<compile_context>
chip_gen: v6e
topology: v6e:2x2x1
jax: 0.10.0
libtpu: 0.0.40
codegen_flags: <defaults>
</compile_context>

<pallas_src>
import functools
import math

import jax
import jax.numpy as jnp
from jax.experimental import pallas as pl
from jax.experimental.pallas import tpu as pltpu

INPUT_DIM = 784  # hard-coded in the PyTorch module (28*28)


# --------------------------------------------------------------------------- kernel
def _meta_vae_kernel(
    didx_ref,                                               # (1,) i32 scalar prefetch
    x_ref, xd_ref, eps_ref,                                 # f32 activations
    w784_ref, ws2_ref, we1s_ref, we2_ref, we3_ref,          # bf16 shared weights
    bs1_ref, bs2_ref, be1_ref, be2_ref, be3_ref,            # f32 shared biases
    wd1_ref, wd2_ref, wd3_ref, bd1_ref, bd2_ref, bd3_ref,   # selected decoder i
    xmu_ref, z_ref, zmu_ref, zlv_ref,                       # outputs
):
    del didx_ref  # only consumed by the decoder index_maps
    f32 = jnp.float32
    bf16 = jnp.bfloat16

    TB, N, _ = xd_ref.shape
    H = we2_ref.shape[0]
    Z = we3_ref.shape[1] // 2

    ws1 = w784_ref[0]       # (784, H) bf16   summary-net fc1
    we1x = w784_ref[1]      # (784, H) bf16   encoder fc1, x part
    bs1 = bs1_ref[...]      # (1, H)

    # ---- summary net: Linear(784->H)+ReLU per sample; because the second Linear is
    # applied to the MEAN over samples (linearity), ws2 runs once on (TB, H).
    # TODO(synk): MeanMLPEncoder is not defined in the provided source; implemented as
    # Linear(784->hidden) -> ReLU -> Linear(hidden->summary_dim) with a mean over the
    # n_samples axis.
    acc = jnp.zeros((TB, H), f32)
    for n in range(N):  # static unroll; N is a small compile-time constant
        xn = xd_ref[:, n, :].astype(bf16)                                   # (TB, 784)
        acc = acc + jnp.maximum(
            jnp.dot(xn, ws1, preferred_element_type=f32) + bs1, 0.0)
    h_mean = acc * (1.0 / N)                                                # (TB, H)
    summary = (jnp.dot(h_mean.astype(bf16), ws2_ref[...],
                       preferred_element_type=f32) + bs2_ref[...])          # (TB, S)

    # ---- encoder on cat([x, summary]); fc1 weight pre-split into x / summary parts
    h1 = (jnp.dot(x_ref[...].astype(bf16), we1x, preferred_element_type=f32)
          + jnp.dot(summary.astype(bf16), we1s_ref[...], preferred_element_type=f32)
          + be1_ref[...])
    h1 = jnp.maximum(h1, 0.0)
    h1 = jnp.maximum(
        jnp.dot(h1.astype(bf16), we2_ref[...], preferred_element_type=f32)
        + be2_ref[...], 0.0)
    mulv = (jnp.dot(h1.astype(bf16), we3_ref[...], preferred_element_type=f32)
            + be3_ref[...])                                                 # (TB, 2Z)
    z_mu = mulv[:, :Z]
    z_lv = mulv[:, Z:]

    # ---- reparameterize: z = eps * exp(0.5*logvar) + mu  (eps supplied by wrapper)
    z = eps_ref[...] * jnp.exp(0.5 * z_lv) + z_mu

    # ---- decoder_nets[i]  (i selected via scalar-prefetch index_maps)
    d = jnp.maximum(
        jnp.dot(z.astype(bf16), wd1_ref[0], preferred_element_type=f32) + bd1_ref[0],
        0.0)
    d = jnp.maximum(
        jnp.dot(d.astype(bf16), wd2_ref[0], preferred_element_type=f32) + bd2_ref[0],
        0.0)
    d = jnp.dot(d.astype(bf16), wd3_ref[0], preferred_element_type=f32) + bd3_ref[0]
    # sigmoid(x) == 0.5*(tanh(0.5*x)+1): one EUP op per element, no divide
    xmu_ref[...] = 0.5 * jnp.tanh(0.5 * d) + 0.5

    z_ref[...] = z
    zmu_ref[...] = z_mu
    zlv_ref[...] = z_lv


# --------------------------------------------------------------------------- params
def _linear_init(key, fan_in, fan_out):
    """Deterministic init; weights stored as (in, out) so the kernel does x @ W + b."""
    kw, kb = jax.random.split(key)
    bound = 1.0 / math.sqrt(fan_in)
    w = jax.random.uniform(kw, (fan_in, fan_out), jnp.float32, -bound, bound)
    b = jax.random.uniform(kb, (1, fan_out), jnp.float32, -bound, bound)
    return w, b


def init_meta_vae_params(key, n_datasets, z_dim, summary_dim, hidden_dim):
    keys = jax.random.split(key, 5 + 3 * n_datasets)
    p = {}
    # summary net (MeanMLPEncoder): 784 -> hidden -> summary_dim
    p["ws1"], p["bs1"] = _linear_init(keys[0], INPUT_DIM, hidden_dim)
    p["ws2"], p["bs2"] = _linear_init(keys[1], hidden_dim, summary_dim)
    # encoder: (784 + summary_dim) -> hidden -> hidden -> 2*z_dim (mu||logvar fused)
    p["we1"], p["be1"] = _linear_init(keys[2], INPUT_DIM + summary_dim, hidden_dim)
    p["we2"], p["be2"] = _linear_init(keys[3], hidden_dim, hidden_dim)
    p["we3"], p["be3"] = _linear_init(keys[4], hidden_dim, 2 * z_dim)
    # decoders: z_dim -> hidden -> hidden -> 784 (one per dataset)
    p["decoders"] = []
    for d in range(n_datasets):
        k1, k2, k3 = keys[5 + 3 * d], keys[6 + 3 * d], keys[7 + 3 * d]
        wd1, bd1 = _linear_init(k1, z_dim, hidden_dim)
        wd2, bd2 = _linear_init(k2, hidden_dim, hidden_dim)
        wd3, bd3 = _linear_init(k3, hidden_dim, INPUT_DIM)
        p["decoders"].append((wd1, bd1, wd2, bd2, wd3, bd3))
    return p


def pack_params_for_kernel(p):
    """One-time host-side packing (call OUTSIDE jit): stack the two 784-dim weights,
    store all weights as bf16 (f32 MXU accumulation in-kernel), stack per-dataset
    decoder tensors, keep biases as separate f32 refs (no unaligned lane slicing)."""
    bf16 = jnp.bfloat16
    return {
        "w784": jnp.stack([p["ws1"], p["we1"][:INPUT_DIM]]).astype(bf16),  # (2,784,H)
        "ws2": p["ws2"].astype(bf16),                                      # (H,S)
        "we1s": p["we1"][INPUT_DIM:].astype(bf16),                         # (S,H)
        "we2": p["we2"].astype(bf16),                                      # (H,H)
        "we3": p["we3"].astype(bf16),                                      # (H,2Z)
        "bs1": p["bs1"], "bs2": p["bs2"],
        "be1": p["be1"], "be2": p["be2"], "be3": p["be3"],
        "wd1_all": jnp.stack([d[0] for d in p["decoders"]]).astype(bf16),  # (D,Z,H)
        "wd2_all": jnp.stack([d[2] for d in p["decoders"]]).astype(bf16),  # (D,H,H)
        "wd3_all": jnp.stack([d[4] for d in p["decoders"]]).astype(bf16),  # (D,H,784)
        "bd1_all": jnp.stack([d[1] for d in p["decoders"]]),               # (D,1,H)
        "bd2_all": jnp.stack([d[3] for d in p["decoders"]]),               # (D,1,H)
        "bd3_all": jnp.stack([d[5] for d in p["decoders"]]),               # (D,1,784)
    }


# --------------------------------------------------------------------------- wrapper
def _vmem_limit_bytes():
    """Per-generation scoped-VMEM limit: v5e/v6e (128 MiB physical) -> 96 MiB;
    v7x (64 MiB physical) -> ~48 MiB with headroom."""
    try:
        cap = int(pltpu.get_tpu_info().vmem_capacity_bytes)
    except Exception:
        cap = 64 * 1024 * 1024  # conservative default (v7x physical)
    if cap >= 100 * 1024 * 1024:
        return 96 * 1024 * 1024
    return max(cap - 16 * 1024 * 1024, 32 * 1024 * 1024)


def _pick_row_tile(B, N, H, S, Z, budget_bytes):
    """Largest batch tile that (a) divides B, (b) is sublane-aligned (or == B),
    (c) fits an explicit VMEM budget.  For large B, prefer >= 2 grid steps so the
    "parallel" batch axis can shard across both v7x TensorCores."""
    cands = [t for t in range(B, 0, -1) if B % t == 0 and (t == B or t % 8 == 0)]

    def est(tb):
        act = 2 * 4 * (tb * N * INPUT_DIM + tb * INPUT_DIM + tb * Z)   # inputs, 2 bufs
        act += 2 * 4 * (tb * INPUT_DIM + 3 * tb * Z)                   # outputs, 2 bufs
        act += 6 * 4 * tb * INPUT_DIM                                  # rough temporaries
        w = 2 * 2 * (2 * INPUT_DIM * H + H * S + S * H + H * H + 2 * H * Z
                     + Z * H + H * H + H * INPUT_DIM)                  # bf16, x2 safety
        w += 2 * 4 * (3 * H + S + 2 * Z + 2 * H + INPUT_DIM)           # f32 biases
        return act + w

    fitting = [t for t in cands if est(t) <= budget_bytes] or [cands[-1]]
    if B >= 16:
        multi = [t for t in fitting if t <= B // 2]
        if multi:
            return multi[0]
    return fitting[0]


def meta_vae_forward(packed, x_img, x_dset_img, didx, eps, *,
                     single_buffer_weights=True):
    """Mirrors MetaVAE.forward(x, x_dset, i).

    x_img:      (B, 1, 28, 28)
    x_dset_img: (B, N, 1, 28, 28)
    didx:       (1,) int32 decoder/dataset index (runtime value, no recompile)
    eps:        (B, z_dim) standard-normal noise (reparameterization)
    Returns (x, x_mu, z, z_mu, z_logvar), same as the PyTorch module.
    """
    B = x_img.shape[0]
    N = x_dset_img.shape[1]
    H = packed["we2"].shape[0]
    S = packed["ws2"].shape[1]
    Z = packed["we3"].shape[1] // 2

    # Free row-major reshapes only -- no pad/cast copies of the big activation streams.
    x = x_img.reshape(B, INPUT_DIM).astype(jnp.float32)      # returned (PyTorch `x`)
    xd = x_dset_img.reshape(B, N, INPUT_DIM).astype(jnp.float32)
    eps = eps.astype(jnp.float32)
    didx = jnp.asarray(didx, jnp.int32).reshape((1,))

    vmem_limit = _vmem_limit_bytes()
    tb = _pick_row_tile(B, N, H, S, Z, int(0.7 * vmem_limit))
    nb = B // tb

    def w_spec(shape):       # grid-invariant shared weight / bias
        nd = len(shape)
        idx = lambda g, d, _nd=nd: (0,) * _nd
        if single_buffer_weights:
            return pl.BlockSpec(shape, idx, pipeline_mode=pl.Buffered(1))
        return pl.BlockSpec(shape, idx)

    def dec_spec(shape):     # leading axis selected by the prefetched dataset index
        nd = len(shape)
        idx = lambda g, d, _nd=nd: (d[0],) + (0,) * (_nd - 1)
        if single_buffer_weights:
            return pl.BlockSpec(shape, idx, pipeline_mode=pl.Buffered(1))
        return pl.BlockSpec(shape, idx)

    tensor_inputs = (
        x, xd, eps,
        packed["w784"], packed["ws2"], packed["we1s"], packed["we2"], packed["we3"],
        packed["bs1"], packed["bs2"], packed["be1"], packed["be2"], packed["be3"],
        packed["wd1_all"], packed["wd2_all"], packed["wd3_all"],
        packed["bd1_all"], packed["bd2_all"], packed["bd3_all"],
    )

    in_specs = [
        pl.BlockSpec((tb, INPUT_DIM), lambda g, d: (g, 0)),           # x
        pl.BlockSpec((tb, N, INPUT_DIM), lambda g, d: (g, 0, 0)),     # x_dset
        pl.BlockSpec((tb, Z), lambda g, d: (g, 0)),                   # eps
        w_spec((2, INPUT_DIM, H)),                                    # ws1 || we1x
        w_spec((H, S)),                                               # ws2
        w_spec((S, H)),                                               # we1 (summary part)
        w_spec((H, H)),                                               # we2
        w_spec((H, 2 * Z)),                                           # we3 (mu||logvar)
        w_spec((1, H)), w_spec((1, S)),                               # bs1, bs2
        w_spec((1, H)), w_spec((1, H)), w_spec((1, 2 * Z)),           # be1, be2, be3
        dec_spec((1, Z, H)), dec_spec((1, H, H)), dec_spec((1, H, INPUT_DIM)),
        dec_spec((1, 1, H)), dec_spec((1, 1, H)), dec_spec((1, 1, INPUT_DIM)),
    ]
    out_specs = [
        pl.BlockSpec((tb, INPUT_DIM), lambda g, d: (g, 0)),           # x_mu (784, no pad)
        pl.BlockSpec((tb, Z), lambda g, d: (g, 0)),                   # z
        pl.BlockSpec((tb, Z), lambda g, d: (g, 0)),                   # z_mu
        pl.BlockSpec((tb, Z), lambda g, d: (g, 0)),                   # z_logvar
    ]
    out_shape = (
        jax.ShapeDtypeStruct((B, INPUT_DIM), jnp.float32),
        jax.ShapeDtypeStruct((B, Z), jnp.float32),
        jax.ShapeDtypeStruct((B, Z), jnp.float32),
        jax.ShapeDtypeStruct((B, Z), jnp.float32),
    )

    # Advisory cost: only the selected decoder slice, true 784-wide streams.
    flops = 2 * B * (N * INPUT_DIM * H + H * S
                     + INPUT_DIM * H + S * H + H * H + 2 * H * Z
                     + Z * H + H * H + H * INPUT_DIM)
    transcendentals = B * (Z + INPUT_DIM)
    weight_bytes = (2 * (2 * INPUT_DIM * H + H * S + S * H + H * H + 2 * H * Z
                         + Z * H + H * H + H * INPUT_DIM)              # bf16 weights
                    + 4 * (3 * H + S + 2 * Z + 2 * H + INPUT_DIM))     # f32 biases
    bytes_accessed = (4 * (x.size + xd.size + eps.size)
                      + 4 * (B * INPUT_DIM + 3 * B * Z)
                      + weight_bytes)

    x_mu, z, z_mu, z_logvar = pl.pallas_call(
        _meta_vae_kernel,
        out_shape=out_shape,
        grid_spec=pltpu.PrefetchScalarGridSpec(
            num_scalar_prefetch=1,
            grid=(nb,),
            in_specs=in_specs,
            out_specs=out_specs,
        ),
        compiler_params=pltpu.CompilerParams(
            dimension_semantics=("parallel",),
            vmem_limit_bytes=vmem_limit,
        ),
        cost_estimate=pl.CostEstimate(
            flops=flops, transcendentals=transcendentals,
            bytes_accessed=bytes_accessed),
    )(didx, *tensor_inputs)

    return x, x_mu, z, z_mu, z_logvar


# --------------------------------------------------------------------------- reference
def _reference_forward(packed, x_img, x_dset_img, i, eps):
    """Pure-JAX reference replicating the kernel's bf16 rounding of weights/activations."""
    f32 = jnp.float32

    def rnd(a):  # bf16 round-trip, matching the in-kernel casts
        return a.astype(jnp.bfloat16).astype(f32)

    dot = functools.partial(jnp.dot, precision=jax.lax.Precision.HIGHEST,
                            preferred_element_type=f32)
    B = x_img.shape[0]
    N = x_dset_img.shape[1]
    Z = packed["we3"].shape[1] // 2

    x = x_img.reshape(B, INPUT_DIM).astype(f32)
    xd = x_dset_img.reshape(B, N, INPUT_DIM).astype(f32)

    ws1 = packed["w784"][0].astype(f32)
    we1x = packed["w784"][1].astype(f32)

    h = jax.nn.relu(jnp.einsum("bnf,fh->bnh", rnd(xd), ws1,
                               precision=jax.lax.Precision.HIGHEST) + packed["bs1"])
    h_mean = jnp.mean(h, axis=1)
    summary = dot(rnd(h_mean), packed["ws2"].astype(f32)) + packed["bs2"]

    h1 = jax.nn.relu(dot(rnd(x), we1x)
                     + dot(rnd(summary), packed["we1s"].astype(f32)) + packed["be1"])
    h1 = jax.nn.relu(dot(rnd(h1), packed["we2"].astype(f32)) + packed["be2"])
    mulv = dot(rnd(h1), packed["we3"].astype(f32)) + packed["be3"]
    z_mu, z_lv = mulv[:, :Z], mulv[:, Z:]
    z = eps.astype(f32) * jnp.exp(0.5 * z_lv) + z_mu

    d = jax.nn.relu(dot(rnd(z), packed["wd1_all"][i].astype(f32)) + packed["bd1_all"][i])
    d = jax.nn.relu(dot(rnd(d), packed["wd2_all"][i].astype(f32)) + packed["bd2_all"][i])
    d = dot(rnd(d), packed["wd3_all"][i].astype(f32)) + packed["bd3_all"][i]
    x_mu = jax.nn.sigmoid(d)
    return x, x_mu, z, z_mu, z_lv


# --------------------------------------------------------------------------- main
if __name__ == "__main__":
    key = jax.random.PRNGKey(0)
    k_param, k_x, k_xd, k_eps = jax.random.split(key, 4)

    # small, module-consistent sizes (input_dim is fixed to 784 by the module)
    batch = 2
    n_samples = 8
    z_dim = 8
    summary_dim = 32
    hidden_dim = 32
    n_datasets = 2
    dataset_i = 1

    params = init_meta_vae_params(k_param, n_datasets, z_dim, summary_dim, hidden_dim)
    packed = pack_params_for_kernel(params)

    x_img = jax.random.uniform(k_x, (batch, 1, 28, 28), jnp.float32)
    x_dset_img = jax.random.uniform(k_xd, (batch, n_samples, 1, 28, 28), jnp.float32)
    eps = jax.random.normal(k_eps, (batch, z_dim), jnp.float32)
    didx = jnp.array([dataset_i], jnp.int32)     # runtime decoder index, no recompile

    fwd = jax.jit(functools.partial(meta_vae_forward, packed))
    try:
        outs = jax.block_until_ready(fwd(x_img, x_dset_img, didx, eps))
    except Exception:
        # Fallback for JAX versions that reject single-buffering via pl.Buffered(1).
        fwd = jax.jit(functools.partial(meta_vae_forward, packed,
                                        single_buffer_weights=False))
        outs = jax.block_until_ready(fwd(x_img, x_dset_img, didx, eps))
    x_flat, x_mu, z, z_mu, z_logvar = outs

    assert x_flat.shape == (batch, INPUT_DIM)
    assert x_mu.shape == (batch, INPUT_DIM)
    assert z.shape == (batch, z_dim)
    assert z_mu.shape == (batch, z_dim)
    assert z_logvar.shape == (batch, z_dim)
    assert bool(jnp.all(jnp.isfinite(x_mu)))
    assert bool(jnp.all((x_mu >= 0.0) & (x_mu <= 1.0)))   # sigmoid output range

    # numerical check against a pure-JAX reference using the same packed params
    _, r_xmu, r_z, r_zmu, r_zlv = _reference_forward(packed, x_img, x_dset_img,
                                                     dataset_i, eps)
    for got, want in ((x_mu, r_xmu), (z, r_z), (z_mu, r_zmu), (z_logvar, r_zlv)):
        assert bool(jnp.allclose(got, want, rtol=1e-2, atol=1e-2))

    print("KERNEL_OK")
</pallas_src>

<mosaic_0001>
module attributes {stable_mosaic.version = 11 : i64} {
  func.func @_meta_vae_kernel(%arg0: i32, %arg1: memref<1xi32, #tpu.memory_space<smem>>, %arg2: memref<2x784xf32, #tpu.memory_space<vmem>>, %arg3: memref<2x8x784xf32, #tpu.memory_space<vmem>>, %arg4: memref<2x8xf32, #tpu.memory_space<vmem>>, %arg5: memref<2x784x32xbf16, #tpu.memory_space<vmem>>, %arg6: memref<32x32xbf16, #tpu.memory_space<vmem>>, %arg7: memref<32x32xbf16, #tpu.memory_space<vmem>>, %arg8: memref<32x32xbf16, #tpu.memory_space<vmem>>, %arg9: memref<32x16xbf16, #tpu.memory_space<vmem>>, %arg10: memref<1x32xf32, #tpu.memory_space<vmem>>, %arg11: memref<1x32xf32, #tpu.memory_space<vmem>>, %arg12: memref<1x32xf32, #tpu.memory_space<vmem>>, %arg13: memref<1x32xf32, #tpu.memory_space<vmem>>, %arg14: memref<1x16xf32, #tpu.memory_space<vmem>>, %arg15: memref<1x8x32xbf16, #tpu.memory_space<vmem>>, %arg16: memref<1x32x32xbf16, #tpu.memory_space<vmem>>, %arg17: memref<1x32x784xbf16, #tpu.memory_space<vmem>>, %arg18: memref<1x1x32xf32, #tpu.memory_space<vmem>>, %arg19: memref<1x1x32xf32, #tpu.memory_space<vmem>>, %arg20: memref<1x1x784xf32, #tpu.memory_space<vmem>>, %arg21: memref<2x784xf32, #tpu.memory_space<vmem>>, %arg22: memref<2x8xf32, #tpu.memory_space<vmem>>, %arg23: memref<2x8xf32, #tpu.memory_space<vmem>>, %arg24: memref<2x8xf32, #tpu.memory_space<vmem>>) attributes {dimension_semantics = [#tpu.dimension_semantics<parallel>], iteration_bounds = array<i64: 1>, scalar_prefetch = 1 : i64, scratch_operands = 0 : i64, tpu.core_type = #tpu.core_type<tc>, window_params = [{transform_indices = @transform_0, window_bounds = array<i64: 2, 784>}, {transform_indices = @transform_1, window_bounds = array<i64: 2, 8, 784>}, {transform_indices = @transform_2, window_bounds = array<i64: 2, 8>}, {pipeline_mode = #tpu.pipeline_mode<synchronous>, transform_indices = @transform_3, window_bounds = array<i64: 2, 784, 32>}, {pipeline_mode = #tpu.pipeline_mode<synchronous>, transform_indices = @transform_4, window_bounds = array<i64: 32, 32>}, {pipeline_mode = #tpu.pipeline_mode<synchronous>, transform_indices = @transform_5, window_bounds = array<i64: 32, 32>}, {pipeline_mode = #tpu.pipeline_mode<synchronous>, transform_indices = @transform_6, window_bounds = array<i64: 32, 32>}, {pipeline_mode = #tpu.pipeline_mode<synchronous>, transform_indices = @transform_7, window_bounds = array<i64: 32, 16>}, {pipeline_mode = #tpu.pipeline_mode<synchronous>, transform_indices = @transform_8, window_bounds = array<i64: 1, 32>}, {pipeline_mode = #tpu.pipeline_mode<synchronous>, transform_indices = @transform_9, window_bounds = array<i64: 1, 32>}, {pipeline_mode = #tpu.pipeline_mode<synchronous>, transform_indices = @transform_10, window_bounds = array<i64: 1, 32>}, {pipeline_mode = #tpu.pipeline_mode<synchronous>, transform_indices = @transform_11, window_bounds = array<i64: 1, 32>}, {pipeline_mode = #tpu.pipeline_mode<synchronous>, transform_indices = @transform_12, window_bounds = array<i64: 1, 16>}, {pipeline_mode = #tpu.pipeline_mode<synchronous>, transform_indices = @transform_13, window_bounds = array<i64: 1, 8, 32>}, {pipeline_mode = #tpu.pipeline_mode<synchronous>, transform_indices = @transform_14, window_bounds = array<i64: 1, 32, 32>}, {pipeline_mode = #tpu.pipeline_mode<synchronous>, transform_indices = @transform_15, window_bounds = array<i64: 1, 32, 784>}, {pipeline_mode = #tpu.pipeline_mode<synchronous>, transform_indices = @transform_16, window_bounds = array<i64: 1, 1, 32>}, {pipeline_mode = #tpu.pipeline_mode<synchronous>, transform_indices = @transform_17, window_bounds = array<i64: 1, 1, 32>}, {pipeline_mode = #tpu.pipeline_mode<synchronous>, transform_indices = @transform_18, window_bounds = array<i64: 1, 1, 784>}, {transform_indices = @transform_19, window_bounds = array<i64: 2, 784>}, {transform_indices = @transform_20, window_bounds = array<i64: 2, 8>}, {transform_indices = @transform_21, window_bounds = array<i64: 2, 8>}, {transform_indices = @transform_22, window_bounds = array<i64: 2, 8>}]} {
    %c0 = arith.constant 0 : index
    %c0_0 = arith.constant 0 : index
    %c0_1 = arith.constant 0 : index
    %0 = vector.load %arg5[%c0, %c0_0, %c0_1] : memref<2x784x32xbf16, #tpu.memory_space<vmem>>, vector<1x784x32xbf16>
    %1 = vector.shape_cast %0 : vector<1x784x32xbf16> to vector<784x32xbf16>
    %c1 = arith.constant 1 : index
    %c0_2 = arith.constant 0 : index
    %c0_3 = arith.constant 0 : index
    %2 = vector.load %arg5[%c1, %c0_2, %c0_3] : memref<2x784x32xbf16, #tpu.memory_space<vmem>>, vector<1x784x32xbf16>
    %3 = vector.shape_cast %2 : vector<1x784x32xbf16> to vector<784x32xbf16>
    %c0_4 = arith.constant 0 : index
    %c0_5 = arith.constant 0 : index
    %4 = vector.load %arg10[%c0_4, %c0_5] : memref<1x32xf32, #tpu.memory_space<vmem>>, vector<1x32xf32>
    %cst = arith.constant 0.000000e+00 : f32
    %5 = vector.broadcast %cst : f32 to vector<2x32xf32>
    %c0_6 = arith.constant 0 : index
    %c0_7 = arith.constant 0 : index
    %c0_8 = arith.constant 0 : index
    %6 = vector.load %arg3[%c0_6, %c0_7, %c0_8] : memref<2x8x784xf32, #tpu.memory_space<vmem>>, vector<2x1x784xf32>
    %7 = vector.shape_cast %6 : vector<2x1x784xf32> to vector<2x784xf32>
    %8 = arith.truncf %7 : vector<2x784xf32> to vector<2x784xbf16>
    %cst_9 = arith.constant dense<0.000000e+00> : vector<2x32xf32>
    %9 = tpu.matmul %8, %1, %cst_9 {dimension_numbers = #tpu.dot_dimension_numbers<[1], [0], [0], [1], [0, 0, 1, 1], [], []>} : vector<2x784xbf16>, vector<784x32xbf16>, vector<2x32xf32> -> vector<2x32xf32>
    %10 = vector.broadcast %4 : vector<1x32xf32> to vector<2x32xf32>
    %11 = arith.addf %9, %10 : vector<2x32xf32>
    %cst_10 = arith.constant 0.000000e+00 : f32
    %12 = vector.broadcast %cst_10 : f32 to vector<2x32xf32>
    %13 = arith.maximumf %11, %12 : vector<2x32xf32>
    %14 = arith.addf %5, %13 : vector<2x32xf32>
    %c0_11 = arith.constant 0 : index
    %c1_12 = arith.constant 1 : index
    %c0_13 = arith.constant 0 : index
    %15 = vector.load %arg3[%c0_11, %c1_12, %c0_13] : memref<2x8x784xf32, #tpu.memory_space<vmem>>, vector<2x1x784xf32>
    %16 = vector.shape_cast %15 : vector<2x1x784xf32> to vector<2x784xf32>
    %17 = arith.truncf %16 : vector<2x784xf32> to vector<2x784xbf16>
    %cst_14 = arith.constant dense<0.000000e+00> : vector<2x32xf32>
    %18 = tpu.matmul %17, %1, %cst_14 {dimension_numbers = #tpu.dot_dimension_numbers<[1], [0], [0], [1], [0, 0, 1, 1], [], []>} : vector<2x784xbf16>, vector<784x32xbf16>, vector<2x32xf32> -> vector<2x32xf32>
    %19 = vector.broadcast %4 : vector<1x32xf32> to vector<2x32xf32>
    %20 = arith.addf %18, %19 : vector<2x32xf32>
    %cst_15 = arith.constant 0.000000e+00 : f32
    %21 = vector.broadcast %cst_15 : f32 to vector<2x32xf32>
    %22 = arith.maximumf %20, %21 : vector<2x32xf32>
    %23 = arith.addf %14, %22 : vector<2x32xf32>
    %c0_16 = arith.constant 0 : index
    %c2 = arith.constant 2 : index
    %c0_17 = arith.constant 0 : index
    %24 = vector.load %arg3[%c0_16, %c2, %c0_17] : memref<2x8x784xf32, #tpu.memory_space<vmem>>, vector<2x1x784xf32>
    %25 = vector.shape_cast %24 : vector<2x1x784xf32> to vector<2x784xf32>
    %26 = arith.truncf %25 : vector<2x784xf32> to vector<2x784xbf16>
    %cst_18 = arith.constant dense<0.000000e+00> : vector<2x32xf32>
    %27 = tpu.matmul %26, %1, %cst_18 {dimension_numbers = #tpu.dot_dimension_numbers<[1], [0], [0], [1], [0, 0, 1, 1], [], []>} : vector<2x784xbf16>, vector<784x32xbf16>, vector<2x32xf32> -> vector<2x32xf32>
    %28 = vector.broadcast %4 : vector<1x32xf32> to vector<2x32xf32>
    %29 = arith.addf %27, %28 : vector<2x32xf32>
    %cst_19 = arith.constant 0.000000e+00 : f32
    %30 = vector.broadcast %cst_19 : f32 to vector<2x32xf32>
    %31 = arith.maximumf %29, %30 : vector<2x32xf32>
    %32 = arith.addf %23, %31 : vector<2x32xf32>
    %c0_20 = arith.constant 0 : index
    %c3 = arith.constant 3 : index
    %c0_21 = arith.constant 0 : index
    %33 = vector.load %arg3[%c0_20, %c3, %c0_21] : memref<2x8x784xf32, #tpu.memory_space<vmem>>, vector<2x1x784xf32>
    %34 = vector.shape_cast %33 : vector<2x1x784xf32> to vector<2x784xf32>
    %35 = arith.truncf %34 : vector<2x784xf32> to vector<2x784xbf16>
    %cst_22 = arith.constant dense<0.000000e+00> : vector<2x32xf32>
    %36 = tpu.matmul %35, %1, %cst_22 {dimension_numbers = #tpu.dot_dimension_numbers<[1], [0], [0], [1], [0, 0, 1, 1], [], []>} : vector<2x784xbf16>, vector<784x32xbf16>, vector<2x32xf32> -> vector<2x32xf32>
    %37 = vector.broadcast %4 : vector<1x32xf32> to vector<2x32xf32>
    %38 = arith.addf %36, %37 : vector<2x32xf32>
    %cst_23 = arith.constant 0.000000e+00 : f32
    %39 = vector.broadcast %cst_23 : f32 to vector<2x32xf32>
    %40 = arith.maximumf %38, %39 : vector<2x32xf32>
    %41 = arith.addf %32, %40 : vector<2x32xf32>
    %c0_24 = arith.constant 0 : index
    %c4 = arith.constant 4 : index
    %c0_25 = arith.constant 0 : index
    %42 = vector.load %arg3[%c0_24, %c4, %c0_25] : memref<2x8x784xf32, #tpu.memory_space<vmem>>, vector<2x1x784xf32>
    %43 = vector.shape_cast %42 : vector<2x1x784xf32> to vector<2x784xf32>
    %44 = arith.truncf %43 : vector<2x784xf32> to vector<2x784xbf16>
    %cst_26 = arith.constant dense<0.000000e+00> : vector<2x32xf32>
    %45 = tpu.matmul %44, %1, %cst_26 {dimension_numbers = #tpu.dot_dimension_numbers<[1], [0], [0], [1], [0, 0, 1, 1], [], []>} : vector<2x784xbf16>, vector<784x32xbf16>, vector<2x32xf32> -> vector<2x32xf32>
    %46 = vector.broadcast %4 : vector<1x32xf32> to vector<2x32xf32>
    %47 = arith.addf %45, %46 : vector<2x32xf32>
    %cst_27 = arith.constant 0.000000e+00 : f32
    %48 = vector.broadcast %cst_27 : f32 to vector<2x32xf32>
    %49 = arith.maximumf %47, %48 : vector<2x32xf32>
    %50 = arith.addf %41, %49 : vector<2x32xf32>
    %c0_28 = arith.constant 0 : index
    %c5 = arith.constant 5 : index
    %c0_29 = arith.constant 0 : index
    %51 = vector.load %arg3[%c0_28, %c5, %c0_29] : memref<2x8x784xf32, #tpu.memory_space<vmem>>, vector<2x1x784xf32>
    %52 = vector.shape_cast %51 : vector<2x1x784xf32> to vector<2x784xf32>
    %53 = arith.truncf %52 : vector<2x784xf32> to vector<2x784xbf16>
    %cst_30 = arith.constant dense<0.000000e+00> : vector<2x32xf32>
    %54 = tpu.matmul %53, %1, %cst_30 {dimension_numbers = #tpu.dot_dimension_numbers<[1], [0], [0], [1], [0, 0, 1, 1], [], []>} : vector<2x784xbf16>, vector<784x32xbf16>, vector<2x32xf32> -> vector<2x32xf32>
    %55 = vector.broadcast %4 : vector<1x32xf32> to vector<2x32xf32>
    %56 = arith.addf %54, %55 : vector<2x32xf32>
    %cst_31 = arith.constant 0.000000e+00 : f32
    %57 = vector.broadcast %cst_31 : f32 to vector<2x32xf32>
    %58 = arith.maximumf %56, %57 : vector<2x32xf32>
    %59 = arith.addf %50, %58 : vector<2x32xf32>
    %c0_32 = arith.constant 0 : index
    %c6 = arith.constant 6 : index
    %c0_33 = arith.constant 0 : index
    %60 = vector.load %arg3[%c0_32, %c6, %c0_33] : memref<2x8x784xf32, #tpu.memory_space<vmem>>, vector<2x1x784xf32>
    %61 = vector.shape_cast %60 : vector<2x1x784xf32> to vector<2x784xf32>
    %62 = arith.truncf %61 : vector<2x784xf32> to vector<2x784xbf16>
    %cst_34 = arith.constant dense<0.000000e+00> : vector<2x32xf32>
    %63 = tpu.matmul %62, %1, %cst_34 {dimension_numbers = #tpu.dot_dimension_numbers<[1], [0], [0], [1], [0, 0, 1, 1], [], []>} : vector<2x784xbf16>, vector<784x32xbf16>, vector<2x32xf32> -> vector<2x32xf32>
    %64 = vector.broadcast %4 : vector<1x32xf32> to vector<2x32xf32>
    %65 = arith.addf %63, %64 : vector<2x32xf32>
    %cst_35 = arith.constant 0.000000e+00 : f32
    %66 = vector.broadcast %cst_35 : f32 to vector<2x32xf32>
    %67 = arith.maximumf %65, %66 : vector<2x32xf32>
    %68 = arith.addf %59, %67 : vector<2x32xf32>
    %c0_36 = arith.constant 0 : index
    %c7 = arith.constant 7 : index
    %c0_37 = arith.constant 0 : index
    %69 = vector.load %arg3[%c0_36, %c7, %c0_37] : memref<2x8x784xf32, #tpu.memory_space<vmem>>, vector<2x1x784xf32>
    %70 = vector.shape_cast %69 : vector<2x1x784xf32> to vector<2x784xf32>
    %71 = arith.truncf %70 : vector<2x784xf32> to vector<2x784xbf16>
    %cst_38 = arith.constant dense<0.000000e+00> : vector<2x32xf32>
    %72 = tpu.matmul %71, %1, %cst_38 {dimension_numbers = #tpu.dot_dimension_numbers<[1], [0], [0], [1], [0, 0, 1, 1], [], []>} : vector<2x784xbf16>, vector<784x32xbf16>, vector<2x32xf32> -> vector<2x32xf32>
    %73 = vector.broadcast %4 : vector<1x32xf32> to vector<2x32xf32>
    %74 = arith.addf %72, %73 : vector<2x32xf32>
    %cst_39 = arith.constant 0.000000e+00 : f32
    %75 = vector.broadcast %cst_39 : f32 to vector<2x32xf32>
    %76 = arith.maximumf %74, %75 : vector<2x32xf32>
    %77 = arith.addf %68, %76 : vector<2x32xf32>
    %cst_40 = arith.constant 1.250000e-01 : f32
    %78 = vector.broadcast %cst_40 : f32 to vector<2x32xf32>
    %79 = arith.mulf %77, %78 : vector<2x32xf32>
    %80 = arith.truncf %79 : vector<2x32xf32> to vector<2x32xbf16>
    %c0_41 = arith.constant 0 : index
    %c0_42 = arith.constant 0 : index
    %81 = vector.load %arg6[%c0_41, %c0_42] : memref<32x32xbf16, #tpu.memory_space<vmem>>, vector<32x32xbf16>
    %cst_43 = arith.constant dense<0.000000e+00> : vector<2x32xf32>
    %82 = tpu.matmul %80, %81, %cst_43 {dimension_numbers = #tpu.dot_dimension_numbers<[1], [0], [0], [1], [0, 0, 1, 1], [], []>} : vector<2x32xbf16>, vector<32x32xbf16>, vector<2x32xf32> -> vector<2x32xf32>
    %c0_44 = arith.constant 0 : index
    %c0_45 = arith.constant 0 : index
    %83 = vector.load %arg11[%c0_44, %c0_45] : memref<1x32xf32, #tpu.memory_space<vmem>>, vector<1x32xf32>
    %84 = vector.broadcast %83 : vector<1x32xf32> to vector<2x32xf32>
    %85 = arith.addf %82, %84 : vector<2x32xf32>
    %c0_46 = arith.constant 0 : index
    %c0_47 = arith.constant 0 : index
    %86 = vector.load %arg2[%c0_46, %c0_47] : memref<2x784xf32, #tpu.memory_space<vmem>>, vector<2x784xf32>
    %87 = arith.truncf %86 : vector<2x784xf32> to vector<2x784xbf16>
    %cst_48 = arith.constant dense<0.000000e+00> : vector<2x32xf32>
    %88 = tpu.matmul %87, %3, %cst_48 {dimension_numbers = #tpu.dot_dimension_numbers<[1], [0], [0], [1], [0, 0, 1, 1], [], []>} : vector<2x784xbf16>, vector<784x32xbf16>, vector<2x32xf32> -> vector<2x32xf32>
    %89 = arith.truncf %85 : vector<2x32xf32> to vector<2x32xbf16>
    %c0_49 = arith.constant 0 : index
    %c0_50 = arith.constant 0 : index
    %90 = vector.load %arg7[%c0_49, %c0_50] : memref<32x32xbf16, #tpu.memory_space<vmem>>, vector<32x32xbf16>
    %cst_51 = arith.constant dense<0.000000e+00> : vector<2x32xf32>
    %91 = tpu.matmul %89, %90, %cst_51 {dimension_numbers = #tpu.dot_dimension_numbers<[1], [0], [0], [1], [0, 0, 1, 1], [], []>} : vector<2x32xbf16>, vector<32x32xbf16>, vector<2x32xf32> -> vector<2x32xf32>
    %92 = arith.addf %88, %91 : vector<2x32xf32>
    %c0_52 = arith.constant 0 : index
    %c0_53 = arith.constant 0 : index
    %93 = vector.load %arg12[%c0_52, %c0_53] : memref<1x32xf32, #tpu.memory_space<vmem>>, vector<1x32xf32>
    %94 = vector.broadcast %93 : vector<1x32xf32> to vector<2x32xf32>
    %95 = arith.addf %92, %94 : vector<2x32xf32>
    %cst_54 = arith.constant 0.000000e+00 : f32
    %96 = vector.broadcast %cst_54 : f32 to vector<2x32xf32>
    %97 = arith.maximumf %95, %96 : vector<2x32xf32>
    %98 = arith.truncf %97 : vector<2x32xf32> to vector<2x32xbf16>
    %c0_55 = arith.constant 0 : index
    %c0_56 = arith.constant 0 : index
    %99 = vector.load %arg8[%c0_55, %c0_56] : memref<32x32xbf16, #tpu.memory_space<vmem>>, vector<32x32xbf16>
    %cst_57 = arith.constant dense<0.000000e+00> : vector<2x32xf32>
    %100 = tpu.matmul %98, %99, %cst_57 {dimension_numbers = #tpu.dot_dimension_numbers<[1], [0], [0], [1], [0, 0, 1, 1], [], []>} : vector<2x32xbf16>, vector<32x32xbf16>, vector<2x32xf32> -> vector<2x32xf32>
    %c0_58 = arith.constant 0 : index
    %c0_59 = arith.constant 0 : index
    %101 = vector.load %arg13[%c0_58, %c0_59] : memref<1x32xf32, #tpu.memory_space<vmem>>, vector<1x32xf32>
    %102 = vector.broadcast %101 : vector<1x32xf32> to vector<2x32xf32>
    %103 = arith.addf %100, %102 : vector<2x32xf32>
    %cst_60 = arith.constant 0.000000e+00 : f32
    %104 = vector.broadcast %cst_60 : f32 to vector<2x32xf32>
    %105 = arith.maximumf %103, %104 : vector<2x32xf32>
    %106 = arith.truncf %105 : vector<2x32xf32> to vector<2x32xbf16>
    %c0_61 = arith.constant 0 : index
    %c0_62 = arith.constant 0 : index
    %107 = vector.load %arg9[%c0_61, %c0_62] : memref<32x16xbf16, #tpu.memory_space<vmem>>, vector<32x16xbf16>
    %cst_63 = arith.constant dense<0.000000e+00> : vector<2x16xf32>
    %108 = tpu.matmul %106, %107, %cst_63 {dimension_numbers = #tpu.dot_dimension_numbers<[1], [0], [0], [1], [0, 0, 1, 1], [], []>} : vector<2x32xbf16>, vector<32x16xbf16>, vector<2x16xf32> -> vector<2x16xf32>
    %c0_64 = arith.constant 0 : index
    %c0_65 = arith.constant 0 : index
    %109 = vector.load %arg14[%c0_64, %c0_65] : memref<1x16xf32, #tpu.memory_space<vmem>>, vector<1x16xf32>
    %110 = vector.broadcast %109 : vector<1x16xf32> to vector<2x16xf32>
    %111 = arith.addf %108, %110 : vector<2x16xf32>
    %112 = vector.extract_strided_slice %111 {offsets = [0, 0], sizes = [2, 8], strides = [1, 1]} : vector<2x16xf32> to vector<2x8xf32>
    %113 = vector.extract_strided_slice %111 {offsets = [0, 8], sizes = [2, 8], strides = [1, 1]} : vector<2x16xf32> to vector<2x8xf32>
    %c0_66 = arith.constant 0 : index
    %c0_67 = arith.constant 0 : index
    %114 = vector.load %arg4[%c0_66, %c0_67] : memref<2x8xf32, #tpu.memory_space<vmem>>, vector<2x8xf32>
    %cst_68 = arith.constant 5.000000e-01 : f32
    %115 = vector.broadcast %cst_68 : f32 to vector<2x8xf32>
    %116 = arith.mulf %115, %113 : vector<2x8xf32>
    %117 = math.exp %116 : vector<2x8xf32>
    %118 = arith.mulf %114, %117 : vector<2x8xf32>
    %119 = arith.addf %118, %112 : vector<2x8xf32>
    %120 = arith.truncf %119 : vector<2x8xf32> to vector<2x8xbf16>
    %c0_69 = arith.constant 0 : index
    %c0_70 = arith.constant 0 : index
    %c0_71 = arith.constant 0 : index
    %121 = vector.load %arg15[%c0_69, %c0_70, %c0_71] : memref<1x8x32xbf16, #tpu.memory_space<vmem>>, vector<1x8x32xbf16>
    %122 = vector.shape_cast %121 : vector<1x8x32xbf16> to vector<8x32xbf16>
    %cst_72 = arith.constant dense<0.000000e+00> : vector<2x32xf32>
    %123 = tpu.matmul %120, %122, %cst_72 {dimension_numbers = #tpu.dot_dimension_numbers<[1], [0], [0], [1], [0, 0, 1, 1], [], []>} : vector<2x8xbf16>, vector<8x32xbf16>, vector<2x32xf32> -> vector<2x32xf32>
    %c0_73 = arith.constant 0 : index
    %c0_74 = arith.constant 0 : index
    %c0_75 = arith.constant 0 : index
    %124 = vector.load %arg18[%c0_73, %c0_74, %c0_75] : memref<1x1x32xf32, #tpu.memory_space<vmem>>, vector<1x1x32xf32>
    %125 = vector.shape_cast %124 : vector<1x1x32xf32> to vector<1x32xf32>
    %126 = vector.broadcast %125 : vector<1x32xf32> to vector<2x32xf32>
    %127 = arith.addf %123, %126 : vector<2x32xf32>
    %cst_76 = arith.constant 0.000000e+00 : f32
    %128 = vector.broadcast %cst_76 : f32 to vector<2x32xf32>
    %129 = arith.maximumf %127, %128 : vector<2x32xf32>
    %130 = arith.truncf %129 : vector<2x32xf32> to vector<2x32xbf16>
    %c0_77 = arith.constant 0 : index
    %c0_78 = arith.constant 0 : index
    %c0_79 = arith.constant 0 : index
    %131 = vector.load %arg16[%c0_77, %c0_78, %c0_79] : memref<1x32x32xbf16, #tpu.memory_space<vmem>>, vector<1x32x32xbf16>
    %132 = vector.shape_cast %131 : vector<1x32x32xbf16> to vector<32x32xbf16>
    %cst_80 = arith.constant dense<0.000000e+00> : vector<2x32xf32>
    %133 = tpu.matmul %130, %132, %cst_80 {dimension_numbers = #tpu.dot_dimension_numbers<[1], [0], [0], [1], [0, 0, 1, 1], [], []>} : vector<2x32xbf16>, vector<32x32xbf16>, vector<2x32xf32> -> vector<2x32xf32>
    %c0_81 = arith.constant 0 : index
    %c0_82 = arith.constant 0 : index
    %c0_83 = arith.constant 0 : index
    %134 = vector.load %arg19[%c0_81, %c0_82, %c0_83] : memref<1x1x32xf32, #tpu.memory_space<vmem>>, vector<1x1x32xf32>
    %135 = vector.shape_cast %134 : vector<1x1x32xf32> to vector<1x32xf32>
    %136 = vector.broadcast %135 : vector<1x32xf32> to vector<2x32xf32>
    %137 = arith.addf %133, %136 : vector<2x32xf32>
    %cst_84 = arith.constant 0.000000e+00 : f32
    %138 = vector.broadcast %cst_84 : f32 to vector<2x32xf32>
    %139 = arith.maximumf %137, %138 : vector<2x32xf32>
    %140 = arith.truncf %139 : vector<2x32xf32> to vector<2x32xbf16>
    %c0_85 = arith.constant 0 : index
    %c0_86 = arith.constant 0 : index
    %c0_87 = arith.constant 0 : index
    %141 = vector.load %arg17[%c0_85, %c0_86, %c0_87] : memref<1x32x784xbf16, #tpu.memory_space<vmem>>, vector<1x32x784xbf16>
    %142 = vector.shape_cast %141 : vector<1x32x784xbf16> to vector<32x784xbf16>
    %cst_88 = arith.constant dense<0.000000e+00> : vector<2x784xf32>
    %143 = tpu.matmul %140, %142, %cst_88 {dimension_numbers = #tpu.dot_dimension_numbers<[1], [0], [0], [1], [0, 0, 1, 1], [], []>} : vector<2x32xbf16>, vector<32x784xbf16>, vector<2x784xf32> -> vector<2x784xf32>
    %c0_89 = arith.constant 0 : index
    %c0_90 = arith.constant 0 : index
    %c0_91 = arith.constant 0 : index
    %144 = vector.load %arg20[%c0_89, %c0_90, %c0_91] : memref<1x1x784xf32, #tpu.memory_space<vmem>>, vector<1x1x784xf32>
    %145 = vector.shape_cast %144 : vector<1x1x784xf32> to vector<1x784xf32>
    %146 = vector.broadcast %145 : vector<1x784xf32> to vector<2x784xf32>
    %147 = arith.addf %143, %146 : vector<2x784xf32>
    %cst_92 = arith.constant 5.000000e-01 : f32
    %148 = vector.broadcast %cst_92 : f32 to vector<2x784xf32>
    %149 = arith.mulf %148, %147 : vector<2x784xf32>
    %150 = math.tanh %149 : vector<2x784xf32>
    %cst_93 = arith.constant 5.000000e-01 : f32
    %151 = vector.broadcast %cst_93 : f32 to vector<2x784xf32>
    %152 = arith.mulf %151, %150 : vector<2x784xf32>
    %cst_94 = arith.constant 5.000000e-01 : f32
    %153 = vector.broadcast %cst_94 : f32 to vector<2x784xf32>
    %154 = arith.addf %152, %153 : vector<2x784xf32>
    %c0_95 = arith.constant 0 : index
    %c0_96 = arith.constant 0 : index
    %155 = vector.load %arg21[%c0_95, %c0_96] : memref<2x784xf32, #tpu.memory_space<vmem>>, vector<2x784xf32>
    tpu.vector_store %arg21[%c0_95, %c0_96], %154 {strides = array<i32>} : memref<2x784xf32, #tpu.memory_space<vmem>>, vector<2x784xf32>,
    %c0_97 = arith.constant 0 : index
    %c0_98 = arith.constant 0 : index
    %156 = vector.load %arg22[%c0_97, %c0_98] : memref<2x8xf32, #tpu.memory_space<vmem>>, vector<2x8xf32>
    tpu.vector_store %arg22[%c0_97, %c0_98], %119 {strides = array<i32>} : memref<2x8xf32, #tpu.memory_space<vmem>>, vector<2x8xf32>,
    %c0_99 = arith.constant 0 : index
    %c0_100 = arith.constant 0 : index
    %157 = vector.load %arg23[%c0_99, %c0_100] : memref<2x8xf32, #tpu.memory_space<vmem>>, vector<2x8xf32>
    tpu.vector_store %arg23[%c0_99, %c0_100], %112 {strides = array<i32>} : memref<2x8xf32, #tpu.memory_space<vmem>>, vector<2x8xf32>,
    %c0_101 = arith.constant 0 : index
    %c0_102 = arith.constant 0 : index
    %158 = vector.load %arg24[%c0_101, %c0_102] : memref<2x8xf32, #tpu.memory_space<vmem>>, vector<2x8xf32>
    tpu.vector_store %arg24[%c0_101, %c0_102], %113 {strides = array<i32>} : memref<2x8xf32, #tpu.memory_space<vmem>>, vector<2x8xf32>,
    return
  }
  func.func @transform_0(%arg0: i32, %arg1: memref<1xi32, #tpu.memory_space<smem>>) -> (i32, i32) {
    %c0_i32 = arith.constant 0 : i32
    %c0_i32_0 = arith.constant 0 : i32
    return %arg0, %c0_i32 : i32, i32
  }
  func.func @transform_1(%arg0: i32, %arg1: memref<1xi32, #tpu.memory_space<smem>>) -> (i32, i32, i32) {
    %c0_i32 = arith.constant 0 : i32
    %c0_i32_0 = arith.constant 0 : i32
    %c0_i32_1 = arith.constant 0 : i32
    return %arg0, %c0_i32, %c0_i32_0 : i32, i32, i32
  }
  func.func @transform_2(%arg0: i32, %arg1: memref<1xi32, #tpu.memory_space<smem>>) -> (i32, i32) {
    %c0_i32 = arith.constant 0 : i32
    %c0_i32_0 = arith.constant 0 : i32
    return %arg0, %c0_i32 : i32, i32
  }
  func.func @transform_3(%arg0: i32, %arg1: memref<1xi32, #tpu.memory_space<smem>>) -> (i32, i32, i32) {
    %c0_i32 = arith.constant 0 : i32
    %c0_i32_0 = arith.constant 0 : i32
    %c0_i32_1 = arith.constant 0 : i32
    %c0_i32_2 = arith.constant 0 : i32
    return %c0_i32, %c0_i32_0, %c0_i32_1 : i32, i32, i32
  }
  func.func @transform_4(%arg0: i32, %arg1: memref<1xi32, #tpu.memory_space<smem>>) -> (i32, i32) {
    %c0_i32 = arith.constant 0 : i32
    %c0_i32_0 = arith.constant 0 : i32
    %c0_i32_1 = arith.constant 0 : i32
    return %c0_i32, %c0_i32_0 : i32, i32
  }
  func.func @transform_5(%arg0: i32, %arg1: memref<1xi32, #tpu.memory_space<smem>>) -> (i32, i32) {
    %c0_i32 = arith.constant 0 : i32
    %c0_i32_0 = arith.constant 0 : i32
    %c0_i32_1 = arith.constant 0 : i32
    return %c0_i32, %c0_i32_0 : i32, i32
  }
  func.func @transform_6(%arg0: i32, %arg1: memref<1xi32, #tpu.memory_space<smem>>) -> (i32, i32) {
    %c0_i32 = arith.constant 0 : i32
    %c0_i32_0 = arith.constant 0 : i32
    %c0_i32_1 = arith.constant 0 : i32
    return %c0_i32, %c0_i32_0 : i32, i32
  }
  func.func @transform_7(%arg0: i32, %arg1: memref<1xi32, #tpu.memory_space<smem>>) -> (i32, i32) {
    %c0_i32 = arith.constant 0 : i32
    %c0_i32_0 = arith.constant 0 : i32
    %c0_i32_1 = arith.constant 0 : i32
    return %c0_i32, %c0_i32_0 : i32, i32
  }
  func.func @transform_8(%arg0: i32, %arg1: memref<1xi32, #tpu.memory_space<smem>>) -> (i32, i32) {
    %c0_i32 = arith.constant 0 : i32
    %c0_i32_0 = arith.constant 0 : i32
    %c0_i32_1 = arith.constant 0 : i32
    return %c0_i32, %c0_i32_0 : i32, i32
  }
  func.func @transform_9(%arg0: i32, %arg1: memref<1xi32, #tpu.memory_space<smem>>) -> (i32, i32) {
    %c0_i32 = arith.constant 0 : i32
    %c0_i32_0 = arith.constant 0 : i32
    %c0_i32_1 = arith.constant 0 : i32
    return %c0_i32, %c0_i32_0 : i32, i32
  }
  func.func @transform_10(%arg0: i32, %arg1: memref<1xi32, #tpu.memory_space<smem>>) -> (i32, i32) {
    %c0_i32 = arith.constant 0 : i32
    %c0_i32_0 = arith.constant 0 : i32
    %c0_i32_1 = arith.constant 0 : i32
    return %c0_i32, %c0_i32_0 : i32, i32
  }
  func.func @transform_11(%arg0: i32, %arg1: memref<1xi32, #tpu.memory_space<smem>>) -> (i32, i32) {
    %c0_i32 = arith.constant 0 : i32
    %c0_i32_0 = arith.constant 0 : i32
    %c0_i32_1 = arith.constant 0 : i32
    return %c0_i32, %c0_i32_0 : i32, i32
  }
  func.func @transform_12(%arg0: i32, %arg1: memref<1xi32, #tpu.memory_space<smem>>) -> (i32, i32) {
    %c0_i32 = arith.constant 0 : i32
    %c0_i32_0 = arith.constant 0 : i32
    %c0_i32_1 = arith.constant 0 : i32
    return %c0_i32, %c0_i32_0 : i32, i32
  }
  func.func @transform_13(%arg0: i32, %arg1: memref<1xi32, #tpu.memory_space<smem>>) -> (i32, i32, i32) {
    %c0 = arith.constant 0 : index
    %0 = memref.load %arg1[%c0] : memref<1xi32, #tpu.memory_space<smem>>
    %c0_i32 = arith.constant 0 : i32
    %c0_i32_0 = arith.constant 0 : i32
    %c0_i32_1 = arith.constant 0 : i32
    return %0, %c0_i32, %c0_i32_0 : i32, i32, i32
  }
  func.func @transform_14(%arg0: i32, %arg1: memref<1xi32, #tpu.memory_space<smem>>) -> (i32, i32, i32) {
    %c0 = arith.constant 0 : index
    %0 = memref.load %arg1[%c0] : memref<1xi32, #tpu.memory_space<smem>>
    %c0_i32 = arith.constant 0 : i32
    %c0_i32_0 = arith.constant 0 : i32
    %c0_i32_1 = arith.constant 0 : i32
    return %0, %c0_i32, %c0_i32_0 : i32, i32, i32
  }
  func.func @transform_15(%arg0: i32, %arg1: memref<1xi32, #tpu.memory_space<smem>>) -> (i32, i32, i32) {
    %c0 = arith.constant 0 : index
    %0 = memref.load %arg1[%c0] : memref<1xi32, #tpu.memory_space<smem>>
    %c0_i32 = arith.constant 0 : i32
    %c0_i32_0 = arith.constant 0 : i32
    %c0_i32_1 = arith.constant 0 : i32
    return %0, %c0_i32, %c0_i32_0 : i32, i32, i32
  }
  func.func @transform_16(%arg0: i32, %arg1: memref<1xi32, #tpu.memory_space<smem>>) -> (i32, i32, i32) {
    %c0 = arith.constant 0 : index
    %0 = memref.load %arg1[%c0] : memref<1xi32, #tpu.memory_space<smem>>
    %c0_i32 = arith.constant 0 : i32
    %c0_i32_0 = arith.constant 0 : i32
    %c0_i32_1 = arith.constant 0 : i32
    return %0, %c0_i32, %c0_i32_0 : i32, i32, i32
  }
  func.func @transform_17(%arg0: i32, %arg1: memref<1xi32, #tpu.memory_space<smem>>) -> (i32, i32, i32) {
    %c0 = arith.constant 0 : index
    %0 = memref.load %arg1[%c0] : memref<1xi32, #tpu.memory_space<smem>>
    %c0_i32 = arith.constant 0 : i32
    %c0_i32_0 = arith.constant 0 : i32
    %c0_i32_1 = arith.constant 0 : i32
    return %0, %c0_i32, %c0_i32_0 : i32, i32, i32
  }
  func.func @transform_18(%arg0: i32, %arg1: memref<1xi32, #tpu.memory_space<smem>>) -> (i32, i32, i32) {
    %c0 = arith.constant 0 : index
    %0 = memref.load %arg1[%c0] : memref<1xi32, #tpu.memory_space<smem>>
    %c0_i32 = arith.constant 0 : i32
    %c0_i32_0 = arith.constant 0 : i32
    %c0_i32_1 = arith.constant 0 : i32
    return %0, %c0_i32, %c0_i32_0 : i32, i32, i32
  }
  func.func @transform_19(%arg0: i32, %arg1: memref<1xi32, #tpu.memory_space<smem>>) -> (i32, i32) {
    %c0_i32 = arith.constant 0 : i32
    %c0_i32_0 = arith.constant 0 : i32
    return %arg0, %c0_i32 : i32, i32
  }
  func.func @transform_20(%arg0: i32, %arg1: memref<1xi32, #tpu.memory_space<smem>>) -> (i32, i32) {
    %c0_i32 = arith.constant 0 : i32
    %c0_i32_0 = arith.constant 0 : i32
    return %arg0, %c0_i32 : i32, i32
  }
  func.func @transform_21(%arg0: i32, %arg1: memref<1xi32, #tpu.memory_space<smem>>) -> (i32, i32) {
    %c0_i32 = arith.constant 0 : i32
    %c0_i32_0 = arith.constant 0 : i32
    return %arg0, %c0_i32 : i32, i32
  }
  func.func @transform_22(%arg0: i32, %arg1: memref<1xi32, #tpu.memory_space<smem>>) -> (i32, i32) {
    %c0_i32 = arith.constant 0 : i32
    %c0_i32_0 = arith.constant 0 : i32
    return %arg0, %c0_i32 : i32, i32
  }
}

module attributes {stable_mosaic.version = 11 : i64} {
  func.func @_meta_vae_kernel(%arg0: i32, %arg1: memref<1xi32, #tpu.memory_space<smem>>, %arg2: memref<2x784xf32, #tpu.memory_space<vmem>>, %arg3: memref<2x8x784xf32, #tpu.memory_space<vmem>>, %arg4: memref<2x8xf32, #tpu.memory_space<vmem>>, %arg5: memref<2x784x32xbf16, #tpu.memory_space<vmem>>, %arg6: memref<32x32xbf16, #tpu.memory_space<vmem>>, %arg7: memref<32x32xbf16, #tpu.memory_space<vmem>>, %arg8: memref<32x32xbf16, #tpu.memory_space<vmem>>, %arg9: memref<32x16xbf16, #tpu.memory_space<vmem>>, %arg10: memref<1x32xf32, #tpu.memory_space<vmem>>, %arg11: memref<1x32xf32, #tpu.memory_space<vmem>>, %arg12: memref<1x32xf32, #tpu.memory_space<vmem>>, %arg13: memref<1x32xf32, #tpu.memory_space<vmem>>, %arg14: memref<1x16xf32, #tpu.memory_space<vmem>>, %arg15: memref<1x8x32xbf16, #tpu.memory_space<vmem>>, %arg16: memref<1x32x32xbf16, #tpu.memory_space<vmem>>, %arg17: memref<1x32x784xbf16, #tpu.memory_space<vmem>>, %arg18: memref<1x1x32xf32, #tpu.memory_space<vmem>>, %arg19: memref<1x1x32xf32, #tpu.memory_space<vmem>>, %arg20: memref<1x1x784xf32, #tpu.memory_space<vmem>>, %arg21: memref<2x784xf32, #tpu.memory_space<vmem>>, %arg22: memref<2x8xf32, #tpu.memory_space<vmem>>, %arg23: memref<2x8xf32, #tpu.memory_space<vmem>>, %arg24: memref<2x8xf32, #tpu.memory_space<vmem>>) attributes {dimension_semantics = [#tpu.dimension_semantics<parallel>], iteration_bounds = array<i64: 1>, scalar_prefetch = 1 : i64, scratch_operands = 0 : i64, tpu.core_type = #tpu.core_type<tc>, window_params = [{transform_indices = @transform_0, window_bounds = array<i64: 2, 784>}, {transform_indices = @transform_1, window_bounds = array<i64: 2, 8, 784>}, {transform_indices = @transform_2, window_bounds = array<i64: 2, 8>}, {pipeline_mode = #tpu.pipeline_mode<synchronous>, transform_indices = @transform_3, window_bounds = array<i64: 2, 784, 32>}, {pipeline_mode = #tpu.pipeline_mode<synchronous>, transform_indices = @transform_4, window_bounds = array<i64: 32, 32>}, {pipeline_mode = #tpu.pipeline_mode<synchronous>, transform_indices = @transform_5, window_bounds = array<i64: 32, 32>}, {pipeline_mode = #tpu.pipeline_mode<synchronous>, transform_indices = @transform_6, window_bounds = array<i64: 32, 32>}, {pipeline_mode = #tpu.pipeline_mode<synchronous>, transform_indices = @transform_7, window_bounds = array<i64: 32, 16>}, {pipeline_mode = #tpu.pipeline_mode<synchronous>, transform_indices = @transform_8, window_bounds = array<i64: 1, 32>}, {pipeline_mode = #tpu.pipeline_mode<synchronous>, transform_indices = @transform_9, window_bounds = array<i64: 1, 32>}, {pipeline_mode = #tpu.pipeline_mode<synchronous>, transform_indices = @transform_10, window_bounds = array<i64: 1, 32>}, {pipeline_mode = #tpu.pipeline_mode<synchronous>, transform_indices = @transform_11, window_bounds = array<i64: 1, 32>}, {pipeline_mode = #tpu.pipeline_mode<synchronous>, transform_indices = @transform_12, window_bounds = array<i64: 1, 16>}, {transform_indices = @transform_13, window_bounds = array<i64: 1, 8, 32>}, {transform_indices = @transform_14, window_bounds = array<i64: 1, 32, 32>}, {transform_indices = @transform_15, window_bounds = array<i64: 1, 32, 784>}, {transform_indices = @transform_16, window_bounds = array<i64: 1, 1, 32>}, {transform_indices = @transform_17, window_bounds = array<i64: 1, 1, 32>}, {transform_indices = @transform_18, window_bounds = array<i64: 1, 1, 784>}, {transform_indices = @transform_19, window_bounds = array<i64: 2, 784>}, {transform_indices = @transform_20, window_bounds = array<i64: 2, 8>}, {transform_indices = @transform_21, window_bounds = array<i64: 2, 8>}, {transform_indices = @transform_22, window_bounds = array<i64: 2, 8>}]} {
    %c0 = arith.constant 0 : index
    %c0_0 = arith.constant 0 : index
    %c0_1 = arith.constant 0 : index
    %0 = vector.load %arg5[%c0, %c0_0, %c0_1] : memref<2x784x32xbf16, #tpu.memory_space<vmem>>, vector<1x784x32xbf16>
    %1 = vector.shape_cast %0 : vector<1x784x32xbf16> to vector<784x32xbf16>
    %c1 = arith.constant 1 : index
    %c0_2 = arith.constant 0 : index
    %c0_3 = arith.constant 0 : index
    %2 = vector.load %arg5[%c1, %c0_2, %c0_3] : memref<2x784x32xbf16, #tpu.memory_space<vmem>>, vector<1x784x32xbf16>
    %3 = vector.shape_cast %2 : vector<1x784x32xbf16> to vector<784x32xbf16>
    %c0_4 = arith.constant 0 : index
    %c0_5 = arith.constant 0 : index
    %4 = vector.load %arg10[%c0_4, %c0_5] : memref<1x32xf32, #tpu.memory_space<vmem>>, vector<1x32xf32>
    %cst = arith.constant 0.000000e+00 : f32
    %5 = vector.broadcast %cst : f32 to vector<2x32xf32>
    %c0_6 = arith.constant 0 : index
    %c0_7 = arith.constant 0 : index
    %c0_8 = arith.constant 0 : index
    %6 = vector.load %arg3[%c0_6, %c0_7, %c0_8] : memref<2x8x784xf32, #tpu.memory_space<vmem>>, vector<2x1x784xf32>
    %7 = vector.shape_cast %6 : vector<2x1x784xf32> to vector<2x784xf32>
    %8 = arith.truncf %7 : vector<2x784xf32> to vector<2x784xbf16>
    %cst_9 = arith.constant dense<0.000000e+00> : vector<2x32xf32>
    %9 = tpu.matmul %8, %1, %cst_9 {dimension_numbers = #tpu.dot_dimension_numbers<[1], [0], [0], [1], [0, 0, 1, 1], [], []>} : vector<2x784xbf16>, vector<784x32xbf16>, vector<2x32xf32> -> vector<2x32xf32>
    %10 = vector.broadcast %4 : vector<1x32xf32> to vector<2x32xf32>
    %11 = arith.addf %9, %10 : vector<2x32xf32>
    %cst_10 = arith.constant 0.000000e+00 : f32
    %12 = vector.broadcast %cst_10 : f32 to vector<2x32xf32>
    %13 = arith.maximumf %11, %12 : vector<2x32xf32>
    %14 = arith.addf %5, %13 : vector<2x32xf32>
    %c0_11 = arith.constant 0 : index
    %c1_12 = arith.constant 1 : index
    %c0_13 = arith.constant 0 : index
    %15 = vector.load %arg3[%c0_11, %c1_12, %c0_13] : memref<2x8x784xf32, #tpu.memory_space<vmem>>, vector<2x1x784xf32>
    %16 = vector.shape_cast %15 : vector<2x1x784xf32> to vector<2x784xf32>
    %17 = arith.truncf %16 : vector<2x784xf32> to vector<2x784xbf16>
    %cst_14 = arith.constant dense<0.000000e+00> : vector<2x32xf32>
    %18 = tpu.matmul %17, %1, %cst_14 {dimension_numbers = #tpu.dot_dimension_numbers<[1], [0], [0], [1], [0, 0, 1, 1], [], []>} : vector<2x784xbf16>, vector<784x32xbf16>, vector<2x32xf32> -> vector<2x32xf32>
    %19 = vector.broadcast %4 : vector<1x32xf32> to vector<2x32xf32>
    %20 = arith.addf %18, %19 : vector<2x32xf32>
    %cst_15 = arith.constant 0.000000e+00 : f32
    %21 = vector.broadcast %cst_15 : f32 to vector<2x32xf32>
    %22 = arith.maximumf %20, %21 : vector<2x32xf32>
    %23 = arith.addf %14, %22 : vector<2x32xf32>
    %c0_16 = arith.constant 0 : index
    %c2 = arith.constant 2 : index
    %c0_17 = arith.constant 0 : index
    %24 = vector.load %arg3[%c0_16, %c2, %c0_17] : memref<2x8x784xf32, #tpu.memory_space<vmem>>, vector<2x1x784xf32>
    %25 = vector.shape_cast %24 : vector<2x1x784xf32> to vector<2x784xf32>
    %26 = arith.truncf %25 : vector<2x784xf32> to vector<2x784xbf16>
    %cst_18 = arith.constant dense<0.000000e+00> : vector<2x32xf32>
    %27 = tpu.matmul %26, %1, %cst_18 {dimension_numbers = #tpu.dot_dimension_numbers<[1], [0], [0], [1], [0, 0, 1, 1], [], []>} : vector<2x784xbf16>, vector<784x32xbf16>, vector<2x32xf32> -> vector<2x32xf32>
    %28 = vector.broadcast %4 : vector<1x32xf32> to vector<2x32xf32>
    %29 = arith.addf %27, %28 : vector<2x32xf32>
    %cst_19 = arith.constant 0.000000e+00 : f32
    %30 = vector.broadcast %cst_19 : f32 to vector<2x32xf32>
    %31 = arith.maximumf %29, %30 : vector<2x32xf32>
    %32 = arith.addf %23, %31 : vector<2x32xf32>
    %c0_20 = arith.constant 0 : index
    %c3 = arith.constant 3 : index
    %c0_21 = arith.constant 0 : index
    %33 = vector.load %arg3[%c0_20, %c3, %c0_21] : memref<2x8x784xf32, #tpu.memory_space<vmem>>, vector<2x1x784xf32>
    %34 = vector.shape_cast %33 : vector<2x1x784xf32> to vector<2x784xf32>
    %35 = arith.truncf %34 : vector<2x784xf32> to vector<2x784xbf16>
    %cst_22 = arith.constant dense<0.000000e+00> : vector<2x32xf32>
    %36 = tpu.matmul %35, %1, %cst_22 {dimension_numbers = #tpu.dot_dimension_numbers<[1], [0], [0], [1], [0, 0, 1, 1], [], []>} : vector<2x784xbf16>, vector<784x32xbf16>, vector<2x32xf32> -> vector<2x32xf32>
    %37 = vector.broadcast %4 : vector<1x32xf32> to vector<2x32xf32>
    %38 = arith.addf %36, %37 : vector<2x32xf32>
    %cst_23 = arith.constant 0.000000e+00 : f32
    %39 = vector.broadcast %cst_23 : f32 to vector<2x32xf32>
    %40 = arith.maximumf %38, %39 : vector<2x32xf32>
    %41 = arith.addf %32, %40 : vector<2x32xf32>
    %c0_24 = arith.constant 0 : index
    %c4 = arith.constant 4 : index
    %c0_25 = arith.constant 0 : index
    %42 = vector.load %arg3[%c0_24, %c4, %c0_25] : memref<2x8x784xf32, #tpu.memory_space<vmem>>, vector<2x1x784xf32>
    %43 = vector.shape_cast %42 : vector<2x1x784xf32> to vector<2x784xf32>
    %44 = arith.truncf %43 : vector<2x784xf32> to vector<2x784xbf16>
    %cst_26 = arith.constant dense<0.000000e+00> : vector<2x32xf32>
    %45 = tpu.matmul %44, %1, %cst_26 {dimension_numbers = #tpu.dot_dimension_numbers<[1], [0], [0], [1], [0, 0, 1, 1], [], []>} : vector<2x784xbf16>, vector<784x32xbf16>, vector<2x32xf32> -> vector<2x32xf32>
    %46 = vector.broadcast %4 : vector<1x32xf32> to vector<2x32xf32>
    %47 = arith.addf %45, %46 : vector<2x32xf32>
    %cst_27 = arith.constant 0.000000e+00 : f32
    %48 = vector.broadcast %cst_27 : f32 to vector<2x32xf32>
    %49 = arith.maximumf %47, %48 : vector<2x32xf32>
    %50 = arith.addf %41, %49 : vector<2x32xf32>
    %c0_28 = arith.constant 0 : index
    %c5 = arith.constant 5 : index
    %c0_29 = arith.constant 0 : index
    %51 = vector.load %arg3[%c0_28, %c5, %c0_29] : memref<2x8x784xf32, #tpu.memory_space<vmem>>, vector<2x1x784xf32>
    %52 = vector.shape_cast %51 : vector<2x1x784xf32> to vector<2x784xf32>
    %53 = arith.truncf %52 : vector<2x784xf32> to vector<2x784xbf16>
    %cst_30 = arith.constant dense<0.000000e+00> : vector<2x32xf32>
    %54 = tpu.matmul %53, %1, %cst_30 {dimension_numbers = #tpu.dot_dimension_numbers<[1], [0], [0], [1], [0, 0, 1, 1], [], []>} : vector<2x784xbf16>, vector<784x32xbf16>, vector<2x32xf32> -> vector<2x32xf32>
    %55 = vector.broadcast %4 : vector<1x32xf32> to vector<2x32xf32>
    %56 = arith.addf %54, %55 : vector<2x32xf32>
    %cst_31 = arith.constant 0.000000e+00 : f32
    %57 = vector.broadcast %cst_31 : f32 to vector<2x32xf32>
    %58 = arith.maximumf %56, %57 : vector<2x32xf32>
    %59 = arith.addf %50, %58 : vector<2x32xf32>
    %c0_32 = arith.constant 0 : index
    %c6 = arith.constant 6 : index
    %c0_33 = arith.constant 0 : index
    %60 = vector.load %arg3[%c0_32, %c6, %c0_33] : memref<2x8x784xf32, #tpu.memory_space<vmem>>, vector<2x1x784xf32>
    %61 = vector.shape_cast %60 : vector<2x1x784xf32> to vector<2x784xf32>
    %62 = arith.truncf %61 : vector<2x784xf32> to vector<2x784xbf16>
    %cst_34 = arith.constant dense<0.000000e+00> : vector<2x32xf32>
    %63 = tpu.matmul %62, %1, %cst_34 {dimension_numbers = #tpu.dot_dimension_numbers<[1], [0], [0], [1], [0, 0, 1, 1], [], []>} : vector<2x784xbf16>, vector<784x32xbf16>, vector<2x32xf32> -> vector<2x32xf32>
    %64 = vector.broadcast %4 : vector<1x32xf32> to vector<2x32xf32>
    %65 = arith.addf %63, %64 : vector<2x32xf32>
    %cst_35 = arith.constant 0.000000e+00 : f32
    %66 = vector.broadcast %cst_35 : f32 to vector<2x32xf32>
    %67 = arith.maximumf %65, %66 : vector<2x32xf32>
    %68 = arith.addf %59, %67 : vector<2x32xf32>
    %c0_36 = arith.constant 0 : index
    %c7 = arith.constant 7 : index
    %c0_37 = arith.constant 0 : index
    %69 = vector.load %arg3[%c0_36, %c7, %c0_37] : memref<2x8x784xf32, #tpu.memory_space<vmem>>, vector<2x1x784xf32>
    %70 = vector.shape_cast %69 : vector<2x1x784xf32> to vector<2x784xf32>
    %71 = arith.truncf %70 : vector<2x784xf32> to vector<2x784xbf16>
    %cst_38 = arith.constant dense<0.000000e+00> : vector<2x32xf32>
    %72 = tpu.matmul %71, %1, %cst_38 {dimension_numbers = #tpu.dot_dimension_numbers<[1], [0], [0], [1], [0, 0, 1, 1], [], []>} : vector<2x784xbf16>, vector<784x32xbf16>, vector<2x32xf32> -> vector<2x32xf32>
    %73 = vector.broadcast %4 : vector<1x32xf32> to vector<2x32xf32>
    %74 = arith.addf %72, %73 : vector<2x32xf32>
    %cst_39 = arith.constant 0.000000e+00 : f32
    %75 = vector.broadcast %cst_39 : f32 to vector<2x32xf32>
    %76 = arith.maximumf %74, %75 : vector<2x32xf32>
    %77 = arith.addf %68, %76 : vector<2x32xf32>
    %cst_40 = arith.constant 1.250000e-01 : f32
    %78 = vector.broadcast %cst_40 : f32 to vector<2x32xf32>
    %79 = arith.mulf %77, %78 : vector<2x32xf32>
    %80 = arith.truncf %79 : vector<2x32xf32> to vector<2x32xbf16>
    %c0_41 = arith.constant 0 : index
    %c0_42 = arith.constant 0 : index
    %81 = vector.load %arg6[%c0_41, %c0_42] : memref<32x32xbf16, #tpu.memory_space<vmem>>, vector<32x32xbf16>
    %cst_43 = arith.constant dense<0.000000e+00> : vector<2x32xf32>
    %82 = tpu.matmul %80, %81, %cst_43 {dimension_numbers = #tpu.dot_dimension_numbers<[1], [0], [0], [1], [0, 0, 1, 1], [], []>} : vector<2x32xbf16>, vector<32x32xbf16>, vector<2x32xf32> -> vector<2x32xf32>
    %c0_44 = arith.constant 0 : index
    %c0_45 = arith.constant 0 : index
    %83 = vector.load %arg11[%c0_44, %c0_45] : memref<1x32xf32, #tpu.memory_space<vmem>>, vector<1x32xf32>
    %84 = vector.broadcast %83 : vector<1x32xf32> to vector<2x32xf32>
    %85 = arith.addf %82, %84 : vector<2x32xf32>
    %c0_46 = arith.constant 0 : index
    %c0_47 = arith.constant 0 : index
    %86 = vector.load %arg2[%c0_46, %c0_47] : memref<2x784xf32, #tpu.memory_space<vmem>>, vector<2x784xf32>
    %87 = arith.truncf %86 : vector<2x784xf32> to vector<2x784xbf16>
    %cst_48 = arith.constant dense<0.000000e+00> : vector<2x32xf32>
    %88 = tpu.matmul %87, %3, %cst_48 {dimension_numbers = #tpu.dot_dimension_numbers<[1], [0], [0], [1], [0, 0, 1, 1], [], []>} : vector<2x784xbf16>, vector<784x32xbf16>, vector<2x32xf32> -> vector<2x32xf32>
    %89 = arith.truncf %85 : vector<2x32xf32> to vector<2x32xbf16>
    %c0_49 = arith.constant 0 : index
    %c0_50 = arith.constant 0 : index
    %90 = vector.load %arg7[%c0_49, %c0_50] : memref<32x32xbf16, #tpu.memory_space<vmem>>, vector<32x32xbf16>
    %cst_51 = arith.constant dense<0.000000e+00> : vector<2x32xf32>
    %91 = tpu.matmul %89, %90, %cst_51 {dimension_numbers = #tpu.dot_dimension_numbers<[1], [0], [0], [1], [0, 0, 1, 1], [], []>} : vector<2x32xbf16>, vector<32x32xbf16>, vector<2x32xf32> -> vector<2x32xf32>
    %92 = arith.addf %88, %91 : vector<2x32xf32>
    %c0_52 = arith.constant 0 : index
    %c0_53 = arith.constant 0 : index
    %93 = vector.load %arg12[%c0_52, %c0_53] : memref<1x32xf32, #tpu.memory_space<vmem>>, vector<1x32xf32>
    %94 = vector.broadcast %93 : vector<1x32xf32> to vector<2x32xf32>
    %95 = arith.addf %92, %94 : vector<2x32xf32>
    %cst_54 = arith.constant 0.000000e+00 : f32
    %96 = vector.broadcast %cst_54 : f32 to vector<2x32xf32>
    %97 = arith.maximumf %95, %96 : vector<2x32xf32>
    %98 = arith.truncf %97 : vector<2x32xf32> to vector<2x32xbf16>
    %c0_55 = arith.constant 0 : index
    %c0_56 = arith.constant 0 : index
    %99 = vector.load %arg8[%c0_55, %c0_56] : memref<32x32xbf16, #tpu.memory_space<vmem>>, vector<32x32xbf16>
    %cst_57 = arith.constant dense<0.000000e+00> : vector<2x32xf32>
    %100 = tpu.matmul %98, %99, %cst_57 {dimension_numbers = #tpu.dot_dimension_numbers<[1], [0], [0], [1], [0, 0, 1, 1], [], []>} : vector<2x32xbf16>, vector<32x32xbf16>, vector<2x32xf32> -> vector<2x32xf32>
    %c0_58 = arith.constant 0 : index
    %c0_59 = arith.constant 0 : index
    %101 = vector.load %arg13[%c0_58, %c0_59] : memref<1x32xf32, #tpu.memory_space<vmem>>, vector<1x32xf32>
    %102 = vector.broadcast %101 : vector<1x32xf32> to vector<2x32xf32>
    %103 = arith.addf %100, %102 : vector<2x32xf32>
    %cst_60 = arith.constant 0.000000e+00 : f32
    %104 = vector.broadcast %cst_60 : f32 to vector<2x32xf32>
    %105 = arith.maximumf %103, %104 : vector<2x32xf32>
    %106 = arith.truncf %105 : vector<2x32xf32> to vector<2x32xbf16>
    %c0_61 = arith.constant 0 : index
    %c0_62 = arith.constant 0 : index
    %107 = vector.load %arg9[%c0_61, %c0_62] : memref<32x16xbf16, #tpu.memory_space<vmem>>, vector<32x16xbf16>
    %cst_63 = arith.constant dense<0.000000e+00> : vector<2x16xf32>
    %108 = tpu.matmul %106, %107, %cst_63 {dimension_numbers = #tpu.dot_dimension_numbers<[1], [0], [0], [1], [0, 0, 1, 1], [], []>} : vector<2x32xbf16>, vector<32x16xbf16>, vector<2x16xf32> -> vector<2x16xf32>
    %c0_64 = arith.constant 0 : index
    %c0_65 = arith.constant 0 : index
    %109 = vector.load %arg14[%c0_64, %c0_65] : memref<1x16xf32, #tpu.memory_space<vmem>>, vector<1x16xf32>
    %110 = vector.broadcast %109 : vector<1x16xf32> to vector<2x16xf32>
    %111 = arith.addf %108, %110 : vector<2x16xf32>
    %112 = vector.extract_strided_slice %111 {offsets = [0, 0], sizes = [2, 8], strides = [1, 1]} : vector<2x16xf32> to vector<2x8xf32>
    %113 = vector.extract_strided_slice %111 {offsets = [0, 8], sizes = [2, 8], strides = [1, 1]} : vector<2x16xf32> to vector<2x8xf32>
    %c0_66 = arith.constant 0 : index
    %c0_67 = arith.constant 0 : index
    %114 = vector.load %arg4[%c0_66, %c0_67] : memref<2x8xf32, #tpu.memory_space<vmem>>, vector<2x8xf32>
    %cst_68 = arith.constant 5.000000e-01 : f32
    %115 = vector.broadcast %cst_68 : f32 to vector<2x8xf32>
    %116 = arith.mulf %115, %113 : vector<2x8xf32>
    %117 = math.exp %116 : vector<2x8xf32>
    %118 = arith.mulf %114, %117 : vector<2x8xf32>
    %119 = arith.addf %118, %112 : vector<2x8xf32>
    %120 = arith.truncf %119 : vector<2x8xf32> to vector<2x8xbf16>
    %c0_69 = arith.constant 0 : index
    %c0_70 = arith.constant 0 : index
    %c0_71 = arith.constant 0 : index
    %121 = vector.load %arg15[%c0_69, %c0_70, %c0_71] : memref<1x8x32xbf16, #tpu.memory_space<vmem>>, vector<1x8x32xbf16>
    %122 = vector.shape_cast %121 : vector<1x8x32xbf16> to vector<8x32xbf16>
    %cst_72 = arith.constant dense<0.000000e+00> : vector<2x32xf32>
    %123 = tpu.matmul %120, %122, %cst_72 {dimension_numbers = #tpu.dot_dimension_numbers<[1], [0], [0], [1], [0, 0, 1, 1], [], []>} : vector<2x8xbf16>, vector<8x32xbf16>, vector<2x32xf32> -> vector<2x32xf32>
    %c0_73 = arith.constant 0 : index
    %c0_74 = arith.constant 0 : index
    %c0_75 = arith.constant 0 : index
    %124 = vector.load %arg18[%c0_73, %c0_74, %c0_75] : memref<1x1x32xf32, #tpu.memory_space<vmem>>, vector<1x1x32xf32>
    %125 = vector.shape_cast %124 : vector<1x1x32xf32> to vector<1x32xf32>
    %126 = vector.broadcast %125 : vector<1x32xf32> to vector<2x32xf32>
    %127 = arith.addf %123, %126 : vector<2x32xf32>
    %cst_76 = arith.constant 0.000000e+00 : f32
    %128 = vector.broadcast %cst_76 : f32 to vector<2x32xf32>
    %129 = arith.maximumf %127, %128 : vector<2x32xf32>
    %130 = arith.truncf %129 : vector<2x32xf32> to vector<2x32xbf16>
    %c0_77 = arith.constant 0 : index
    %c0_78 = arith.constant 0 : index
    %c0_79 = arith.constant 0 : index
    %131 = vector.load %arg16[%c0_77, %c0_78, %c0_79] : memref<1x32x32xbf16, #tpu.memory_space<vmem>>, vector<1x32x32xbf16>
    %132 = vector.shape_cast %131 : vector<1x32x32xbf16> to vector<32x32xbf16>
    %cst_80 = arith.constant dense<0.000000e+00> : vector<2x32xf32>
    %133 = tpu.matmul %130, %132, %cst_80 {dimension_numbers = #tpu.dot_dimension_numbers<[1], [0], [0], [1], [0, 0, 1, 1], [], []>} : vector<2x32xbf16>, vector<32x32xbf16>, vector<2x32xf32> -> vector<2x32xf32>
    %c0_81 = arith.constant 0 : index
    %c0_82 = arith.constant 0 : index
    %c0_83 = arith.constant 0 : index
    %134 = vector.load %arg19[%c0_81, %c0_82, %c0_83] : memref<1x1x32xf32, #tpu.memory_space<vmem>>, vector<1x1x32xf32>
    %135 = vector.shape_cast %134 : vector<1x1x32xf32> to vector<1x32xf32>
    %136 = vector.broadcast %135 : vector<1x32xf32> to vector<2x32xf32>
    %137 = arith.addf %133, %136 : vector<2x32xf32>
    %cst_84 = arith.constant 0.000000e+00 : f32
    %138 = vector.broadcast %cst_84 : f32 to vector<2x32xf32>
    %139 = arith.maximumf %137, %138 : vector<2x32xf32>
    %140 = arith.truncf %139 : vector<2x32xf32> to vector<2x32xbf16>
    %c0_85 = arith.constant 0 : index
    %c0_86 = arith.constant 0 : index
    %c0_87 = arith.constant 0 : index
    %141 = vector.load %arg17[%c0_85, %c0_86, %c0_87] : memref<1x32x784xbf16, #tpu.memory_space<vmem>>, vector<1x32x784xbf16>
    %142 = vector.shape_cast %141 : vector<1x32x784xbf16> to vector<32x784xbf16>
    %cst_88 = arith.constant dense<0.000000e+00> : vector<2x784xf32>
    %143 = tpu.matmul %140, %142, %cst_88 {dimension_numbers = #tpu.dot_dimension_numbers<[1], [0], [0], [1], [0, 0, 1, 1], [], []>} : vector<2x32xbf16>, vector<32x784xbf16>, vector<2x784xf32> -> vector<2x784xf32>
    %c0_89 = arith.constant 0 : index
    %c0_90 = arith.constant 0 : index
    %c0_91 = arith.constant 0 : index
    %144 = vector.load %arg20[%c0_89, %c0_90, %c0_91] : memref<1x1x784xf32, #tpu.memory_space<vmem>>, vector<1x1x784xf32>
    %145 = vector.shape_cast %144 : vector<1x1x784xf32> to vector<1x784xf32>
    %146 = vector.broadcast %145 : vector<1x784xf32> to vector<2x784xf32>
    %147 = arith.addf %143, %146 : vector<2x784xf32>
    %cst_92 = arith.constant 5.000000e-01 : f32
    %148 = vector.broadcast %cst_92 : f32 to vector<2x784xf32>
    %149 = arith.mulf %148, %147 : vector<2x784xf32>
    %150 = math.tanh %149 : vector<2x784xf32>
    %cst_93 = arith.constant 5.000000e-01 : f32
    %151 = vector.broadcast %cst_93 : f32 to vector<2x784xf32>
    %152 = arith.mulf %151, %150 : vector<2x784xf32>
    %cst_94 = arith.constant 5.000000e-01 : f32
    %153 = vector.broadcast %cst_94 : f32 to vector<2x784xf32>
    %154 = arith.addf %152, %153 : vector<2x784xf32>
    %c0_95 = arith.constant 0 : index
    %c0_96 = arith.constant 0 : index
    %155 = vector.load %arg21[%c0_95, %c0_96] : memref<2x784xf32, #tpu.memory_space<vmem>>, vector<2x784xf32>
    tpu.vector_store %arg21[%c0_95, %c0_96], %154 {strides = array<i32>} : memref<2x784xf32, #tpu.memory_space<vmem>>, vector<2x784xf32>,
    %c0_97 = arith.constant 0 : index
    %c0_98 = arith.constant 0 : index
    %156 = vector.load %arg22[%c0_97, %c0_98] : memref<2x8xf32, #tpu.memory_space<vmem>>, vector<2x8xf32>
    tpu.vector_store %arg22[%c0_97, %c0_98], %119 {strides = array<i32>} : memref<2x8xf32, #tpu.memory_space<vmem>>, vector<2x8xf32>,
    %c0_99 = arith.constant 0 : index
    %c0_100 = arith.constant 0 : index
    %157 = vector.load %arg23[%c0_99, %c0_100] : memref<2x8xf32, #tpu.memory_space<vmem>>, vector<2x8xf32>
    tpu.vector_store %arg23[%c0_99, %c0_100], %112 {strides = array<i32>} : memref<2x8xf32, #tpu.memory_space<vmem>>, vector<2x8xf32>,
    %c0_101 = arith.constant 0 : index
    %c0_102 = arith.constant 0 : index
    %158 = vector.load %arg24[%c0_101, %c0_102] : memref<2x8xf32, #tpu.memory_space<vmem>>, vector<2x8xf32>
    tpu.vector_store %arg24[%c0_101, %c0_102], %113 {strides = array<i32>} : memref<2x8xf32, #tpu.memory_space<vmem>>, vector<2x8xf32>,
    return
  }
  func.func @transform_0(%arg0: i32, %arg1: memref<1xi32, #tpu.memory_space<smem>>) -> (i32, i32) {
    %c0_i32 = arith.constant 0 : i32
    %c0_i32_0 = arith.constant 0 : i32
    return %arg0, %c0_i32 : i32, i32
  }
  func.func @transform_1(%arg0: i32, %arg1: memref<1xi32, #tpu.memory_space<smem>>) -> (i32, i32, i32) {
    %c0_i32 = arith.constant 0 : i32
    %c0_i32_0 = arith.constant 0 : i32
    %c0_i32_1 = arith.constant 0 : i32
    return %arg0, %c0_i32, %c0_i32_0 : i32, i32, i32
  }
  func.func @transform_2(%arg0: i32, %arg1: memref<1xi32, #tpu.memory_space<smem>>) -> (i32, i32) {
    %c0_i32 = arith.constant 0 : i32
    %c0_i32_0 = arith.constant 0 : i32
    return %arg0, %c0_i32 : i32, i32
  }
  func.func @transform_3(%arg0: i32, %arg1: memref<1xi32, #tpu.memory_space<smem>>) -> (i32, i32, i32) {
    %c0_i32 = arith.constant 0 : i32
    %c0_i32_0 = arith.constant 0 : i32
    %c0_i32_1 = arith.constant 0 : i32
    %c0_i32_2 = arith.constant 0 : i32
    return %c0_i32, %c0_i32_0, %c0_i32_1 : i32, i32, i32
  }
  func.func @transform_4(%arg0: i32, %arg1: memref<1xi32, #tpu.memory_space<smem>>) -> (i32, i32) {
    %c0_i32 = arith.constant 0 : i32
    %c0_i32_0 = arith.constant 0 : i32
    %c0_i32_1 = arith.constant 0 : i32
    return %c0_i32, %c0_i32_0 : i32, i32
  }
  func.func @transform_5(%arg0: i32, %arg1: memref<1xi32, #tpu.memory_space<smem>>) -> (i32, i32) {
    %c0_i32 = arith.constant 0 : i32
    %c0_i32_0 = arith.constant 0 : i32
    %c0_i32_1 = arith.constant 0 : i32
    return %c0_i32, %c0_i32_0 : i32, i32
  }
  func.func @transform_6(%arg0: i32, %arg1: memref<1xi32, #tpu.memory_space<smem>>) -> (i32, i32) {
    %c0_i32 = arith.constant 0 : i32
    %c0_i32_0 = arith.constant 0 : i32
    %c0_i32_1 = arith.constant 0 : i32
    return %c0_i32, %c0_i32_0 : i32, i32
  }
  func.func @transform_7(%arg0: i32, %arg1: memref<1xi32, #tpu.memory_space<smem>>) -> (i32, i32) {
    %c0_i32 = arith.constant 0 : i32
    %c0_i32_0 = arith.constant 0 : i32
    %c0_i32_1 = arith.constant 0 : i32
    return %c0_i32, %c0_i32_0 : i32, i32
  }
  func.func @transform_8(%arg0: i32, %arg1: memref<1xi32, #tpu.memory_space<smem>>) -> (i32, i32) {
    %c0_i32 = arith.constant 0 : i32
    %c0_i32_0 = arith.constant 0 : i32
    %c0_i32_1 = arith.constant 0 : i32
    return %c0_i32, %c0_i32_0 : i32, i32
  }
  func.func @transform_9(%arg0: i32, %arg1: memref<1xi32, #tpu.memory_space<smem>>) -> (i32, i32) {
    %c0_i32 = arith.constant 0 : i32
    %c0_i32_0 = arith.constant 0 : i32
    %c0_i32_1 = arith.constant 0 : i32
    return %c0_i32, %c0_i32_0 : i32, i32
  }
  func.func @transform_10(%arg0: i32, %arg1: memref<1xi32, #tpu.memory_space<smem>>) -> (i32, i32) {
    %c0_i32 = arith.constant 0 : i32
    %c0_i32_0 = arith.constant 0 : i32
    %c0_i32_1 = arith.constant 0 : i32
    return %c0_i32, %c0_i32_0 : i32, i32
  }
  func.func @transform_11(%arg0: i32, %arg1: memref<1xi32, #tpu.memory_space<smem>>) -> (i32, i32) {
    %c0_i32 = arith.constant 0 : i32
    %c0_i32_0 = arith.constant 0 : i32
    %c0_i32_1 = arith.constant 0 : i32
    return %c0_i32, %c0_i32_0 : i32, i32
  }
  func.func @transform_12(%arg0: i32, %arg1: memref<1xi32, #tpu.memory_space<smem>>) -> (i32, i32) {
    %c0_i32 = arith.constant 0 : i32
    %c0_i32_0 = arith.constant 0 : i32
    %c0_i32_1 = arith.constant 0 : i32
    return %c0_i32, %c0_i32_0 : i32, i32
  }
  func.func @transform_13(%arg0: i32, %arg1: memref<1xi32, #tpu.memory_space<smem>>) -> (i32, i32, i32) {
    %c0 = arith.constant 0 : index
    %0 = memref.load %arg1[%c0] : memref<1xi32, #tpu.memory_space<smem>>
    %c0_i32 = arith.constant 0 : i32
    %c0_i32_0 = arith.constant 0 : i32
    %c0_i32_1 = arith.constant 0 : i32
    return %0, %c0_i32, %c0_i32_0 : i32, i32, i32
  }
  func.func @transform_14(%arg0: i32, %arg1: memref<1xi32, #tpu.memory_space<smem>>) -> (i32, i32, i32) {
    %c0 = arith.constant 0 : index
    %0 = memref.load %arg1[%c0] : memref<1xi32, #tpu.memory_space<smem>>
    %c0_i32 = arith.constant 0 : i32
    %c0_i32_0 = arith.constant 0 : i32
    %c0_i32_1 = arith.constant 0 : i32
    return %0, %c0_i32, %c0_i32_0 : i32, i32, i32
  }
  func.func @transform_15(%arg0: i32, %arg1: memref<1xi32, #tpu.memory_space<smem>>) -> (i32, i32, i32) {
    %c0 = arith.constant 0 : index
    %0 = memref.load %arg1[%c0] : memref<1xi32, #tpu.memory_space<smem>>
    %c0_i32 = arith.constant 0 : i32
    %c0_i32_0 = arith.constant 0 : i32
    %c0_i32_1 = arith.constant 0 : i32
    return %0, %c0_i32, %c0_i32_0 : i32, i32, i32
  }
  func.func @transform_16(%arg0: i32, %arg1: memref<1xi32, #tpu.memory_space<smem>>) -> (i32, i32, i32) {
    %c0 = arith.constant 0 : index
    %0 = memref.load %arg1[%c0] : memref<1xi32, #tpu.memory_space<smem>>
    %c0_i32 = arith.constant 0 : i32
    %c0_i32_0 = arith.constant 0 : i32
    %c0_i32_1 = arith.constant 0 : i32
    return %0, %c0_i32, %c0_i32_0 : i32, i32, i32
  }
  func.func @transform_17(%arg0: i32, %arg1: memref<1xi32, #tpu.memory_space<smem>>) -> (i32, i32, i32) {
    %c0 = arith.constant 0 : index
    %0 = memref.load %arg1[%c0] : memref<1xi32, #tpu.memory_space<smem>>
    %c0_i32 = arith.constant 0 : i32
    %c0_i32_0 = arith.constant 0 : i32
    %c0_i32_1 = arith.constant 0 : i32
    return %0, %c0_i32, %c0_i32_0 : i32, i32, i32
  }
  func.func @transform_18(%arg0: i32, %arg1: memref<1xi32, #tpu.memory_space<smem>>) -> (i32, i32, i32) {
    %c0 = arith.constant 0 : index
    %0 = memref.load %arg1[%c0] : memref<1xi32, #tpu.memory_space<smem>>
    %c0_i32 = arith.constant 0 : i32
    %c0_i32_0 = arith.constant 0 : i32
    %c0_i32_1 = arith.constant 0 : i32
    return %0, %c0_i32, %c0_i32_0 : i32, i32, i32
  }
  func.func @transform_19(%arg0: i32, %arg1: memref<1xi32, #tpu.memory_space<smem>>) -> (i32, i32) {
    %c0_i32 = arith.constant 0 : i32
    %c0_i32_0 = arith.constant 0 : i32
    return %arg0, %c0_i32 : i32, i32
  }
  func.func @transform_20(%arg0: i32, %arg1: memref<1xi32, #tpu.memory_space<smem>>) -> (i32, i32) {
    %c0_i32 = arith.constant 0 : i32
    %c0_i32_0 = arith.constant 0 : i32
    return %arg0, %c0_i32 : i32, i32
  }
  func.func @transform_21(%arg0: i32, %arg1: memref<1xi32, #tpu.memory_space<smem>>) -> (i32, i32) {
    %c0_i32 = arith.constant 0 : i32
    %c0_i32_0 = arith.constant 0 : i32
    return %arg0, %c0_i32 : i32, i32
  }
  func.func @transform_22(%arg0: i32, %arg1: memref<1xi32, #tpu.memory_space<smem>>) -> (i32, i32) {
    %c0_i32 = arith.constant 0 : i32
    %c0_i32_0 = arith.constant 0 : i32
    return %arg0, %c0_i32 : i32, i32
  }
}

</mosaic_0001>

<llo_original>
// kernel: meta_vae_forward.1
$region0: #{meta_vae_forward.1}
  #allocation0 [shape = 'u32[]', space=smem, size = 0x4, offset = 0x4, fixed_abs, tag = 'smem constant byte address 0x4 - core index']
  #allocation1 [shape = 'u32[144,128]{1,0:T(1,128)}', space=vmem, size = 0x12000, scoped, tag = 'internal scratch']
  #allocation2 [shape = 's32[1]{0}', space=sflag, size = 0x4, scoped, tag = 'scoped memory for meta_vae_forward.1']
  #allocation3 [shape = 's32[1]{0:T(128)S(6)}', space=smem, size = 0x200, scoped, tag = 'prefetched SMEM operand 0']
  %s0 = inlined_call_operand.<no memory space> [shape: s32[1], index: 0, kind: input, shape index: {}]
  %s1 = inlined_call_operand.vmem [shape: f32[2,784], index: 1, kind: input, shape index: {}]
  %s2 = inlined_call_operand.vmem [shape: f32[2,8,784], index: 2, kind: input, shape index: {}]
  %s3 = inlined_call_operand.vmem [shape: f32[2,8], index: 3, kind: input, shape index: {}]
  %s4 = inlined_call_operand.vmem [shape: bf16[2,784,32], index: 4, kind: input, shape index: {}]
  %s5 = inlined_call_operand.vmem [shape: bf16[32,32], index: 5, kind: input, shape index: {}]
  %s6 = inlined_call_operand.vmem [shape: bf16[32,32], index: 6, kind: input, shape index: {}]
  %s7 = inlined_call_operand.vmem [shape: bf16[32,32], index: 7, kind: input, shape index: {}]
  %s8 = inlined_call_operand.vmem [shape: bf16[32,16], index: 8, kind: input, shape index: {}]
  %s9 = inlined_call_operand.vmem [shape: f32[1,32], index: 9, kind: input, shape index: {}]
  %s10 = inlined_call_operand.vmem [shape: f32[1,32], index: 10, kind: input, shape index: {}]
  %s11 = inlined_call_operand.vmem [shape: f32[1,32], index: 11, kind: input, shape index: {}]
  %s12 = inlined_call_operand.vmem [shape: f32[1,32], index: 12, kind: input, shape index: {}]
  %s13 = inlined_call_operand.vmem [shape: f32[1,16], index: 13, kind: input, shape index: {}]
  %s14 = inlined_call_operand.vmem [shape: bf16[2,8,32], index: 14, kind: input, shape index: {}]
  %s15 = inlined_call_operand.vmem [shape: bf16[2,32,32], index: 15, kind: input, shape index: {}]
  %s16 = inlined_call_operand.vmem [shape: bf16[2,32,784], index: 16, kind: input, shape index: {}]
  %s17 = inlined_call_operand.vmem [shape: f32[2,1,32], index: 17, kind: input, shape index: {}]
  %s18 = inlined_call_operand.vmem [shape: f32[2,1,32], index: 18, kind: input, shape index: {}]
  %s19 = inlined_call_operand.vmem [shape: f32[2,1,784], index: 19, kind: input, shape index: {}]
  %s20 = inlined_call_operand.hbm [shape: f32[2,784], index: 20, kind: output, shape index: {0}]
  %s21 = inlined_call_operand.hbm [shape: f32[2,8], index: 21, kind: output, shape index: {1}]
  %s22 = inlined_call_operand.hbm [shape: f32[2,8], index: 22, kind: output, shape index: {2}]
  %s23 = inlined_call_operand.hbm [shape: f32[2,8], index: 23, kind: output, shape index: {3}]
  %24 = xla_tuple %s20, %s21, %s22, %s23
  %s25 = sld [smem:[#allocation0]]
  $region110: #{meta_vae_forward.1} parent=0
    _
  %s27 = ssub.s32 1, %s25
  %s28 = scalar_select 0, %s27, %s25
  %29 = sst [smem:[#allocation3]] %s0
  $region1: #{meta_vae_forward.1} parent=0
    #allocation4 [shape = 'u8[7168]{0}', space=vmem, size = 0x1c00, scoped, tag = 'output window, operand 0, single buffered']
    #allocation5 [shape = 's32[1]{0}', space=sflag, size = 0x4, scoped, tag = 'scoped memory for meta_vae_forward.1']
    #allocation6 [shape = 'u8[1024]{0}', space=vmem, size = 0x400, scoped, tag = 'output window, operand 1, single buffered']
    #allocation7 [shape = 's32[1]{0}', space=sflag, size = 0x4, scoped, tag = 'scoped memory for meta_vae_forward.1']
    #allocation8 [shape = 'u8[1024]{0}', space=vmem, size = 0x400, scoped, tag = 'output window, operand 2, single buffered']
    #allocation9 [shape = 'u8[1024]{0}', space=vmem, size = 0x400, scoped, tag = 'output window, operand 3, single buffered']
    #allocation10 [shape = 's32[1]{0}', space=sflag, size = 0x4, scoped, tag = 'scoped memory for meta_vae_forward.1']
    %30 = vsyncpa [#allocation5], 0
    %31 = vsyncpa [#allocation7], 0
    %32 = vsyncpa [#allocation10], 0
    // Predicated region
    $region2: #{meta_vae_forward.1} parent=1 // pred_check
      _
    $region3: #{meta_vae_forward.1} parent=1 // pred_check_branch
      %34 = sbr.rel (0) target = $region5
    $region4: #{meta_vae_forward.1} parent=1 // pred_region
      _
    $region5: #{meta_vae_forward.1} parent=1 // pred_fallthru
      _
    // Predicated region
    $region6: #{meta_vae_forward.1} parent=1 // pred_check
      _
    $region7: #{meta_vae_forward.1} parent=1 // pred_check_branch
      %36 = sbr.rel (0) target = $region9
    $region8: #{meta_vae_forward.1} parent=1 // pred_region
      _
    $region9: #{meta_vae_forward.1} parent=1 // pred_fallthru
      _
    // Predicated region
    $region10: #{meta_vae_forward.1} parent=1 // pred_check
      _
    $region11: #{meta_vae_forward.1} parent=1 // pred_check_branch
      %38 = sbr.rel (0) target = $region13
    $region12: #{meta_vae_forward.1} parent=1 // pred_region
      _
    $region13: #{meta_vae_forward.1} parent=1 // pred_fallthru
      _
    // Predicated region
    $region14: #{meta_vae_forward.1} parent=1 // pred_check
      _
    $region15: #{meta_vae_forward.1} parent=1 // pred_check_branch
      %40 = sbr.rel (0) target = $region17
    $region16: #{meta_vae_forward.1} parent=1 // pred_region
      _
    $region17: #{meta_vae_forward.1} parent=1 // pred_fallthru
      _
    // Predicated region
    $region18: #{meta_vae_forward.1} parent=1 // pred_check
      _
    $region19: #{meta_vae_forward.1} parent=1 // pred_check_branch
      %42 = sbr.rel (0) target = $region21
    $region20: #{meta_vae_forward.1} parent=1 // pred_region
      _
    $region21: #{meta_vae_forward.1} parent=1 // pred_fallthru
      _
    // Predicated region
    $region22: #{meta_vae_forward.1} parent=1 // pred_check
      _
    $region23: #{meta_vae_forward.1} parent=1 // pred_check_branch
      %44 = sbr.rel (0) target = $region25
    $region24: #{meta_vae_forward.1} parent=1 // pred_region
      _
    $region25: #{meta_vae_forward.1} parent=1 // pred_fallthru
      _
    // Predicated region
    $region26: #{meta_vae_forward.1} parent=1 // pred_check
      _
    $region27: #{meta_vae_forward.1} parent=1 // pred_check_branch
      %46 = sbr.rel (0) target = $region29
    $region28: #{meta_vae_forward.1} parent=1 // pred_region
      _
    $region29: #{meta_vae_forward.1} parent=1 // pred_fallthru
      _
    // Predicated region
    $region30: #{meta_vae_forward.1} parent=1 // pred_check
      _
    $region31: #{meta_vae_forward.1} parent=1 // pred_check_branch
      %48 = sbr.rel (0) target = $region33
    $region32: #{meta_vae_forward.1} parent=1 // pred_region
      _
    $region33: #{meta_vae_forward.1} parent=1 // pred_fallthru
      _
    // Predicated region
    $region34: #{meta_vae_forward.1} parent=1 // pred_check
      _
    $region35: #{meta_vae_forward.1} parent=1 // pred_check_branch
      %50 = sbr.rel (0) target = $region37
    $region36: #{meta_vae_forward.1} parent=1 // pred_region
      _
    $region37: #{meta_vae_forward.1} parent=1 // pred_fallthru
      _
    // Predicated region
    $region38: #{meta_vae_forward.1} parent=1 // pred_check
      _
    $region39: #{meta_vae_forward.1} parent=1 // pred_check_branch
      %52 = sbr.rel (0) target = $region41
    $region40: #{meta_vae_forward.1} parent=1 // pred_region
      _
    $region41: #{meta_vae_forward.1} parent=1 // pred_fallthru
      _
    // Predicated region
    $region42: #{meta_vae_forward.1} parent=1 // pred_check
      _
    $region43: #{meta_vae_forward.1} parent=1 // pred_check_branch
      %54 = sbr.rel (0) target = $region45
    $region44: #{meta_vae_forward.1} parent=1 // pred_region
      _
    $region45: #{meta_vae_forward.1} parent=1 // pred_fallthru
      _
    // Predicated region
    $region46: #{meta_vae_forward.1} parent=1 // pred_check
      _
    $region47: #{meta_vae_forward.1} parent=1 // pred_check_branch
      %56 = sbr.rel (0) target = $region49
    $region48: #{meta_vae_forward.1} parent=1 // pred_region
      _
    $region49: #{meta_vae_forward.1} parent=1 // pred_fallthru
      _
    // Predicated region
    $region50: #{meta_vae_forward.1} parent=1 // pred_check
      _
    $region51: #{meta_vae_forward.1} parent=1 // pred_check_branch
      %58 = sbr.rel (0) target = $region53
    $region52: #{meta_vae_forward.1} parent=1 // pred_region
      _
    $region53: #{meta_vae_forward.1} parent=1 // pred_fallthru
      _
    // Predicated region
    $region54: #{meta_vae_forward.1} parent=1 // pred_check
      _
    $region55: #{meta_vae_forward.1} parent=1 // pred_check_branch
      %60 = sbr.rel (0) target = $region57
    $region56: #{meta_vae_forward.1} parent=1 // pred_region
      %s61 = sld [smem:[#allocation3]]
      %p62 = scmp.lt.s32.totalorder %s61, 1
      %s63 = scalar_select %p62, %s61, 1
      %s64 = smul.addr %s63, 4
      %s65 = scalar_lea.vmem %s14, %s64
      %s66 = sld [smem:[#allocation3]]
    $region57: #{meta_vae_forward.1} parent=1 // pred_fallthru
      _
    // Predicated region
    $region58: #{meta_vae_forward.1} parent=1 // pred_check
      _
    $region59: #{meta_vae_forward.1} parent=1 // pred_check_branch
      %68 = sbr.rel (0) target = $region61
    $region60: #{meta_vae_forward.1} parent=1 // pred_region
      %s69 = sld [smem:[#allocation3]]
      %p70 = scmp.lt.s32.totalorder %s69, 1
      %s71 = scalar_select %p70, %s69, 1
      %s72 = smul.addr %s71, 4
      %s73 = smul.addr %s72, 4
      %s74 = scalar_lea.vmem %s15, %s73
      %s75 = sld [smem:[#allocation3]]
    $region61: #{meta_vae_forward.1} parent=1 // pred_fallthru
      _
    // Predicated region
    $region62: #{meta_vae_forward.1} parent=1 // pred_check
      _
    $region63: #{meta_vae_forward.1} parent=1 // pred_check_branch
      %77 = sbr.rel (0) target = $region65
    $region64: #{meta_vae_forward.1} parent=1 // pred_region
      %s78 = sld [smem:[#allocation3]]
      %p79 = scmp.lt.s32.totalorder %s78, 1
      %s80 = scalar_select %p79, %s78, 1
      %s81 = smul.addr %s80, 28
      %s82 = smul.addr %s81, 4
      %s83 = scalar_lea.vmem %s16, %s82
      %s84 = sld [smem:[#allocation3]]
    $region65: #{meta_vae_forward.1} parent=1 // pred_fallthru
      _
    // Predicated region
    $region66: #{meta_vae_forward.1} parent=1 // pred_check
      _
    $region67: #{meta_vae_forward.1} parent=1 // pred_check_branch
      %86 = sbr.rel (0) target = $region69
    $region68: #{meta_vae_forward.1} parent=1 // pred_region
      %s87 = sld [smem:[#allocation3]]
      %p88 = scmp.lt.s32.totalorder %s87, 1
      %s89 = scalar_select %p88, %s87, 1
      %s90 = scalar_lea.vmem %s17, %s89
      %s91 = sld [smem:[#allocation3]]
    $region69: #{meta_vae_forward.1} parent=1 // pred_fallthru
      _
    // Predicated region
    $region70: #{meta_vae_forward.1} parent=1 // pred_check
      _
    $region71: #{meta_vae_forward.1} parent=1 // pred_check_branch
      %93 = sbr.rel (0) target = $region73
    $region72: #{meta_vae_forward.1} parent=1 // pred_region
      %s94 = sld [smem:[#allocation3]]
      %p95 = scmp.lt.s32.totalorder %s94, 1
      %s96 = scalar_select %p95, %s94, 1
      %s97 = scalar_lea.vmem %s18, %s96
      %s98 = sld [smem:[#allocation3]]
    $region73: #{meta_vae_forward.1} parent=1 // pred_fallthru
      _
    // Predicated region
    $region74: #{meta_vae_forward.1} parent=1 // pred_check
      _
    $region75: #{meta_vae_forward.1} parent=1 // pred_check_branch
      %100 = sbr.rel (0) target = $region77
    $region76: #{meta_vae_forward.1} parent=1 // pred_region
      %s101 = sld [smem:[#allocation3]]
      %p102 = scmp.lt.s32.totalorder %s101, 1
      %s103 = scalar_select %p102, %s101, 1
      %s104 = smul.addr %s103, 7
      %s105 = scalar_lea.vmem %s19, %s104
      %s106 = sld [smem:[#allocation3]]
    $region77: #{meta_vae_forward.1} parent=1 // pred_fallthru
      _
    %s107 = sld [smem:[#allocation3]]
    %p108 = scmp.lt.s32.totalorder %s107, 1
    %s109 = scalar_select %p108, %s107, 1
    %s110 = smul.addr %s109, 4
    %s111 = scalar_lea.vmem %s14, %s110
    %s112 = sld [smem:[#allocation3]]
    %p113 = scmp.lt.s32.totalorder %s112, 1
    %s114 = scalar_select %p113, %s112, 1
    %s115 = smul.addr %s114, 4
    %s116 = smul.addr %s115, 4
    %s117 = scalar_lea.vmem %s15, %s116
    %s118 = sld [smem:[#allocation3]]
    %p119 = scmp.lt.s32.totalorder %s118, 1
    %s120 = scalar_select %p119, %s118, 1
    %s121 = smul.addr %s120, 28
    %s122 = smul.addr %s121, 4
    %s123 = scalar_lea.vmem %s16, %s122
    %s124 = sld [smem:[#allocation3]]
    %p125 = scmp.lt.s32.totalorder %s124, 1
    %s126 = scalar_select %p125, %s124, 1
    %s127 = scalar_lea.vmem %s17, %s126
    %s128 = sld [smem:[#allocation3]]
    %p129 = scmp.lt.s32.totalorder %s128, 1
    %s130 = scalar_select %p129, %s128, 1
    %s131 = scalar_lea.vmem %s18, %s130
    %s132 = sld [smem:[#allocation3]]
    %p133 = scmp.lt.s32.totalorder %s132, 1
    %s134 = scalar_select %p133, %s132, 1
    %s135 = smul.addr %s134, 7
    %s136 = scalar_lea.vmem %s19, %s135
    %s137 = sld [smem:[#allocation3]]
    %p138 = scmp.lt.s32.totalorder %s137, 1
    %s139 = scalar_select %p138, %s137, 1
    %s140 = smul.addr %s139, 4
    %s141 = scalar_lea.vmem %s14, %s140
    %s142 = sld [smem:[#allocation3]]
    %s143 = sld [smem:[#allocation3]]
    %p144 = scmp.lt.s32.totalorder %s143, 1
    %s145 = scalar_select %p144, %s143, 1
    %s146 = smul.addr %s145, 4
    %s147 = smul.addr %s146, 4
    %s148 = scalar_lea.vmem %s15, %s147
    %s149 = sld [smem:[#allocation3]]
    %s150 = sld [smem:[#allocation3]]
    %p151 = scmp.lt.s32.totalorder %s150, 1
    %s152 = scalar_select %p151, %s150, 1
    %s153 = smul.addr %s152, 28
    %s154 = smul.addr %s153, 4
    %s155 = scalar_lea.vmem %s16, %s154
    %s156 = sld [smem:[#allocation3]]
    %s157 = sld [smem:[#allocation3]]
    %p158 = scmp.lt.s32.totalorder %s157, 1
    %s159 = scalar_select %p158, %s157, 1
    %s160 = scalar_lea.vmem %s17, %s159
    %s161 = sld [smem:[#allocation3]]
    %s162 = sld [smem:[#allocation3]]
    %p163 = scmp.lt.s32.totalorder %s162, 1
    %s164 = scalar_select %p163, %s162, 1
    %s165 = scalar_lea.vmem %s18, %s164
    %s166 = sld [smem:[#allocation3]]
    %s167 = sld [smem:[#allocation3]]
    %p168 = scmp.lt.s32.totalorder %s167, 1
    %s169 = scalar_select %p168, %s167, 1
    %s170 = smul.addr %s169, 7
    %s171 = scalar_lea.vmem %s19, %s170
    %s172 = sld [smem:[#allocation3]]
    %v174 = vld [vmem:[%s4] sm:$0xf]
    %v175 = vld [vmem:[%s4 + $0x4] sm:$0xf]
    %v176 = vld [vmem:[%s4 + $0x8] sm:$0xf]
    %v177 = vld [vmem:[%s4 + $0xc] sm:$0xf]
    %v178 = vld [vmem:[%s4 + $0x10] sm:$0xf]
    %v179 = vld [vmem:[%s4 + $0x14] sm:$0xf]
    %v180 = vld [vmem:[%s4 + $0x18] sm:$0xf]
    %v181 = vld [vmem:[%s4 + $0x1c] sm:$0xf]
    %v182 = vld [vmem:[%s4 + $0x20] sm:$0xf]
    %v183 = vld [vmem:[%s4 + $0x24] sm:$0xf]
    %v184 = vld [vmem:[%s4 + $0x28] sm:$0xf]
    %v185 = vld [vmem:[%s4 + $0x2c] sm:$0xf]
    %v186 = vld [vmem:[%s4 + $0x30] sm:$0xf]
    %v187 = vld [vmem:[%s4 + $0x34] sm:$0xf]
    %v188 = vld [vmem:[%s4 + $0x38] sm:$0xf]
    %v189 = vld [vmem:[%s4 + $0x3c] sm:$0xf]
    %v190 = vld [vmem:[%s4 + $0x40] sm:$0xf]
    %v191 = vld [vmem:[%s4 + $0x44] sm:$0xf]
    %v192 = vld [vmem:[%s4 + $0x48] sm:$0xf]
    %v193 = vld [vmem:[%s4 + $0x4c] sm:$0xf]
    %v194 = vld [vmem:[%s4 + $0x50] sm:$0xf]
    %v195 = vld [vmem:[%s4 + $0x54] sm:$0xf]
    %v196 = vld [vmem:[%s4 + $0x58] sm:$0xf]
    %v197 = vld [vmem:[%s4 + $0x5c] sm:$0xf]
    %v198 = vld [vmem:[%s4 + $0x60] sm:$0xf]
    %v199 = vld [vmem:[%s4 + $0x64] sm:$0xf]
    %v200 = vld [vmem:[%s4 + $0x68] sm:$0xf]
    %v201 = vld [vmem:[%s4 + $0x6c] sm:$0xf]
    %v202 = vld [vmem:[%s4 + $0x70] sm:$0xf]
    %v203 = vld [vmem:[%s4 + $0x74] sm:$0xf]
    %v204 = vld [vmem:[%s4 + $0x78] sm:$0xf]
    %v205 = vld [vmem:[%s4 + $0x7c] sm:$0xf]
    %v206 = vld [vmem:[%s4 + $0x80] sm:$0xf]
    %v207 = vld [vmem:[%s4 + $0x84] sm:$0xf]
    %v208 = vld [vmem:[%s4 + $0x88] sm:$0xf]
    %v209 = vld [vmem:[%s4 + $0x8c] sm:$0xf]
    %v210 = vld [vmem:[%s4 + $0x90] sm:$0xf]
    %v211 = vld [vmem:[%s4 + $0x94] sm:$0xf]
    %v212 = vld [vmem:[%s4 + $0x98] sm:$0xf]
    %v213 = vld [vmem:[%s4 + $0x9c] sm:$0xf]
    %v214 = vld [vmem:[%s4 + $0xa0] sm:$0xf]
    %v215 = vld [vmem:[%s4 + $0xa4] sm:$0xf]
    %v216 = vld [vmem:[%s4 + $0xa8] sm:$0xf]
    %v217 = vld [vmem:[%s4 + $0xac] sm:$0xf]
    %v218 = vld [vmem:[%s4 + $0xb0] sm:$0xf]
    %v219 = vld [vmem:[%s4 + $0xb4] sm:$0xf]
    %v220 = vld [vmem:[%s4 + $0xb8] sm:$0xf]
    %v221 = vld [vmem:[%s4 + $0xbc] sm:$0xf]
    %v222 = vld [vmem:[%s4 + $0xc0] sm:$0xf]
    %v223 = vld [vmem:[%s4 + $0xc4] sm:$0xf]
    %v224 = vld [vmem:[%s4 + $0xc8] sm:$0xf]
    %v225 = vld [vmem:[%s4 + $0xcc] sm:$0xf]
    %v226 = vld [vmem:[%s4 + $0xd0] sm:$0xf]
    %v227 = vld [vmem:[%s4 + $0xd4] sm:$0xf]
    %v228 = vld [vmem:[%s4 + $0xd8] sm:$0xf]
    %v229 = vld [vmem:[%s4 + $0xdc] sm:$0xf]
    %v230 = vld [vmem:[%s4 + $0xe0] sm:$0xf]
    %v231 = vld [vmem:[%s4 + $0xe4] sm:$0xf]
    %v232 = vld [vmem:[%s4 + $0xe8] sm:$0xf]
    %v233 = vld [vmem:[%s4 + $0xec] sm:$0xf]
    %v234 = vld [vmem:[%s4 + $0xf0] sm:$0xf]
    %v235 = vld [vmem:[%s4 + $0xf4] sm:$0xf]
    %v236 = vld [vmem:[%s4 + $0xf8] sm:$0xf]
    %v237 = vld [vmem:[%s4 + $0xfc] sm:$0xf]
    %v238 = vld [vmem:[%s4 + $0x100] sm:$0xf]
    %v239 = vld [vmem:[%s4 + $0x104] sm:$0xf]
    %v240 = vld [vmem:[%s4 + $0x108] sm:$0xf]
    %v241 = vld [vmem:[%s4 + $0x10c] sm:$0xf]
    %v242 = vld [vmem:[%s4 + $0x110] sm:$0xf]
    %v243 = vld [vmem:[%s4 + $0x114] sm:$0xf]
    %v244 = vld [vmem:[%s4 + $0x118] sm:$0xf]
    %v245 = vld [vmem:[%s4 + $0x11c] sm:$0xf]
    %v246 = vld [vmem:[%s4 + $0x120] sm:$0xf]
    %v247 = vld [vmem:[%s4 + $0x124] sm:$0xf]
    %v248 = vld [vmem:[%s4 + $0x128] sm:$0xf]
    %v249 = vld [vmem:[%s4 + $0x12c] sm:$0xf]
    %v250 = vld [vmem:[%s4 + $0x130] sm:$0xf]
    %v251 = vld [vmem:[%s4 + $0x134] sm:$0xf]
    %v252 = vld [vmem:[%s4 + $0x138] sm:$0xf]
    %v253 = vld [vmem:[%s4 + $0x13c] sm:$0xf]
    %v254 = vld [vmem:[%s4 + $0x140] sm:$0xf]
    %v255 = vld [vmem:[%s4 + $0x144] sm:$0xf]
    %v256 = vld [vmem:[%s4 + $0x148] sm:$0xf]
    %v257 = vld [vmem:[%s4 + $0x14c] sm:$0xf]
    %v258 = vld [vmem:[%s4 + $0x150] sm:$0xf]
    %v259 = vld [vmem:[%s4 + $0x154] sm:$0xf]
    %v260 = vld [vmem:[%s4 + $0x158] sm:$0xf]
    %v261 = vld [vmem:[%s4 + $0x15c] sm:$0xf]
    %v262 = vld [vmem:[%s4 + $0x160] sm:$0xf]
    %v263 = vld [vmem:[%s4 + $0x164] sm:$0xf]
    %v264 = vld [vmem:[%s4 + $0x168] sm:$0xf]
    %v265 = vld [vmem:[%s4 + $0x16c] sm:$0xf]
    %v266 = vld [vmem:[%s4 + $0x170] sm:$0xf]
    %v267 = vld [vmem:[%s4 + $0x174] sm:$0xf]
    %v268 = vld [vmem:[%s4 + $0x178] sm:$0xf]
    %v269 = vld [vmem:[%s4 + $0x17c] sm:$0xf]
    %v270 = vld [vmem:[%s4 + $0x180] sm:$0xf]
    %v271 = vld [vmem:[%s4 + $0x184] sm:$0xf]
    %s272 = scalar_lea.vmem %s4, 392
    %v273 = vld [vmem:[%s272] sm:$0xf]
    %v274 = vld [vmem:[%s272 + $0x4] sm:$0xf]
    %v275 = vld [vmem:[%s272 + $0x8] sm:$0xf]
    %v276 = vld [vmem:[%s272 + $0xc] sm:$0xf]
    %v277 = vld [vmem:[%s272 + $0x10] sm:$0xf]
    %v278 = vld [vmem:[%s272 + $0x14] sm:$0xf]
    %v279 = vld [vmem:[%s272 + $0x18] sm:$0xf]
    %v280 = vld [vmem:[%s272 + $0x1c] sm:$0xf]
    %v281 = vld [vmem:[%s272 + $0x20] sm:$0xf]
    %v282 = vld [vmem:[%s272 + $0x24] sm:$0xf]
    %v283 = vld [vmem:[%s272 + $0x28] sm:$0xf]
    %v284 = vld [vmem:[%s272 + $0x2c] sm:$0xf]
    %v285 = vld [vmem:[%s272 + $0x30] sm:$0xf]
    %v286 = vld [vmem:[%s272 + $0x34] sm:$0xf]
    %v287 = vld [vmem:[%s272 + $0x38] sm:$0xf]
    %v288 = vld [vmem:[%s272 + $0x3c] sm:$0xf]
    %v289 = vld [vmem:[%s272 + $0x40] sm:$0xf]
    %v290 = vld [vmem:[%s272 + $0x44] sm:$0xf]
    %v291 = vld [vmem:[%s272 + $0x48] sm:$0xf]
    %v292 = vld [vmem:[%s272 + $0x4c] sm:$0xf]
    %v293 = vld [vmem:[%s272 + $0x50] sm:$0xf]
    %v294 = vld [vmem:[%s272 + $0x54] sm:$0xf]
    %v295 = vld [vmem:[%s272 + $0x58] sm:$0xf]
    %v296 = vld [vmem:[%s272 + $0x5c] sm:$0xf]
    %v297 = vld [vmem:[%s272 + $0x60] sm:$0xf]
    %v298 = vld [vmem:[%s272 + $0x64] sm:$0xf]
    %v299 = vld [vmem:[%s272 + $0x68] sm:$0xf]
    %v300 = vld [vmem:[%s272 + $0x6c] sm:$0xf]
    %v301 = vld [vmem:[%s272 + $0x70] sm:$0xf]
    %v302 = vld [vmem:[%s272 + $0x74] sm:$0xf]
    %v303 = vld [vmem:[%s272 + $0x78] sm:$0xf]
    %v304 = vld [vmem:[%s272 + $0x7c] sm:$0xf]
    %v305 = vld [vmem:[%s272 + $0x80] sm:$0xf]
    %v306 = vld [vmem:[%s272 + $0x84] sm:$0xf]
    %v307 = vld [vmem:[%s272 + $0x88] sm:$0xf]
    %v308 = vld [vmem:[%s272 + $0x8c] sm:$0xf]
    %v309 = vld [vmem:[%s272 + $0x90] sm:$0xf]
    %v310 = vld [vmem:[%s272 + $0x94] sm:$0xf]
    %v311 = vld [vmem:[%s272 + $0x98] sm:$0xf]
    %v312 = vld [vmem:[%s272 + $0x9c] sm:$0xf]
    %v313 = vld [vmem:[%s272 + $0xa0] sm:$0xf]
    %v314 = vld [vmem:[%s272 + $0xa4] sm:$0xf]
    %v315 = vld [vmem:[%s272 + $0xa8] sm:$0xf]
    %v316 = vld [vmem:[%s272 + $0xac] sm:$0xf]
    %v317 = vld [vmem:[%s272 + $0xb0] sm:$0xf]
    %v318 = vld [vmem:[%s272 + $0xb4] sm:$0xf]
    %v319 = vld [vmem:[%s272 + $0xb8] sm:$0xf]
    %v320 = vld [vmem:[%s272 + $0xbc] sm:$0xf]
    %v321 = vld [vmem:[%s272 + $0xc0] sm:$0xf]
    %v322 = vld [vmem:[%s272 + $0xc4] sm:$0xf]
    %v323 = vld [vmem:[%s272 + $0xc8] sm:$0xf]
    %v324 = vld [vmem:[%s272 + $0xcc] sm:$0xf]
    %v325 = vld [vmem:[%s272 + $0xd0] sm:$0xf]
    %v326 = vld [vmem:[%s272 + $0xd4] sm:$0xf]
    %v327 = vld [vmem:[%s272 + $0xd8] sm:$0xf]
    %v328 = vld [vmem:[%s272 + $0xdc] sm:$0xf]
    %v329 = vld [vmem:[%s272 + $0xe0] sm:$0xf]
    %v330 = vld [vmem:[%s272 + $0xe4] sm:$0xf]
    %v331 = vld [vmem:[%s272 + $0xe8] sm:$0xf]
    %v332 = vld [vmem:[%s272 + $0xec] sm:$0xf]
    %v333 = vld [vmem:[%s272 + $0xf0] sm:$0xf]
    %v334 = vld [vmem:[%s272 + $0xf4] sm:$0xf]
    %v335 = vld [vmem:[%s272 + $0xf8] sm:$0xf]
    %v336 = vld [vmem:[%s272 + $0xfc] sm:$0xf]
    %v337 = vld [vmem:[%s272 + $0x100] sm:$0xf]
    %v338 = vld [vmem:[%s272 + $0x104] sm:$0xf]
    %v339 = vld [vmem:[%s272 + $0x108] sm:$0xf]
    %v340 = vld [vmem:[%s272 + $0x10c] sm:$0xf]
    %v341 = vld [vmem:[%s272 + $0x110] sm:$0xf]
    %v342 = vld [vmem:[%s272 + $0x114] sm:$0xf]
    %v343 = vld [vmem:[%s272 + $0x118] sm:$0xf]
    %v344 = vld [vmem:[%s272 + $0x11c] sm:$0xf]
    %v345 = vld [vmem:[%s272 + $0x120] sm:$0xf]
    %v346 = vld [vmem:[%s272 + $0x124] sm:$0xf]
    %v347 = vld [vmem:[%s272 + $0x128] sm:$0xf]
    %v348 = vld [vmem:[%s272 + $0x12c] sm:$0xf]
    %v349 = vld [vmem:[%s272 + $0x130] sm:$0xf]
    %v350 = vld [vmem:[%s272 + $0x134] sm:$0xf]
    %v351 = vld [vmem:[%s272 + $0x138] sm:$0xf]
    %v352 = vld [vmem:[%s272 + $0x13c] sm:$0xf]
    %v353 = vld [vmem:[%s272 + $0x140] sm:$0xf]
    %v354 = vld [vmem:[%s272 + $0x144] sm:$0xf]
    %v355 = vld [vmem:[%s272 + $0x148] sm:$0xf]
    %v356 = vld [vmem:[%s272 + $0x14c] sm:$0xf]
    %v357 = vld [vmem:[%s272 + $0x150] sm:$0xf]
    %v358 = vld [vmem:[%s272 + $0x154] sm:$0xf]
    %v359 = vld [vmem:[%s272 + $0x158] sm:$0xf]
    %v360 = vld [vmem:[%s272 + $0x15c] sm:$0xf]
    %v361 = vld [vmem:[%s272 + $0x160] sm:$0xf]
    %v362 = vld [vmem:[%s272 + $0x164] sm:$0xf]
    %v363 = vld [vmem:[%s272 + $0x168] sm:$0xf]
    %v364 = vld [vmem:[%s272 + $0x16c] sm:$0xf]
    %v365 = vld [vmem:[%s272 + $0x170] sm:$0xf]
    %v366 = vld [vmem:[%s272 + $0x174] sm:$0xf]
    %v367 = vld [vmem:[%s272 + $0x178] sm:$0xf]
    %v368 = vld [vmem:[%s272 + $0x17c] sm:$0xf]
    %v369 = vld [vmem:[%s272 + $0x180] sm:$0xf]
    %v370 = vld [vmem:[%s272 + $0x184] sm:$0xf]
    %v371 = vld [vmem:[%s9] sm:$0x1]
    %v372 = vld [vmem:[%s2] ss:$8 sm:$0xf]
    %v373 = vld [vmem:[%s2] ss:$8 sm:$0x70]
    %v374 = vor.u32 %v372, %v373
    %s375 = scalar_lea.vmem %s2, 56
    %v376 = vld [vmem:[%s375] ss:$8 sm:$0xf]
    %v377 = vld [vmem:[%s375] ss:$8 sm:$0x70]
    %v378 = vor.u32 %v376, %v377
    %v381 = vlaneseq
    %v382 = vshrl.u32 %v381, 7
    %v383 = vsub.s32 0, %v382
    %v384 = vrot.slane %v374, %v383
    %v385 = vlaneseq
    %v386 = vshrl.u32 %v385, 7
    %v387 = vsub.s32 1, %v386
    %v388 = vrot.slane %v374, %v387
    %v389 = vlaneseq
    %v390 = vshrl.u32 %v389, 7
    %v391 = vsub.s32 2, %v390
    %v392 = vrot.slane %v374, %v391
    %v393 = vlaneseq
    %v394 = vshrl.u32 %v393, 7
    %v395 = vsub.s32 3, %v394
    %v396 = vrot.slane %v374, %v395
    %v397 = vlaneseq
    %v398 = vshrl.u32 %v397, 7
    %v399 = vsub.s32 4, %v398
    %v400 = vrot.slane %v374, %v399
    %v401 = vlaneseq
    %v402 = vshrl.u32 %v401, 7
    %v403 = vsub.s32 5, %v402
    %v404 = vrot.slane %v374, %v403
    %v405 = vlaneseq
    %v406 = vshrl.u32 %v405, 7
    %v407 = vsub.s32 6, %v406
    %v408 = vrot.slane %v374, %v407
    %v409 = vlaneseq
    %v410 = vshrl.u32 %v409, 7
    %v411 = vsub.s32 0, %v410
    %v412 = vrot.slane %v378, %v411
    %v413 = vlaneseq
    %v414 = vshrl.u32 %v413, 7
    %v415 = vsub.s32 1, %v414
    %v416 = vrot.slane %v378, %v415
    %v417 = vlaneseq
    %v418 = vshrl.u32 %v417, 7
    %v419 = vsub.s32 2, %v418
    %v420 = vrot.slane %v378, %v419
    %v421 = vlaneseq
    %v422 = vshrl.u32 %v421, 7
    %v423 = vsub.s32 3, %v422
    %v424 = vrot.slane %v378, %v423
    %v425 = vlaneseq
    %v426 = vshrl.u32 %v425, 7
    %v427 = vsub.s32 4, %v426
    %v428 = vrot.slane %v378, %v427
    %v429 = vlaneseq
    %v430 = vshrl.u32 %v429, 7
    %v431 = vsub.s32 5, %v430
    %v432 = vrot.slane %v378, %v431
    %v433 = vlaneseq
    %v434 = vshrl.u32 %v433, 7
    %v435 = vsub.s32 6, %v434
    %v436 = vrot.slane %v378, %v435
    %v451 = vpack.c.bf16 %v384, %v384
    %v452 = vpack.c.bf16 %v388, %v388
    %v453 = vpack.c.bf16 %v392, %v392
    %v454 = vpack.c.bf16 %v396, %v396
    %v455 = vpack.c.bf16 %v400, %v400
    %v456 = vpack.c.bf16 %v404, %v404
    %v457 = vpack.c.bf16 %v408, %v408
    %v458 = vpack.c.bf16 %v412, %v412
    %v459 = vpack.c.bf16 %v416, %v416
    %v460 = vpack.c.bf16 %v420, %v420
    %v461 = vpack.c.bf16 %v424, %v424
    %v462 = vpack.c.bf16 %v428, %v428
    %v463 = vpack.c.bf16 %v432, %v432
    %v464 = vpack.c.bf16 %v436, %v436
    %v466 = vlaneseq
    %v467 = vshrl.u32 %v466, 7
    %v468 = vsub.s32 0, %v467
    %v469 = vrot.slane %v371, %v468
    %v485 = vunpack.c.l.b16 %v451
    %v486 = vunpack.c.l.b16 %v452
    %v487 = vunpack.c.l.b16 %v453
    %v488 = vunpack.c.l.b16 %v454
    %v489 = vunpack.c.l.b16 %v455
    %v490 = vunpack.c.l.b16 %v456
    %v491 = vunpack.c.l.b16 %v457
    %v492 = vunpack.c.l.b16 %v458
    %v493 = vunpack.c.l.b16 %v459
    %v494 = vunpack.c.l.b16 %v460
    %v495 = vunpack.c.l.b16 %v461
    %v496 = vunpack.c.l.b16 %v462
    %v497 = vunpack.c.l.b16 %v463
    %v498 = vunpack.c.l.b16 %v464
    %v499 = vrot.slane %v492, 7
    %vm500 = vcmask 1041409
    %v501 = vsel %vm500, %v499, %v485
    %v502 = vrot.slane %v493, 7
    %v503 = vsel %vm500, %v502, %v486
    %v504 = vrot.slane %v494, 7
    %v505 = vsel %vm500, %v504, %v487
    %v506 = vrot.slane %v495, 7
    %v507 = vsel %vm500, %v506, %v488
    %v508 = vrot.slane %v496, 7
    %v509 = vsel %vm500, %v508, %v489
    %v510 = vrot.slane %v497, 7
    %v511 = vsel %vm500, %v510, %v490
    %v512 = vrot.slane %v498, 7
    %v513 = vsel %vm500, %v512, %v491
    %v514 = vpack.c.b16 %v501, %v501
    %v515 = vpack.c.b16 %v503, %v503
    %v516 = vpack.c.b16 %v505, %v505
    %v517 = vpack.c.b16 %v507, %v507
    %v518 = vpack.c.b16 %v509, %v509
    %v519 = vpack.c.b16 %v511, %v511
    %v520 = vpack.c.b16 %v513, %v513
    %v625 = vunpack.c.l.b16 %v174
    %v626 = vunpack.c.l.b16 %v175
    %v627 = vunpack.c.l.b16 %v176
    %v628 = vunpack.c.l.b16 %v177
    %v629 = vunpack.c.l.b16 %v178
    %v630 = vunpack.c.l.b16 %v179
    %v631 = vunpack.c.l.b16 %v180
    %v632 = vunpack.c.l.b16 %v181
    %v633 = vunpack.c.l.b16 %v182
    %v634 = vunpack.c.l.b16 %v183
    %v635 = vunpack.c.l.b16 %v184
    %v636 = vunpack.c.l.b16 %v185
    %v637 = vunpack.c.l.b16 %v186
    %v638 = vunpack.c.l.b16 %v187
    %v639 = vunpack.c.l.b16 %v188
    %v640 = vunpack.c.l.b16 %v189
    %v641 = vunpack.c.l.b16 %v190
    %v642 = vunpack.c.l.b16 %v191
    %v643 = vunpack.c.l.b16 %v192
    %v644 = vunpack.c.l.b16 %v193
    %v645 = vunpack.c.l.b16 %v194
    %v646 = vunpack.c.l.b16 %v195
    %v647 = vunpack.c.l.b16 %v196
    %v648 = vunpack.c.l.b16 %v197
    %v649 = vunpack.c.l.b16 %v198
    %v650 = vunpack.c.l.b16 %v199
    %v651 = vunpack.c.l.b16 %v200
    %v652 = vunpack.c.l.b16 %v201
    %v653 = vunpack.c.l.b16 %v202
    %v654 = vunpack.c.l.b16 %v203
    %v655 = vunpack.c.l.b16 %v204
    %v656 = vunpack.c.l.b16 %v205
    %v657 = vunpack.c.l.b16 %v206
    %v658 = vunpack.c.l.b16 %v207
    %v659 = vunpack.c.l.b16 %v208
    %v660 = vunpack.c.l.b16 %v209
    %v661 = vunpack.c.l.b16 %v210
    %v662 = vunpack.c.l.b16 %v211
    %v663 = vunpack.c.l.b16 %v212
    %v664 = vunpack.c.l.b16 %v213
    %v665 = vunpack.c.l.b16 %v214
    %v666 = vunpack.c.l.b16 %v215
    %v667 = vunpack.c.l.b16 %v216
    %v668 = vunpack.c.l.b16 %v217
    %v669 = vunpack.c.l.b16 %v218
    %v670 = vunpack.c.l.b16 %v219
    %v671 = vunpack.c.l.b16 %v220
    %v672 = vunpack.c.l.b16 %v221
    %v673 = vunpack.c.l.b16 %v222
    %v674 = vunpack.c.l.b16 %v223
    %v675 = vunpack.c.l.b16 %v224
    %v676 = vunpack.c.l.b16 %v225
    %v677 = vunpack.c.l.b16 %v226
    %v678 = vunpack.c.l.b16 %v227
    %v679 = vunpack.c.l.b16 %v228
    %v680 = vunpack.c.l.b16 %v229
    %v681 = vunpack.c.l.b16 %v230
    %v682 = vunpack.c.l.b16 %v231
    %v683 = vunpack.c.l.b16 %v232
    %v684 = vunpack.c.l.b16 %v233
    %v685 = vunpack.c.l.b16 %v234
    %v686 = vunpack.c.l.b16 %v235
    %v687 = vunpack.c.l.b16 %v236
    %v688 = vunpack.c.l.b16 %v237
    %v689 = vunpack.c.l.b16 %v238
    %v690 = vunpack.c.l.b16 %v239
    %v691 = vunpack.c.l.b16 %v240
    %v692 = vunpack.c.l.b16 %v241
    %v693 = vunpack.c.l.b16 %v242
    %v694 = vunpack.c.l.b16 %v243
    %v695 = vunpack.c.l.b16 %v244
    %v696 = vunpack.c.l.b16 %v245
    %v697 = vunpack.c.l.b16 %v246
    %v698 = vunpack.c.l.b16 %v247
    %v699 = vunpack.c.l.b16 %v248
    %v700 = vunpack.c.l.b16 %v249
    %v701 = vunpack.c.l.b16 %v250
    %v702 = vunpack.c.l.b16 %v251
    %v703 = vunpack.c.l.b16 %v252
    %v704 = vunpack.c.l.b16 %v253
    %v705 = vunpack.c.l.b16 %v254
    %v706 = vunpack.c.l.b16 %v255
    %v707 = vunpack.c.l.b16 %v256
    %v708 = vunpack.c.l.b16 %v257
    %v709 = vunpack.c.l.b16 %v258
    %v710 = vunpack.c.l.b16 %v259
    %v711 = vunpack.c.l.b16 %v260
    %v712 = vunpack.c.l.b16 %v261
    %v713 = vunpack.c.l.b16 %v262
    %v714 = vunpack.c.l.b16 %v263
    %v715 = vunpack.c.l.b16 %v264
    %v716 = vunpack.c.l.b16 %v265
    %v717 = vunpack.c.l.b16 %v266
    %v718 = vunpack.c.l.b16 %v267
    %v719 = vunpack.c.l.b16 %v268
    %v720 = vunpack.c.l.b16 %v269
    %v721 = vunpack.c.l.b16 %v270
    %v722 = vunpack.c.l.b16 %v271
    %v723 = vpack.c.b16 %v626, %v625
    %v724 = vpack.c.b16 %v628, %v627
    %v725 = vpack.c.b16 %v630, %v629
    %v726 = vpack.c.b16 %v632, %v631
    %v727 = vpack.c.b16 %v634, %v633
    %v728 = vpack.c.b16 %v636, %v635
    %v729 = vpack.c.b16 %v638, %v637
    %v730 = vpack.c.b16 %v640, %v639
    %v731 = vpack.c.b16 %v642, %v641
    %v732 = vpack.c.b16 %v644, %v643
    %v733 = vpack.c.b16 %v646, %v645
    %v734 = vpack.c.b16 %v648, %v647
    %v735 = vpack.c.b16 %v650, %v649
    %v736 = vpack.c.b16 %v652, %v651
    %v737 = vpack.c.b16 %v654, %v653
    %v738 = vpack.c.b16 %v656, %v655
    %v739 = vpack.c.b16 %v658, %v657
    %v740 = vpack.c.b16 %v660, %v659
    %v741 = vpack.c.b16 %v662, %v661
    %v742 = vpack.c.b16 %v664, %v663
    %v743 = vpack.c.b16 %v666, %v665
    %v744 = vpack.c.b16 %v668, %v667
    %v745 = vpack.c.b16 %v670, %v669
    %v746 = vpack.c.b16 %v672, %v671
    %v747 = vpack.c.b16 %v674, %v673
    %v748 = vpack.c.b16 %v676, %v675
    %v749 = vpack.c.b16 %v678, %v677
    %v750 = vpack.c.b16 %v680, %v679
    %v751 = vpack.c.b16 %v682, %v681
    %v752 = vpack.c.b16 %v684, %v683
    %v753 = vpack.c.b16 %v686, %v685
    %v754 = vpack.c.b16 %v688, %v687
    %v755 = vpack.c.b16 %v690, %v689
    %v756 = vpack.c.b16 %v692, %v691
    %v757 = vpack.c.b16 %v694, %v693
    %v758 = vpack.c.b16 %v696, %v695
    %v759 = vpack.c.b16 %v698, %v697
    %v760 = vpack.c.b16 %v700, %v699
    %v761 = vpack.c.b16 %v702, %v701
    %v762 = vpack.c.b16 %v704, %v703
    %v763 = vpack.c.b16 %v706, %v705
    %v764 = vpack.c.b16 %v708, %v707
    %v765 = vpack.c.b16 %v710, %v709
    %v766 = vpack.c.b16 %v712, %v711
    %v767 = vpack.c.b16 %v714, %v713
    %v768 = vpack.c.b16 %v716, %v715
    %v769 = vpack.c.b16 %v718, %v717
    %v770 = vpack.c.b16 %v720, %v719
    %v771 = vpack.c.b16 %v722, %v721
    %vm821 = vcmask 130048
    %v823 = vsel %vm821, %v520, 0
    %825 = vmatprep.subr.bf16.mxu0 0
    %826 = vmatpush1.bf16.msra.mxu0 %v730
    %827 = vmatprep.subr.bf16.mxu0 0
    %828 = vmatpush1.bf16.msra.mxu0 %v729
    %829 = vmatprep.subr.bf16.mxu0 0
    %830 = vmatpush1.bf16.msra.mxu0 %v728
    %831 = vmatprep.subr.bf16.mxu0 0
    %832 = vmatpush1.bf16.msra.mxu0 %v727
    %833 = vmatprep.subr.bf16.mxu0 0
    %834 = vmatpush1.bf16.msra.mxu0 %v726
    %835 = vmatprep.subr.bf16.mxu0 0
    %836 = vmatpush1.bf16.msra.mxu0 %v725
    %837 = vmatprep.subr.bf16.mxu0 0
    %838 = vmatpush1.bf16.msra.mxu0 %v724
    %839 = vmatprep.subr.bf16.mxu0 0
    %840 = vmatpush1.bf16.msra.mxu0 %v723
    %841 = vmatprep.subr.bf16.mxu0 0
    %842 = vmatpush2.bf16.msra.mxu0 %v738
    %843 = vmatprep.subr.bf16.mxu0 0
    %844 = vmatpush2.bf16.msra.mxu0 %v737
    %845 = vmatprep.subr.bf16.mxu0 0
    %846 = vmatpush2.bf16.msra.mxu0 %v736
    %847 = vmatprep.subr.bf16.mxu0 0
    %848 = vmatpush2.bf16.msra.mxu0 %v735
    %849 = vmatprep.subr.bf16.mxu0 0
    %850 = vmatpush2.bf16.msra.mxu0 %v734
    %851 = vmatprep.subr.bf16.mxu0 0
    %852 = vmatpush2.bf16.msra.mxu0 %v733
    %853 = vmatprep.subr.bf16.mxu0 0
    %854 = vmatpush2.bf16.msra.mxu0 %v732
    %855 = vmatprep.subr.bf16.mxu0 0
    %856 = vmatpush2.bf16.msra.mxu0 %v731
    %857 = vmatprep.mubr.bf16.mxu0 %v515
    %858 = vmatmul.mubr.bf16.gmra.mxu0 %v514
    %v859 = vpop.f32.mrf.mxu0
    %v860 = vadd.f32 %v469, %v859
    %v861 = vpop.f32.mrf.mxu0
    %v862 = vpop.f32.mrf.mxu0
    %v863 = vpop.f32.mrf.mxu0
    %864 = vdwg.mxu0
    %865 = vmatprep.subr.bf16.mxu0 0
    %866 = vmatpush1.bf16.msra.mxu0 %v746
    %867 = vmatprep.subr.bf16.mxu0 0
    %868 = vmatpush1.bf16.msra.mxu0 %v745
    %869 = vmatprep.subr.bf16.mxu0 0
    %870 = vmatpush1.bf16.msra.mxu0 %v744
    %871 = vmatprep.subr.bf16.mxu0 0
    %872 = vmatpush1.bf16.msra.mxu0 %v743
    %873 = vmatprep.subr.bf16.mxu0 0
    %874 = vmatpush1.bf16.msra.mxu0 %v742
    %875 = vmatprep.subr.bf16.mxu0 0
    %876 = vmatpush1.bf16.msra.mxu0 %v741
    %877 = vmatprep.subr.bf16.mxu0 0
    %878 = vmatpush1.bf16.msra.mxu0 %v740
    %879 = vmatprep.subr.bf16.mxu0 0
    %880 = vmatpush1.bf16.msra.mxu0 %v739
    %881 = vmatprep.subr.bf16.mxu0 0
    %882 = vmatpush2.bf16.msra.mxu0 %v754
    %883 = vmatprep.subr.bf16.mxu0 0
    %884 = vmatpush2.bf16.msra.mxu0 %v753
    %885 = vmatprep.subr.bf16.mxu0 0
    %886 = vmatpush2.bf16.msra.mxu0 %v752
    %887 = vmatprep.subr.bf16.mxu0 0
    %888 = vmatpush2.bf16.msra.mxu0 %v751
    %889 = vmatprep.subr.bf16.mxu0 0
    %890 = vmatpush2.bf16.msra.mxu0 %v750
    %891 = vmatprep.subr.bf16.mxu0 0
    %892 = vmatpush2.bf16.msra.mxu0 %v749
    %893 = vmatprep.subr.bf16.mxu0 0
    %894 = vmatpush2.bf16.msra.mxu0 %v748
    %895 = vmatprep.subr.bf16.mxu0 0
    %896 = vmatpush2.bf16.msra.mxu0 %v747
    %897 = vmatprep.mubr.bf16.mxu0 %v517
    %898 = vmatmul.mubr.bf16.gmra.mxu0 %v516
    %v899 = vpop.f32.mrf.mxu0
    %v900 = vadd.f32 %v860, %v899
    %v901 = vpop.f32.mrf.mxu0
    %v902 = vpop.f32.mrf.mxu0
    %v903 = vpop.f32.mrf.mxu0
    %904 = vdwg.mxu0
    %905 = vmatprep.subr.bf16.mxu0 0
    %906 = vmatpush1.bf16.msra.mxu0 %v762
    %907 = vmatprep.subr.bf16.mxu0 0
    %908 = vmatpush1.bf16.msra.mxu0 %v761
    %909 = vmatprep.subr.bf16.mxu0 0
    %910 = vmatpush1.bf16.msra.mxu0 %v760
    %911 = vmatprep.subr.bf16.mxu0 0
    %912 = vmatpush1.bf16.msra.mxu0 %v759
    %913 = vmatprep.subr.bf16.mxu0 0
    %914 = vmatpush1.bf16.msra.mxu0 %v758
    %915 = vmatprep.subr.bf16.mxu0 0
    %916 = vmatpush1.bf16.msra.mxu0 %v757
    %917 = vmatprep.subr.bf16.mxu0 0
    %918 = vmatpush1.bf16.msra.mxu0 %v756
    %919 = vmatprep.subr.bf16.mxu0 0
    %920 = vmatpush1.bf16.msra.mxu0 %v755
    %921 = vmatprep.subr.bf16.mxu0 0
    %922 = vmatpush2.bf16.msra.mxu0 %v770
    %923 = vmatprep.subr.bf16.mxu0 0
    %924 = vmatpush2.bf16.msra.mxu0 %v769
    %925 = vmatprep.subr.bf16.mxu0 0
    %926 = vmatpush2.bf16.msra.mxu0 %v768
    %927 = vmatprep.subr.bf16.mxu0 0
    %928 = vmatpush2.bf16.msra.mxu0 %v767
    %929 = vmatprep.subr.bf16.mxu0 0
    %930 = vmatpush2.bf16.msra.mxu0 %v766
    %931 = vmatprep.subr.bf16.mxu0 0
    %932 = vmatpush2.bf16.msra.mxu0 %v765
    %933 = vmatprep.subr.bf16.mxu0 0
    %934 = vmatpush2.bf16.msra.mxu0 %v764
    %935 = vmatprep.subr.bf16.mxu0 0
    %936 = vmatpush2.bf16.msra.mxu0 %v763
    %937 = vmatprep.mubr.bf16.mxu0 %v519
    %938 = vmatmul.mubr.bf16.gmra.mxu0 %v518
    %v939 = vpop.f32.mrf.mxu0
    %v940 = vadd.f32 %v900, %v939
    %v941 = vpop.f32.mrf.mxu0
    %v942 = vpop.f32.mrf.mxu0
    %v943 = vpop.f32.mrf.mxu0
    %944 = vdwg.mxu0
    %945 = vmatprep.subr.bf16.mxu0 0
    %946 = vmatpush1.bf16.msra.mxu0 0
    %947 = vmatprep.subr.bf16.mxu0 0
    %948 = vmatpush1.bf16.msra.mxu0 0
    %949 = vmatprep.subr.bf16.mxu0 0
    %950 = vmatpush1.bf16.msra.mxu0 0
    %951 = vmatprep.subr.bf16.mxu0 0
    %952 = vmatpush1.bf16.msra.mxu0 0
    %953 = vmatprep.subr.bf16.mxu0 0
    %954 = vmatpush1.bf16.msra.mxu0 0
    %955 = vmatprep.subr.bf16.mxu0 0
    %956 = vmatpush1.bf16.msra.mxu0 0
    %957 = vmatprep.subr.bf16.mxu0 0
    %958 = vmatpush1.bf16.msra.mxu0 0
    %959 = vmatprep.subr.bf16.mxu0 0
    %960 = vmatpush1.bf16.msra.mxu0 %v771
    %961 = vmatprep.subr.bf16.mxu0 0
    %962 = vmatpush2.bf16.msra.mxu0 0
    %963 = vmatprep.subr.bf16.mxu0 0
    %964 = vmatpush2.bf16.msra.mxu0 0
    %965 = vmatprep.subr.bf16.mxu0 0
    %966 = vmatpush2.bf16.msra.mxu0 0
    %967 = vmatprep.subr.bf16.mxu0 0
    %968 = vmatpush2.bf16.msra.mxu0 0
    %969 = vmatprep.subr.bf16.mxu0 0
    %970 = vmatpush2.bf16.msra.mxu0 0
    %971 = vmatprep.subr.bf16.mxu0 0
    %972 = vmatpush2.bf16.msra.mxu0 0
    %973 = vmatprep.subr.bf16.mxu0 0
    %974 = vmatpush2.bf16.msra.mxu0 0
    %975 = vmatprep.subr.bf16.mxu0 0
    %976 = vmatpush2.bf16.msra.mxu0 0
    %977 = vmatprep.mubr.bf16.mxu0 0
    %978 = vmatmul.mubr.bf16.gmra.mxu0 %v823
    %v979 = vpop.f32.mrf.mxu0
    %v980 = vadd.f32 %v940, %v979
    %v981 = vpop.f32.mrf.mxu0
    %v982 = vpop.f32.mrf.mxu0
    %v983 = vpop.f32.mrf.mxu0
    %984 = vdwg.mxu0
    %v985 = vmax.f32 %v980, 0.0
    %v986 = vadd.f32 %v985, 0.0
    %s987 = scalar_lea.vmem %s2, 1
    %v988 = vld [vmem:[%s987] ss:$8 sm:$0xf]
    %v989 = vld [vmem:[%s987] ss:$8 sm:$0x70]
    %v990 = vor.u32 %v988, %v989
    %s991 = scalar_lea.vmem %s2, 57
    %v992 = vld [vmem:[%s991] ss:$8 sm:$0xf]
    %v993 = vld [vmem:[%s991] ss:$8 sm:$0x70]
    %v994 = vor.u32 %v992, %v993
    %v997 = vlaneseq
    %v998 = vshrl.u32 %v997, 7
    %v999 = vsub.s32 0, %v998
    %v1000 = vrot.slane %v990, %v999
    %v1001 = vlaneseq
    %v1002 = vshrl.u32 %v1001, 7
    %v1003 = vsub.s32 1, %v1002
    %v1004 = vrot.slane %v990, %v1003
    %v1005 = vlaneseq
    %v1006 = vshrl.u32 %v1005, 7
    %v1007 = vsub.s32 2, %v1006
    %v1008 = vrot.slane %v990, %v1007
    %v1009 = vlaneseq
    %v1010 = vshrl.u32 %v1009, 7
    %v1011 = vsub.s32 3, %v1010
    %v1012 = vrot.slane %v990, %v1011
    %v1013 = vlaneseq
    %v1014 = vshrl.u32 %v1013, 7
    %v1015 = vsub.s32 4, %v1014
    %v1016 = vrot.slane %v990, %v1015
    %v1017 = vlaneseq
    %v1018 = vshrl.u32 %v1017, 7
    %v1019 = vsub.s32 5, %v1018
    %v1020 = vrot.slane %v990, %v1019
    %v1021 = vlaneseq
    %v1022 = vshrl.u32 %v1021, 7
    %v1023 = vsub.s32 6, %v1022
    %v1024 = vrot.slane %v990, %v1023
    %v1025 = vlaneseq
    %v1026 = vshrl.u32 %v1025, 7
    %v1027 = vsub.s32 0, %v1026
    %v1028 = vrot.slane %v994, %v1027
    %v1029 = vlaneseq
    %v1030 = vshrl.u32 %v1029, 7
    %v1031 = vsub.s32 1, %v1030
    %v1032 = vrot.slane %v994, %v1031
    %v1033 = vlaneseq
    %v1034 = vshrl.u32 %v1033, 7
    %v1035 = vsub.s32 2, %v1034
    %v1036 = vrot.slane %v994, %v1035
    %v1037 = vlaneseq
    %v1038 = vshrl.u32 %v1037, 7
    %v1039 = vsub.s32 3, %v1038
    %v1040 = vrot.slane %v994, %v1039
    %v1041 = vlaneseq
    %v1042 = vshrl.u32 %v1041, 7
    %v1043 = vsub.s32 4, %v1042
    %v1044 = vrot.slane %v994, %v1043
    %v1045 = vlaneseq
    %v1046 = vshrl.u32 %v1045, 7
    %v1047 = vsub.s32 5, %v1046
    %v1048 = vrot.slane %v994, %v1047
    %v1049 = vlaneseq
    %v1050 = vshrl.u32 %v1049, 7
    %v1051 = vsub.s32 6, %v1050
    %v1052 = vrot.slane %v994, %v1051
    %v1067 = vpack.c.bf16 %v1000, %v1000
    %v1068 = vpack.c.bf16 %v1004, %v1004
    %v1069 = vpack.c.bf16 %v1008, %v1008
    %v1070 = vpack.c.bf16 %v1012, %v1012
    %v1071 = vpack.c.bf16 %v1016, %v1016
    %v1072 = vpack.c.bf16 %v1020, %v1020
    %v1073 = vpack.c.bf16 %v1024, %v1024
    %v1074 = vpack.c.bf16 %v1028, %v1028
    %v1075 = vpack.c.bf16 %v1032, %v1032
    %v1076 = vpack.c.bf16 %v1036, %v1036
    %v1077 = vpack.c.bf16 %v1040, %v1040
    %v1078 = vpack.c.bf16 %v1044, %v1044
    %v1079 = vpack.c.bf16 %v1048, %v1048
    %v1080 = vpack.c.bf16 %v1052, %v1052
    %v1095 = vunpack.c.l.b16 %v1067
    %v1096 = vunpack.c.l.b16 %v1068
    %v1097 = vunpack.c.l.b16 %v1069
    %v1098 = vunpack.c.l.b16 %v1070
    %v1099 = vunpack.c.l.b16 %v1071
    %v1100 = vunpack.c.l.b16 %v1072
    %v1101 = vunpack.c.l.b16 %v1073
    %v1102 = vunpack.c.l.b16 %v1074
    %v1103 = vunpack.c.l.b16 %v1075
    %v1104 = vunpack.c.l.b16 %v1076
    %v1105 = vunpack.c.l.b16 %v1077
    %v1106 = vunpack.c.l.b16 %v1078
    %v1107 = vunpack.c.l.b16 %v1079
    %v1108 = vunpack.c.l.b16 %v1080
    %v1109 = vrot.slane %v1102, 7
    %v1110 = vsel %vm500, %v1109, %v1095
    %v1111 = vrot.slane %v1103, 7
    %v1112 = vsel %vm500, %v1111, %v1096
    %v1113 = vrot.slane %v1104, 7
    %v1114 = vsel %vm500, %v1113, %v1097
    %v1115 = vrot.slane %v1105, 7
    %v1116 = vsel %vm500, %v1115, %v1098
    %v1117 = vrot.slane %v1106, 7
    %v1118 = vsel %vm500, %v1117, %v1099
    %v1119 = vrot.slane %v1107, 7
    %v1120 = vsel %vm500, %v1119, %v1100
    %v1121 = vrot.slane %v1108, 7
    %v1122 = vsel %vm500, %v1121, %v1101
    %v1123 = vpack.c.b16 %v1110, %v1110
    %v1124 = vpack.c.b16 %v1112, %v1112
    %v1125 = vpack.c.b16 %v1114, %v1114
    %v1126 = vpack.c.b16 %v1116, %v1116
    %v1127 = vpack.c.b16 %v1118, %v1118
    %v1128 = vpack.c.b16 %v1120, %v1120
    %v1129 = vpack.c.b16 %v1122, %v1122
    %v1137 = vsel %vm821, %v1129, 0
    %1139 = vmatprep.subr.bf16.mxu0 0
    %1140 = vmatpush1.bf16.msra.mxu0 %v730
    %1141 = vmatprep.subr.bf16.mxu0 0
    %1142 = vmatpush1.bf16.msra.mxu0 %v729
    %1143 = vmatprep.subr.bf16.mxu0 0
    %1144 = vmatpush1.bf16.msra.mxu0 %v728
    %1145 = vmatprep.subr.bf16.mxu0 0
    %1146 = vmatpush1.bf16.msra.mxu0 %v727
    %1147 = vmatprep.subr.bf16.mxu0 0
    %1148 = vmatpush1.bf16.msra.mxu0 %v726
    %1149 = vmatprep.subr.bf16.mxu0 0
    %1150 = vmatpush1.bf16.msra.mxu0 %v725
    %1151 = vmatprep.subr.bf16.mxu0 0
    %1152 = vmatpush1.bf16.msra.mxu0 %v724
    %1153 = vmatprep.subr.bf16.mxu0 0
    %1154 = vmatpush1.bf16.msra.mxu0 %v723
    %1155 = vmatprep.subr.bf16.mxu0 0
    %1156 = vmatpush2.bf16.msra.mxu0 %v738
    %1157 = vmatprep.subr.bf16.mxu0 0
    %1158 = vmatpush2.bf16.msra.mxu0 %v737
    %1159 = vmatprep.subr.bf16.mxu0 0
    %1160 = vmatpush2.bf16.msra.mxu0 %v736
    %1161 = vmatprep.subr.bf16.mxu0 0
    %1162 = vmatpush2.bf16.msra.mxu0 %v735
    %1163 = vmatprep.subr.bf16.mxu0 0
    %1164 = vmatpush2.bf16.msra.mxu0 %v734
    %1165 = vmatprep.subr.bf16.mxu0 0
    %1166 = vmatpush2.bf16.msra.mxu0 %v733
    %1167 = vmatprep.subr.bf16.mxu0 0
    %1168 = vmatpush2.bf16.msra.mxu0 %v732
    %1169 = vmatprep.subr.bf16.mxu0 0
    %1170 = vmatpush2.bf16.msra.mxu0 %v731
    %1171 = vmatprep.mubr.bf16.mxu0 %v1124
    %1172 = vmatmul.mubr.bf16.gmra.mxu0 %v1123
    %v1173 = vpop.f32.mrf.mxu0
    %v1174 = vadd.f32 %v469, %v1173
    %v1175 = vpop.f32.mrf.mxu0
    %v1176 = vpop.f32.mrf.mxu0
    %v1177 = vpop.f32.mrf.mxu0
    %1178 = vdwg.mxu0
    %1179 = vmatprep.subr.bf16.mxu0 0
    %1180 = vmatpush1.bf16.msra.mxu0 %v746
    %1181 = vmatprep.subr.bf16.mxu0 0
    %1182 = vmatpush1.bf16.msra.mxu0 %v745
    %1183 = vmatprep.subr.bf16.mxu0 0
    %1184 = vmatpush1.bf16.msra.mxu0 %v744
    %1185 = vmatprep.subr.bf16.mxu0 0
    %1186 = vmatpush1.bf16.msra.mxu0 %v743
    %1187 = vmatprep.subr.bf16.mxu0 0
    %1188 = vmatpush1.bf16.msra.mxu0 %v742
    %1189 = vmatprep.subr.bf16.mxu0 0
    %1190 = vmatpush1.bf16.msra.mxu0 %v741
    %1191 = vmatprep.subr.bf16.mxu0 0
    %1192 = vmatpush1.bf16.msra.mxu0 %v740
    %1193 = vmatprep.subr.bf16.mxu0 0
    %1194 = vmatpush1.bf16.msra.mxu0 %v739
    %1195 = vmatprep.subr.bf16.mxu0 0
    %1196 = vmatpush2.bf16.msra.mxu0 %v754
    %1197 = vmatprep.subr.bf16.mxu0 0
    %1198 = vmatpush2.bf16.msra.mxu0 %v753
    %1199 = vmatprep.subr.bf16.mxu0 0
    %1200 = vmatpush2.bf16.msra.mxu0 %v752
    %1201 = vmatprep.subr.bf16.mxu0 0
    %1202 = vmatpush2.bf16.msra.mxu0 %v751
    %1203 = vmatprep.subr.bf16.mxu0 0
    %1204 = vmatpush2.bf16.msra.mxu0 %v750
    %1205 = vmatprep.subr.bf16.mxu0 0
    %1206 = vmatpush2.bf16.msra.mxu0 %v749
    %1207 = vmatprep.subr.bf16.mxu0 0
    %1208 = vmatpush2.bf16.msra.mxu0 %v748
    %1209 = vmatprep.subr.bf16.mxu0 0
    %1210 = vmatpush2.bf16.msra.mxu0 %v747
    %1211 = vmatprep.mubr.bf16.mxu0 %v1126
    %1212 = vmatmul.mubr.bf16.gmra.mxu0 %v1125
    %v1213 = vpop.f32.mrf.mxu0
    %v1214 = vadd.f32 %v1174, %v1213
    %v1215 = vpop.f32.mrf.mxu0
    %v1216 = vpop.f32.mrf.mxu0
    %v1217 = vpop.f32.mrf.mxu0
    %1218 = vdwg.mxu0
    %1219 = vmatprep.subr.bf16.mxu0 0
    %1220 = vmatpush1.bf16.msra.mxu0 %v762
    %1221 = vmatprep.subr.bf16.mxu0 0
    %1222 = vmatpush1.bf16.msra.mxu0 %v761
    %1223 = vmatprep.subr.bf16.mxu0 0
    %1224 = vmatpush1.bf16.msra.mxu0 %v760
    %1225 = vmatprep.subr.bf16.mxu0 0
    %1226 = vmatpush1.bf16.msra.mxu0 %v759
    %1227 = vmatprep.subr.bf16.mxu0 0
    %1228 = vmatpush1.bf16.msra.mxu0 %v758
    %1229 = vmatprep.subr.bf16.mxu0 0
    %1230 = vmatpush1.bf16.msra.mxu0 %v757
    %1231 = vmatprep.subr.bf16.mxu0 0
    %1232 = vmatpush1.bf16.msra.mxu0 %v756
    %1233 = vmatprep.subr.bf16.mxu0 0
    %1234 = vmatpush1.bf16.msra.mxu0 %v755
    %1235 = vmatprep.subr.bf16.mxu0 0
    %1236 = vmatpush2.bf16.msra.mxu0 %v770
    %1237 = vmatprep.subr.bf16.mxu0 0
    %1238 = vmatpush2.bf16.msra.mxu0 %v769
    %1239 = vmatprep.subr.bf16.mxu0 0
    %1240 = vmatpush2.bf16.msra.mxu0 %v768
    %1241 = vmatprep.subr.bf16.mxu0 0
    %1242 = vmatpush2.bf16.msra.mxu0 %v767
    %1243 = vmatprep.subr.bf16.mxu0 0
    %1244 = vmatpush2.bf16.msra.mxu0 %v766
    %1245 = vmatprep.subr.bf16.mxu0 0
    %1246 = vmatpush2.bf16.msra.mxu0 %v765
    %1247 = vmatprep.subr.bf16.mxu0 0
    %1248 = vmatpush2.bf16.msra.mxu0 %v764
    %1249 = vmatprep.subr.bf16.mxu0 0
    %1250 = vmatpush2.bf16.msra.mxu0 %v763
    %1251 = vmatprep.mubr.bf16.mxu0 %v1128
    %1252 = vmatmul.mubr.bf16.gmra.mxu0 %v1127
    %v1253 = vpop.f32.mrf.mxu0
    %v1254 = vadd.f32 %v1214, %v1253
    %v1255 = vpop.f32.mrf.mxu0
    %v1256 = vpop.f32.mrf.mxu0
    %v1257 = vpop.f32.mrf.mxu0
    %1258 = vdwg.mxu0
    %1259 = vmatprep.subr.bf16.mxu0 0
    %1260 = vmatpush1.bf16.msra.mxu0 0
    %1261 = vmatprep.subr.bf16.mxu0 0
    %1262 = vmatpush1.bf16.msra.mxu0 0
    %1263 = vmatprep.subr.bf16.mxu0 0
    %1264 = vmatpush1.bf16.msra.mxu0 0
    %1265 = vmatprep.subr.bf16.mxu0 0
    %1266 = vmatpush1.bf16.msra.mxu0 0
    %1267 = vmatprep.subr.bf16.mxu0 0
    %1268 = vmatpush1.bf16.msra.mxu0 0
    %1269 = vmatprep.subr.bf16.mxu0 0
    %1270 = vmatpush1.bf16.msra.mxu0 0
    %1271 = vmatprep.subr.bf16.mxu0 0
    %1272 = vmatpush1.bf16.msra.mxu0 0
    %1273 = vmatprep.subr.bf16.mxu0 0
    %1274 = vmatpush1.bf16.msra.mxu0 %v771
    %1275 = vmatprep.subr.bf16.mxu0 0
    %1276 = vmatpush2.bf16.msra.mxu0 0
    %1277 = vmatprep.subr.bf16.mxu0 0
    %1278 = vmatpush2.bf16.msra.mxu0 0
    %1279 = vmatprep.subr.bf16.mxu0 0
    %1280 = vmatpush2.bf16.msra.mxu0 0
    %1281 = vmatprep.subr.bf16.mxu0 0
    %1282 = vmatpush2.bf16.msra.mxu0 0
    %1283 = vmatprep.subr.bf16.mxu0 0
    %1284 = vmatpush2.bf16.msra.mxu0 0
    %1285 = vmatprep.subr.bf16.mxu0 0
    %1286 = vmatpush2.bf16.msra.mxu0 0
    %1287 = vmatprep.subr.bf16.mxu0 0
    %1288 = vmatpush2.bf16.msra.mxu0 0
    %1289 = vmatprep.subr.bf16.mxu0 0
    %1290 = vmatpush2.bf16.msra.mxu0 0
    %1291 = vmatprep.mubr.bf16.mxu0 0
    %1292 = vmatmul.mubr.bf16.gmra.mxu0 %v1137
    %v1293 = vpop.f32.mrf.mxu0
    %v1294 = vadd.f32 %v1254, %v1293
    %v1295 = vpop.f32.mrf.mxu0
    %v1296 = vpop.f32.mrf.mxu0
    %v1297 = vpop.f32.mrf.mxu0
    %1298 = vdwg.mxu0
    %v1299 = vmax.f32 %v1294, 0.0
    %v1300 = vadd.f32 %v986, %v1299
    %s1301 = scalar_lea.vmem %s2, 2
    %v1302 = vld [vmem:[%s1301] ss:$8 sm:$0xf]
    %v1303 = vld [vmem:[%s1301] ss:$8 sm:$0x70]
    %v1304 = vor.u32 %v1302, %v1303
    %s1305 = scalar_lea.vmem %s2, 58
    %v1306 = vld [vmem:[%s1305] ss:$8 sm:$0xf]
    %v1307 = vld [vmem:[%s1305] ss:$8 sm:$0x70]
    %v1308 = vor.u32 %v1306, %v1307
    %v1311 = vlaneseq
    %v1312 = vshrl.u32 %v1311, 7
    %v1313 = vsub.s32 0, %v1312
    %v1314 = vrot.slane %v1304, %v1313
    %v1315 = vlaneseq
    %v1316 = vshrl.u32 %v1315, 7
    %v1317 = vsub.s32 1, %v1316
    %v1318 = vrot.slane %v1304, %v1317
    %v1319 = vlaneseq
    %v1320 = vshrl.u32 %v1319, 7
    %v1321 = vsub.s32 2, %v1320
    %v1322 = vrot.slane %v1304, %v1321
    %v1323 = vlaneseq
    %v1324 = vshrl.u32 %v1323, 7
    %v1325 = vsub.s32 3, %v1324
    %v1326 = vrot.slane %v1304, %v1325
    %v1327 = vlaneseq
    %v1328 = vshrl.u32 %v1327, 7
    %v1329 = vsub.s32 4, %v1328
    %v1330 = vrot.slane %v1304, %v1329
    %v1331 = vlaneseq
    %v1332 = vshrl.u32 %v1331, 7
    %v1333 = vsub.s32 5, %v1332
    %v1334 = vrot.slane %v1304, %v1333
    %v1335 = vlaneseq
    %v1336 = vshrl.u32 %v1335, 7
    %v1337 = vsub.s32 6, %v1336
    %v1338 = vrot.slane %v1304, %v1337
    %v1339 = vlaneseq
    %v1340 = vshrl.u32 %v1339, 7
    %v1341 = vsub.s32 0, %v1340
    %v1342 = vrot.slane %v1308, %v1341
    %v1343 = vlaneseq
    %v1344 = vshrl.u32 %v1343, 7
    %v1345 = vsub.s32 1, %v1344
    %v1346 = vrot.slane %v1308, %v1345
    %v1347 = vlaneseq
    %v1348 = vshrl.u32 %v1347, 7
    %v1349 = vsub.s32 2, %v1348
    %v1350 = vrot.slane %v1308, %v1349
    %v1351 = vlaneseq
    %v1352 = vshrl.u32 %v1351, 7
    %v1353 = vsub.s32 3, %v1352
    %v1354 = vrot.slane %v1308, %v1353
    %v1355 = vlaneseq
    %v1356 = vshrl.u32 %v1355, 7
    %v1357 = vsub.s32 4, %v1356
    %v1358 = vrot.slane %v1308, %v1357
    %v1359 = vlaneseq
    %v1360 = vshrl.u32 %v1359, 7
    %v1361 = vsub.s32 5, %v1360
    %v1362 = vrot.slane %v1308, %v1361
    %v1363 = vlaneseq
    %v1364 = vshrl.u32 %v1363, 7
    %v1365 = vsub.s32 6, %v1364
    %v1366 = vrot.slane %v1308, %v1365
    %v1381 = vpack.c.bf16 %v1314, %v1314
    %v1382 = vpack.c.bf16 %v1318, %v1318
    %v1383 = vpack.c.bf16 %v1322, %v1322
    %v1384 = vpack.c.bf16 %v1326, %v1326
    %v1385 = vpack.c.bf16 %v1330, %v1330
    %v1386 = vpack.c.bf16 %v1334, %v1334
    %v1387 = vpack.c.bf16 %v1338, %v1338
    %v1388 = vpack.c.bf16 %v1342, %v1342
    %v1389 = vpack.c.bf16 %v1346, %v1346
    %v1390 = vpack.c.bf16 %v1350, %v1350
    %v1391 = vpack.c.bf16 %v1354, %v1354
    %v1392 = vpack.c.bf16 %v1358, %v1358
    %v1393 = vpack.c.bf16 %v1362, %v1362
    %v1394 = vpack.c.bf16 %v1366, %v1366
    %v1409 = vunpack.c.l.b16 %v1381
    %v1410 = vunpack.c.l.b16 %v1382
    %v1411 = vunpack.c.l.b16 %v1383
    %v1412 = vunpack.c.l.b16 %v1384
    %v1413 = vunpack.c.l.b16 %v1385
    %v1414 = vunpack.c.l.b16 %v1386
    %v1415 = vunpack.c.l.b16 %v1387
    %v1416 = vunpack.c.l.b16 %v1388
    %v1417 = vunpack.c.l.b16 %v1389
    %v1418 = vunpack.c.l.b16 %v1390
    %v1419 = vunpack.c.l.b16 %v1391
    %v1420 = vunpack.c.l.b16 %v1392
    %v1421 = vunpack.c.l.b16 %v1393
    %v1422 = vunpack.c.l.b16 %v1394
    %v1423 = vrot.slane %v1416, 7
    %v1424 = vsel %vm500, %v1423, %v1409
    %v1425 = vrot.slane %v1417, 7
    %v1426 = vsel %vm500, %v1425, %v1410
    %v1427 = vrot.slane %v1418, 7
    %v1428 = vsel %vm500, %v1427, %v1411
    %v1429 = vrot.slane %v1419, 7
    %v1430 = vsel %vm500, %v1429, %v1412
    %v1431 = vrot.slane %v1420, 7
    %v1432 = vsel %vm500, %v1431, %v1413
    %v1433 = vrot.slane %v1421, 7
    %v1434 = vsel %vm500, %v1433, %v1414
    %v1435 = vrot.slane %v1422, 7
    %v1436 = vsel %vm500, %v1435, %v1415
    %v1437 = vpack.c.b16 %v1424, %v1424
    %v1438 = vpack.c.b16 %v1426, %v1426
    %v1439 = vpack.c.b16 %v1428, %v1428
    %v1440 = vpack.c.b16 %v1430, %v1430
    %v1441 = vpack.c.b16 %v1432, %v1432
    %v1442 = vpack.c.b16 %v1434, %v1434
    %v1443 = vpack.c.b16 %v1436, %v1436
    %v1451 = vsel %vm821, %v1443, 0
    %1453 = vmatprep.subr.bf16.mxu0 0
    %1454 = vmatpush1.bf16.msra.mxu0 %v730
    %1455 = vmatprep.subr.bf16.mxu0 0
    %1456 = vmatpush1.bf16.msra.mxu0 %v729
    %1457 = vmatprep.subr.bf16.mxu0 0
    %1458 = vmatpush1.bf16.msra.mxu0 %v728
    %1459 = vmatprep.subr.bf16.mxu0 0
    %1460 = vmatpush1.bf16.msra.mxu0 %v727
    %1461 = vmatprep.subr.bf16.mxu0 0
    %1462 = vmatpush1.bf16.msra.mxu0 %v726
    %1463 = vmatprep.subr.bf16.mxu0 0
    %1464 = vmatpush1.bf16.msra.mxu0 %v725
    %1465 = vmatprep.subr.bf16.mxu0 0
    %1466 = vmatpush1.bf16.msra.mxu0 %v724
    %1467 = vmatprep.subr.bf16.mxu0 0
    %1468 = vmatpush1.bf16.msra.mxu0 %v723
    %1469 = vmatprep.subr.bf16.mxu0 0
    %1470 = vmatpush2.bf16.msra.mxu0 %v738
    %1471 = vmatprep.subr.bf16.mxu0 0
    %1472 = vmatpush2.bf16.msra.mxu0 %v737
    %1473 = vmatprep.subr.bf16.mxu0 0
    %1474 = vmatpush2.bf16.msra.mxu0 %v736
    %1475 = vmatprep.subr.bf16.mxu0 0
    %1476 = vmatpush2.bf16.msra.mxu0 %v735
    %1477 = vmatprep.subr.bf16.mxu0 0
    %1478 = vmatpush2.bf16.msra.mxu0 %v734
    %1479 = vmatprep.subr.bf16.mxu0 0
    %1480 = vmatpush2.bf16.msra.mxu0 %v733
    %1481 = vmatprep.subr.bf16.mxu0 0
    %1482 = vmatpush2.bf16.msra.mxu0 %v732
    %1483 = vmatprep.subr.bf16.mxu0 0
    %1484 = vmatpush2.bf16.msra.mxu0 %v731
    %1485 = vmatprep.mubr.bf16.mxu0 %v1438
    %1486 = vmatmul.mubr.bf16.gmra.mxu0 %v1437
    %v1487 = vpop.f32.mrf.mxu0
    %v1488 = vadd.f32 %v469, %v1487
    %v1489 = vpop.f32.mrf.mxu0
    %v1490 = vpop.f32.mrf.mxu0
    %v1491 = vpop.f32.mrf.mxu0
    %1492 = vdwg.mxu0
    %1493 = vmatprep.subr.bf16.mxu0 0
    %1494 = vmatpush1.bf16.msra.mxu0 %v746
    %1495 = vmatprep.subr.bf16.mxu0 0
    %1496 = vmatpush1.bf16.msra.mxu0 %v745
    %1497 = vmatprep.subr.bf16.mxu0 0
    %1498 = vmatpush1.bf16.msra.mxu0 %v744
    %1499 = vmatprep.subr.bf16.mxu0 0
    %1500 = vmatpush1.bf16.msra.mxu0 %v743
    %1501 = vmatprep.subr.bf16.mxu0 0
    %1502 = vmatpush1.bf16.msra.mxu0 %v742
    %1503 = vmatprep.subr.bf16.mxu0 0
    %1504 = vmatpush1.bf16.msra.mxu0 %v741
    %1505 = vmatprep.subr.bf16.mxu0 0
    %1506 = vmatpush1.bf16.msra.mxu0 %v740
    %1507 = vmatprep.subr.bf16.mxu0 0
    %1508 = vmatpush1.bf16.msra.mxu0 %v739
    %1509 = vmatprep.subr.bf16.mxu0 0
    %1510 = vmatpush2.bf16.msra.mxu0 %v754
    %1511 = vmatprep.subr.bf16.mxu0 0
    %1512 = vmatpush2.bf16.msra.mxu0 %v753
    %1513 = vmatprep.subr.bf16.mxu0 0
    %1514 = vmatpush2.bf16.msra.mxu0 %v752
    %1515 = vmatprep.subr.bf16.mxu0 0
    %1516 = vmatpush2.bf16.msra.mxu0 %v751
    %1517 = vmatprep.subr.bf16.mxu0 0
    %1518 = vmatpush2.bf16.msra.mxu0 %v750
    %1519 = vmatprep.subr.bf16.mxu0 0
    %1520 = vmatpush2.bf16.msra.mxu0 %v749
    %1521 = vmatprep.subr.bf16.mxu0 0
    %1522 = vmatpush2.bf16.msra.mxu0 %v748
    %1523 = vmatprep.subr.bf16.mxu0 0
    %1524 = vmatpush2.bf16.msra.mxu0 %v747
    %1525 = vmatprep.mubr.bf16.mxu0 %v1440
    %1526 = vmatmul.mubr.bf16.gmra.mxu0 %v1439
    %v1527 = vpop.f32.mrf.mxu0
    %v1528 = vadd.f32 %v1488, %v1527
    %v1529 = vpop.f32.mrf.mxu0
    %v1530 = vpop.f32.mrf.mxu0
    %v1531 = vpop.f32.mrf.mxu0
    %1532 = vdwg.mxu0
    %1533 = vmatprep.subr.bf16.mxu0 0
    %1534 = vmatpush1.bf16.msra.mxu0 %v762
    %1535 = vmatprep.subr.bf16.mxu0 0
    %1536 = vmatpush1.bf16.msra.mxu0 %v761
    %1537 = vmatprep.subr.bf16.mxu0 0
    %1538 = vmatpush1.bf16.msra.mxu0 %v760
    %1539 = vmatprep.subr.bf16.mxu0 0
    %1540 = vmatpush1.bf16.msra.mxu0 %v759
    %1541 = vmatprep.subr.bf16.mxu0 0
    %1542 = vmatpush1.bf16.msra.mxu0 %v758
    %1543 = vmatprep.subr.bf16.mxu0 0
    %1544 = vmatpush1.bf16.msra.mxu0 %v757
    %1545 = vmatprep.subr.bf16.mxu0 0
    %1546 = vmatpush1.bf16.msra.mxu0 %v756
    %1547 = vmatprep.subr.bf16.mxu0 0
    %1548 = vmatpush1.bf16.msra.mxu0 %v755
    %1549 = vmatprep.subr.bf16.mxu0 0
    %1550 = vmatpush2.bf16.msra.mxu0 %v770
    %1551 = vmatprep.subr.bf16.mxu0 0
    %1552 = vmatpush2.bf16.msra.mxu0 %v769
    %1553 = vmatprep.subr.bf16.mxu0 0
    %1554 = vmatpush2.bf16.msra.mxu0 %v768
    %1555 = vmatprep.subr.bf16.mxu0 0
    %1556 = vmatpush2.bf16.msra.mxu0 %v767
    %1557 = vmatprep.subr.bf16.mxu0 0
    %1558 = vmatpush2.bf16.msra.mxu0 %v766
    %1559 = vmatprep.subr.bf16.mxu0 0
    %1560 = vmatpush2.bf16.msra.mxu0 %v765
    %1561 = vmatprep.subr.bf16.mxu0 0
    %1562 = vmatpush2.bf16.msra.mxu0 %v764
    %1563 = vmatprep.subr.bf16.mxu0 0
    %1564 = vmatpush2.bf16.msra.mxu0 %v763
    %1565 = vmatprep.mubr.bf16.mxu0 %v1442
    %1566 = vmatmul.mubr.bf16.gmra.mxu0 %v1441
    %v1567 = vpop.f32.mrf.mxu0
    %v1568 = vadd.f32 %v1528, %v1567
    %v1569 = vpop.f32.mrf.mxu0
    %v1570 = vpop.f32.mrf.mxu0
    %v1571 = vpop.f32.mrf.mxu0
    %1572 = vdwg.mxu0
    %1573 = vmatprep.subr.bf16.mxu0 0
    %1574 = vmatpush1.bf16.msra.mxu0 0
    %1575 = vmatprep.subr.bf16.mxu0 0
    %1576 = vmatpush1.bf16.msra.mxu0 0
    %1577 = vmatprep.subr.bf16.mxu0 0
    %1578 = vmatpush1.bf16.msra.mxu0 0
    %1579 = vmatprep.subr.bf16.mxu0 0
    %1580 = vmatpush1.bf16.msra.mxu0 0
    %1581 = vmatprep.subr.bf16.mxu0 0
    %1582 = vmatpush1.bf16.msra.mxu0 0
    %1583 = vmatprep.subr.bf16.mxu0 0
    %1584 = vmatpush1.bf16.msra.mxu0 0
    %1585 = vmatprep.subr.bf16.mxu0 0
    %1586 = vmatpush1.bf16.msra.mxu0 0
    %1587 = vmatprep.subr.bf16.mxu0 0
    %1588 = vmatpush1.bf16.msra.mxu0 %v771
    %1589 = vmatprep.subr.bf16.mxu0 0
    %1590 = vmatpush2.bf16.msra.mxu0 0
    %1591 = vmatprep.subr.bf16.mxu0 0
    %1592 = vmatpush2.bf16.msra.mxu0 0
    %1593 = vmatprep.subr.bf16.mxu0 0
    %1594 = vmatpush2.bf16.msra.mxu0 0
    %1595 = vmatprep.subr.bf16.mxu0 0
    %1596 = vmatpush2.bf16.msra.mxu0 0
    %1597 = vmatprep.subr.bf16.mxu0 0
    %1598 = vmatpush2.bf16.msra.mxu0 0
    %1599 = vmatprep.subr.bf16.mxu0 0
    %1600 = vmatpush2.bf16.msra.mxu0 0
    %1601 = vmatprep.subr.bf16.mxu0 0
    %1602 = vmatpush2.bf16.msra.mxu0 0
    %1603 = vmatprep.subr.bf16.mxu0 0
    %1604 = vmatpush2.bf16.msra.mxu0 0
    %1605 = vmatprep.mubr.bf16.mxu0 0
    %1606 = vmatmul.mubr.bf16.gmra.mxu0 %v1451
    %v1607 = vpop.f32.mrf.mxu0
    %v1608 = vadd.f32 %v1568, %v1607
    %v1609 = vpop.f32.mrf.mxu0
    %v1610 = vpop.f32.mrf.mxu0
    %v1611 = vpop.f32.mrf.mxu0
    %1612 = vdwg.mxu0
    %v1613 = vmax.f32 %v1608, 0.0
    %v1614 = vadd.f32 %v1300, %v1613
    %s1615 = scalar_lea.vmem %s2, 3
    %v1616 = vld [vmem:[%s1615] ss:$8 sm:$0xf]
    %v1617 = vld [vmem:[%s1615] ss:$8 sm:$0x70]
    %v1618 = vor.u32 %v1616, %v1617
    %s1619 = scalar_lea.vmem %s2, 59
    %v1620 = vld [vmem:[%s1619] ss:$8 sm:$0xf]
    %v1621 = vld [vmem:[%s1619] ss:$8 sm:$0x70]
    %v1622 = vor.u32 %v1620, %v1621
    %v1625 = vlaneseq
    %v1626 = vshrl.u32 %v1625, 7
    %v1627 = vsub.s32 0, %v1626
    %v1628 = vrot.slane %v1618, %v1627
    %v1629 = vlaneseq
    %v1630 = vshrl.u32 %v1629, 7
    %v1631 = vsub.s32 1, %v1630
    %v1632 = vrot.slane %v1618, %v1631
    %v1633 = vlaneseq
    %v1634 = vshrl.u32 %v1633, 7
    %v1635 = vsub.s32 2, %v1634
    %v1636 = vrot.slane %v1618, %v1635
    %v1637 = vlaneseq
    %v1638 = vshrl.u32 %v1637, 7
    %v1639 = vsub.s32 3, %v1638
    %v1640 = vrot.slane %v1618, %v1639
    %v1641 = vlaneseq
    %v1642 = vshrl.u32 %v1641, 7
    %v1643 = vsub.s32 4, %v1642
    %v1644 = vrot.slane %v1618, %v1643
    %v1645 = vlaneseq
    %v1646 = vshrl.u32 %v1645, 7
    %v1647 = vsub.s32 5, %v1646
    %v1648 = vrot.slane %v1618, %v1647
    %v1649 = vlaneseq
    %v1650 = vshrl.u32 %v1649, 7
    %v1651 = vsub.s32 6, %v1650
    %v1652 = vrot.slane %v1618, %v1651
    %v1653 = vlaneseq
    %v1654 = vshrl.u32 %v1653, 7
    %v1655 = vsub.s32 0, %v1654
    %v1656 = vrot.slane %v1622, %v1655
    %v1657 = vlaneseq
    %v1658 = vshrl.u32 %v1657, 7
    %v1659 = vsub.s32 1, %v1658
    %v1660 = vrot.slane %v1622, %v1659
    %v1661 = vlaneseq
    %v1662 = vshrl.u32 %v1661, 7
    %v1663 = vsub.s32 2, %v1662
    %v1664 = vrot.slane %v1622, %v1663
    %v1665 = vlaneseq
    %v1666 = vshrl.u32 %v1665, 7
    %v1667 = vsub.s32 3, %v1666
    %v1668 = vrot.slane %v1622, %v1667
    %v1669 = vlaneseq
    %v1670 = vshrl.u32 %v1669, 7
    %v1671 = vsub.s32 4, %v1670
    %v1672 = vrot.slane %v1622, %v1671
    %v1673 = vlaneseq
    %v1674 = vshrl.u32 %v1673, 7
    %v1675 = vsub.s32 5, %v1674
    %v1676 = vrot.slane %v1622, %v1675
    %v1677 = vlaneseq
    %v1678 = vshrl.u32 %v1677, 7
    %v1679 = vsub.s32 6, %v1678
    %v1680 = vrot.slane %v1622, %v1679
    %v1695 = vpack.c.bf16 %v1628, %v1628
    %v1696 = vpack.c.bf16 %v1632, %v1632
    %v1697 = vpack.c.bf16 %v1636, %v1636
    %v1698 = vpack.c.bf16 %v1640, %v1640
    %v1699 = vpack.c.bf16 %v1644, %v1644
    %v1700 = vpack.c.bf16 %v1648, %v1648
    %v1701 = vpack.c.bf16 %v1652, %v1652
    %v1702 = vpack.c.bf16 %v1656, %v1656
    %v1703 = vpack.c.bf16 %v1660, %v1660
    %v1704 = vpack.c.bf16 %v1664, %v1664
    %v1705 = vpack.c.bf16 %v1668, %v1668
    %v1706 = vpack.c.bf16 %v1672, %v1672
    %v1707 = vpack.c.bf16 %v1676, %v1676
    %v1708 = vpack.c.bf16 %v1680, %v1680
    %v1723 = vunpack.c.l.b16 %v1695
    %v1724 = vunpack.c.l.b16 %v1696
    %v1725 = vunpack.c.l.b16 %v1697
    %v1726 = vunpack.c.l.b16 %v1698
    %v1727 = vunpack.c.l.b16 %v1699
    %v1728 = vunpack.c.l.b16 %v1700
    %v1729 = vunpack.c.l.b16 %v1701
    %v1730 = vunpack.c.l.b16 %v1702
    %v1731 = vunpack.c.l.b16 %v1703
    %v1732 = vunpack.c.l.b16 %v1704
    %v1733 = vunpack.c.l.b16 %v1705
    %v1734 = vunpack.c.l.b16 %v1706
    %v1735 = vunpack.c.l.b16 %v1707
    %v1736 = vunpack.c.l.b16 %v1708
    %v1737 = vrot.slane %v1730, 7
    %v1738 = vsel %vm500, %v1737, %v1723
    %v1739 = vrot.slane %v1731, 7
    %v1740 = vsel %vm500, %v1739, %v1724
    %v1741 = vrot.slane %v1732, 7
    %v1742 = vsel %vm500, %v1741, %v1725
    %v1743 = vrot.slane %v1733, 7
    %v1744 = vsel %vm500, %v1743, %v1726
    %v1745 = vrot.slane %v1734, 7
    %v1746 = vsel %vm500, %v1745, %v1727
    %v1747 = vrot.slane %v1735, 7
    %v1748 = vsel %vm500, %v1747, %v1728
    %v1749 = vrot.slane %v1736, 7
    %v1750 = vsel %vm500, %v1749, %v1729
    %v1751 = vpack.c.b16 %v1738, %v1738
    %v1752 = vpack.c.b16 %v1740, %v1740
    %v1753 = vpack.c.b16 %v1742, %v1742
    %v1754 = vpack.c.b16 %v1744, %v1744
    %v1755 = vpack.c.b16 %v1746, %v1746
    %v1756 = vpack.c.b16 %v1748, %v1748
    %v1757 = vpack.c.b16 %v1750, %v1750
    %v1765 = vsel %vm821, %v1757, 0
    %1767 = vmatprep.subr.bf16.mxu0 0
    %1768 = vmatpush1.bf16.msra.mxu0 %v730
    %1769 = vmatprep.subr.bf16.mxu0 0
    %1770 = vmatpush1.bf16.msra.mxu0 %v729
    %1771 = vmatprep.subr.bf16.mxu0 0
    %1772 = vmatpush1.bf16.msra.mxu0 %v728
    %1773 = vmatprep.subr.bf16.mxu0 0
    %1774 = vmatpush1.bf16.msra.mxu0 %v727
    %1775 = vmatprep.subr.bf16.mxu0 0
    %1776 = vmatpush1.bf16.msra.mxu0 %v726
    %1777 = vmatprep.subr.bf16.mxu0 0
    %1778 = vmatpush1.bf16.msra.mxu0 %v725
    %1779 = vmatprep.subr.bf16.mxu0 0
    %1780 = vmatpush1.bf16.msra.mxu0 %v724
    %1781 = vmatprep.subr.bf16.mxu0 0
    %1782 = vmatpush1.bf16.msra.mxu0 %v723
    %1783 = vmatprep.subr.bf16.mxu0 0
    %1784 = vmatpush2.bf16.msra.mxu0 %v738
    %1785 = vmatprep.subr.bf16.mxu0 0
    %1786 = vmatpush2.bf16.msra.mxu0 %v737
    %1787 = vmatprep.subr.bf16.mxu0 0
    %1788 = vmatpush2.bf16.msra.mxu0 %v736
    %1789 = vmatprep.subr.bf16.mxu0 0
    %1790 = vmatpush2.bf16.msra.mxu0 %v735
    %1791 = vmatprep.subr.bf16.mxu0 0
    %1792 = vmatpush2.bf16.msra.mxu0 %v734
    %1793 = vmatprep.subr.bf16.mxu0 0
    %1794 = vmatpush2.bf16.msra.mxu0 %v733
    %1795 = vmatprep.subr.bf16.mxu0 0
    %1796 = vmatpush2.bf16.msra.mxu0 %v732
    %1797 = vmatprep.subr.bf16.mxu0 0
    %1798 = vmatpush2.bf16.msra.mxu0 %v731
    %1799 = vmatprep.mubr.bf16.mxu0 %v1752
    %1800 = vmatmul.mubr.bf16.gmra.mxu0 %v1751
    %v1801 = vpop.f32.mrf.mxu0
    %v1802 = vadd.f32 %v469, %v1801
    %v1803 = vpop.f32.mrf.mxu0
    %v1804 = vpop.f32.mrf.mxu0
    %v1805 = vpop.f32.mrf.mxu0
    %1806 = vdwg.mxu0
    %1807 = vmatprep.subr.bf16.mxu0 0
    %1808 = vmatpush1.bf16.msra.mxu0 %v746
    %1809 = vmatprep.subr.bf16.mxu0 0
    %1810 = vmatpush1.bf16.msra.mxu0 %v745
    %1811 = vmatprep.subr.bf16.mxu0 0
    %1812 = vmatpush1.bf16.msra.mxu0 %v744
    %1813 = vmatprep.subr.bf16.mxu0 0
    %1814 = vmatpush1.bf16.msra.mxu0 %v743
    %1815 = vmatprep.subr.bf16.mxu0 0
    %1816 = vmatpush1.bf16.msra.mxu0 %v742
    %1817 = vmatprep.subr.bf16.mxu0 0
    %1818 = vmatpush1.bf16.msra.mxu0 %v741
    %1819 = vmatprep.subr.bf16.mxu0 0
    %1820 = vmatpush1.bf16.msra.mxu0 %v740
    %1821 = vmatprep.subr.bf16.mxu0 0
    %1822 = vmatpush1.bf16.msra.mxu0 %v739
    %1823 = vmatprep.subr.bf16.mxu0 0
    %1824 = vmatpush2.bf16.msra.mxu0 %v754
    %1825 = vmatprep.subr.bf16.mxu0 0
    %1826 = vmatpush2.bf16.msra.mxu0 %v753
    %1827 = vmatprep.subr.bf16.mxu0 0
    %1828 = vmatpush2.bf16.msra.mxu0 %v752
    %1829 = vmatprep.subr.bf16.mxu0 0
    %1830 = vmatpush2.bf16.msra.mxu0 %v751
    %1831 = vmatprep.subr.bf16.mxu0 0
    %1832 = vmatpush2.bf16.msra.mxu0 %v750
    %1833 = vmatprep.subr.bf16.mxu0 0
    %1834 = vmatpush2.bf16.msra.mxu0 %v749
    %1835 = vmatprep.subr.bf16.mxu0 0
    %1836 = vmatpush2.bf16.msra.mxu0 %v748
    %1837 = vmatprep.subr.bf16.mxu0 0
    %1838 = vmatpush2.bf16.msra.mxu0 %v747
    %1839 = vmatprep.mubr.bf16.mxu0 %v1754
    %1840 = vmatmul.mubr.bf16.gmra.mxu0 %v1753
    %v1841 = vpop.f32.mrf.mxu0
    %v1842 = vadd.f32 %v1802, %v1841
    %v1843 = vpop.f32.mrf.mxu0
    %v1844 = vpop.f32.mrf.mxu0
    %v1845 = vpop.f32.mrf.mxu0
    %1846 = vdwg.mxu0
    %1847 = vmatprep.subr.bf16.mxu0 0
    %1848 = vmatpush1.bf16.msra.mxu0 %v762
    %1849 = vmatprep.subr.bf16.mxu0 0
    %1850 = vmatpush1.bf16.msra.mxu0 %v761
    %1851 = vmatprep.subr.bf16.mxu0 0
    %1852 = vmatpush1.bf16.msra.mxu0 %v760
    %1853 = vmatprep.subr.bf16.mxu0 0
    %1854 = vmatpush1.bf16.msra.mxu0 %v759
    %1855 = vmatprep.subr.bf16.mxu0 0
    %1856 = vmatpush1.bf16.msra.mxu0 %v758
    %1857 = vmatprep.subr.bf16.mxu0 0
    %1858 = vmatpush1.bf16.msra.mxu0 %v757
    %1859 = vmatprep.subr.bf16.mxu0 0
    %1860 = vmatpush1.bf16.msra.mxu0 %v756
    %1861 = vmatprep.subr.bf16.mxu0 0
    %1862 = vmatpush1.bf16.msra.mxu0 %v755
    %1863 = vmatprep.subr.bf16.mxu0 0
    %1864 = vmatpush2.bf16.msra.mxu0 %v770
    %1865 = vmatprep.subr.bf16.mxu0 0
    %1866 = vmatpush2.bf16.msra.mxu0 %v769
    %1867 = vmatprep.subr.bf16.mxu0 0
    %1868 = vmatpush2.bf16.msra.mxu0 %v768
    %1869 = vmatprep.subr.bf16.mxu0 0
    %1870 = vmatpush2.bf16.msra.mxu0 %v767
    %1871 = vmatprep.subr.bf16.mxu0 0
    %1872 = vmatpush2.bf16.msra.mxu0 %v766
    %1873 = vmatprep.subr.bf16.mxu0 0
    %1874 = vmatpush2.bf16.msra.mxu0 %v765
    %1875 = vmatprep.subr.bf16.mxu0 0
    %1876 = vmatpush2.bf16.msra.mxu0 %v764
    %1877 = vmatprep.subr.bf16.mxu0 0
    %1878 = vmatpush2.bf16.msra.mxu0 %v763
    %1879 = vmatprep.mubr.bf16.mxu0 %v1756
    %1880 = vmatmul.mubr.bf16.gmra.mxu0 %v1755
    %v1881 = vpop.f32.mrf.mxu0
    %v1882 = vadd.f32 %v1842, %v1881
    %v1883 = vpop.f32.mrf.mxu0
    %v1884 = vpop.f32.mrf.mxu0
    %v1885 = vpop.f32.mrf.mxu0
    %1886 = vdwg.mxu0
    %1887 = vmatprep.subr.bf16.mxu0 0
    %1888 = vmatpush1.bf16.msra.mxu0 0
    %1889 = vmatprep.subr.bf16.mxu0 0
    %1890 = vmatpush1.bf16.msra.mxu0 0
    %1891 = vmatprep.subr.bf16.mxu0 0
    %1892 = vmatpush1.bf16.msra.mxu0 0
    %1893 = vmatprep.subr.bf16.mxu0 0
    %1894 = vmatpush1.bf16.msra.mxu0 0
    %1895 = vmatprep.subr.bf16.mxu0 0
    %1896 = vmatpush1.bf16.msra.mxu0 0
    %1897 = vmatprep.subr.bf16.mxu0 0
    %1898 = vmatpush1.bf16.msra.mxu0 0
    %1899 = vmatprep.subr.bf16.mxu0 0
    %1900 = vmatpush1.bf16.msra.mxu0 0
    %1901 = vmatprep.subr.bf16.mxu0 0
    %1902 = vmatpush1.bf16.msra.mxu0 %v771
    %1903 = vmatprep.subr.bf16.mxu0 0
    %1904 = vmatpush2.bf16.msra.mxu0 0
    %1905 = vmatprep.subr.bf16.mxu0 0
    %1906 = vmatpush2.bf16.msra.mxu0 0
    %1907 = vmatprep.subr.bf16.mxu0 0
    %1908 = vmatpush2.bf16.msra.mxu0 0
    %1909 = vmatprep.subr.bf16.mxu0 0
    %1910 = vmatpush2.bf16.msra.mxu0 0
    %1911 = vmatprep.subr.bf16.mxu0 0
    %1912 = vmatpush2.bf16.msra.mxu0 0
    %1913 = vmatprep.subr.bf16.mxu0 0
    %1914 = vmatpush2.bf16.msra.mxu0 0
    %1915 = vmatprep.subr.bf16.mxu0 0
    %1916 = vmatpush2.bf16.msra.mxu0 0
    %1917 = vmatprep.subr.bf16.mxu0 0
    %1918 = vmatpush2.bf16.msra.mxu0 0
    %1919 = vmatprep.mubr.bf16.mxu0 0
    %1920 = vmatmul.mubr.bf16.gmra.mxu0 %v1765
    %v1921 = vpop.f32.mrf.mxu0
    %v1922 = vadd.f32 %v1882, %v1921
    %v1923 = vpop.f32.mrf.mxu0
    %v1924 = vpop.f32.mrf.mxu0
    %v1925 = vpop.f32.mrf.mxu0
    %1926 = vdwg.mxu0
    %v1927 = vmax.f32 %v1922, 0.0
    %v1928 = vadd.f32 %v1614, %v1927
    %s1929 = scalar_lea.vmem %s2, 4
    %v1930 = vld [vmem:[%s1929] ss:$8 sm:$0xf]
    %v1931 = vld [vmem:[%s1929] ss:$8 sm:$0x70]
    %v1932 = vor.u32 %v1930, %v1931
    %s1933 = scalar_lea.vmem %s2, 60
    %v1934 = vld [vmem:[%s1933] ss:$8 sm:$0xf]
    %v1935 = vld [vmem:[%s1933] ss:$8 sm:$0x70]
    %v1936 = vor.u32 %v1934, %v1935
    %v1939 = vlaneseq
    %v1940 = vshrl.u32 %v1939, 7
    %v1941 = vsub.s32 0, %v1940
    %v1942 = vrot.slane %v1932, %v1941
    %v1943 = vlaneseq
    %v1944 = vshrl.u32 %v1943, 7
    %v1945 = vsub.s32 1, %v1944
    %v1946 = vrot.slane %v1932, %v1945
    %v1947 = vlaneseq
    %v1948 = vshrl.u32 %v1947, 7
    %v1949 = vsub.s32 2, %v1948
    %v1950 = vrot.slane %v1932, %v1949
    %v1951 = vlaneseq
    %v1952 = vshrl.u32 %v1951, 7
    %v1953 = vsub.s32 3, %v1952
    %v1954 = vrot.slane %v1932, %v1953
    %v1955 = vlaneseq
    %v1956 = vshrl.u32 %v1955, 7
    %v1957 = vsub.s32 4, %v1956
    %v1958 = vrot.slane %v1932, %v1957
    %v1959 = vlaneseq
    %v1960 = vshrl.u32 %v1959, 7
    %v1961 = vsub.s32 5, %v1960
    %v1962 = vrot.slane %v1932, %v1961
    %v1963 = vlaneseq
    %v1964 = vshrl.u32 %v1963, 7
    %v1965 = vsub.s32 6, %v1964
    %v1966 = vrot.slane %v1932, %v1965
    %v1967 = vlaneseq
    %v1968 = vshrl.u32 %v1967, 7
    %v1969 = vsub.s32 0, %v1968
    %v1970 = vrot.slane %v1936, %v1969
    %v1971 = vlaneseq
    %v1972 = vshrl.u32 %v1971, 7
    %v1973 = vsub.s32 1, %v1972
    %v1974 = vrot.slane %v1936, %v1973
    %v1975 = vlaneseq
    %v1976 = vshrl.u32 %v1975, 7
    %v1977 = vsub.s32 2, %v1976
    %v1978 = vrot.slane %v1936, %v1977
    %v1979 = vlaneseq
    %v1980 = vshrl.u32 %v1979, 7
    %v1981 = vsub.s32 3, %v1980
    %v1982 = vrot.slane %v1936, %v1981
    %v1983 = vlaneseq
    %v1984 = vshrl.u32 %v1983, 7
    %v1985 = vsub.s32 4, %v1984
    %v1986 = vrot.slane %v1936, %v1985
    %v1987 = vlaneseq
    %v1988 = vshrl.u32 %v1987, 7
    %v1989 = vsub.s32 5, %v1988
    %v1990 = vrot.slane %v1936, %v1989
    %v1991 = vlaneseq
    %v1992 = vshrl.u32 %v1991, 7
    %v1993 = vsub.s32 6, %v1992
    %v1994 = vrot.slane %v1936, %v1993
    %v2009 = vpack.c.bf16 %v1942, %v1942
    %v2010 = vpack.c.bf16 %v1946, %v1946
    %v2011 = vpack.c.bf16 %v1950, %v1950
    %v2012 = vpack.c.bf16 %v1954, %v1954
    %v2013 = vpack.c.bf16 %v1958, %v1958
    %v2014 = vpack.c.bf16 %v1962, %v1962
    %v2015 = vpack.c.bf16 %v1966, %v1966
    %v2016 = vpack.c.bf16 %v1970, %v1970
    %v2017 = vpack.c.bf16 %v1974, %v1974
    %v2018 = vpack.c.bf16 %v1978, %v1978
    %v2019 = vpack.c.bf16 %v1982, %v1982
    %v2020 = vpack.c.bf16 %v1986, %v1986
    %v2021 = vpack.c.bf16 %v1990, %v1990
    %v2022 = vpack.c.bf16 %v1994, %v1994
    %v2037 = vunpack.c.l.b16 %v2009
    %v2038 = vunpack.c.l.b16 %v2010
    %v2039 = vunpack.c.l.b16 %v2011
    %v2040 = vunpack.c.l.b16 %v2012
    %v2041 = vunpack.c.l.b16 %v2013
    %v2042 = vunpack.c.l.b16 %v2014
    %v2043 = vunpack.c.l.b16 %v2015
    %v2044 = vunpack.c.l.b16 %v2016
    %v2045 = vunpack.c.l.b16 %v2017
    %v2046 = vunpack.c.l.b16 %v2018
    %v2047 = vunpack.c.l.b16 %v2019
    %v2048 = vunpack.c.l.b16 %v2020
    %v2049 = vunpack.c.l.b16 %v2021
    %v2050 = vunpack.c.l.b16 %v2022
    %v2051 = vrot.slane %v2044, 7
    %v2052 = vsel %vm500, %v2051, %v2037
    %v2053 = vrot.slane %v2045, 7
    %v2054 = vsel %vm500, %v2053, %v2038
    %v2055 = vrot.slane %v2046, 7
    %v2056 = vsel %vm500, %v2055, %v2039
    %v2057 = vrot.slane %v2047, 7
    %v2058 = vsel %vm500, %v2057, %v2040
    %v2059 = vrot.slane %v2048, 7
    %v2060 = vsel %vm500, %v2059, %v2041
    %v2061 = vrot.slane %v2049, 7
    %v2062 = vsel %vm500, %v2061, %v2042
    %v2063 = vrot.slane %v2050, 7
    %v2064 = vsel %vm500, %v2063, %v2043
    %v2065 = vpack.c.b16 %v2052, %v2052
    %v2066 = vpack.c.b16 %v2054, %v2054
    %v2067 = vpack.c.b16 %v2056, %v2056
    %v2068 = vpack.c.b16 %v2058, %v2058
    %v2069 = vpack.c.b16 %v2060, %v2060
    %v2070 = vpack.c.b16 %v2062, %v2062
    %v2071 = vpack.c.b16 %v2064, %v2064
    %v2079 = vsel %vm821, %v2071, 0
    %2081 = vmatprep.subr.bf16.mxu0 0
    %2082 = vmatpush1.bf16.msra.mxu0 %v730
    %2083 = vmatprep.subr.bf16.mxu0 0
    %2084 = vmatpush1.bf16.msra.mxu0 %v729
    %2085 = vmatprep.subr.bf16.mxu0 0
    %2086 = vmatpush1.bf16.msra.mxu0 %v728
    %2087 = vmatprep.subr.bf16.mxu0 0
    %2088 = vmatpush1.bf16.msra.mxu0 %v727
    %2089 = vmatprep.subr.bf16.mxu0 0
    %2090 = vmatpush1.bf16.msra.mxu0 %v726
    %2091 = vmatprep.subr.bf16.mxu0 0
    %2092 = vmatpush1.bf16.msra.mxu0 %v725
    %2093 = vmatprep.subr.bf16.mxu0 0
    %2094 = vmatpush1.bf16.msra.mxu0 %v724
    %2095 = vmatprep.subr.bf16.mxu0 0
    %2096 = vmatpush1.bf16.msra.mxu0 %v723
    %2097 = vmatprep.subr.bf16.mxu0 0
    %2098 = vmatpush2.bf16.msra.mxu0 %v738
    %2099 = vmatprep.subr.bf16.mxu0 0
    %2100 = vmatpush2.bf16.msra.mxu0 %v737
    %2101 = vmatprep.subr.bf16.mxu0 0
    %2102 = vmatpush2.bf16.msra.mxu0 %v736
    %2103 = vmatprep.subr.bf16.mxu0 0
    %2104 = vmatpush2.bf16.msra.mxu0 %v735
    %2105 = vmatprep.subr.bf16.mxu0 0
    %2106 = vmatpush2.bf16.msra.mxu0 %v734
    %2107 = vmatprep.subr.bf16.mxu0 0
    %2108 = vmatpush2.bf16.msra.mxu0 %v733
    %2109 = vmatprep.subr.bf16.mxu0 0
    %2110 = vmatpush2.bf16.msra.mxu0 %v732
    %2111 = vmatprep.subr.bf16.mxu0 0
    %2112 = vmatpush2.bf16.msra.mxu0 %v731
    %2113 = vmatprep.mubr.bf16.mxu0 %v2066
    %2114 = vmatmul.mubr.bf16.gmra.mxu0 %v2065
    %v2115 = vpop.f32.mrf.mxu0
    %v2116 = vadd.f32 %v469, %v2115
    %v2117 = vpop.f32.mrf.mxu0
    %v2118 = vpop.f32.mrf.mxu0
    %v2119 = vpop.f32.mrf.mxu0
    %2120 = vdwg.mxu0
    %2121 = vmatprep.subr.bf16.mxu0 0
    %2122 = vmatpush1.bf16.msra.mxu0 %v746
    %2123 = vmatprep.subr.bf16.mxu0 0
    %2124 = vmatpush1.bf16.msra.mxu0 %v745
    %2125 = vmatprep.subr.bf16.mxu0 0
    %2126 = vmatpush1.bf16.msra.mxu0 %v744
    %2127 = vmatprep.subr.bf16.mxu0 0
    %2128 = vmatpush1.bf16.msra.mxu0 %v743
    %2129 = vmatprep.subr.bf16.mxu0 0
    %2130 = vmatpush1.bf16.msra.mxu0 %v742
    %2131 = vmatprep.subr.bf16.mxu0 0
    %2132 = vmatpush1.bf16.msra.mxu0 %v741
    %2133 = vmatprep.subr.bf16.mxu0 0
    %2134 = vmatpush1.bf16.msra.mxu0 %v740
    %2135 = vmatprep.subr.bf16.mxu0 0
    %2136 = vmatpush1.bf16.msra.mxu0 %v739
    %2137 = vmatprep.subr.bf16.mxu0 0
    %2138 = vmatpush2.bf16.msra.mxu0 %v754
    %2139 = vmatprep.subr.bf16.mxu0 0
    %2140 = vmatpush2.bf16.msra.mxu0 %v753
    %2141 = vmatprep.subr.bf16.mxu0 0
    %2142 = vmatpush2.bf16.msra.mxu0 %v752
    %2143 = vmatprep.subr.bf16.mxu0 0
    %2144 = vmatpush2.bf16.msra.mxu0 %v751
    %2145 = vmatprep.subr.bf16.mxu0 0
    %2146 = vmatpush2.bf16.msra.mxu0 %v750
    %2147 = vmatprep.subr.bf16.mxu0 0
    %2148 = vmatpush2.bf16.msra.mxu0 %v749
    %2149 = vmatprep.subr.bf16.mxu0 0
    %2150 = vmatpush2.bf16.msra.mxu0 %v748
    %2151 = vmatprep.subr.bf16.mxu0 0
    %2152 = vmatpush2.bf16.msra.mxu0 %v747
    %2153 = vmatprep.mubr.bf16.mxu0 %v2068
    %2154 = vmatmul.mubr.bf16.gmra.mxu0 %v2067
    %v2155 = vpop.f32.mrf.mxu0
    %v2156 = vadd.f32 %v2116, %v2155
    %v2157 = vpop.f32.mrf.mxu0
    %v2158 = vpop.f32.mrf.mxu0
    %v2159 = vpop.f32.mrf.mxu0
    %2160 = vdwg.mxu0
    %2161 = vmatprep.subr.bf16.mxu0 0
    %2162 = vmatpush1.bf16.msra.mxu0 %v762
    %2163 = vmatprep.subr.bf16.mxu0 0
    %2164 = vmatpush1.bf16.msra.mxu0 %v761
    %2165 = vmatprep.subr.bf16.mxu0 0
    %2166 = vmatpush1.bf16.msra.mxu0 %v760
    %2167 = vmatprep.subr.bf16.mxu0 0
    %2168 = vmatpush1.bf16.msra.mxu0 %v759
    %2169 = vmatprep.subr.bf16.mxu0 0
    %2170 = vmatpush1.bf16.msra.mxu0 %v758
    %2171 = vmatprep.subr.bf16.mxu0 0
    %2172 = vmatpush1.bf16.msra.mxu0 %v757
    %2173 = vmatprep.subr.bf16.mxu0 0
    %2174 = vmatpush1.bf16.msra.mxu0 %v756
    %2175 = vmatprep.subr.bf16.mxu0 0
    %2176 = vmatpush1.bf16.msra.mxu0 %v755
    %2177 = vmatprep.subr.bf16.mxu0 0
    %2178 = vmatpush2.bf16.msra.mxu0 %v770
    %2179 = vmatprep.subr.bf16.mxu0 0
    %2180 = vmatpush2.bf16.msra.mxu0 %v769
    %2181 = vmatprep.subr.bf16.mxu0 0
    %2182 = vmatpush2.bf16.msra.mxu0 %v768
    %2183 = vmatprep.subr.bf16.mxu0 0
    %2184 = vmatpush2.bf16.msra.mxu0 %v767
    %2185 = vmatprep.subr.bf16.mxu0 0
    %2186 = vmatpush2.bf16.msra.mxu0 %v766
    %2187 = vmatprep.subr.bf16.mxu0 0
    %2188 = vmatpush2.bf16.msra.mxu0 %v765
    %2189 = vmatprep.subr.bf16.mxu0 0
    %2190 = vmatpush2.bf16.msra.mxu0 %v764
    %2191 = vmatprep.subr.bf16.mxu0 0
    %2192 = vmatpush2.bf16.msra.mxu0 %v763
    %2193 = vmatprep.mubr.bf16.mxu0 %v2070
    %2194 = vmatmul.mubr.bf16.gmra.mxu0 %v2069
    %v2195 = vpop.f32.mrf.mxu0
    %v2196 = vadd.f32 %v2156, %v2195
    %v2197 = vpop.f32.mrf.mxu0
    %v2198 = vpop.f32.mrf.mxu0
    %v2199 = vpop.f32.mrf.mxu0
    %2200 = vdwg.mxu0
    %2201 = vmatprep.subr.bf16.mxu0 0
    %2202 = vmatpush1.bf16.msra.mxu0 0
    %2203 = vmatprep.subr.bf16.mxu0 0
    %2204 = vmatpush1.bf16.msra.mxu0 0
    %2205 = vmatprep.subr.bf16.mxu0 0
    %2206 = vmatpush1.bf16.msra.mxu0 0
    %2207 = vmatprep.subr.bf16.mxu0 0
    %2208 = vmatpush1.bf16.msra.mxu0 0
    %2209 = vmatprep.subr.bf16.mxu0 0
    %2210 = vmatpush1.bf16.msra.mxu0 0
    %2211 = vmatprep.subr.bf16.mxu0 0
    %2212 = vmatpush1.bf16.msra.mxu0 0
    %2213 = vmatprep.subr.bf16.mxu0 0
    %2214 = vmatpush1.bf16.msra.mxu0 0
    %2215 = vmatprep.subr.bf16.mxu0 0
    %2216 = vmatpush1.bf16.msra.mxu0 %v771
    %2217 = vmatprep.subr.bf16.mxu0 0
    %2218 = vmatpush2.bf16.msra.mxu0 0
    %2219 = vmatprep.subr.bf16.mxu0 0
    %2220 = vmatpush2.bf16.msra.mxu0 0
    %2221 = vmatprep.subr.bf16.mxu0 0
    %2222 = vmatpush2.bf16.msra.mxu0 0
    %2223 = vmatprep.subr.bf16.mxu0 0
    %2224 = vmatpush2.bf16.msra.mxu0 0
    %2225 = vmatprep.subr.bf16.mxu0 0
    %2226 = vmatpush2.bf16.msra.mxu0 0
    %2227 = vmatprep.subr.bf16.mxu0 0
    %2228 = vmatpush2.bf16.msra.mxu0 0
    %2229 = vmatprep.subr.bf16.mxu0 0
    %2230 = vmatpush2.bf16.msra.mxu0 0
    %2231 = vmatprep.subr.bf16.mxu0 0
    %2232 = vmatpush2.bf16.msra.mxu0 0
    %2233 = vmatprep.mubr.bf16.mxu0 0
    %2234 = vmatmul.mubr.bf16.gmra.mxu0 %v2079
    %v2235 = vpop.f32.mrf.mxu0
    %v2236 = vadd.f32 %v2196, %v2235
    %v2237 = vpop.f32.mrf.mxu0
    %v2238 = vpop.f32.mrf.mxu0
    %v2239 = vpop.f32.mrf.mxu0
    %2240 = vdwg.mxu0
    %v2241 = vmax.f32 %v2236, 0.0
    %v2242 = vadd.f32 %v1928, %v2241
    %s2243 = scalar_lea.vmem %s2, 5
    %v2244 = vld [vmem:[%s2243] ss:$8 sm:$0xf]
    %v2245 = vld [vmem:[%s2243] ss:$8 sm:$0x70]
    %v2246 = vor.u32 %v2244, %v2245
    %s2247 = scalar_lea.vmem %s2, 61
    %v2248 = vld [vmem:[%s2247] ss:$8 sm:$0xf]
    %v2249 = vld [vmem:[%s2247] ss:$8 sm:$0x70]
    %v2250 = vor.u32 %v2248, %v2249
    %v2253 = vlaneseq
    %v2254 = vshrl.u32 %v2253, 7
    %v2255 = vsub.s32 0, %v2254
    %v2256 = vrot.slane %v2246, %v2255
    %v2257 = vlaneseq
    %v2258 = vshrl.u32 %v2257, 7
    %v2259 = vsub.s32 1, %v2258
    %v2260 = vrot.slane %v2246, %v2259
    %v2261 = vlaneseq
    %v2262 = vshrl.u32 %v2261, 7
    %v2263 = vsub.s32 2, %v2262
    %v2264 = vrot.slane %v2246, %v2263
    %v2265 = vlaneseq
    %v2266 = vshrl.u32 %v2265, 7
    %v2267 = vsub.s32 3, %v2266
    %v2268 = vrot.slane %v2246, %v2267
    %v2269 = vlaneseq
    %v2270 = vshrl.u32 %v2269, 7
    %v2271 = vsub.s32 4, %v2270
    %v2272 = vrot.slane %v2246, %v2271
    %v2273 = vlaneseq
    %v2274 = vshrl.u32 %v2273, 7
    %v2275 = vsub.s32 5, %v2274
    %v2276 = vrot.slane %v2246, %v2275
    %v2277 = vlaneseq
    %v2278 = vshrl.u32 %v2277, 7
    %v2279 = vsub.s32 6, %v2278
    %v2280 = vrot.slane %v2246, %v2279
    %v2281 = vlaneseq
    %v2282 = vshrl.u32 %v2281, 7
    %v2283 = vsub.s32 0, %v2282
    %v2284 = vrot.slane %v2250, %v2283
    %v2285 = vlaneseq
    %v2286 = vshrl.u32 %v2285, 7
    %v2287 = vsub.s32 1, %v2286
    %v2288 = vrot.slane %v2250, %v2287
    %v2289 = vlaneseq
    %v2290 = vshrl.u32 %v2289, 7
    %v2291 = vsub.s32 2, %v2290
    %v2292 = vrot.slane %v2250, %v2291
    %v2293 = vlaneseq
    %v2294 = vshrl.u32 %v2293, 7
    %v2295 = vsub.s32 3, %v2294
    %v2296 = vrot.slane %v2250, %v2295
    %v2297 = vlaneseq
    %v2298 = vshrl.u32 %v2297, 7
    %v2299 = vsub.s32 4, %v2298
    %v2300 = vrot.slane %v2250, %v2299
    %v2301 = vlaneseq
    %v2302 = vshrl.u32 %v2301, 7
    %v2303 = vsub.s32 5, %v2302
    %v2304 = vrot.slane %v2250, %v2303
    %v2305 = vlaneseq
    %v2306 = vshrl.u32 %v2305, 7
    %v2307 = vsub.s32 6, %v2306
    %v2308 = vrot.slane %v2250, %v2307
    %v2323 = vpack.c.bf16 %v2256, %v2256
    %v2324 = vpack.c.bf16 %v2260, %v2260
    %v2325 = vpack.c.bf16 %v2264, %v2264
    %v2326 = vpack.c.bf16 %v2268, %v2268
    %v2327 = vpack.c.bf16 %v2272, %v2272
    %v2328 = vpack.c.bf16 %v2276, %v2276
    %v2329 = vpack.c.bf16 %v2280, %v2280
    %v2330 = vpack.c.bf16 %v2284, %v2284
    %v2331 = vpack.c.bf16 %v2288, %v2288
    %v2332 = vpack.c.bf16 %v2292, %v2292
    %v2333 = vpack.c.bf16 %v2296, %v2296
    %v2334 = vpack.c.bf16 %v2300, %v2300
    %v2335 = vpack.c.bf16 %v2304, %v2304
    %v2336 = vpack.c.bf16 %v2308, %v2308
    %v2351 = vunpack.c.l.b16 %v2323
    %v2352 = vunpack.c.l.b16 %v2324
    %v2353 = vunpack.c.l.b16 %v2325
    %v2354 = vunpack.c.l.b16 %v2326
    %v2355 = vunpack.c.l.b16 %v2327
    %v2356 = vunpack.c.l.b16 %v2328
    %v2357 = vunpack.c.l.b16 %v2329
    %v2358 = vunpack.c.l.b16 %v2330
    %v2359 = vunpack.c.l.b16 %v2331
    %v2360 = vunpack.c.l.b16 %v2332
    %v2361 = vunpack.c.l.b16 %v2333
    %v2362 = vunpack.c.l.b16 %v2334
    %v2363 = vunpack.c.l.b16 %v2335
    %v2364 = vunpack.c.l.b16 %v2336
    %v2365 = vrot.slane %v2358, 7
    %v2366 = vsel %vm500, %v2365, %v2351
    %v2367 = vrot.slane %v2359, 7
    %v2368 = vsel %vm500, %v2367, %v2352
    %v2369 = vrot.slane %v2360, 7
    %v2370 = vsel %vm500, %v2369, %v2353
    %v2371 = vrot.slane %v2361, 7
    %v2372 = vsel %vm500, %v2371, %v2354
    %v2373 = vrot.slane %v2362, 7
    %v2374 = vsel %vm500, %v2373, %v2355
    %v2375 = vrot.slane %v2363, 7
    %v2376 = vsel %vm500, %v2375, %v2356
    %v2377 = vrot.slane %v2364, 7
    %v2378 = vsel %vm500, %v2377, %v2357
    %v2379 = vpack.c.b16 %v2366, %v2366
    %v2380 = vpack.c.b16 %v2368, %v2368
    %v2381 = vpack.c.b16 %v2370, %v2370
    %v2382 = vpack.c.b16 %v2372, %v2372
    %v2383 = vpack.c.b16 %v2374, %v2374
    %v2384 = vpack.c.b16 %v2376, %v2376
    %v2385 = vpack.c.b16 %v2378, %v2378
    %v2393 = vsel %vm821, %v2385, 0
    %2395 = vmatprep.subr.bf16.mxu0 0
    %2396 = vmatpush1.bf16.msra.mxu0 %v730
    %2397 = vmatprep.subr.bf16.mxu0 0
    %2398 = vmatpush1.bf16.msra.mxu0 %v729
    %2399 = vmatprep.subr.bf16.mxu0 0
    %2400 = vmatpush1.bf16.msra.mxu0 %v728
    %2401 = vmatprep.subr.bf16.mxu0 0
    %2402 = vmatpush1.bf16.msra.mxu0 %v727
    %2403 = vmatprep.subr.bf16.mxu0 0
    %2404 = vmatpush1.bf16.msra.mxu0 %v726
    %2405 = vmatprep.subr.bf16.mxu0 0
    %2406 = vmatpush1.bf16.msra.mxu0 %v725
    %2407 = vmatprep.subr.bf16.mxu0 0
    %2408 = vmatpush1.bf16.msra.mxu0 %v724
    %2409 = vmatprep.subr.bf16.mxu0 0
    %2410 = vmatpush1.bf16.msra.mxu0 %v723
    %2411 = vmatprep.subr.bf16.mxu0 0
    %2412 = vmatpush2.bf16.msra.mxu0 %v738
    %2413 = vmatprep.subr.bf16.mxu0 0
    %2414 = vmatpush2.bf16.msra.mxu0 %v737
    %2415 = vmatprep.subr.bf16.mxu0 0
    %2416 = vmatpush2.bf16.msra.mxu0 %v736
    %2417 = vmatprep.subr.bf16.mxu0 0
    %2418 = vmatpush2.bf16.msra.mxu0 %v735
    %2419 = vmatprep.subr.bf16.mxu0 0
    %2420 = vmatpush2.bf16.msra.mxu0 %v734
    %2421 = vmatprep.subr.bf16.mxu0 0
    %2422 = vmatpush2.bf16.msra.mxu0 %v733
    %2423 = vmatprep.subr.bf16.mxu0 0
    %2424 = vmatpush2.bf16.msra.mxu0 %v732
    %2425 = vmatprep.subr.bf16.mxu0 0
    %2426 = vmatpush2.bf16.msra.mxu0 %v731
    %2427 = vmatprep.mubr.bf16.mxu0 %v2380
    %2428 = vmatmul.mubr.bf16.gmra.mxu0 %v2379
    %v2429 = vpop.f32.mrf.mxu0
    %v2430 = vadd.f32 %v469, %v2429
    %v2431 = vpop.f32.mrf.mxu0
    %v2432 = vpop.f32.mrf.mxu0
    %v2433 = vpop.f32.mrf.mxu0
    %2434 = vdwg.mxu0
    %2435 = vmatprep.subr.bf16.mxu0 0
    %2436 = vmatpush1.bf16.msra.mxu0 %v746
    %2437 = vmatprep.subr.bf16.mxu0 0
    %2438 = vmatpush1.bf16.msra.mxu0 %v745
    %2439 = vmatprep.subr.bf16.mxu0 0
    %2440 = vmatpush1.bf16.msra.mxu0 %v744
    %2441 = vmatprep.subr.bf16.mxu0 0
    %2442 = vmatpush1.bf16.msra.mxu0 %v743
    %2443 = vmatprep.subr.bf16.mxu0 0
    %2444 = vmatpush1.bf16.msra.mxu0 %v742
    %2445 = vmatprep.subr.bf16.mxu0 0
    %2446 = vmatpush1.bf16.msra.mxu0 %v741
    %2447 = vmatprep.subr.bf16.mxu0 0
    %2448 = vmatpush1.bf16.msra.mxu0 %v740
    %2449 = vmatprep.subr.bf16.mxu0 0
    %2450 = vmatpush1.bf16.msra.mxu0 %v739
    %2451 = vmatprep.subr.bf16.mxu0 0
    %2452 = vmatpush2.bf16.msra.mxu0 %v754
    %2453 = vmatprep.subr.bf16.mxu0 0
    %2454 = vmatpush2.bf16.msra.mxu0 %v753
    %2455 = vmatprep.subr.bf16.mxu0 0
    %2456 = vmatpush2.bf16.msra.mxu0 %v752
    %2457 = vmatprep.subr.bf16.mxu0 0
    %2458 = vmatpush2.bf16.msra.mxu0 %v751
    %2459 = vmatprep.subr.bf16.mxu0 0
    %2460 = vmatpush2.bf16.msra.mxu0 %v750
    %2461 = vmatprep.subr.bf16.mxu0 0
    %2462 = vmatpush2.bf16.msra.mxu0 %v749
    %2463 = vmatprep.subr.bf16.mxu0 0
    %2464 = vmatpush2.bf16.msra.mxu0 %v748
    %2465 = vmatprep.subr.bf16.mxu0 0
    %2466 = vmatpush2.bf16.msra.mxu0 %v747
    %2467 = vmatprep.mubr.bf16.mxu0 %v2382
    %2468 = vmatmul.mubr.bf16.gmra.mxu0 %v2381
    %v2469 = vpop.f32.mrf.mxu0
    %v2470 = vadd.f32 %v2430, %v2469
    %v2471 = vpop.f32.mrf.mxu0
    %v2472 = vpop.f32.mrf.mxu0
    %v2473 = vpop.f32.mrf.mxu0
    %2474 = vdwg.mxu0
    %2475 = vmatprep.subr.bf16.mxu0 0
    %2476 = vmatpush1.bf16.msra.mxu0 %v762
    %2477 = vmatprep.subr.bf16.mxu0 0
    %2478 = vmatpush1.bf16.msra.mxu0 %v761
    %2479 = vmatprep.subr.bf16.mxu0 0
    %2480 = vmatpush1.bf16.msra.mxu0 %v760
    %2481 = vmatprep.subr.bf16.mxu0 0
    %2482 = vmatpush1.bf16.msra.mxu0 %v759
    %2483 = vmatprep.subr.bf16.mxu0 0
    %2484 = vmatpush1.bf16.msra.mxu0 %v758
    %2485 = vmatprep.subr.bf16.mxu0 0
    %2486 = vmatpush1.bf16.msra.mxu0 %v757
    %2487 = vmatprep.subr.bf16.mxu0 0
    %2488 = vmatpush1.bf16.msra.mxu0 %v756
    %2489 = vmatprep.subr.bf16.mxu0 0
    %2490 = vmatpush1.bf16.msra.mxu0 %v755
    %2491 = vmatprep.subr.bf16.mxu0 0
    %2492 = vmatpush2.bf16.msra.mxu0 %v770
    %2493 = vmatprep.subr.bf16.mxu0 0
    %2494 = vmatpush2.bf16.msra.mxu0 %v769
    %2495 = vmatprep.subr.bf16.mxu0 0
    %2496 = vmatpush2.bf16.msra.mxu0 %v768
    %2497 = vmatprep.subr.bf16.mxu0 0
    %2498 = vmatpush2.bf16.msra.mxu0 %v767
    %2499 = vmatprep.subr.bf16.mxu0 0
    %2500 = vmatpush2.bf16.msra.mxu0 %v766
    %2501 = vmatprep.subr.bf16.mxu0 0
    %2502 = vmatpush2.bf16.msra.mxu0 %v765
    %2503 = vmatprep.subr.bf16.mxu0 0
    %2504 = vmatpush2.bf16.msra.mxu0 %v764
    %2505 = vmatprep.subr.bf16.mxu0 0
    %2506 = vmatpush2.bf16.msra.mxu0 %v763
    %2507 = vmatprep.mubr.bf16.mxu0 %v2384
    %2508 = vmatmul.mubr.bf16.gmra.mxu0 %v2383
    %v2509 = vpop.f32.mrf.mxu0
    %v2510 = vadd.f32 %v2470, %v2509
    %v2511 = vpop.f32.mrf.mxu0
    %v2512 = vpop.f32.mrf.mxu0
    %v2513 = vpop.f32.mrf.mxu0
    %2514 = vdwg.mxu0
    %2515 = vmatprep.subr.bf16.mxu0 0
    %2516 = vmatpush1.bf16.msra.mxu0 0
    %2517 = vmatprep.subr.bf16.mxu0 0
    %2518 = vmatpush1.bf16.msra.mxu0 0
    %2519 = vmatprep.subr.bf16.mxu0 0
    %2520 = vmatpush1.bf16.msra.mxu0 0
    %2521 = vmatprep.subr.bf16.mxu0 0
    %2522 = vmatpush1.bf16.msra.mxu0 0
    %2523 = vmatprep.subr.bf16.mxu0 0
    %2524 = vmatpush1.bf16.msra.mxu0 0
    %2525 = vmatprep.subr.bf16.mxu0 0
    %2526 = vmatpush1.bf16.msra.mxu0 0
    %2527 = vmatprep.subr.bf16.mxu0 0
    %2528 = vmatpush1.bf16.msra.mxu0 0
    %2529 = vmatprep.subr.bf16.mxu0 0
    %2530 = vmatpush1.bf16.msra.mxu0 %v771
    %2531 = vmatprep.subr.bf16.mxu0 0
    %2532 = vmatpush2.bf16.msra.mxu0 0
    %2533 = vmatprep.subr.bf16.mxu0 0
    %2534 = vmatpush2.bf16.msra.mxu0 0
    %2535 = vmatprep.subr.bf16.mxu0 0
    %2536 = vmatpush2.bf16.msra.mxu0 0
    %2537 = vmatprep.subr.bf16.mxu0 0
    %2538 = vmatpush2.bf16.msra.mxu0 0
    %2539 = vmatprep.subr.bf16.mxu0 0
    %2540 = vmatpush2.bf16.msra.mxu0 0
    %2541 = vmatprep.subr.bf16.mxu0 0
    %2542 = vmatpush2.bf16.msra.mxu0 0
    %2543 = vmatprep.subr.bf16.mxu0 0
    %2544 = vmatpush2.bf16.msra.mxu0 0
    %2545 = vmatprep.subr.bf16.mxu0 0
    %2546 = vmatpush2.bf16.msra.mxu0 0
    %2547 = vmatprep.mubr.bf16.mxu0 0
    %2548 = vmatmul.mubr.bf16.gmra.mxu0 %v2393
    %v2549 = vpop.f32.mrf.mxu0
    %v2550 = vadd.f32 %v2510, %v2549
    %v2551 = vpop.f32.mrf.mxu0
    %v2552 = vpop.f32.mrf.mxu0
    %v2553 = vpop.f32.mrf.mxu0
    %2554 = vdwg.mxu0
    %v2555 = vmax.f32 %v2550, 0.0
    %v2556 = vadd.f32 %v2242, %v2555
    %s2557 = scalar_lea.vmem %s2, 6
    %v2558 = vld [vmem:[%s2557] ss:$8 sm:$0xf]
    %v2559 = vld [vmem:[%s2557] ss:$8 sm:$0x70]
    %v2560 = vor.u32 %v2558, %v2559
    %s2561 = scalar_lea.vmem %s2, 62
    %v2562 = vld [vmem:[%s2561] ss:$8 sm:$0xf]
    %v2563 = vld [vmem:[%s2561] ss:$8 sm:$0x70]
    %v2564 = vor.u32 %v2562, %v2563
    %v2567 = vlaneseq
    %v2568 = vshrl.u32 %v2567, 7
    %v2569 = vsub.s32 0, %v2568
    %v2570 = vrot.slane %v2560, %v2569
    %v2571 = vlaneseq
    %v2572 = vshrl.u32 %v2571, 7
    %v2573 = vsub.s32 1, %v2572
    %v2574 = vrot.slane %v2560, %v2573
    %v2575 = vlaneseq
    %v2576 = vshrl.u32 %v2575, 7
    %v2577 = vsub.s32 2, %v2576
    %v2578 = vrot.slane %v2560, %v2577
    %v2579 = vlaneseq
    %v2580 = vshrl.u32 %v2579, 7
    %v2581 = vsub.s32 3, %v2580
    %v2582 = vrot.slane %v2560, %v2581
    %v2583 = vlaneseq
    %v2584 = vshrl.u32 %v2583, 7
    %v2585 = vsub.s32 4, %v2584
    %v2586 = vrot.slane %v2560, %v2585
    %v2587 = vlaneseq
    %v2588 = vshrl.u32 %v2587, 7
    %v2589 = vsub.s32 5, %v2588
    %v2590 = vrot.slane %v2560, %v2589
    %v2591 = vlaneseq
    %v2592 = vshrl.u32 %v2591, 7
    %v2593 = vsub.s32 6, %v2592
    %v2594 = vrot.slane %v2560, %v2593
    %v2595 = vlaneseq
    %v2596 = vshrl.u32 %v2595, 7
    %v2597 = vsub.s32 0, %v2596
    %v2598 = vrot.slane %v2564, %v2597
    %v2599 = vlaneseq
    %v2600 = vshrl.u32 %v2599, 7
    %v2601 = vsub.s32 1, %v2600
    %v2602 = vrot.slane %v2564, %v2601
    %v2603 = vlaneseq
    %v2604 = vshrl.u32 %v2603, 7
    %v2605 = vsub.s32 2, %v2604
    %v2606 = vrot.slane %v2564, %v2605
    %v2607 = vlaneseq
    %v2608 = vshrl.u32 %v2607, 7
    %v2609 = vsub.s32 3, %v2608
    %v2610 = vrot.slane %v2564, %v2609
    %v2611 = vlaneseq
    %v2612 = vshrl.u32 %v2611, 7
    %v2613 = vsub.s32 4, %v2612
    %v2614 = vrot.slane %v2564, %v2613
    %v2615 = vlaneseq
    %v2616 = vshrl.u32 %v2615, 7
    %v2617 = vsub.s32 5, %v2616
    %v2618 = vrot.slane %v2564, %v2617
    %v2619 = vlaneseq
    %v2620 = vshrl.u32 %v2619, 7
    %v2621 = vsub.s32 6, %v2620
    %v2622 = vrot.slane %v2564, %v2621
    %v2637 = vpack.c.bf16 %v2570, %v2570
    %v2638 = vpack.c.bf16 %v2574, %v2574
    %v2639 = vpack.c.bf16 %v2578, %v2578
    %v2640 = vpack.c.bf16 %v2582, %v2582
    %v2641 = vpack.c.bf16 %v2586, %v2586
    %v2642 = vpack.c.bf16 %v2590, %v2590
    %v2643 = vpack.c.bf16 %v2594, %v2594
    %v2644 = vpack.c.bf16 %v2598, %v2598
    %v2645 = vpack.c.bf16 %v2602, %v2602
    %v2646 = vpack.c.bf16 %v2606, %v2606
    %v2647 = vpack.c.bf16 %v2610, %v2610
    %v2648 = vpack.c.bf16 %v2614, %v2614
    %v2649 = vpack.c.bf16 %v2618, %v2618
    %v2650 = vpack.c.bf16 %v2622, %v2622
    %v2665 = vunpack.c.l.b16 %v2637
    %v2666 = vunpack.c.l.b16 %v2638
    %v2667 = vunpack.c.l.b16 %v2639
    %v2668 = vunpack.c.l.b16 %v2640
    %v2669 = vunpack.c.l.b16 %v2641
    %v2670 = vunpack.c.l.b16 %v2642
    %v2671 = vunpack.c.l.b16 %v2643
    %v2672 = vunpack.c.l.b16 %v2644
    %v2673 = vunpack.c.l.b16 %v2645
    %v2674 = vunpack.c.l.b16 %v2646
    %v2675 = vunpack.c.l.b16 %v2647
    %v2676 = vunpack.c.l.b16 %v2648
    %v2677 = vunpack.c.l.b16 %v2649
    %v2678 = vunpack.c.l.b16 %v2650
    %v2679 = vrot.slane %v2672, 7
    %v2680 = vsel %vm500, %v2679, %v2665
    %v2681 = vrot.slane %v2673, 7
    %v2682 = vsel %vm500, %v2681, %v2666
    %v2683 = vrot.slane %v2674, 7
    %v2684 = vsel %vm500, %v2683, %v2667
    %v2685 = vrot.slane %v2675, 7
    %v2686 = vsel %vm500, %v2685, %v2668
    %v2687 = vrot.slane %v2676, 7
    %v2688 = vsel %vm500, %v2687, %v2669
    %v2689 = vrot.slane %v2677, 7
    %v2690 = vsel %vm500, %v2689, %v2670
    %v2691 = vrot.slane %v2678, 7
    %v2692 = vsel %vm500, %v2691, %v2671
    %v2693 = vpack.c.b16 %v2680, %v2680
    %v2694 = vpack.c.b16 %v2682, %v2682
    %v2695 = vpack.c.b16 %v2684, %v2684
    %v2696 = vpack.c.b16 %v2686, %v2686
    %v2697 = vpack.c.b16 %v2688, %v2688
    %v2698 = vpack.c.b16 %v2690, %v2690
    %v2699 = vpack.c.b16 %v2692, %v2692
    %v2707 = vsel %vm821, %v2699, 0
    %2709 = vmatprep.subr.bf16.mxu0 0
    %2710 = vmatpush1.bf16.msra.mxu0 %v730
    %2711 = vmatprep.subr.bf16.mxu0 0
    %2712 = vmatpush1.bf16.msra.mxu0 %v729
    %2713 = vmatprep.subr.bf16.mxu0 0
    %2714 = vmatpush1.bf16.msra.mxu0 %v728
    %2715 = vmatprep.subr.bf16.mxu0 0
    %2716 = vmatpush1.bf16.msra.mxu0 %v727
    %2717 = vmatprep.subr.bf16.mxu0 0
    %2718 = vmatpush1.bf16.msra.mxu0 %v726
    %2719 = vmatprep.subr.bf16.mxu0 0
    %2720 = vmatpush1.bf16.msra.mxu0 %v725
    %2721 = vmatprep.subr.bf16.mxu0 0
    %2722 = vmatpush1.bf16.msra.mxu0 %v724
    %2723 = vmatprep.subr.bf16.mxu0 0
    %2724 = vmatpush1.bf16.msra.mxu0 %v723
    %2725 = vmatprep.subr.bf16.mxu0 0
    %2726 = vmatpush2.bf16.msra.mxu0 %v738
    %2727 = vmatprep.subr.bf16.mxu0 0
    %2728 = vmatpush2.bf16.msra.mxu0 %v737
    %2729 = vmatprep.subr.bf16.mxu0 0
    %2730 = vmatpush2.bf16.msra.mxu0 %v736
    %2731 = vmatprep.subr.bf16.mxu0 0
    %2732 = vmatpush2.bf16.msra.mxu0 %v735
    %2733 = vmatprep.subr.bf16.mxu0 0
    %2734 = vmatpush2.bf16.msra.mxu0 %v734
    %2735 = vmatprep.subr.bf16.mxu0 0
    %2736 = vmatpush2.bf16.msra.mxu0 %v733
    %2737 = vmatprep.subr.bf16.mxu0 0
    %2738 = vmatpush2.bf16.msra.mxu0 %v732
    %2739 = vmatprep.subr.bf16.mxu0 0
    %2740 = vmatpush2.bf16.msra.mxu0 %v731
    %2741 = vmatprep.mubr.bf16.mxu0 %v2694
    %2742 = vmatmul.mubr.bf16.gmra.mxu0 %v2693
    %v2743 = vpop.f32.mrf.mxu0
    %v2744 = vadd.f32 %v469, %v2743
    %v2745 = vpop.f32.mrf.mxu0
    %v2746 = vpop.f32.mrf.mxu0
    %v2747 = vpop.f32.mrf.mxu0
    %2748 = vdwg.mxu0
    %2749 = vmatprep.subr.bf16.mxu0 0
    %2750 = vmatpush1.bf16.msra.mxu0 %v746
    %2751 = vmatprep.subr.bf16.mxu0 0
    %2752 = vmatpush1.bf16.msra.mxu0 %v745
    %2753 = vmatprep.subr.bf16.mxu0 0
    %2754 = vmatpush1.bf16.msra.mxu0 %v744
    %2755 = vmatprep.subr.bf16.mxu0 0
    %2756 = vmatpush1.bf16.msra.mxu0 %v743
    %2757 = vmatprep.subr.bf16.mxu0 0
    %2758 = vmatpush1.bf16.msra.mxu0 %v742
    %2759 = vmatprep.subr.bf16.mxu0 0
    %2760 = vmatpush1.bf16.msra.mxu0 %v741
    %2761 = vmatprep.subr.bf16.mxu0 0
    %2762 = vmatpush1.bf16.msra.mxu0 %v740
    %2763 = vmatprep.subr.bf16.mxu0 0
    %2764 = vmatpush1.bf16.msra.mxu0 %v739
    %2765 = vmatprep.subr.bf16.mxu0 0
    %2766 = vmatpush2.bf16.msra.mxu0 %v754
    %2767 = vmatprep.subr.bf16.mxu0 0
    %2768 = vmatpush2.bf16.msra.mxu0 %v753
    %2769 = vmatprep.subr.bf16.mxu0 0
    %2770 = vmatpush2.bf16.msra.mxu0 %v752
    %2771 = vmatprep.subr.bf16.mxu0 0
    %2772 = vmatpush2.bf16.msra.mxu0 %v751
    %2773 = vmatprep.subr.bf16.mxu0 0
    %2774 = vmatpush2.bf16.msra.mxu0 %v750
    %2775 = vmatprep.subr.bf16.mxu0 0
    %2776 = vmatpush2.bf16.msra.mxu0 %v749
    %2777 = vmatprep.subr.bf16.mxu0 0
    %2778 = vmatpush2.bf16.msra.mxu0 %v748
    %2779 = vmatprep.subr.bf16.mxu0 0
    %2780 = vmatpush2.bf16.msra.mxu0 %v747
    %2781 = vmatprep.mubr.bf16.mxu0 %v2696
    %2782 = vmatmul.mubr.bf16.gmra.mxu0 %v2695
    %v2783 = vpop.f32.mrf.mxu0
    %v2784 = vadd.f32 %v2744, %v2783
    %v2785 = vpop.f32.mrf.mxu0
    %v2786 = vpop.f32.mrf.mxu0
    %v2787 = vpop.f32.mrf.mxu0
    %2788 = vdwg.mxu0
    %2789 = vmatprep.subr.bf16.mxu0 0
    %2790 = vmatpush1.bf16.msra.mxu0 %v762
    %2791 = vmatprep.subr.bf16.mxu0 0
    %2792 = vmatpush1.bf16.msra.mxu0 %v761
    %2793 = vmatprep.subr.bf16.mxu0 0
    %2794 = vmatpush1.bf16.msra.mxu0 %v760
    %2795 = vmatprep.subr.bf16.mxu0 0
    %2796 = vmatpush1.bf16.msra.mxu0 %v759
    %2797 = vmatprep.subr.bf16.mxu0 0
    %2798 = vmatpush1.bf16.msra.mxu0 %v758
    %2799 = vmatprep.subr.bf16.mxu0 0
    %2800 = vmatpush1.bf16.msra.mxu0 %v757
    %2801 = vmatprep.subr.bf16.mxu0 0
    %2802 = vmatpush1.bf16.msra.mxu0 %v756
    %2803 = vmatprep.subr.bf16.mxu0 0
    %2804 = vmatpush1.bf16.msra.mxu0 %v755
    %2805 = vmatprep.subr.bf16.mxu0 0
    %2806 = vmatpush2.bf16.msra.mxu0 %v770
    %2807 = vmatprep.subr.bf16.mxu0 0
    %2808 = vmatpush2.bf16.msra.mxu0 %v769
    %2809 = vmatprep.subr.bf16.mxu0 0
    %2810 = vmatpush2.bf16.msra.mxu0 %v768
    %2811 = vmatprep.subr.bf16.mxu0 0
    %2812 = vmatpush2.bf16.msra.mxu0 %v767
    %2813 = vmatprep.subr.bf16.mxu0 0
    %2814 = vmatpush2.bf16.msra.mxu0 %v766
    %2815 = vmatprep.subr.bf16.mxu0 0
    %2816 = vmatpush2.bf16.msra.mxu0 %v765
    %2817 = vmatprep.subr.bf16.mxu0 0
    %2818 = vmatpush2.bf16.msra.mxu0 %v764
    %2819 = vmatprep.subr.bf16.mxu0 0
    %2820 = vmatpush2.bf16.msra.mxu0 %v763
    %2821 = vmatprep.mubr.bf16.mxu0 %v2698
    %2822 = vmatmul.mubr.bf16.gmra.mxu0 %v2697
    %v2823 = vpop.f32.mrf.mxu0
    %v2824 = vadd.f32 %v2784, %v2823
    %v2825 = vpop.f32.mrf.mxu0
    %v2826 = vpop.f32.mrf.mxu0
    %v2827 = vpop.f32.mrf.mxu0
    %2828 = vdwg.mxu0
    %2829 = vmatprep.subr.bf16.mxu0 0
    %2830 = vmatpush1.bf16.msra.mxu0 0
    %2831 = vmatprep.subr.bf16.mxu0 0
    %2832 = vmatpush1.bf16.msra.mxu0 0
    %2833 = vmatprep.subr.bf16.mxu0 0
    %2834 = vmatpush1.bf16.msra.mxu0 0
    %2835 = vmatprep.subr.bf16.mxu0 0
    %2836 = vmatpush1.bf16.msra.mxu0 0
    %2837 = vmatprep.subr.bf16.mxu0 0
    %2838 = vmatpush1.bf16.msra.mxu0 0
    %2839 = vmatprep.subr.bf16.mxu0 0
    %2840 = vmatpush1.bf16.msra.mxu0 0
    %2841 = vmatprep.subr.bf16.mxu0 0
    %2842 = vmatpush1.bf16.msra.mxu0 0
    %2843 = vmatprep.subr.bf16.mxu0 0
    %2844 = vmatpush1.bf16.msra.mxu0 %v771
    %2845 = vmatprep.subr.bf16.mxu0 0
    %2846 = vmatpush2.bf16.msra.mxu0 0
    %2847 = vmatprep.subr.bf16.mxu0 0
    %2848 = vmatpush2.bf16.msra.mxu0 0
    %2849 = vmatprep.subr.bf16.mxu0 0
    %2850 = vmatpush2.bf16.msra.mxu0 0
    %2851 = vmatprep.subr.bf16.mxu0 0
    %2852 = vmatpush2.bf16.msra.mxu0 0
    %2853 = vmatprep.subr.bf16.mxu0 0
    %2854 = vmatpush2.bf16.msra.mxu0 0
    %2855 = vmatprep.subr.bf16.mxu0 0
    %2856 = vmatpush2.bf16.msra.mxu0 0
    %2857 = vmatprep.subr.bf16.mxu0 0
    %2858 = vmatpush2.bf16.msra.mxu0 0
    %2859 = vmatprep.subr.bf16.mxu0 0
    %2860 = vmatpush2.bf16.msra.mxu0 0
    %2861 = vmatprep.mubr.bf16.mxu0 0
    %2862 = vmatmul.mubr.bf16.gmra.mxu0 %v2707
    %v2863 = vpop.f32.mrf.mxu0
    %v2864 = vadd.f32 %v2824, %v2863
    %v2865 = vpop.f32.mrf.mxu0
    %v2866 = vpop.f32.mrf.mxu0
    %v2867 = vpop.f32.mrf.mxu0
    %2868 = vdwg.mxu0
    %v2869 = vmax.f32 %v2864, 0.0
    %v2870 = vadd.f32 %v2556, %v2869
    %s2871 = scalar_lea.vmem %s2, 7
    %v2872 = vld [vmem:[%s2871] ss:$8 sm:$0xf]
    %v2873 = vld [vmem:[%s2871] ss:$8 sm:$0x70]
    %v2874 = vor.u32 %v2872, %v2873
    %s2875 = scalar_lea.vmem %s2, 63
    %v2876 = vld [vmem:[%s2875] ss:$8 sm:$0xf]
    %v2877 = vld [vmem:[%s2875] ss:$8 sm:$0x70]
    %v2878 = vor.u32 %v2876, %v2877
    %v2881 = vlaneseq
    %v2882 = vshrl.u32 %v2881, 7
    %v2883 = vsub.s32 0, %v2882
    %v2884 = vrot.slane %v2874, %v2883
    %v2885 = vlaneseq
    %v2886 = vshrl.u32 %v2885, 7
    %v2887 = vsub.s32 1, %v2886
    %v2888 = vrot.slane %v2874, %v2887
    %v2889 = vlaneseq
    %v2890 = vshrl.u32 %v2889, 7
    %v2891 = vsub.s32 2, %v2890
    %v2892 = vrot.slane %v2874, %v2891
    %v2893 = vlaneseq
    %v2894 = vshrl.u32 %v2893, 7
    %v2895 = vsub.s32 3, %v2894
    %v2896 = vrot.slane %v2874, %v2895
    %v2897 = vlaneseq
    %v2898 = vshrl.u32 %v2897, 7
    %v2899 = vsub.s32 4, %v2898
    %v2900 = vrot.slane %v2874, %v2899
    %v2901 = vlaneseq
    %v2902 = vshrl.u32 %v2901, 7
    %v2903 = vsub.s32 5, %v2902
    %v2904 = vrot.slane %v2874, %v2903
    %v2905 = vlaneseq
    %v2906 = vshrl.u32 %v2905, 7
    %v2907 = vsub.s32 6, %v2906
    %v2908 = vrot.slane %v2874, %v2907
    %v2909 = vlaneseq
    %v2910 = vshrl.u32 %v2909, 7
    %v2911 = vsub.s32 0, %v2910
    %v2912 = vrot.slane %v2878, %v2911
    %v2913 = vlaneseq
    %v2914 = vshrl.u32 %v2913, 7
    %v2915 = vsub.s32 1, %v2914
    %v2916 = vrot.slane %v2878, %v2915
    %v2917 = vlaneseq
    %v2918 = vshrl.u32 %v2917, 7
    %v2919 = vsub.s32 2, %v2918
    %v2920 = vrot.slane %v2878, %v2919
    %v2921 = vlaneseq
    %v2922 = vshrl.u32 %v2921, 7
    %v2923 = vsub.s32 3, %v2922
    %v2924 = vrot.slane %v2878, %v2923
    %v2925 = vlaneseq
    %v2926 = vshrl.u32 %v2925, 7
    %v2927 = vsub.s32 4, %v2926
    %v2928 = vrot.slane %v2878, %v2927
    %v2929 = vlaneseq
    %v2930 = vshrl.u32 %v2929, 7
    %v2931 = vsub.s32 5, %v2930
    %v2932 = vrot.slane %v2878, %v2931
    %v2933 = vlaneseq
    %v2934 = vshrl.u32 %v2933, 7
    %v2935 = vsub.s32 6, %v2934
    %v2936 = vrot.slane %v2878, %v2935
    %v2951 = vpack.c.bf16 %v2884, %v2884
    %v2952 = vpack.c.bf16 %v2888, %v2888
    %v2953 = vpack.c.bf16 %v2892, %v2892
    %v2954 = vpack.c.bf16 %v2896, %v2896
    %v2955 = vpack.c.bf16 %v2900, %v2900
    %v2956 = vpack.c.bf16 %v2904, %v2904
    %v2957 = vpack.c.bf16 %v2908, %v2908
    %v2958 = vpack.c.bf16 %v2912, %v2912
    %v2959 = vpack.c.bf16 %v2916, %v2916
    %v2960 = vpack.c.bf16 %v2920, %v2920
    %v2961 = vpack.c.bf16 %v2924, %v2924
    %v2962 = vpack.c.bf16 %v2928, %v2928
    %v2963 = vpack.c.bf16 %v2932, %v2932
    %v2964 = vpack.c.bf16 %v2936, %v2936
    %v2979 = vunpack.c.l.b16 %v2951
    %v2980 = vunpack.c.l.b16 %v2952
    %v2981 = vunpack.c.l.b16 %v2953
    %v2982 = vunpack.c.l.b16 %v2954
    %v2983 = vunpack.c.l.b16 %v2955
    %v2984 = vunpack.c.l.b16 %v2956
    %v2985 = vunpack.c.l.b16 %v2957
    %v2986 = vunpack.c.l.b16 %v2958
    %v2987 = vunpack.c.l.b16 %v2959
    %v2988 = vunpack.c.l.b16 %v2960
    %v2989 = vunpack.c.l.b16 %v2961
    %v2990 = vunpack.c.l.b16 %v2962
    %v2991 = vunpack.c.l.b16 %v2963
    %v2992 = vunpack.c.l.b16 %v2964
    %v2993 = vrot.slane %v2986, 7
    %v2994 = vsel %vm500, %v2993, %v2979
    %v2995 = vrot.slane %v2987, 7
    %v2996 = vsel %vm500, %v2995, %v2980
    %v2997 = vrot.slane %v2988, 7
    %v2998 = vsel %vm500, %v2997, %v2981
    %v2999 = vrot.slane %v2989, 7
    %v3000 = vsel %vm500, %v2999, %v2982
    %v3001 = vrot.slane %v2990, 7
    %v3002 = vsel %vm500, %v3001, %v2983
    %v3003 = vrot.slane %v2991, 7
    %v3004 = vsel %vm500, %v3003, %v2984
    %v3005 = vrot.slane %v2992, 7
    %v3006 = vsel %vm500, %v3005, %v2985
    %v3007 = vpack.c.b16 %v2994, %v2994
    %v3008 = vpack.c.b16 %v2996, %v2996
    %v3009 = vpack.c.b16 %v2998, %v2998
    %v3010 = vpack.c.b16 %v3000, %v3000
    %v3011 = vpack.c.b16 %v3002, %v3002
    %v3012 = vpack.c.b16 %v3004, %v3004
    %v3013 = vpack.c.b16 %v3006, %v3006
    %v3021 = vsel %vm821, %v3013, 0
    %3023 = vmatprep.subr.bf16.mxu0 0
    %3024 = vmatpush1.bf16.msra.mxu0 %v730
    %3025 = vmatprep.subr.bf16.mxu0 0
    %3026 = vmatpush1.bf16.msra.mxu0 %v729
    %3027 = vmatprep.subr.bf16.mxu0 0
    %3028 = vmatpush1.bf16.msra.mxu0 %v728
    %3029 = vmatprep.subr.bf16.mxu0 0
    %3030 = vmatpush1.bf16.msra.mxu0 %v727
    %3031 = vmatprep.subr.bf16.mxu0 0
    %3032 = vmatpush1.bf16.msra.mxu0 %v726
    %3033 = vmatprep.subr.bf16.mxu0 0
    %3034 = vmatpush1.bf16.msra.mxu0 %v725
    %3035 = vmatprep.subr.bf16.mxu0 0
    %3036 = vmatpush1.bf16.msra.mxu0 %v724
    %3037 = vmatprep.subr.bf16.mxu0 0
    %3038 = vmatpush1.bf16.msra.mxu0 %v723
    %3039 = vmatprep.subr.bf16.mxu0 0
    %3040 = vmatpush2.bf16.msra.mxu0 %v738
    %3041 = vmatprep.subr.bf16.mxu0 0
    %3042 = vmatpush2.bf16.msra.mxu0 %v737
    %3043 = vmatprep.subr.bf16.mxu0 0
    %3044 = vmatpush2.bf16.msra.mxu0 %v736
    %3045 = vmatprep.subr.bf16.mxu0 0
    %3046 = vmatpush2.bf16.msra.mxu0 %v735
    %3047 = vmatprep.subr.bf16.mxu0 0
    %3048 = vmatpush2.bf16.msra.mxu0 %v734
    %3049 = vmatprep.subr.bf16.mxu0 0
    %3050 = vmatpush2.bf16.msra.mxu0 %v733
    %3051 = vmatprep.subr.bf16.mxu0 0
    %3052 = vmatpush2.bf16.msra.mxu0 %v732
    %3053 = vmatprep.subr.bf16.mxu0 0
    %3054 = vmatpush2.bf16.msra.mxu0 %v731
    %3055 = vmatprep.mubr.bf16.mxu0 %v3008
    %3056 = vmatmul.mubr.bf16.gmra.mxu0 %v3007
    %v3057 = vpop.f32.mrf.mxu0
    %v3058 = vadd.f32 %v469, %v3057
    %v3059 = vpop.f32.mrf.mxu0
    %v3060 = vpop.f32.mrf.mxu0
    %v3061 = vpop.f32.mrf.mxu0
    %3062 = vdwg.mxu0
    %3063 = vmatprep.subr.bf16.mxu0 0
    %3064 = vmatpush1.bf16.msra.mxu0 %v746
    %3065 = vmatprep.subr.bf16.mxu0 0
    %3066 = vmatpush1.bf16.msra.mxu0 %v745
    %3067 = vmatprep.subr.bf16.mxu0 0
    %3068 = vmatpush1.bf16.msra.mxu0 %v744
    %3069 = vmatprep.subr.bf16.mxu0 0
    %3070 = vmatpush1.bf16.msra.mxu0 %v743
    %3071 = vmatprep.subr.bf16.mxu0 0
    %3072 = vmatpush1.bf16.msra.mxu0 %v742
    %3073 = vmatprep.subr.bf16.mxu0 0
    %3074 = vmatpush1.bf16.msra.mxu0 %v741
    %3075 = vmatprep.subr.bf16.mxu0 0
    %3076 = vmatpush1.bf16.msra.mxu0 %v740
    %3077 = vmatprep.subr.bf16.mxu0 0
    %3078 = vmatpush1.bf16.msra.mxu0 %v739
    %3079 = vmatprep.subr.bf16.mxu0 0
    %3080 = vmatpush2.bf16.msra.mxu0 %v754
    %3081 = vmatprep.subr.bf16.mxu0 0
    %3082 = vmatpush2.bf16.msra.mxu0 %v753
    %3083 = vmatprep.subr.bf16.mxu0 0
    %3084 = vmatpush2.bf16.msra.mxu0 %v752
    %3085 = vmatprep.subr.bf16.mxu0 0
    %3086 = vmatpush2.bf16.msra.mxu0 %v751
    %3087 = vmatprep.subr.bf16.mxu0 0
    %3088 = vmatpush2.bf16.msra.mxu0 %v750
    %3089 = vmatprep.subr.bf16.mxu0 0
    %3090 = vmatpush2.bf16.msra.mxu0 %v749
    %3091 = vmatprep.subr.bf16.mxu0 0
    %3092 = vmatpush2.bf16.msra.mxu0 %v748
    %3093 = vmatprep.subr.bf16.mxu0 0
    %3094 = vmatpush2.bf16.msra.mxu0 %v747
    %3095 = vmatprep.mubr.bf16.mxu0 %v3010
    %3096 = vmatmul.mubr.bf16.gmra.mxu0 %v3009
    %v3097 = vpop.f32.mrf.mxu0
    %v3098 = vadd.f32 %v3058, %v3097
    %v3099 = vpop.f32.mrf.mxu0
    %v3100 = vpop.f32.mrf.mxu0
    %v3101 = vpop.f32.mrf.mxu0
    %3102 = vdwg.mxu0
    %3103 = vmatprep.subr.bf16.mxu0 0
    %3104 = vmatpush1.bf16.msra.mxu0 %v762
    %3105 = vmatprep.subr.bf16.mxu0 0
    %3106 = vmatpush1.bf16.msra.mxu0 %v761
    %3107 = vmatprep.subr.bf16.mxu0 0
    %3108 = vmatpush1.bf16.msra.mxu0 %v760
    %3109 = vmatprep.subr.bf16.mxu0 0
    %3110 = vmatpush1.bf16.msra.mxu0 %v759
    %3111 = vmatprep.subr.bf16.mxu0 0
    %3112 = vmatpush1.bf16.msra.mxu0 %v758
    %3113 = vmatprep.subr.bf16.mxu0 0
    %3114 = vmatpush1.bf16.msra.mxu0 %v757
    %3115 = vmatprep.subr.bf16.mxu0 0
    %3116 = vmatpush1.bf16.msra.mxu0 %v756
    %3117 = vmatprep.subr.bf16.mxu0 0
    %3118 = vmatpush1.bf16.msra.mxu0 %v755
    %3119 = vmatprep.subr.bf16.mxu0 0
    %3120 = vmatpush2.bf16.msra.mxu0 %v770
    %3121 = vmatprep.subr.bf16.mxu0 0
    %3122 = vmatpush2.bf16.msra.mxu0 %v769
    %3123 = vmatprep.subr.bf16.mxu0 0
    %3124 = vmatpush2.bf16.msra.mxu0 %v768
    %3125 = vmatprep.subr.bf16.mxu0 0
    %3126 = vmatpush2.bf16.msra.mxu0 %v767
    %3127 = vmatprep.subr.bf16.mxu0 0
    %3128 = vmatpush2.bf16.msra.mxu0 %v766
    %3129 = vmatprep.subr.bf16.mxu0 0
    %3130 = vmatpush2.bf16.msra.mxu0 %v765
    %3131 = vmatprep.subr.bf16.mxu0 0
    %3132 = vmatpush2.bf16.msra.mxu0 %v764
    %3133 = vmatprep.subr.bf16.mxu0 0
    %3134 = vmatpush2.bf16.msra.mxu0 %v763
    %3135 = vmatprep.mubr.bf16.mxu0 %v3012
    %3136 = vmatmul.mubr.bf16.gmra.mxu0 %v3011
    %v3137 = vpop.f32.mrf.mxu0
    %v3138 = vadd.f32 %v3098, %v3137
    %v3139 = vpop.f32.mrf.mxu0
    %v3140 = vpop.f32.mrf.mxu0
    %v3141 = vpop.f32.mrf.mxu0
    %3142 = vdwg.mxu0
    %3143 = vmatprep.subr.bf16.mxu0 0
    %3144 = vmatpush1.bf16.msra.mxu0 0
    %3145 = vmatprep.subr.bf16.mxu0 0
    %3146 = vmatpush1.bf16.msra.mxu0 0
    %3147 = vmatprep.subr.bf16.mxu0 0
    %3148 = vmatpush1.bf16.msra.mxu0 0
    %3149 = vmatprep.subr.bf16.mxu0 0
    %3150 = vmatpush1.bf16.msra.mxu0 0
    %3151 = vmatprep.subr.bf16.mxu0 0
    %3152 = vmatpush1.bf16.msra.mxu0 0
    %3153 = vmatprep.subr.bf16.mxu0 0
    %3154 = vmatpush1.bf16.msra.mxu0 0
    %3155 = vmatprep.subr.bf16.mxu0 0
    %3156 = vmatpush1.bf16.msra.mxu0 0
    %3157 = vmatprep.subr.bf16.mxu0 0
    %3158 = vmatpush1.bf16.msra.mxu0 %v771
    %3159 = vmatprep.subr.bf16.mxu0 0
    %3160 = vmatpush2.bf16.msra.mxu0 0
    %3161 = vmatprep.subr.bf16.mxu0 0
    %3162 = vmatpush2.bf16.msra.mxu0 0
    %3163 = vmatprep.subr.bf16.mxu0 0
    %3164 = vmatpush2.bf16.msra.mxu0 0
    %3165 = vmatprep.subr.bf16.mxu0 0
    %3166 = vmatpush2.bf16.msra.mxu0 0
    %3167 = vmatprep.subr.bf16.mxu0 0
    %3168 = vmatpush2.bf16.msra.mxu0 0
    %3169 = vmatprep.subr.bf16.mxu0 0
    %3170 = vmatpush2.bf16.msra.mxu0 0
    %3171 = vmatprep.subr.bf16.mxu0 0
    %3172 = vmatpush2.bf16.msra.mxu0 0
    %3173 = vmatprep.subr.bf16.mxu0 0
    %3174 = vmatpush2.bf16.msra.mxu0 0
    %3175 = vmatprep.mubr.bf16.mxu0 0
    %3176 = vmatmul.mubr.bf16.gmra.mxu0 %v3021
    %v3177 = vpop.f32.mrf.mxu0
    %v3178 = vadd.f32 %v3138, %v3177
    %v3179 = vpop.f32.mrf.mxu0
    %v3180 = vpop.f32.mrf.mxu0
    %v3181 = vpop.f32.mrf.mxu0
    %3182 = vdwg.mxu0
    %v3183 = vmax.f32 %v3178, 0.0
    %v3184 = vadd.f32 %v2870, %v3183
    %v3185 = vmul.f32 %v3184, 0.125
    %v3186 = vpack.c.bf16 %v3185, %v3185
    %v3187 = vld [vmem:[%s5] sm:$0xf]
    %v3188 = vld [vmem:[%s5 + $0x4] sm:$0xf]
    %v3189 = vld [vmem:[%s5 + $0x8] sm:$0xf]
    %v3190 = vld [vmem:[%s5 + $0xc] sm:$0xf]
    %v3191 = vld [vmem:[%s10] sm:$0x1]
    %v3193 = vlaneseq
    %v3194 = vshrl.u32 %v3193, 7
    %v3195 = vsub.s32 0, %v3194
    %v3196 = vrot.slane %v3191, %v3195
    %v3202 = vunpack.c.l.b16 %v3187
    %v3203 = vunpack.c.l.b16 %v3188
    %v3204 = vunpack.c.l.b16 %v3189
    %v3205 = vunpack.c.l.b16 %v3190
    %v3206 = vpack.c.b16 %v3203, %v3202
    %v3207 = vpack.c.b16 %v3205, %v3204
    %vm3210 = vcmask 261120
    %v3212 = vsel %vm3210, %v3186, 0
    %3214 = vmatprep.subr.bf16.mxu0 0
    %3215 = vmatpush1.bf16.msra.mxu0 0
    %3216 = vmatprep.subr.bf16.mxu0 0
    %3217 = vmatpush1.bf16.msra.mxu0 0
    %3218 = vmatprep.subr.bf16.mxu0 0
    %3219 = vmatpush1.bf16.msra.mxu0 0
    %3220 = vmatprep.subr.bf16.mxu0 0
    %3221 = vmatpush1.bf16.msra.mxu0 0
    %3222 = vmatprep.subr.bf16.mxu0 0
    %3223 = vmatpush1.bf16.msra.mxu0 0
    %3224 = vmatprep.subr.bf16.mxu0 0
    %3225 = vmatpush1.bf16.msra.mxu0 0
    %3226 = vmatprep.subr.bf16.mxu0 0
    %3227 = vmatpush1.bf16.msra.mxu0 %v3207
    %3228 = vmatprep.subr.bf16.mxu0 0
    %3229 = vmatpush1.bf16.msra.mxu0 %v3206
    %3230 = vmatprep.subr.bf16.mxu0 0
    %3231 = vmatpush2.bf16.msra.mxu0 0
    %3232 = vmatprep.subr.bf16.mxu0 0
    %3233 = vmatpush2.bf16.msra.mxu0 0
    %3234 = vmatprep.subr.bf16.mxu0 0
    %3235 = vmatpush2.bf16.msra.mxu0 0
    %3236 = vmatprep.subr.bf16.mxu0 0
    %3237 = vmatpush2.bf16.msra.mxu0 0
    %3238 = vmatprep.subr.bf16.mxu0 0
    %3239 = vmatpush2.bf16.msra.mxu0 0
    %3240 = vmatprep.subr.bf16.mxu0 0
    %3241 = vmatpush2.bf16.msra.mxu0 0
    %3242 = vmatprep.subr.bf16.mxu0 0
    %3243 = vmatpush2.bf16.msra.mxu0 0
    %3244 = vmatprep.subr.bf16.mxu0 0
    %3245 = vmatpush2.bf16.msra.mxu0 0
    %3246 = vmatprep.mubr.bf16.mxu0 0
    %3247 = vmatmul.mubr.bf16.gmra.mxu0 %v3212
    %v3248 = vpop.f32.mrf.mxu0
    %v3249 = vadd.f32 %v3196, %v3248
    %v3250 = vpop.f32.mrf.mxu0
    %v3251 = vpop.f32.mrf.mxu0
    %v3252 = vpop.f32.mrf.mxu0
    %3253 = vdwg.mxu0
    %v3254 = vld [vmem:[%s1] sm:$0xff]
    %v3255 = vld [vmem:[%s1 + $0x8] sm:$0x3f]
    %v3258 = vcombine.high %v3254, %v3254
    %v3260 = vunpack.c.l.s4 1983009808
    %v3261 = vunpack.c.0.s8 %v3260
    %v3262 = vlaneseq
    %v3263 = vshrl.u32 %v3262, 7
    %v3264 = vsub.s32 %v3261, %v3263
    %v3265 = vrot.slane %v3254, %v3264
    %v3267 = vunpack.c.l.s4 1983009808
    %v3268 = vunpack.c.0.s8 %v3267
    %v3269 = vlaneseq
    %v3270 = vshrl.u32 %v3269, 7
    %v3271 = vsub.s32 %v3268, %v3270
    %v3272 = vrot.slane %v3258, %v3271
    %v3273 = vcombine.high %v3265, %v3265
    %v3274 = vcombine.high %v3272, %v3272
    %v3275 = vcombine.high %v3255, %v3255
    %v3277 = vunpack.c.l.s4 1983009808
    %v3278 = vunpack.c.0.s8 %v3277
    %v3279 = vlaneseq
    %v3280 = vshrl.u32 %v3279, 7
    %v3281 = vsub.s32 %v3278, %v3280
    %v3282 = vrot.slane %v3255, %v3281
    %v3284 = vunpack.c.l.s4 1983009808
    %v3285 = vunpack.c.0.s8 %v3284
    %v3286 = vlaneseq
    %v3287 = vshrl.u32 %v3286, 7
    %v3288 = vsub.s32 %v3285, %v3287
    %v3289 = vrot.slane %v3275, %v3288
    %v3290 = vcombine.high %v3282, %v3282
    %v3298 = vpack.c.bf16 %v3265, %v3265
    %v3299 = vpack.c.bf16 %v3273, %v3273
    %v3300 = vpack.c.bf16 %v3272, %v3272
    %v3301 = vpack.c.bf16 %v3274, %v3274
    %v3302 = vpack.c.bf16 %v3282, %v3282
    %v3303 = vpack.c.bf16 %v3290, %v3290
    %v3304 = vpack.c.bf16 %v3289, %v3289
    %v3305 = vpack.c.bf16 %v3249, %v3249
    %v3306 = vld [vmem:[%s6] sm:$0xf]
    %v3307 = vld [vmem:[%s6 + $0x4] sm:$0xf]
    %v3308 = vld [vmem:[%s6 + $0x8] sm:$0xf]
    %v3309 = vld [vmem:[%s6 + $0xc] sm:$0xf]
    %v3314 = vunpack.c.l.b16 %v3306
    %v3315 = vunpack.c.l.b16 %v3307
    %v3316 = vunpack.c.l.b16 %v3308
    %v3317 = vunpack.c.l.b16 %v3309
    %v3318 = vpack.c.b16 %v3315, %v3314
    %v3319 = vpack.c.b16 %v3317, %v3316
    %v3323 = vsel %vm3210, %v3305, 0
    %3325 = vmatprep.subr.bf16.mxu0 0
    %3326 = vmatpush1.bf16.msra.mxu0 0
    %3327 = vmatprep.subr.bf16.mxu0 0
    %3328 = vmatpush1.bf16.msra.mxu0 0
    %3329 = vmatprep.subr.bf16.mxu0 0
    %3330 = vmatpush1.bf16.msra.mxu0 0
    %3331 = vmatprep.subr.bf16.mxu0 0
    %3332 = vmatpush1.bf16.msra.mxu0 0
    %3333 = vmatprep.subr.bf16.mxu0 0
    %3334 = vmatpush1.bf16.msra.mxu0 0
    %3335 = vmatprep.subr.bf16.mxu0 0
    %3336 = vmatpush1.bf16.msra.mxu0 0
    %3337 = vmatprep.subr.bf16.mxu0 0
    %3338 = vmatpush1.bf16.msra.mxu0 %v3319
    %3339 = vmatprep.subr.bf16.mxu0 0
    %3340 = vmatpush1.bf16.msra.mxu0 %v3318
    %3341 = vmatprep.subr.bf16.mxu0 0
    %3342 = vmatpush2.bf16.msra.mxu0 0
    %3343 = vmatprep.subr.bf16.mxu0 0
    %3344 = vmatpush2.bf16.msra.mxu0 0
    %3345 = vmatprep.subr.bf16.mxu0 0
    %3346 = vmatpush2.bf16.msra.mxu0 0
    %3347 = vmatprep.subr.bf16.mxu0 0
    %3348 = vmatpush2.bf16.msra.mxu0 0
    %3349 = vmatprep.subr.bf16.mxu0 0
    %3350 = vmatpush2.bf16.msra.mxu0 0
    %3351 = vmatprep.subr.bf16.mxu0 0
    %3352 = vmatpush2.bf16.msra.mxu0 0
    %3353 = vmatprep.subr.bf16.mxu0 0
    %3354 = vmatpush2.bf16.msra.mxu0 0
    %3355 = vmatprep.subr.bf16.mxu0 0
    %3356 = vmatpush2.bf16.msra.mxu0 0
    %3357 = vmatprep.mubr.bf16.mxu0 0
    %3358 = vmatmul.mubr.bf16.gmra.mxu0 %v3323
    %v3359 = vpop.f32.mrf.mxu0
    %v3360 = vadd.f32 0.0, %v3359
    %v3361 = vpop.f32.mrf.mxu0
    %v3362 = vpop.f32.mrf.mxu0
    %v3363 = vpop.f32.mrf.mxu0
    %3364 = vdwg.mxu0
    %v3463 = vunpack.c.l.b16 %v273
    %v3464 = vunpack.c.l.b16 %v274
    %v3465 = vunpack.c.l.b16 %v275
    %v3466 = vunpack.c.l.b16 %v276
    %v3467 = vunpack.c.l.b16 %v277
    %v3468 = vunpack.c.l.b16 %v278
    %v3469 = vunpack.c.l.b16 %v279
    %v3470 = vunpack.c.l.b16 %v280
    %v3471 = vunpack.c.l.b16 %v281
    %v3472 = vunpack.c.l.b16 %v282
    %v3473 = vunpack.c.l.b16 %v283
    %v3474 = vunpack.c.l.b16 %v284
    %v3475 = vunpack.c.l.b16 %v285
    %v3476 = vunpack.c.l.b16 %v286
    %v3477 = vunpack.c.l.b16 %v287
    %v3478 = vunpack.c.l.b16 %v288
    %v3479 = vunpack.c.l.b16 %v289
    %v3480 = vunpack.c.l.b16 %v290
    %v3481 = vunpack.c.l.b16 %v291
    %v3482 = vunpack.c.l.b16 %v292
    %v3483 = vunpack.c.l.b16 %v293
    %v3484 = vunpack.c.l.b16 %v294
    %v3485 = vunpack.c.l.b16 %v295
    %v3486 = vunpack.c.l.b16 %v296
    %v3487 = vunpack.c.l.b16 %v297
    %v3488 = vunpack.c.l.b16 %v298
    %v3489 = vunpack.c.l.b16 %v299
    %v3490 = vunpack.c.l.b16 %v300
    %v3491 = vunpack.c.l.b16 %v301
    %v3492 = vunpack.c.l.b16 %v302
    %v3493 = vunpack.c.l.b16 %v303
    %v3494 = vunpack.c.l.b16 %v304
    %v3495 = vunpack.c.l.b16 %v305
    %v3496 = vunpack.c.l.b16 %v306
    %v3497 = vunpack.c.l.b16 %v307
    %v3498 = vunpack.c.l.b16 %v308
    %v3499 = vunpack.c.l.b16 %v309
    %v3500 = vunpack.c.l.b16 %v310
    %v3501 = vunpack.c.l.b16 %v311
    %v3502 = vunpack.c.l.b16 %v312
    %v3503 = vunpack.c.l.b16 %v313
    %v3504 = vunpack.c.l.b16 %v314
    %v3505 = vunpack.c.l.b16 %v315
    %v3506 = vunpack.c.l.b16 %v316
    %v3507 = vunpack.c.l.b16 %v317
    %v3508 = vunpack.c.l.b16 %v318
    %v3509 = vunpack.c.l.b16 %v319
    %v3510 = vunpack.c.l.b16 %v320
    %v3511 = vunpack.c.l.b16 %v321
    %v3512 = vunpack.c.l.b16 %v322
    %v3513 = vunpack.c.l.b16 %v323
    %v3514 = vunpack.c.l.b16 %v324
    %v3515 = vunpack.c.l.b16 %v325
    %v3516 = vunpack.c.l.b16 %v326
    %v3517 = vunpack.c.l.b16 %v327
    %v3518 = vunpack.c.l.b16 %v328
    %v3519 = vunpack.c.l.b16 %v329
    %v3520 = vunpack.c.l.b16 %v330
    %v3521 = vunpack.c.l.b16 %v331
    %v3522 = vunpack.c.l.b16 %v332
    %v3523 = vunpack.c.l.b16 %v333
    %v3524 = vunpack.c.l.b16 %v334
    %v3525 = vunpack.c.l.b16 %v335
    %v3526 = vunpack.c.l.b16 %v336
    %v3527 = vunpack.c.l.b16 %v337
    %v3528 = vunpack.c.l.b16 %v338
    %v3529 = vunpack.c.l.b16 %v339
    %v3530 = vunpack.c.l.b16 %v340
    %v3531 = vunpack.c.l.b16 %v341
    %v3532 = vunpack.c.l.b16 %v342
    %v3533 = vunpack.c.l.b16 %v343
    %v3534 = vunpack.c.l.b16 %v344
    %v3535 = vunpack.c.l.b16 %v345
    %v3536 = vunpack.c.l.b16 %v346
    %v3537 = vunpack.c.l.b16 %v347
    %v3538 = vunpack.c.l.b16 %v348
    %v3539 = vunpack.c.l.b16 %v349
    %v3540 = vunpack.c.l.b16 %v350
    %v3541 = vunpack.c.l.b16 %v351
    %v3542 = vunpack.c.l.b16 %v352
    %v3543 = vunpack.c.l.b16 %v353
    %v3544 = vunpack.c.l.b16 %v354
    %v3545 = vunpack.c.l.b16 %v355
    %v3546 = vunpack.c.l.b16 %v356
    %v3547 = vunpack.c.l.b16 %v357
    %v3548 = vunpack.c.l.b16 %v358
    %v3549 = vunpack.c.l.b16 %v359
    %v3550 = vunpack.c.l.b16 %v360
    %v3551 = vunpack.c.l.b16 %v361
    %v3552 = vunpack.c.l.b16 %v362
    %v3553 = vunpack.c.l.b16 %v363
    %v3554 = vunpack.c.l.b16 %v364
    %v3555 = vunpack.c.l.b16 %v365
    %v3556 = vunpack.c.l.b16 %v366
    %v3557 = vunpack.c.l.b16 %v367
    %v3558 = vunpack.c.l.b16 %v368
    %v3559 = vunpack.c.l.b16 %v369
    %v3560 = vunpack.c.l.b16 %v370
    %v3561 = vpack.c.b16 %v3464, %v3463
    %v3562 = vpack.c.b16 %v3466, %v3465
    %v3563 = vpack.c.b16 %v3468, %v3467
    %v3564 = vpack.c.b16 %v3470, %v3469
    %v3565 = vpack.c.b16 %v3472, %v3471
    %v3566 = vpack.c.b16 %v3474, %v3473
    %v3567 = vpack.c.b16 %v3476, %v3475
    %v3568 = vpack.c.b16 %v3478, %v3477
    %v3569 = vpack.c.b16 %v3480, %v3479
    %v3570 = vpack.c.b16 %v3482, %v3481
    %v3571 = vpack.c.b16 %v3484, %v3483
    %v3572 = vpack.c.b16 %v3486, %v3485
    %v3573 = vpack.c.b16 %v3488, %v3487
    %v3574 = vpack.c.b16 %v3490, %v3489
    %v3575 = vpack.c.b16 %v3492, %v3491
    %v3576 = vpack.c.b16 %v3494, %v3493
    %v3577 = vpack.c.b16 %v3496, %v3495
    %v3578 = vpack.c.b16 %v3498, %v3497
    %v3579 = vpack.c.b16 %v3500, %v3499
    %v3580 = vpack.c.b16 %v3502, %v3501
    %v3581 = vpack.c.b16 %v3504, %v3503
    %v3582 = vpack.c.b16 %v3506, %v3505
    %v3583 = vpack.c.b16 %v3508, %v3507
    %v3584 = vpack.c.b16 %v3510, %v3509
    %v3585 = vpack.c.b16 %v3512, %v3511
    %v3586 = vpack.c.b16 %v3514, %v3513
    %v3587 = vpack.c.b16 %v3516, %v3515
    %v3588 = vpack.c.b16 %v3518, %v3517
    %v3589 = vpack.c.b16 %v3520, %v3519
    %v3590 = vpack.c.b16 %v3522, %v3521
    %v3591 = vpack.c.b16 %v3524, %v3523
    %v3592 = vpack.c.b16 %v3526, %v3525
    %v3593 = vpack.c.b16 %v3528, %v3527
    %v3594 = vpack.c.b16 %v3530, %v3529
    %v3595 = vpack.c.b16 %v3532, %v3531
    %v3596 = vpack.c.b16 %v3534, %v3533
    %v3597 = vpack.c.b16 %v3536, %v3535
    %v3598 = vpack.c.b16 %v3538, %v3537
    %v3599 = vpack.c.b16 %v3540, %v3539
    %v3600 = vpack.c.b16 %v3542, %v3541
    %v3601 = vpack.c.b16 %v3544, %v3543
    %v3602 = vpack.c.b16 %v3546, %v3545
    %v3603 = vpack.c.b16 %v3548, %v3547
    %v3604 = vpack.c.b16 %v3550, %v3549
    %v3605 = vpack.c.b16 %v3552, %v3551
    %v3606 = vpack.c.b16 %v3554, %v3553
    %v3607 = vpack.c.b16 %v3556, %v3555
    %v3608 = vpack.c.b16 %v3558, %v3557
    %v3609 = vpack.c.b16 %v3560, %v3559
    %v3660 = vsel %vm821, %v3304, 0
    %3662 = vmatprep.subr.bf16.mxu0 0
    %3663 = vmatpush1.bf16.msra.mxu0 %v3568
    %3664 = vmatprep.subr.bf16.mxu0 0
    %3665 = vmatpush1.bf16.msra.mxu0 %v3567
    %3666 = vmatprep.subr.bf16.mxu0 0
    %3667 = vmatpush1.bf16.msra.mxu0 %v3566
    %3668 = vmatprep.subr.bf16.mxu0 0
    %3669 = vmatpush1.bf16.msra.mxu0 %v3565
    %3670 = vmatprep.subr.bf16.mxu0 0
    %3671 = vmatpush1.bf16.msra.mxu0 %v3564
    %3672 = vmatprep.subr.bf16.mxu0 0
    %3673 = vmatpush1.bf16.msra.mxu0 %v3563
    %3674 = vmatprep.subr.bf16.mxu0 0
    %3675 = vmatpush1.bf16.msra.mxu0 %v3562
    %3676 = vmatprep.subr.bf16.mxu0 0
    %3677 = vmatpush1.bf16.msra.mxu0 %v3561
    %3678 = vmatprep.subr.bf16.mxu0 0
    %3679 = vmatpush2.bf16.msra.mxu0 %v3576
    %3680 = vmatprep.subr.bf16.mxu0 0
    %3681 = vmatpush2.bf16.msra.mxu0 %v3575
    %3682 = vmatprep.subr.bf16.mxu0 0
    %3683 = vmatpush2.bf16.msra.mxu0 %v3574
    %3684 = vmatprep.subr.bf16.mxu0 0
    %3685 = vmatpush2.bf16.msra.mxu0 %v3573
    %3686 = vmatprep.subr.bf16.mxu0 0
    %3687 = vmatpush2.bf16.msra.mxu0 %v3572
    %3688 = vmatprep.subr.bf16.mxu0 0
    %3689 = vmatpush2.bf16.msra.mxu0 %v3571
    %3690 = vmatprep.subr.bf16.mxu0 0
    %3691 = vmatpush2.bf16.msra.mxu0 %v3570
    %3692 = vmatprep.subr.bf16.mxu0 0
    %3693 = vmatpush2.bf16.msra.mxu0 %v3569
    %3694 = vmatprep.mubr.bf16.mxu0 %v3299
    %3695 = vmatmul.mubr.bf16.gmra.mxu0 %v3298
    %v3696 = vpop.f32.mrf.mxu0
    %v3697 = vadd.f32 %v3360, %v3696
    %v3698 = vpop.f32.mrf.mxu0
    %v3699 = vpop.f32.mrf.mxu0
    %v3700 = vpop.f32.mrf.mxu0
    %3701 = vdwg.mxu0
    %3702 = vmatprep.subr.bf16.mxu0 0
    %3703 = vmatpush1.bf16.msra.mxu0 %v3584
    %3704 = vmatprep.subr.bf16.mxu0 0
    %3705 = vmatpush1.bf16.msra.mxu0 %v3583
    %3706 = vmatprep.subr.bf16.mxu0 0
    %3707 = vmatpush1.bf16.msra.mxu0 %v3582
    %3708 = vmatprep.subr.bf16.mxu0 0
    %3709 = vmatpush1.bf16.msra.mxu0 %v3581
    %3710 = vmatprep.subr.bf16.mxu0 0
    %3711 = vmatpush1.bf16.msra.mxu0 %v3580
    %3712 = vmatprep.subr.bf16.mxu0 0
    %3713 = vmatpush1.bf16.msra.mxu0 %v3579
    %3714 = vmatprep.subr.bf16.mxu0 0
    %3715 = vmatpush1.bf16.msra.mxu0 %v3578
    %3716 = vmatprep.subr.bf16.mxu0 0
    %3717 = vmatpush1.bf16.msra.mxu0 %v3577
    %3718 = vmatprep.subr.bf16.mxu0 0
    %3719 = vmatpush2.bf16.msra.mxu0 %v3592
    %3720 = vmatprep.subr.bf16.mxu0 0
    %3721 = vmatpush2.bf16.msra.mxu0 %v3591
    %3722 = vmatprep.subr.bf16.mxu0 0
    %3723 = vmatpush2.bf16.msra.mxu0 %v3590
    %3724 = vmatprep.subr.bf16.mxu0 0
    %3725 = vmatpush2.bf16.msra.mxu0 %v3589
    %3726 = vmatprep.subr.bf16.mxu0 0
    %3727 = vmatpush2.bf16.msra.mxu0 %v3588
    %3728 = vmatprep.subr.bf16.mxu0 0
    %3729 = vmatpush2.bf16.msra.mxu0 %v3587
    %3730 = vmatprep.subr.bf16.mxu0 0
    %3731 = vmatpush2.bf16.msra.mxu0 %v3586
    %3732 = vmatprep.subr.bf16.mxu0 0
    %3733 = vmatpush2.bf16.msra.mxu0 %v3585
    %3734 = vmatprep.mubr.bf16.mxu0 %v3301
    %3735 = vmatmul.mubr.bf16.gmra.mxu0 %v3300
    %v3736 = vpop.f32.mrf.mxu0
    %v3737 = vadd.f32 %v3697, %v3736
    %v3738 = vpop.f32.mrf.mxu0
    %v3739 = vpop.f32.mrf.mxu0
    %v3740 = vpop.f32.mrf.mxu0
    %3741 = vdwg.mxu0
    %3742 = vmatprep.subr.bf16.mxu0 0
    %3743 = vmatpush1.bf16.msra.mxu0 %v3600
    %3744 = vmatprep.subr.bf16.mxu0 0
    %3745 = vmatpush1.bf16.msra.mxu0 %v3599
    %3746 = vmatprep.subr.bf16.mxu0 0
    %3747 = vmatpush1.bf16.msra.mxu0 %v3598
    %3748 = vmatprep.subr.bf16.mxu0 0
    %3749 = vmatpush1.bf16.msra.mxu0 %v3597
    %3750 = vmatprep.subr.bf16.mxu0 0
    %3751 = vmatpush1.bf16.msra.mxu0 %v3596
    %3752 = vmatprep.subr.bf16.mxu0 0
    %3753 = vmatpush1.bf16.msra.mxu0 %v3595
    %3754 = vmatprep.subr.bf16.mxu0 0
    %3755 = vmatpush1.bf16.msra.mxu0 %v3594
    %3756 = vmatprep.subr.bf16.mxu0 0
    %3757 = vmatpush1.bf16.msra.mxu0 %v3593
    %3758 = vmatprep.subr.bf16.mxu0 0
    %3759 = vmatpush2.bf16.msra.mxu0 %v3608
    %3760 = vmatprep.subr.bf16.mxu0 0
    %3761 = vmatpush2.bf16.msra.mxu0 %v3607
    %3762 = vmatprep.subr.bf16.mxu0 0
    %3763 = vmatpush2.bf16.msra.mxu0 %v3606
    %3764 = vmatprep.subr.bf16.mxu0 0
    %3765 = vmatpush2.bf16.msra.mxu0 %v3605
    %3766 = vmatprep.subr.bf16.mxu0 0
    %3767 = vmatpush2.bf16.msra.mxu0 %v3604
    %3768 = vmatprep.subr.bf16.mxu0 0
    %3769 = vmatpush2.bf16.msra.mxu0 %v3603
    %3770 = vmatprep.subr.bf16.mxu0 0
    %3771 = vmatpush2.bf16.msra.mxu0 %v3602
    %3772 = vmatprep.subr.bf16.mxu0 0
    %3773 = vmatpush2.bf16.msra.mxu0 %v3601
    %3774 = vmatprep.mubr.bf16.mxu0 %v3303
    %3775 = vmatmul.mubr.bf16.gmra.mxu0 %v3302
    %v3776 = vpop.f32.mrf.mxu0
    %v3777 = vadd.f32 %v3737, %v3776
    %v3778 = vpop.f32.mrf.mxu0
    %v3779 = vpop.f32.mrf.mxu0
    %v3780 = vpop.f32.mrf.mxu0
    %3781 = vdwg.mxu0
    %3782 = vmatprep.subr.bf16.mxu0 0
    %3783 = vmatpush1.bf16.msra.mxu0 0
    %3784 = vmatprep.subr.bf16.mxu0 0
    %3785 = vmatpush1.bf16.msra.mxu0 0
    %3786 = vmatprep.subr.bf16.mxu0 0
    %3787 = vmatpush1.bf16.msra.mxu0 0
    %3788 = vmatprep.subr.bf16.mxu0 0
    %3789 = vmatpush1.bf16.msra.mxu0 0
    %3790 = vmatprep.subr.bf16.mxu0 0
    %3791 = vmatpush1.bf16.msra.mxu0 0
    %3792 = vmatprep.subr.bf16.mxu0 0
    %3793 = vmatpush1.bf16.msra.mxu0 0
    %3794 = vmatprep.subr.bf16.mxu0 0
    %3795 = vmatpush1.bf16.msra.mxu0 0
    %3796 = vmatprep.subr.bf16.mxu0 0
    %3797 = vmatpush1.bf16.msra.mxu0 %v3609
    %3798 = vmatprep.subr.bf16.mxu0 0
    %3799 = vmatpush2.bf16.msra.mxu0 0
    %3800 = vmatprep.subr.bf16.mxu0 0
    %3801 = vmatpush2.bf16.msra.mxu0 0
    %3802 = vmatprep.subr.bf16.mxu0 0
    %3803 = vmatpush2.bf16.msra.mxu0 0
    %3804 = vmatprep.subr.bf16.mxu0 0
    %3805 = vmatpush2.bf16.msra.mxu0 0
    %3806 = vmatprep.subr.bf16.mxu0 0
    %3807 = vmatpush2.bf16.msra.mxu0 0
    %3808 = vmatprep.subr.bf16.mxu0 0
    %3809 = vmatpush2.bf16.msra.mxu0 0
    %3810 = vmatprep.subr.bf16.mxu0 0
    %3811 = vmatpush2.bf16.msra.mxu0 0
    %3812 = vmatprep.subr.bf16.mxu0 0
    %3813 = vmatpush2.bf16.msra.mxu0 0
    %3814 = vmatprep.mubr.bf16.mxu0 0
    %3815 = vmatmul.mubr.bf16.gmra.mxu0 %v3660
    %v3816 = vpop.f32.mrf.mxu0
    %v3817 = vadd.f32 %v3777, %v3816
    %v3818 = vpop.f32.mrf.mxu0
    %v3819 = vpop.f32.mrf.mxu0
    %v3820 = vpop.f32.mrf.mxu0
    %3821 = vdwg.mxu0
    %v3822 = vld [vmem:[%s11] sm:$0x1]
    %v3824 = vlaneseq
    %v3825 = vshrl.u32 %v3824, 7
    %v3826 = vsub.s32 0, %v3825
    %v3827 = vrot.slane %v3822, %v3826
    %v3829 = vadd.f32 %v3817, %v3827
    %v3830 = vmax.f32 %v3829, 0.0
    %v3831 = vpack.c.bf16 %v3830, %v3830
    %v3832 = vld [vmem:[%s7] sm:$0xf]
    %v3833 = vld [vmem:[%s7 + $0x4] sm:$0xf]
    %v3834 = vld [vmem:[%s7 + $0x8] sm:$0xf]
    %v3835 = vld [vmem:[%s7 + $0xc] sm:$0xf]
    %v3836 = vld [vmem:[%s12] sm:$0x1]
    %v3838 = vlaneseq
    %v3839 = vshrl.u32 %v3838, 7
    %v3840 = vsub.s32 0, %v3839
    %v3841 = vrot.slane %v3836, %v3840
    %v3847 = vunpack.c.l.b16 %v3832
    %v3848 = vunpack.c.l.b16 %v3833
    %v3849 = vunpack.c.l.b16 %v3834
    %v3850 = vunpack.c.l.b16 %v3835
    %v3851 = vpack.c.b16 %v3848, %v3847
    %v3852 = vpack.c.b16 %v3850, %v3849
    %v3856 = vsel %vm3210, %v3831, 0
    %3858 = vmatprep.subr.bf16.mxu0 0
    %3859 = vmatpush1.bf16.msra.mxu0 0
    %3860 = vmatprep.subr.bf16.mxu0 0
    %3861 = vmatpush1.bf16.msra.mxu0 0
    %3862 = vmatprep.subr.bf16.mxu0 0
    %3863 = vmatpush1.bf16.msra.mxu0 0
    %3864 = vmatprep.subr.bf16.mxu0 0
    %3865 = vmatpush1.bf16.msra.mxu0 0
    %3866 = vmatprep.subr.bf16.mxu0 0
    %3867 = vmatpush1.bf16.msra.mxu0 0
    %3868 = vmatprep.subr.bf16.mxu0 0
    %3869 = vmatpush1.bf16.msra.mxu0 0
    %3870 = vmatprep.subr.bf16.mxu0 0
    %3871 = vmatpush1.bf16.msra.mxu0 %v3852
    %3872 = vmatprep.subr.bf16.mxu0 0
    %3873 = vmatpush1.bf16.msra.mxu0 %v3851
    %3874 = vmatprep.subr.bf16.mxu0 0
    %3875 = vmatpush2.bf16.msra.mxu0 0
    %3876 = vmatprep.subr.bf16.mxu0 0
    %3877 = vmatpush2.bf16.msra.mxu0 0
    %3878 = vmatprep.subr.bf16.mxu0 0
    %3879 = vmatpush2.bf16.msra.mxu0 0
    %3880 = vmatprep.subr.bf16.mxu0 0
    %3881 = vmatpush2.bf16.msra.mxu0 0
    %3882 = vmatprep.subr.bf16.mxu0 0
    %3883 = vmatpush2.bf16.msra.mxu0 0
    %3884 = vmatprep.subr.bf16.mxu0 0
    %3885 = vmatpush2.bf16.msra.mxu0 0
    %3886 = vmatprep.subr.bf16.mxu0 0
    %3887 = vmatpush2.bf16.msra.mxu0 0
    %3888 = vmatprep.subr.bf16.mxu0 0
    %3889 = vmatpush2.bf16.msra.mxu0 0
    %3890 = vmatprep.mubr.bf16.mxu0 0
    %3891 = vmatmul.mubr.bf16.gmra.mxu0 %v3856
    %v3892 = vpop.f32.mrf.mxu0
    %v3893 = vadd.f32 %v3841, %v3892
    %v3894 = vpop.f32.mrf.mxu0
    %v3895 = vpop.f32.mrf.mxu0
    %v3896 = vpop.f32.mrf.mxu0
    %3897 = vdwg.mxu0
    %v3898 = vmax.f32 %v3893, 0.0
    %v3899 = vpack.c.bf16 %v3898, %v3898
    %v3900 = vld [vmem:[%s8] sm:$0xf]
    %v3901 = vld [vmem:[%s8 + $0x4] sm:$0xf]
    %v3902 = vld [vmem:[%s8 + $0x8] sm:$0xf]
    %v3903 = vld [vmem:[%s8 + $0xc] sm:$0xf]
    %v3904 = vld [vmem:[%s13] sm:$0x1]
    %v3906 = vlaneseq
    %v3907 = vshrl.u32 %v3906, 7
    %v3908 = vsub.s32 0, %v3907
    %v3909 = vrot.slane %v3904, %v3908
    %v3915 = vunpack.c.l.b16 %v3900
    %v3916 = vunpack.c.l.b16 %v3901
    %v3917 = vunpack.c.l.b16 %v3902
    %v3918 = vunpack.c.l.b16 %v3903
    %v3919 = vpack.c.b16 %v3916, %v3915
    %v3920 = vpack.c.b16 %v3918, %v3917
    %v3924 = vsel %vm3210, %v3899, 0
    %3926 = vmatprep.subr.bf16.mxu0 0
    %3927 = vmatpush1.bf16.msra.mxu0 0
    %3928 = vmatprep.subr.bf16.mxu0 0
    %3929 = vmatpush1.bf16.msra.mxu0 0
    %3930 = vmatprep.subr.bf16.mxu0 0
    %3931 = vmatpush1.bf16.msra.mxu0 0
    %3932 = vmatprep.subr.bf16.mxu0 0
    %3933 = vmatpush1.bf16.msra.mxu0 0
    %3934 = vmatprep.subr.bf16.mxu0 0
    %3935 = vmatpush1.bf16.msra.mxu0 0
    %3936 = vmatprep.subr.bf16.mxu0 0
    %3937 = vmatpush1.bf16.msra.mxu0 0
    %3938 = vmatprep.subr.bf16.mxu0 0
    %3939 = vmatpush1.bf16.msra.mxu0 %v3920
    %3940 = vmatprep.subr.bf16.mxu0 0
    %3941 = vmatpush1.bf16.msra.mxu0 %v3919
    %3942 = vmatprep.subr.bf16.mxu0 0
    %3943 = vmatpush2.bf16.msra.mxu0 0
    %3944 = vmatprep.subr.bf16.mxu0 0
    %3945 = vmatpush2.bf16.msra.mxu0 0
    %3946 = vmatprep.subr.bf16.mxu0 0
    %3947 = vmatpush2.bf16.msra.mxu0 0
    %3948 = vmatprep.subr.bf16.mxu0 0
    %3949 = vmatpush2.bf16.msra.mxu0 0
    %3950 = vmatprep.subr.bf16.mxu0 0
    %3951 = vmatpush2.bf16.msra.mxu0 0
    %3952 = vmatprep.subr.bf16.mxu0 0
    %3953 = vmatpush2.bf16.msra.mxu0 0
    %3954 = vmatprep.subr.bf16.mxu0 0
    %3955 = vmatpush2.bf16.msra.mxu0 0
    %3956 = vmatprep.subr.bf16.mxu0 0
    %3957 = vmatpush2.bf16.msra.mxu0 0
    %3958 = vmatprep.mubr.bf16.mxu0 0
    %3959 = vmatmul.mubr.bf16.gmra.mxu0 %v3924
    %v3960 = vpop.f32.mrf.mxu0
    %v3961 = vadd.f32 %v3909, %v3960
    %v3962 = vpop.f32.mrf.mxu0
    %v3963 = vpop.f32.mrf.mxu0
    %v3964 = vpop.f32.mrf.mxu0
    %3965 = vdwg.mxu0
    %v3966 = vld [vmem:[%s3] sm:$0x3]
    %v3967 = vmul.f32 %v3961, 0.5
    %v3968 = vmul.f32 %v3967, 1.442695
    %v3969 = vpow.pop %v3968
    %3971 = vrot.lane.b32.xlu0 %v3969, 120
    %v3972 = vpop.permute.xlu0 %3971
    %v3974 = vmul.f32 %v3966, %v3972
    %v3975 = vadd.f32 %v3974, %v3961
    %v3976 = vpack.c.bf16 %v3975, %v3975
    %v3977 = vld [vmem:[%s141] sm:$0xf]
    %v3978 = vld [vmem:[%s160] sm:$0x1]
    %v3980 = vlaneseq
    %v3981 = vshrl.u32 %v3980, 7
    %v3982 = vsub.s32 0, %v3981
    %v3983 = vrot.slane %v3978, %v3982
    %vm3985 = vcmask 64512
    %v3987 = vsel %vm3985, %v3976, 0
    %vm3989 = vcmask 1043456
    %v3991 = vsel %vm3989, %v3977, 0
    %3993 = vmatprep.subr.bf16.mxu0 0
    %3994 = vmatpush1.bf16.msra.mxu0 0
    %3995 = vmatprep.subr.bf16.mxu0 0
    %3996 = vmatpush1.bf16.msra.mxu0 0
    %3997 = vmatprep.subr.bf16.mxu0 0
    %3998 = vmatpush1.bf16.msra.mxu0 0
    %3999 = vmatprep.subr.bf16.mxu0 0
    %4000 = vmatpush1.bf16.msra.mxu0 0
    %4001 = vmatprep.subr.bf16.mxu0 0
    %4002 = vmatpush1.bf16.msra.mxu0 0
    %4003 = vmatprep.subr.bf16.mxu0 0
    %4004 = vmatpush1.bf16.msra.mxu0 0
    %4005 = vmatprep.subr.bf16.mxu0 0
    %4006 = vmatpush1.bf16.msra.mxu0 0
    %4007 = vmatprep.subr.bf16.mxu0 0
    %4008 = vmatpush1.bf16.msra.mxu0 %v3991
    %4009 = vmatprep.subr.bf16.mxu0 0
    %4010 = vmatpush2.bf16.msra.mxu0 0
    %4011 = vmatprep.subr.bf16.mxu0 0
    %4012 = vmatpush2.bf16.msra.mxu0 0
    %4013 = vmatprep.subr.bf16.mxu0 0
    %4014 = vmatpush2.bf16.msra.mxu0 0
    %4015 = vmatprep.subr.bf16.mxu0 0
    %4016 = vmatpush2.bf16.msra.mxu0 0
    %4017 = vmatprep.subr.bf16.mxu0 0
    %4018 = vmatpush2.bf16.msra.mxu0 0
    %4019 = vmatprep.subr.bf16.mxu0 0
    %4020 = vmatpush2.bf16.msra.mxu0 0
    %4021 = vmatprep.subr.bf16.mxu0 0
    %4022 = vmatpush2.bf16.msra.mxu0 0
    %4023 = vmatprep.subr.bf16.mxu0 0
    %4024 = vmatpush2.bf16.msra.mxu0 0
    %4025 = vmatprep.mubr.bf16.mxu0 0
    %4026 = vmatmul.mubr.bf16.gmra.mxu0 %v3987
    %v4027 = vpop.f32.mrf.mxu0
    %v4028 = vadd.f32 %v3983, %v4027
    %v4029 = vpop.f32.mrf.mxu0
    %v4030 = vpop.f32.mrf.mxu0
    %v4031 = vpop.f32.mrf.mxu0
    %4032 = vdwg.mxu0
    %v4033 = vmax.f32 %v4028, 0.0
    %v4034 = vpack.c.bf16 %v4033, %v4033
    %v4035 = vld [vmem:[%s148] sm:$0xf]
    %v4036 = vld [vmem:[%s148 + $0x4] sm:$0xf]
    %v4037 = vld [vmem:[%s148 + $0x8] sm:$0xf]
    %v4038 = vld [vmem:[%s148 + $0xc] sm:$0xf]
    %v4039 = vld [vmem:[%s165] sm:$0x1]
    %v4041 = vlaneseq
    %v4042 = vshrl.u32 %v4041, 7
    %v4043 = vsub.s32 0, %v4042
    %v4044 = vrot.slane %v4039, %v4043
    %v4050 = vunpack.c.l.b16 %v4035
    %v4051 = vunpack.c.l.b16 %v4036
    %v4052 = vunpack.c.l.b16 %v4037
    %v4053 = vunpack.c.l.b16 %v4038
    %v4054 = vpack.c.b16 %v4051, %v4050
    %v4055 = vpack.c.b16 %v4053, %v4052
    %v4059 = vsel %vm3210, %v4034, 0
    %4061 = vmatprep.subr.bf16.mxu0 0
    %4062 = vmatpush1.bf16.msra.mxu0 0
    %4063 = vmatprep.subr.bf16.mxu0 0
    %4064 = vmatpush1.bf16.msra.mxu0 0
    %4065 = vmatprep.subr.bf16.mxu0 0
    %4066 = vmatpush1.bf16.msra.mxu0 0
    %4067 = vmatprep.subr.bf16.mxu0 0
    %4068 = vmatpush1.bf16.msra.mxu0 0
    %4069 = vmatprep.subr.bf16.mxu0 0
    %4070 = vmatpush1.bf16.msra.mxu0 0
    %4071 = vmatprep.subr.bf16.mxu0 0
    %4072 = vmatpush1.bf16.msra.mxu0 0
    %4073 = vmatprep.subr.bf16.mxu0 0
    %4074 = vmatpush1.bf16.msra.mxu0 %v4055
    %4075 = vmatprep.subr.bf16.mxu0 0
    %4076 = vmatpush1.bf16.msra.mxu0 %v4054
    %4077 = vmatprep.subr.bf16.mxu0 0
    %4078 = vmatpush2.bf16.msra.mxu0 0
    %4079 = vmatprep.subr.bf16.mxu0 0
    %4080 = vmatpush2.bf16.msra.mxu0 0
    %4081 = vmatprep.subr.bf16.mxu0 0
    %4082 = vmatpush2.bf16.msra.mxu0 0
    %4083 = vmatprep.subr.bf16.mxu0 0
    %4084 = vmatpush2.bf16.msra.mxu0 0
    %4085 = vmatprep.subr.bf16.mxu0 0
    %4086 = vmatpush2.bf16.msra.mxu0 0
    %4087 = vmatprep.subr.bf16.mxu0 0
    %4088 = vmatpush2.bf16.msra.mxu0 0
    %4089 = vmatprep.subr.bf16.mxu0 0
    %4090 = vmatpush2.bf16.msra.mxu0 0
    %4091 = vmatprep.subr.bf16.mxu0 0
    %4092 = vmatpush2.bf16.msra.mxu0 0
    %4093 = vmatprep.mubr.bf16.mxu0 0
    %4094 = vmatmul.mubr.bf16.gmra.mxu0 %v4059
    %v4095 = vpop.f32.mrf.mxu0
    %v4096 = vadd.f32 %v4044, %v4095
    %v4097 = vpop.f32.mrf.mxu0
    %v4098 = vpop.f32.mrf.mxu0
    %v4099 = vpop.f32.mrf.mxu0
    %4100 = vdwg.mxu0
    %v4101 = vmax.f32 %v4096, 0.0
    %v4102 = vpack.c.bf16 %v4101, %v4101
    %v4103 = vld [vmem:[%s155] sm:$0xff]
    %v4104 = vld [vmem:[%s155 + $0x8] sm:$0xff]
    %v4105 = vld [vmem:[%s155 + $0x10] sm:$0xff]
    %v4106 = vld [vmem:[%s155 + $0x18] sm:$0xf]
    %v4107 = vld [vmem:[%s155 + $0x1c] sm:$0xff]
    %v4108 = vld [vmem:[%s155 + $0x24] sm:$0xff]
    %v4109 = vld [vmem:[%s155 + $0x2c] sm:$0xff]
    %v4110 = vld [vmem:[%s155 + $0x34] sm:$0xf]
    %v4111 = vld [vmem:[%s155 + $0x38] sm:$0xff]
    %v4112 = vld [vmem:[%s155 + $0x40] sm:$0xff]
    %v4113 = vld [vmem:[%s155 + $0x48] sm:$0xff]
    %v4114 = vld [vmem:[%s155 + $0x50] sm:$0xf]
    %v4115 = vld [vmem:[%s155 + $0x54] sm:$0xff]
    %v4116 = vld [vmem:[%s155 + $0x5c] sm:$0xff]
    %v4117 = vld [vmem:[%s155 + $0x64] sm:$0xff]
    %v4118 = vld [vmem:[%s155 + $0x6c] sm:$0xf]
    %v4119 = vld [vmem:[%s171] sm:$0x7f]
    %v4121 = vlaneseq
    %v4122 = vshrl.u32 %v4121, 7
    %v4123 = vsub.s32 0, %v4122
    %v4124 = vrot.slane %v4119, %v4123
    %v4125 = vlaneseq
    %v4126 = vshrl.u32 %v4125, 7
    %v4127 = vsub.s32 1, %v4126
    %v4128 = vrot.slane %v4119, %v4127
    %v4129 = vlaneseq
    %v4130 = vshrl.u32 %v4129, 7
    %v4131 = vsub.s32 2, %v4130
    %v4132 = vrot.slane %v4119, %v4131
    %v4133 = vlaneseq
    %v4134 = vshrl.u32 %v4133, 7
    %v4135 = vsub.s32 3, %v4134
    %v4136 = vrot.slane %v4119, %v4135
    %v4137 = vlaneseq
    %v4138 = vshrl.u32 %v4137, 7
    %v4139 = vsub.s32 4, %v4138
    %v4140 = vrot.slane %v4119, %v4139
    %v4141 = vlaneseq
    %v4142 = vshrl.u32 %v4141, 7
    %v4143 = vsub.s32 5, %v4142
    %v4144 = vrot.slane %v4119, %v4143
    %v4145 = vlaneseq
    %v4146 = vshrl.u32 %v4145, 7
    %v4147 = vsub.s32 6, %v4146
    %v4148 = vrot.slane %v4119, %v4147
    %v4172 = vunpack.c.l.b16 %v4103
    %v4173 = vunpack.c.h.b16 %v4103
    %v4174 = vunpack.c.l.b16 %v4104
    %v4175 = vunpack.c.h.b16 %v4104
    %v4176 = vunpack.c.l.b16 %v4105
    %v4177 = vunpack.c.h.b16 %v4105
    %v4178 = vunpack.c.l.b16 %v4106
    %v4179 = vunpack.c.l.b16 %v4107
    %v4180 = vunpack.c.h.b16 %v4107
    %v4181 = vunpack.c.l.b16 %v4108
    %v4182 = vunpack.c.h.b16 %v4108
    %v4183 = vunpack.c.l.b16 %v4109
    %v4184 = vunpack.c.h.b16 %v4109
    %v4185 = vunpack.c.l.b16 %v4110
    %v4186 = vunpack.c.l.b16 %v4111
    %v4187 = vunpack.c.h.b16 %v4111
    %v4188 = vunpack.c.l.b16 %v4112
    %v4189 = vunpack.c.h.b16 %v4112
    %v4190 = vunpack.c.l.b16 %v4113
    %v4191 = vunpack.c.h.b16 %v4113
    %v4192 = vunpack.c.l.b16 %v4114
    %v4193 = vunpack.c.l.b16 %v4115
    %v4194 = vunpack.c.h.b16 %v4115
    %v4195 = vunpack.c.l.b16 %v4116
    %v4196 = vunpack.c.h.b16 %v4116
    %v4197 = vunpack.c.l.b16 %v4117
    %v4198 = vunpack.c.h.b16 %v4117
    %v4199 = vunpack.c.l.b16 %v4118
    %v4200 = vpack.c.b16 %v4179, %v4172
    %v4201 = vpack.c.b16 %v4180, %v4173
    %v4202 = vpack.c.b16 %v4181, %v4174
    %v4203 = vpack.c.b16 %v4182, %v4175
    %v4204 = vpack.c.b16 %v4183, %v4176
    %v4205 = vpack.c.b16 %v4184, %v4177
    %v4206 = vpack.c.b16 %v4185, %v4178
    %v4207 = vpack.c.b16 %v4193, %v4186
    %v4208 = vpack.c.b16 %v4194, %v4187
    %v4209 = vpack.c.b16 %v4195, %v4188
    %v4210 = vpack.c.b16 %v4196, %v4189
    %v4211 = vpack.c.b16 %v4197, %v4190
    %v4212 = vpack.c.b16 %v4198, %v4191
    %v4213 = vpack.c.b16 %v4199, %v4192
    %v4229 = vsel %vm3210, %v4102, 0
    %4231 = vmatprep.subr.bf16.mxu0 0
    %4232 = vmatpush1.bf16.msra.mxu0 0
    %4233 = vmatprep.subr.bf16.mxu0 0
    %4234 = vmatpush1.bf16.msra.mxu0 0
    %4235 = vmatprep.subr.bf16.mxu0 0
    %4236 = vmatpush1.bf16.msra.mxu0 0
    %4237 = vmatprep.subr.bf16.mxu0 0
    %4238 = vmatpush1.bf16.msra.mxu0 0
    %4239 = vmatprep.subr.bf16.mxu0 0
    %4240 = vmatpush1.bf16.msra.mxu0 0
    %4241 = vmatprep.subr.bf16.mxu0 0
    %4242 = vmatpush1.bf16.msra.mxu0 0
    %4243 = vmatprep.subr.bf16.mxu0 %v4208
    %4244 = vmatpush1.bf16.msra.mxu0 %v4207
    %4245 = vmatprep.subr.bf16.mxu0 %v4201
    %4246 = vmatpush1.bf16.msra.mxu0 %v4200
    %4247 = vmatprep.subr.bf16.mxu0 0
    %4248 = vmatpush2.bf16.msra.mxu0 0
    %4249 = vmatprep.subr.bf16.mxu0 0
    %4250 = vmatpush2.bf16.msra.mxu0 0
    %4251 = vmatprep.subr.bf16.mxu0 0
    %4252 = vmatpush2.bf16.msra.mxu0 0
    %4253 = vmatprep.subr.bf16.mxu0 0
    %4254 = vmatpush2.bf16.msra.mxu0 0
    %4255 = vmatprep.subr.bf16.mxu0 0
    %4256 = vmatpush2.bf16.msra.mxu0 0
    %4257 = vmatprep.subr.bf16.mxu0 0
    %4258 = vmatpush2.bf16.msra.mxu0 0
    %4259 = vmatprep.subr.bf16.mxu0 0
    %4260 = vmatpush2.bf16.msra.mxu0 0
    %4261 = vmatprep.subr.bf16.mxu0 0
    %4262 = vmatpush2.bf16.msra.mxu0 0
    %4263 = vmatprep.mubr.bf16.mxu0 0
    %4264 = vmatmul.mubr.bf16.gmra.mxu0 %v4229
    %v4265 = vpop.f32.mrf.mxu0
    %v4266 = vadd.f32 %v4124, %v4265
    %v4267 = vpop.f32.mrf.mxu0
    %v4268 = vadd.f32 %v4128, %v4267
    %v4269 = vpop.f32.mrf.mxu0
    %v4270 = vpop.f32.mrf.mxu0
    %4271 = vdwg.mxu0
    %4272 = vmatprep.subr.bf16.mxu0 0
    %4273 = vmatpush1.bf16.msra.mxu0 0
    %4274 = vmatprep.subr.bf16.mxu0 0
    %4275 = vmatpush1.bf16.msra.mxu0 0
    %4276 = vmatprep.subr.bf16.mxu0 0
    %4277 = vmatpush1.bf16.msra.mxu0 0
    %4278 = vmatprep.subr.bf16.mxu0 0
    %4279 = vmatpush1.bf16.msra.mxu0 0
    %4280 = vmatprep.subr.bf16.mxu0 0
    %4281 = vmatpush1.bf16.msra.mxu0 0
    %4282 = vmatprep.subr.bf16.mxu0 0
    %4283 = vmatpush1.bf16.msra.mxu0 0
    %4284 = vmatprep.subr.bf16.mxu0 %v4210
    %4285 = vmatpush1.bf16.msra.mxu0 %v4209
    %4286 = vmatprep.subr.bf16.mxu0 %v4203
    %4287 = vmatpush1.bf16.msra.mxu0 %v4202
    %4288 = vmatprep.subr.bf16.mxu0 0
    %4289 = vmatpush2.bf16.msra.mxu0 0
    %4290 = vmatprep.subr.bf16.mxu0 0
    %4291 = vmatpush2.bf16.msra.mxu0 0
    %4292 = vmatprep.subr.bf16.mxu0 0
    %4293 = vmatpush2.bf16.msra.mxu0 0
    %4294 = vmatprep.subr.bf16.mxu0 0
    %4295 = vmatpush2.bf16.msra.mxu0 0
    %4296 = vmatprep.subr.bf16.mxu0 0
    %4297 = vmatpush2.bf16.msra.mxu0 0
    %4298 = vmatprep.subr.bf16.mxu0 0
    %4299 = vmatpush2.bf16.msra.mxu0 0
    %4300 = vmatprep.subr.bf16.mxu0 0
    %4301 = vmatpush2.bf16.msra.mxu0 0
    %4302 = vmatprep.subr.bf16.mxu0 0
    %4303 = vmatpush2.bf16.msra.mxu0 0
    %4304 = vmatprep.mubr.bf16.mxu0 0
    %4305 = vmatmul.mubr.bf16.gmra.mxu0 %v4229
    %v4306 = vpop.f32.mrf.mxu0
    %v4307 = vadd.f32 %v4132, %v4306
    %v4308 = vpop.f32.mrf.mxu0
    %v4309 = vadd.f32 %v4136, %v4308
    %v4310 = vpop.f32.mrf.mxu0
    %v4311 = vpop.f32.mrf.mxu0
    %4312 = vdwg.mxu0
    %4313 = vmatprep.subr.bf16.mxu0 0
    %4314 = vmatpush1.bf16.msra.mxu0 0
    %4315 = vmatprep.subr.bf16.mxu0 0
    %4316 = vmatpush1.bf16.msra.mxu0 0
    %4317 = vmatprep.subr.bf16.mxu0 0
    %4318 = vmatpush1.bf16.msra.mxu0 0
    %4319 = vmatprep.subr.bf16.mxu0 0
    %4320 = vmatpush1.bf16.msra.mxu0 0
    %4321 = vmatprep.subr.bf16.mxu0 0
    %4322 = vmatpush1.bf16.msra.mxu0 0
    %4323 = vmatprep.subr.bf16.mxu0 0
    %4324 = vmatpush1.bf16.msra.mxu0 0
    %4325 = vmatprep.subr.bf16.mxu0 %v4212
    %4326 = vmatpush1.bf16.msra.mxu0 %v4211
    %4327 = vmatprep.subr.bf16.mxu0 %v4205
    %4328 = vmatpush1.bf16.msra.mxu0 %v4204
    %4329 = vmatprep.subr.bf16.mxu0 0
    %4330 = vmatpush2.bf16.msra.mxu0 0
    %4331 = vmatprep.subr.bf16.mxu0 0
    %4332 = vmatpush2.bf16.msra.mxu0 0
    %4333 = vmatprep.subr.bf16.mxu0 0
    %4334 = vmatpush2.bf16.msra.mxu0 0
    %4335 = vmatprep.subr.bf16.mxu0 0
    %4336 = vmatpush2.bf16.msra.mxu0 0
    %4337 = vmatprep.subr.bf16.mxu0 0
    %4338 = vmatpush2.bf16.msra.mxu0 0
    %4339 = vmatprep.subr.bf16.mxu0 0
    %4340 = vmatpush2.bf16.msra.mxu0 0
    %4341 = vmatprep.subr.bf16.mxu0 0
    %4342 = vmatpush2.bf16.msra.mxu0 0
    %4343 = vmatprep.subr.bf16.mxu0 0
    %4344 = vmatpush2.bf16.msra.mxu0 0
    %4345 = vmatprep.mubr.bf16.mxu0 0
    %4346 = vmatmul.mubr.bf16.gmra.mxu0 %v4229
    %v4347 = vpop.f32.mrf.mxu0
    %v4348 = vadd.f32 %v4140, %v4347
    %v4349 = vpop.f32.mrf.mxu0
    %v4350 = vadd.f32 %v4144, %v4349
    %v4351 = vpop.f32.mrf.mxu0
    %v4352 = vpop.f32.mrf.mxu0
    %4353 = vdwg.mxu0
    %4354 = vmatprep.subr.bf16.mxu0 0
    %4355 = vmatpush1.bf16.msra.mxu0 0
    %4356 = vmatprep.subr.bf16.mxu0 0
    %4357 = vmatpush1.bf16.msra.mxu0 0
    %4358 = vmatprep.subr.bf16.mxu0 0
    %4359 = vmatpush1.bf16.msra.mxu0 0
    %4360 = vmatprep.subr.bf16.mxu0 0
    %4361 = vmatpush1.bf16.msra.mxu0 0
    %4362 = vmatprep.subr.bf16.mxu0 0
    %4363 = vmatpush1.bf16.msra.mxu0 0
    %4364 = vmatprep.subr.bf16.mxu0 0
    %4365 = vmatpush1.bf16.msra.mxu0 0
    %4366 = vmatprep.subr.bf16.mxu0 0
    %4367 = vmatpush1.bf16.msra.mxu0 %v4213
    %4368 = vmatprep.subr.bf16.mxu0 0
    %4369 = vmatpush1.bf16.msra.mxu0 %v4206
    %4370 = vmatprep.subr.bf16.mxu0 0
    %4371 = vmatpush2.bf16.msra.mxu0 0
    %4372 = vmatprep.subr.bf16.mxu0 0
    %4373 = vmatpush2.bf16.msra.mxu0 0
    %4374 = vmatprep.subr.bf16.mxu0 0
    %4375 = vmatpush2.bf16.msra.mxu0 0
    %4376 = vmatprep.subr.bf16.mxu0 0
    %4377 = vmatpush2.bf16.msra.mxu0 0
    %4378 = vmatprep.subr.bf16.mxu0 0
    %4379 = vmatpush2.bf16.msra.mxu0 0
    %4380 = vmatprep.subr.bf16.mxu0 0
    %4381 = vmatpush2.bf16.msra.mxu0 0
    %4382 = vmatprep.subr.bf16.mxu0 0
    %4383 = vmatpush2.bf16.msra.mxu0 0
    %4384 = vmatprep.subr.bf16.mxu0 0
    %4385 = vmatpush2.bf16.msra.mxu0 0
    %4386 = vmatprep.mubr.bf16.mxu0 0
    %4387 = vmatmul.mubr.bf16.gmra.mxu0 %v4229
    %v4388 = vpop.f32.mrf.mxu0
    %v4389 = vadd.f32 %v4148, %v4388
    %v4390 = vpop.f32.mrf.mxu0
    %v4391 = vpop.f32.mrf.mxu0
    %v4392 = vpop.f32.mrf.mxu0
    %4393 = vdwg.mxu0
    %v4394 = vmul.f32 %v4266, 0.5
    %v4395 = vmul.f32 %v4268, 0.5
    %v4396 = vmul.f32 %v4307, 0.5
    %v4397 = vmul.f32 %v4309, 0.5
    %v4398 = vmul.f32 %v4348, 0.5
    %v4399 = vmul.f32 %v4350, 0.5
    %v4400 = vmul.f32 %v4389, 0.5
    %v4401 = vtanh.pop %v4394
    %v4402 = vtanh.pop %v4395
    %v4403 = vtanh.pop %v4396
    %v4404 = vtanh.pop %v4397
    %v4405 = vtanh.pop %v4398
    %v4406 = vtanh.pop %v4399
    %v4407 = vtanh.pop %v4400
    %v4408 = vmul.f32 %v4401, 0.5
    %v4409 = vmul.f32 %v4402, 0.5
    %v4410 = vmul.f32 %v4403, 0.5
    %v4411 = vmul.f32 %v4404, 0.5
    %v4412 = vmul.f32 %v4405, 0.5
    %v4413 = vmul.f32 %v4406, 0.5
    %v4414 = vmul.f32 %v4407, 0.5
    %v4415 = vadd.f32 %v4408, 0.5
    %v4416 = vadd.f32 %v4409, 0.5
    %v4417 = vadd.f32 %v4410, 0.5
    %v4418 = vadd.f32 %v4411, 0.5
    %v4419 = vadd.f32 %v4412, 0.5
    %v4420 = vadd.f32 %v4413, 0.5
    %v4421 = vadd.f32 %v4414, 0.5
    %v4429 = vcombine.low %v4415, %v4416
    %v4430 = vcombine.low %v4417, %v4418
    %v4432 = vunpack.c.l.s4 1983009808
    %v4433 = vunpack.c.0.s8 %v4432
    %v4434 = vlaneseq
    %v4435 = vshrl.u32 %v4434, 7
    %v4436 = vsub.s32 %v4433, %v4435
    %v4437 = vrot.slane %v4429, %v4436
    %v4439 = vunpack.c.l.s4 1983009808
    %v4440 = vunpack.c.0.s8 %v4439
    %v4441 = vlaneseq
    %v4442 = vshrl.u32 %v4441, 7
    %v4443 = vsub.s32 %v4440, %v4442
    %v4444 = vrot.slane %v4430, %v4443
    %v4445 = vcombine.low %v4437, %v4444
    %v4446 = vcombine.low %v4419, %v4420
    %v4448 = vunpack.c.l.s4 1983009808
    %v4449 = vunpack.c.0.s8 %v4448
    %v4450 = vlaneseq
    %v4451 = vshrl.u32 %v4450, 7
    %v4452 = vsub.s32 %v4449, %v4451
    %v4453 = vrot.slane %v4446, %v4452
    %v4455 = vunpack.c.l.s4 1983009808
    %v4456 = vunpack.c.0.s8 %v4455
    %v4457 = vlaneseq
    %v4458 = vshrl.u32 %v4457, 7
    %v4459 = vsub.s32 %v4456, %v4458
    %v4460 = vrot.slane %v4421, %v4459
    %v4461 = vcombine.low %v4453, %v4460
    %4464 = vst [vmem:[#allocation4] sm:$0xff] %v4445
    %vm4465 = vcmask 1041408
    %vm4466 = vcmask 1043458
    %vm4467 = vmor %vm4466, %vm4465
    %vm4468 = vcmask 128004
    %vm4469 = vmor %vm4468, %vm4467
    %4470 = vst.msk [vmem:[#allocation4 + $0x8] sm:$0x3f] %vm4469, %v4461
    %vm4471 = vcmask 58368
    %4472 = vst.msk [vmem:[#allocation6] sm:$0x3] %vm4471, %v3975
    %4473 = vst.msk [vmem:[#allocation8] sm:$0x3] %vm4471, %v3961
    %4475 = vrot.lane.b32.xlu0 %v3961, 120
    %v4476 = vpop.permute.xlu0 %4475
    %4478 = vst.msk [vmem:[#allocation9] sm:$0x3] %vm4471, %v4476
    // Predicated region
    $region78: #{meta_vae_forward.1} parent=1 // pred_check
      _
    $region79: #{meta_vae_forward.1} parent=1 // pred_check_branch
      %4480 = sbr.rel (0) target = $region81
    $region80: #{meta_vae_forward.1} parent=1 // pred_region
      %s4482 = ssub.s32 224, 224
      %4483 = vsyncadd [#allocation5], %s4482
      %s4485 = sshll.u32 [#allocation4], 4
      %s4486 = int_to_ptr.vmem [resolvable:$true] %s4485
      %4488 = dma.vmem_to_hbm [thread:$0]  %s4486, 224, %s20, [#allocation5]
    $region81: #{meta_vae_forward.1} parent=1 // pred_fallthru
      _
    // Predicated region
    $region82: #{meta_vae_forward.1} parent=1 // pred_check
      _
    $region83: #{meta_vae_forward.1} parent=1 // pred_check_branch
      %4490 = sbr.rel (0) target = $region85
    $region84: #{meta_vae_forward.1} parent=1 // pred_region
      %s4492 = ssub.s32 32, 32
      %4493 = vsyncadd [#allocation7], %s4492
      %s4495 = sshll.u32 [#allocation6], 4
      %s4496 = int_to_ptr.vmem [resolvable:$true] %s4495
      %4498 = dma.vmem_to_hbm [thread:$0]  %s4496, 32, %s21, [#allocation7]
    $region85: #{meta_vae_forward.1} parent=1 // pred_fallthru
      _
    // Predicated region
    $region86: #{meta_vae_forward.1} parent=1 // pred_check
      _
    $region87: #{meta_vae_forward.1} parent=1 // pred_check_branch
      %4500 = sbr.rel (0) target = $region89
    $region88: #{meta_vae_forward.1} parent=1 // pred_region
      %s4502 = ssub.s32 32, 32
      %4503 = vsyncadd [#allocation7], %s4502
      %s4505 = sshll.u32 [#allocation8], 4
      %s4506 = int_to_ptr.vmem [resolvable:$true] %s4505
      %4508 = dma.vmem_to_hbm [thread:$0]  %s4506, 32, %s22, [#allocation7]
    $region89: #{meta_vae_forward.1} parent=1 // pred_fallthru
      _
    // Predicated region
    $region90: #{meta_vae_forward.1} parent=1 // pred_check
      _
    $region91: #{meta_vae_forward.1} parent=1 // pred_check_branch
      %4510 = sbr.rel (0) target = $region93
    $region92: #{meta_vae_forward.1} parent=1 // pred_region
      %s4512 = ssub.s32 32, 32
      %4513 = vsyncadd [#allocation10], %s4512
      %s4515 = sshll.u32 [#allocation9], 4
      %s4516 = int_to_ptr.vmem [resolvable:$true] %s4515
      %4518 = dma.vmem_to_hbm [thread:$0]  %s4516, 32, %s23, [#allocation10]
    $region93: #{meta_vae_forward.1} parent=1 // pred_fallthru
      _
    // Predicated region
    $region94: #{meta_vae_forward.1} parent=1 // pred_check
      _
    $region95: #{meta_vae_forward.1} parent=1 // pred_check_branch
      %4520 = sbr.rel (0) target = $region97
    $region96: #{meta_vae_forward.1} parent=1 // pred_region
      %4521 = dma.done [#allocation5], 224
    $region97: #{meta_vae_forward.1} parent=1 // pred_fallthru
      _
    // Predicated region
    $region98: #{meta_vae_forward.1} parent=1 // pred_check
      _
    $region99: #{meta_vae_forward.1} parent=1 // pred_check_branch
      %4523 = sbr.rel (0) target = $region101
    $region100: #{meta_vae_forward.1} parent=1 // pred_region
      %4524 = dma.done [#allocation7], 32
    $region101: #{meta_vae_forward.1} parent=1 // pred_fallthru
      _
    // Predicated region
    $region102: #{meta_vae_forward.1} parent=1 // pred_check
      _
    $region103: #{meta_vae_forward.1} parent=1 // pred_check_branch
      %4526 = sbr.rel (0) target = $region105
    $region104: #{meta_vae_forward.1} parent=1 // pred_region
      %4527 = dma.done [#allocation7], 32
    $region105: #{meta_vae_forward.1} parent=1 // pred_fallthru
      _
    // Predicated region
    $region106: #{meta_vae_forward.1} parent=1 // pred_check
      _
    $region107: #{meta_vae_forward.1} parent=1 // pred_check_branch
      %4529 = sbr.rel (0) target = $region109
    $region108: #{meta_vae_forward.1} parent=1 // pred_region
      %4530 = dma.done [#allocation10], 32
    $region109: #{meta_vae_forward.1} parent=1 // pred_fallthru
      _
    %4531 = vsyncpa [#allocation5], 1
    %4532 = vsyncpa [#allocation7], 1
    %4533 = vsyncpa [#allocation10], 1

// kernel: meta_vae_forward.1
$region0: #{meta_vae_forward.1}
  #allocation0 [shape = 'u32[]', space=smem, size = 0x4, offset = 0x4, fixed_abs, tag = 'smem constant byte address 0x4 - core index']
  #allocation1 [shape = 'u32[144,128]{1,0:T(1,128)}', space=vmem, size = 0x12000, scoped, tag = 'internal scratch']
  #allocation2 [shape = 's32[1]{0}', space=sflag, size = 0x4, scoped, tag = 'scoped memory for meta_vae_forward.1']
  #allocation3 [shape = 's32[1]{0:T(128)S(6)}', space=smem, size = 0x200, scoped, tag = 'prefetched SMEM operand 0']
  %s0 = inlined_call_operand.<no memory space> [shape: s32[1], index: 0, kind: input, shape index: {}]
  %s1 = inlined_call_operand.vmem [shape: f32[2,784], index: 1, kind: input, shape index: {}]
  %s2 = inlined_call_operand.vmem [shape: f32[2,8,784], index: 2, kind: input, shape index: {}]
  %s3 = inlined_call_operand.vmem [shape: f32[2,8], index: 3, kind: input, shape index: {}]
  %s4 = inlined_call_operand.vmem [shape: bf16[2,784,32], index: 4, kind: input, shape index: {}]
  %s5 = inlined_call_operand.vmem [shape: bf16[32,32], index: 5, kind: input, shape index: {}]
  %s6 = inlined_call_operand.vmem [shape: bf16[32,32], index: 6, kind: input, shape index: {}]
  %s7 = inlined_call_operand.vmem [shape: bf16[32,32], index: 7, kind: input, shape index: {}]
  %s8 = inlined_call_operand.vmem [shape: bf16[32,16], index: 8, kind: input, shape index: {}]
  %s9 = inlined_call_operand.vmem [shape: f32[1,32], index: 9, kind: input, shape index: {}]
  %s10 = inlined_call_operand.vmem [shape: f32[1,32], index: 10, kind: input, shape index: {}]
  %s11 = inlined_call_operand.vmem [shape: f32[1,32], index: 11, kind: input, shape index: {}]
  %s12 = inlined_call_operand.vmem [shape: f32[1,32], index: 12, kind: input, shape index: {}]
  %s13 = inlined_call_operand.vmem [shape: f32[1,16], index: 13, kind: input, shape index: {}]
  %s14 = inlined_call_operand.vmem [shape: bf16[2,8,32], index: 14, kind: input, shape index: {}]
  %s15 = inlined_call_operand.vmem [shape: bf16[2,32,32], index: 15, kind: input, shape index: {}]
  %s16 = inlined_call_operand.vmem [shape: bf16[2,32,784], index: 16, kind: input, shape index: {}]
  %s17 = inlined_call_operand.vmem [shape: f32[2,1,32], index: 17, kind: input, shape index: {}]
  %s18 = inlined_call_operand.vmem [shape: f32[2,1,32], index: 18, kind: input, shape index: {}]
  %s19 = inlined_call_operand.vmem [shape: f32[2,1,784], index: 19, kind: input, shape index: {}]
  %s20 = inlined_call_operand.hbm [shape: f32[2,784], index: 20, kind: output, shape index: {0}]
  %s21 = inlined_call_operand.hbm [shape: f32[2,8], index: 21, kind: output, shape index: {1}]
  %s22 = inlined_call_operand.hbm [shape: f32[2,8], index: 22, kind: output, shape index: {2}]
  %s23 = inlined_call_operand.hbm [shape: f32[2,8], index: 23, kind: output, shape index: {3}]
  %24 = xla_tuple %s20, %s21, %s22, %s23
  %s25 = sld [smem:[#allocation0]]
  $region110: #{meta_vae_forward.1} parent=0
    _
  %s27 = ssub.s32 1, %s25
  %s28 = scalar_select 0, %s27, %s25
  %29 = sst [smem:[#allocation3]] %s0
  $region1: #{meta_vae_forward.1} parent=0
    #allocation4 [shape = 'u8[7168]{0}', space=vmem, size = 0x1c00, scoped, tag = 'output window, operand 0, single buffered']
    #allocation5 [shape = 's32[1]{0}', space=sflag, size = 0x4, scoped, tag = 'scoped memory for meta_vae_forward.1']
    #allocation6 [shape = 'u8[1024]{0}', space=vmem, size = 0x400, scoped, tag = 'output window, operand 1, single buffered']
    #allocation7 [shape = 's32[1]{0}', space=sflag, size = 0x4, scoped, tag = 'scoped memory for meta_vae_forward.1']
    #allocation8 [shape = 'u8[1024]{0}', space=vmem, size = 0x400, scoped, tag = 'output window, operand 2, single buffered']
    #allocation9 [shape = 'u8[1024]{0}', space=vmem, size = 0x400, scoped, tag = 'output window, operand 3, single buffered']
    #allocation10 [shape = 's32[1]{0}', space=sflag, size = 0x4, scoped, tag = 'scoped memory for meta_vae_forward.1']
    %30 = vsyncpa [#allocation5], 0
    %31 = vsyncpa [#allocation7], 0
    %32 = vsyncpa [#allocation10], 0
    // Predicated region
    $region2: #{meta_vae_forward.1} parent=1 // pred_check
      _
    $region3: #{meta_vae_forward.1} parent=1 // pred_check_branch
      %34 = sbr.rel (0) target = $region5
    $region4: #{meta_vae_forward.1} parent=1 // pred_region
      _
    $region5: #{meta_vae_forward.1} parent=1 // pred_fallthru
      _
    // Predicated region
    $region6: #{meta_vae_forward.1} parent=1 // pred_check
      _
    $region7: #{meta_vae_forward.1} parent=1 // pred_check_branch
      %36 = sbr.rel (0) target = $region9
    $region8: #{meta_vae_forward.1} parent=1 // pred_region
      _
    $region9: #{meta_vae_forward.1} parent=1 // pred_fallthru
      _
    // Predicated region
    $region10: #{meta_vae_forward.1} parent=1 // pred_check
      _
    $region11: #{meta_vae_forward.1} parent=1 // pred_check_branch
      %38 = sbr.rel (0) target = $region13
    $region12: #{meta_vae_forward.1} parent=1 // pred_region
      _
    $region13: #{meta_vae_forward.1} parent=1 // pred_fallthru
      _
    // Predicated region
    $region14: #{meta_vae_forward.1} parent=1 // pred_check
      _
    $region15: #{meta_vae_forward.1} parent=1 // pred_check_branch
      %40 = sbr.rel (0) target = $region17
    $region16: #{meta_vae_forward.1} parent=1 // pred_region
      _
    $region17: #{meta_vae_forward.1} parent=1 // pred_fallthru
      _
    // Predicated region
    $region18: #{meta_vae_forward.1} parent=1 // pred_check
      _
    $region19: #{meta_vae_forward.1} parent=1 // pred_check_branch
      %42 = sbr.rel (0) target = $region21
    $region20: #{meta_vae_forward.1} parent=1 // pred_region
      _
    $region21: #{meta_vae_forward.1} parent=1 // pred_fallthru
      _
    // Predicated region
    $region22: #{meta_vae_forward.1} parent=1 // pred_check
      _
    $region23: #{meta_vae_forward.1} parent=1 // pred_check_branch
      %44 = sbr.rel (0) target = $region25
    $region24: #{meta_vae_forward.1} parent=1 // pred_region
      _
    $region25: #{meta_vae_forward.1} parent=1 // pred_fallthru
      _
    // Predicated region
    $region26: #{meta_vae_forward.1} parent=1 // pred_check
      _
    $region27: #{meta_vae_forward.1} parent=1 // pred_check_branch
      %46 = sbr.rel (0) target = $region29
    $region28: #{meta_vae_forward.1} parent=1 // pred_region
      _
    $region29: #{meta_vae_forward.1} parent=1 // pred_fallthru
      _
    // Predicated region
    $region30: #{meta_vae_forward.1} parent=1 // pred_check
      _
    $region31: #{meta_vae_forward.1} parent=1 // pred_check_branch
      %48 = sbr.rel (0) target = $region33
    $region32: #{meta_vae_forward.1} parent=1 // pred_region
      _
    $region33: #{meta_vae_forward.1} parent=1 // pred_fallthru
      _
    // Predicated region
    $region34: #{meta_vae_forward.1} parent=1 // pred_check
      _
    $region35: #{meta_vae_forward.1} parent=1 // pred_check_branch
      %50 = sbr.rel (0) target = $region37
    $region36: #{meta_vae_forward.1} parent=1 // pred_region
      _
    $region37: #{meta_vae_forward.1} parent=1 // pred_fallthru
      _
    // Predicated region
    $region38: #{meta_vae_forward.1} parent=1 // pred_check
      _
    $region39: #{meta_vae_forward.1} parent=1 // pred_check_branch
      %52 = sbr.rel (0) target = $region41
    $region40: #{meta_vae_forward.1} parent=1 // pred_region
      _
    $region41: #{meta_vae_forward.1} parent=1 // pred_fallthru
      _
    // Predicated region
    $region42: #{meta_vae_forward.1} parent=1 // pred_check
      _
    $region43: #{meta_vae_forward.1} parent=1 // pred_check_branch
      %54 = sbr.rel (0) target = $region45
    $region44: #{meta_vae_forward.1} parent=1 // pred_region
      _
    $region45: #{meta_vae_forward.1} parent=1 // pred_fallthru
      _
    // Predicated region
    $region46: #{meta_vae_forward.1} parent=1 // pred_check
      _
    $region47: #{meta_vae_forward.1} parent=1 // pred_check_branch
      %56 = sbr.rel (0) target = $region49
    $region48: #{meta_vae_forward.1} parent=1 // pred_region
      _
    $region49: #{meta_vae_forward.1} parent=1 // pred_fallthru
      _
    // Predicated region
    $region50: #{meta_vae_forward.1} parent=1 // pred_check
      _
    $region51: #{meta_vae_forward.1} parent=1 // pred_check_branch
      %58 = sbr.rel (0) target = $region53
    $region52: #{meta_vae_forward.1} parent=1 // pred_region
      _
    $region53: #{meta_vae_forward.1} parent=1 // pred_fallthru
      _
    // Predicated region
    $region54: #{meta_vae_forward.1} parent=1 // pred_check
      _
    $region55: #{meta_vae_forward.1} parent=1 // pred_check_branch
      %60 = sbr.rel (0) target = $region57
    $region56: #{meta_vae_forward.1} parent=1 // pred_region
      %s61 = sld [smem:[#allocation3]]
      %p62 = scmp.lt.s32.totalorder %s61, 1
      %s63 = scalar_select %p62, %s61, 1
      %s64 = smul.addr %s63, 4
      %s65 = scalar_lea.vmem %s14, %s64
      %s66 = sld [smem:[#allocation3]]
    $region57: #{meta_vae_forward.1} parent=1 // pred_fallthru
      _
    // Predicated region
    $region58: #{meta_vae_forward.1} parent=1 // pred_check
      _
    $region59: #{meta_vae_forward.1} parent=1 // pred_check_branch
      %68 = sbr.rel (0) target = $region61
    $region60: #{meta_vae_forward.1} parent=1 // pred_region
      %s69 = sld [smem:[#allocation3]]
      %p70 = scmp.lt.s32.totalorder %s69, 1
      %s71 = scalar_select %p70, %s69, 1
      %s72 = smul.addr %s71, 4
      %s73 = smul.addr %s72, 4
      %s74 = scalar_lea.vmem %s15, %s73
      %s75 = sld [smem:[#allocation3]]
    $region61: #{meta_vae_forward.1} parent=1 // pred_fallthru
      _
    // Predicated region
    $region62: #{meta_vae_forward.1} parent=1 // pred_check
      _
    $region63: #{meta_vae_forward.1} parent=1 // pred_check_branch
      %77 = sbr.rel (0) target = $region65
    $region64: #{meta_vae_forward.1} parent=1 // pred_region
      %s78 = sld [smem:[#allocation3]]
      %p79 = scmp.lt.s32.totalorder %s78, 1
      %s80 = scalar_select %p79, %s78, 1
      %s81 = smul.addr %s80, 28
      %s82 = smul.addr %s81, 4
      %s83 = scalar_lea.vmem %s16, %s82
      %s84 = sld [smem:[#allocation3]]
    $region65: #{meta_vae_forward.1} parent=1 // pred_fallthru
      _
    // Predicated region
    $region66: #{meta_vae_forward.1} parent=1 // pred_check
      _
    $region67: #{meta_vae_forward.1} parent=1 // pred_check_branch
      %86 = sbr.rel (0) target = $region69
    $region68: #{meta_vae_forward.1} parent=1 // pred_region
      %s87 = sld [smem:[#allocation3]]
      %p88 = scmp.lt.s32.totalorder %s87, 1
      %s89 = scalar_select %p88, %s87, 1
      %s90 = scalar_lea.vmem %s17, %s89
      %s91 = sld [smem:[#allocation3]]
    $region69: #{meta_vae_forward.1} parent=1 // pred_fallthru
      _
    // Predicated region
    $region70: #{meta_vae_forward.1} parent=1 // pred_check
      _
    $region71: #{meta_vae_forward.1} parent=1 // pred_check_branch
      %93 = sbr.rel (0) target = $region73
    $region72: #{meta_vae_forward.1} parent=1 // pred_region
      %s94 = sld [smem:[#allocation3]]
      %p95 = scmp.lt.s32.totalorder %s94, 1
      %s96 = scalar_select %p95, %s94, 1
      %s97 = scalar_lea.vmem %s18, %s96
      %s98 = sld [smem:[#allocation3]]
    $region73: #{meta_vae_forward.1} parent=1 // pred_fallthru
      _
    // Predicated region
    $region74: #{meta_vae_forward.1} parent=1 // pred_check
      _
    $region75: #{meta_vae_forward.1} parent=1 // pred_check_branch
      %100 = sbr.rel (0) target = $region77
    $region76: #{meta_vae_forward.1} parent=1 // pred_region
      %s101 = sld [smem:[#allocation3]]
      %p102 = scmp.lt.s32.totalorder %s101, 1
      %s103 = scalar_select %p102, %s101, 1
      %s104 = smul.addr %s103, 7
      %s105 = scalar_lea.vmem %s19, %s104
      %s106 = sld [smem:[#allocation3]]
    $region77: #{meta_vae_forward.1} parent=1 // pred_fallthru
      _
    %s107 = sld [smem:[#allocation3]]
    %p108 = scmp.lt.s32.totalorder %s107, 1
    %s109 = scalar_select %p108, %s107, 1
    %s110 = smul.addr %s109, 4
    %s111 = scalar_lea.vmem %s14, %s110
    %s112 = sld [smem:[#allocation3]]
    %p113 = scmp.lt.s32.totalorder %s112, 1
    %s114 = scalar_select %p113, %s112, 1
    %s115 = smul.addr %s114, 4
    %s116 = smul.addr %s115, 4
    %s117 = scalar_lea.vmem %s15, %s116
    %s118 = sld [smem:[#allocation3]]
    %p119 = scmp.lt.s32.totalorder %s118, 1
    %s120 = scalar_select %p119, %s118, 1
    %s121 = smul.addr %s120, 28
    %s122 = smul.addr %s121, 4
    %s123 = scalar_lea.vmem %s16, %s122
    %s124 = sld [smem:[#allocation3]]
    %p125 = scmp.lt.s32.totalorder %s124, 1
    %s126 = scalar_select %p125, %s124, 1
    %s127 = scalar_lea.vmem %s17, %s126
    %s128 = sld [smem:[#allocation3]]
    %p129 = scmp.lt.s32.totalorder %s128, 1
    %s130 = scalar_select %p129, %s128, 1
    %s131 = scalar_lea.vmem %s18, %s130
    %s132 = sld [smem:[#allocation3]]
    %p133 = scmp.lt.s32.totalorder %s132, 1
    %s134 = scalar_select %p133, %s132, 1
    %s135 = smul.addr %s134, 7
    %s136 = scalar_lea.vmem %s19, %s135
    %s137 = sld [smem:[#allocation3]]
    %p138 = scmp.lt.s32.totalorder %s137, 1
    %s139 = scalar_select %p138, %s137, 1
    %s140 = smul.addr %s139, 4
    %s141 = scalar_lea.vmem %s14, %s140
    %s142 = sld [smem:[#allocation3]]
    %s143 = sld [smem:[#allocation3]]
    %p144 = scmp.lt.s32.totalorder %s143, 1
    %s145 = scalar_select %p144, %s143, 1
    %s146 = smul.addr %s145, 4
    %s147 = smul.addr %s146, 4
    %s148 = scalar_lea.vmem %s15, %s147
    %s149 = sld [smem:[#allocation3]]
    %s150 = sld [smem:[#allocation3]]
    %p151 = scmp.lt.s32.totalorder %s150, 1
    %s152 = scalar_select %p151, %s150, 1
    %s153 = smul.addr %s152, 28
    %s154 = smul.addr %s153, 4
    %s155 = scalar_lea.vmem %s16, %s154
    %s156 = sld [smem:[#allocation3]]
    %s157 = sld [smem:[#allocation3]]
    %p158 = scmp.lt.s32.totalorder %s157, 1
    %s159 = scalar_select %p158, %s157, 1
    %s160 = scalar_lea.vmem %s17, %s159
    %s161 = sld [smem:[#allocation3]]
    %s162 = sld [smem:[#allocation3]]
    %p163 = scmp.lt.s32.totalorder %s162, 1
    %s164 = scalar_select %p163, %s162, 1
    %s165 = scalar_lea.vmem %s18, %s164
    %s166 = sld [smem:[#allocation3]]
    %s167 = sld [smem:[#allocation3]]
    %p168 = scmp.lt.s32.totalorder %s167, 1
    %s169 = scalar_select %p168, %s167, 1
    %s170 = smul.addr %s169, 7
    %s171 = scalar_lea.vmem %s19, %s170
    %s172 = sld [smem:[#allocation3]]
    %v174 = vld [vmem:[%s4] sm:$0xf]
    %v175 = vld [vmem:[%s4 + $0x4] sm:$0xf]
    %v176 = vld [vmem:[%s4 + $0x8] sm:$0xf]
    %v177 = vld [vmem:[%s4 + $0xc] sm:$0xf]
    %v178 = vld [vmem:[%s4 + $0x10] sm:$0xf]
    %v179 = vld [vmem:[%s4 + $0x14] sm:$0xf]
    %v180 = vld [vmem:[%s4 + $0x18] sm:$0xf]
    %v181 = vld [vmem:[%s4 + $0x1c] sm:$0xf]
    %v182 = vld [vmem:[%s4 + $0x20] sm:$0xf]
    %v183 = vld [vmem:[%s4 + $0x24] sm:$0xf]
    %v184 = vld [vmem:[%s4 + $0x28] sm:$0xf]
    %v185 = vld [vmem:[%s4 + $0x2c] sm:$0xf]
    %v186 = vld [vmem:[%s4 + $0x30] sm:$0xf]
    %v187 = vld [vmem:[%s4 + $0x34] sm:$0xf]
    %v188 = vld [vmem:[%s4 + $0x38] sm:$0xf]
    %v189 = vld [vmem:[%s4 + $0x3c] sm:$0xf]
    %v190 = vld [vmem:[%s4 + $0x40] sm:$0xf]
    %v191 = vld [vmem:[%s4 + $0x44] sm:$0xf]
    %v192 = vld [vmem:[%s4 + $0x48] sm:$0xf]
    %v193 = vld [vmem:[%s4 + $0x4c] sm:$0xf]
    %v194 = vld [vmem:[%s4 + $0x50] sm:$0xf]
    %v195 = vld [vmem:[%s4 + $0x54] sm:$0xf]
    %v196 = vld [vmem:[%s4 + $0x58] sm:$0xf]
    %v197 = vld [vmem:[%s4 + $0x5c] sm:$0xf]
    %v198 = vld [vmem:[%s4 + $0x60] sm:$0xf]
    %v199 = vld [vmem:[%s4 + $0x64] sm:$0xf]
    %v200 = vld [vmem:[%s4 + $0x68] sm:$0xf]
    %v201 = vld [vmem:[%s4 + $0x6c] sm:$0xf]
    %v202 = vld [vmem:[%s4 + $0x70] sm:$0xf]
    %v203 = vld [vmem:[%s4 + $0x74] sm:$0xf]
    %v204 = vld [vmem:[%s4 + $0x78] sm:$0xf]
    %v205 = vld [vmem:[%s4 + $0x7c] sm:$0xf]
    %v206 = vld [vmem:[%s4 + $0x80] sm:$0xf]
    %v207 = vld [vmem:[%s4 + $0x84] sm:$0xf]
    %v208 = vld [vmem:[%s4 + $0x88] sm:$0xf]
    %v209 = vld [vmem:[%s4 + $0x8c] sm:$0xf]
    %v210 = vld [vmem:[%s4 + $0x90] sm:$0xf]
    %v211 = vld [vmem:[%s4 + $0x94] sm:$0xf]
    %v212 = vld [vmem:[%s4 + $0x98] sm:$0xf]
    %v213 = vld [vmem:[%s4 + $0x9c] sm:$0xf]
    %v214 = vld [vmem:[%s4 + $0xa0] sm:$0xf]
    %v215 = vld [vmem:[%s4 + $0xa4] sm:$0xf]
    %v216 = vld [vmem:[%s4 + $0xa8] sm:$0xf]
    %v217 = vld [vmem:[%s4 + $0xac] sm:$0xf]
    %v218 = vld [vmem:[%s4 + $0xb0] sm:$0xf]
    %v219 = vld [vmem:[%s4 + $0xb4] sm:$0xf]
    %v220 = vld [vmem:[%s4 + $0xb8] sm:$0xf]
    %v221 = vld [vmem:[%s4 + $0xbc] sm:$0xf]
    %v222 = vld [vmem:[%s4 + $0xc0] sm:$0xf]
    %v223 = vld [vmem:[%s4 + $0xc4] sm:$0xf]
    %v224 = vld [vmem:[%s4 + $0xc8] sm:$0xf]
    %v225 = vld [vmem:[%s4 + $0xcc] sm:$0xf]
    %v226 = vld [vmem:[%s4 + $0xd0] sm:$0xf]
    %v227 = vld [vmem:[%s4 + $0xd4] sm:$0xf]
    %v228 = vld [vmem:[%s4 + $0xd8] sm:$0xf]
    %v229 = vld [vmem:[%s4 + $0xdc] sm:$0xf]
    %v230 = vld [vmem:[%s4 + $0xe0] sm:$0xf]
    %v231 = vld [vmem:[%s4 + $0xe4] sm:$0xf]
    %v232 = vld [vmem:[%s4 + $0xe8] sm:$0xf]
    %v233 = vld [vmem:[%s4 + $0xec] sm:$0xf]
    %v234 = vld [vmem:[%s4 + $0xf0] sm:$0xf]
    %v235 = vld [vmem:[%s4 + $0xf4] sm:$0xf]
    %v236 = vld [vmem:[%s4 + $0xf8] sm:$0xf]
    %v237 = vld [vmem:[%s4 + $0xfc] sm:$0xf]
    %v238 = vld [vmem:[%s4 + $0x100] sm:$0xf]
    %v239 = vld [vmem:[%s4 + $0x104] sm:$0xf]
    %v240 = vld [vmem:[%s4 + $0x108] sm:$0xf]
    %v241 = vld [vmem:[%s4 + $0x10c] sm:$0xf]
    %v242 = vld [vmem:[%s4 + $0x110] sm:$0xf]
    %v243 = vld [vmem:[%s4 + $0x114] sm:$0xf]
    %v244 = vld [vmem:[%s4 + $0x118] sm:$0xf]
    %v245 = vld [vmem:[%s4 + $0x11c] sm:$0xf]
    %v246 = vld [vmem:[%s4 + $0x120] sm:$0xf]
    %v247 = vld [vmem:[%s4 + $0x124] sm:$0xf]
    %v248 = vld [vmem:[%s4 + $0x128] sm:$0xf]
    %v249 = vld [vmem:[%s4 + $0x12c] sm:$0xf]
    %v250 = vld [vmem:[%s4 + $0x130] sm:$0xf]
    %v251 = vld [vmem:[%s4 + $0x134] sm:$0xf]
    %v252 = vld [vmem:[%s4 + $0x138] sm:$0xf]
    %v253 = vld [vmem:[%s4 + $0x13c] sm:$0xf]
    %v254 = vld [vmem:[%s4 + $0x140] sm:$0xf]
    %v255 = vld [vmem:[%s4 + $0x144] sm:$0xf]
    %v256 = vld [vmem:[%s4 + $0x148] sm:$0xf]
    %v257 = vld [vmem:[%s4 + $0x14c] sm:$0xf]
    %v258 = vld [vmem:[%s4 + $0x150] sm:$0xf]
    %v259 = vld [vmem:[%s4 + $0x154] sm:$0xf]
    %v260 = vld [vmem:[%s4 + $0x158] sm:$0xf]
    %v261 = vld [vmem:[%s4 + $0x15c] sm:$0xf]
    %v262 = vld [vmem:[%s4 + $0x160] sm:$0xf]
    %v263 = vld [vmem:[%s4 + $0x164] sm:$0xf]
    %v264 = vld [vmem:[%s4 + $0x168] sm:$0xf]
    %v265 = vld [vmem:[%s4 + $0x16c] sm:$0xf]
    %v266 = vld [vmem:[%s4 + $0x170] sm:$0xf]
    %v267 = vld [vmem:[%s4 + $0x174] sm:$0xf]
    %v268 = vld [vmem:[%s4 + $0x178] sm:$0xf]
    %v269 = vld [vmem:[%s4 + $0x17c] sm:$0xf]
    %v270 = vld [vmem:[%s4 + $0x180] sm:$0xf]
    %v271 = vld [vmem:[%s4 + $0x184] sm:$0xf]
    %s272 = scalar_lea.vmem %s4, 392
    %v273 = vld [vmem:[%s272] sm:$0xf]
    %v274 = vld [vmem:[%s272 + $0x4] sm:$0xf]
    %v275 = vld [vmem:[%s272 + $0x8] sm:$0xf]
    %v276 = vld [vmem:[%s272 + $0xc] sm:$0xf]
    %v277 = vld [vmem:[%s272 + $0x10] sm:$0xf]
    %v278 = vld [vmem:[%s272 + $0x14] sm:$0xf]
    %v279 = vld [vmem:[%s272 + $0x18] sm:$0xf]
    %v280 = vld [vmem:[%s272 + $0x1c] sm:$0xf]
    %v281 = vld [vmem:[%s272 + $0x20] sm:$0xf]
    %v282 = vld [vmem:[%s272 + $0x24] sm:$0xf]
    %v283 = vld [vmem:[%s272 + $0x28] sm:$0xf]
    %v284 = vld [vmem:[%s272 + $0x2c] sm:$0xf]
    %v285 = vld [vmem:[%s272 + $0x30] sm:$0xf]
    %v286 = vld [vmem:[%s272 + $0x34] sm:$0xf]
    %v287 = vld [vmem:[%s272 + $0x38] sm:$0xf]
    %v288 = vld [vmem:[%s272 + $0x3c] sm:$0xf]
    %v289 = vld [vmem:[%s272 + $0x40] sm:$0xf]
    %v290 = vld [vmem:[%s272 + $0x44] sm:$0xf]
    %v291 = vld [vmem:[%s272 + $0x48] sm:$0xf]
    %v292 = vld [vmem:[%s272 + $0x4c] sm:$0xf]
    %v293 = vld [vmem:[%s272 + $0x50] sm:$0xf]
    %v294 = vld [vmem:[%s272 + $0x54] sm:$0xf]
    %v295 = vld [vmem:[%s272 + $0x58] sm:$0xf]
    %v296 = vld [vmem:[%s272 + $0x5c] sm:$0xf]
    %v297 = vld [vmem:[%s272 + $0x60] sm:$0xf]
    %v298 = vld [vmem:[%s272 + $0x64] sm:$0xf]
    %v299 = vld [vmem:[%s272 + $0x68] sm:$0xf]
    %v300 = vld [vmem:[%s272 + $0x6c] sm:$0xf]
    %v301 = vld [vmem:[%s272 + $0x70] sm:$0xf]
    %v302 = vld [vmem:[%s272 + $0x74] sm:$0xf]
    %v303 = vld [vmem:[%s272 + $0x78] sm:$0xf]
    %v304 = vld [vmem:[%s272 + $0x7c] sm:$0xf]
    %v305 = vld [vmem:[%s272 + $0x80] sm:$0xf]
    %v306 = vld [vmem:[%s272 + $0x84] sm:$0xf]
    %v307 = vld [vmem:[%s272 + $0x88] sm:$0xf]
    %v308 = vld [vmem:[%s272 + $0x8c] sm:$0xf]
    %v309 = vld [vmem:[%s272 + $0x90] sm:$0xf]
    %v310 = vld [vmem:[%s272 + $0x94] sm:$0xf]
    %v311 = vld [vmem:[%s272 + $0x98] sm:$0xf]
    %v312 = vld [vmem:[%s272 + $0x9c] sm:$0xf]
    %v313 = vld [vmem:[%s272 + $0xa0] sm:$0xf]
    %v314 = vld [vmem:[%s272 + $0xa4] sm:$0xf]
    %v315 = vld [vmem:[%s272 + $0xa8] sm:$0xf]
    %v316 = vld [vmem:[%s272 + $0xac] sm:$0xf]
    %v317 = vld [vmem:[%s272 + $0xb0] sm:$0xf]
    %v318 = vld [vmem:[%s272 + $0xb4] sm:$0xf]
    %v319 = vld [vmem:[%s272 + $0xb8] sm:$0xf]
    %v320 = vld [vmem:[%s272 + $0xbc] sm:$0xf]
    %v321 = vld [vmem:[%s272 + $0xc0] sm:$0xf]
    %v322 = vld [vmem:[%s272 + $0xc4] sm:$0xf]
    %v323 = vld [vmem:[%s272 + $0xc8] sm:$0xf]
    %v324 = vld [vmem:[%s272 + $0xcc] sm:$0xf]
    %v325 = vld [vmem:[%s272 + $0xd0] sm:$0xf]
    %v326 = vld [vmem:[%s272 + $0xd4] sm:$0xf]
    %v327 = vld [vmem:[%s272 + $0xd8] sm:$0xf]
    %v328 = vld [vmem:[%s272 + $0xdc] sm:$0xf]
    %v329 = vld [vmem:[%s272 + $0xe0] sm:$0xf]
    %v330 = vld [vmem:[%s272 + $0xe4] sm:$0xf]
    %v331 = vld [vmem:[%s272 + $0xe8] sm:$0xf]
    %v332 = vld [vmem:[%s272 + $0xec] sm:$0xf]
    %v333 = vld [vmem:[%s272 + $0xf0] sm:$0xf]
    %v334 = vld [vmem:[%s272 + $0xf4] sm:$0xf]
    %v335 = vld [vmem:[%s272 + $0xf8] sm:$0xf]
    %v336 = vld [vmem:[%s272 + $0xfc] sm:$0xf]
    %v337 = vld [vmem:[%s272 + $0x100] sm:$0xf]
    %v338 = vld [vmem:[%s272 + $0x104] sm:$0xf]
    %v339 = vld [vmem:[%s272 + $0x108] sm:$0xf]
    %v340 = vld [vmem:[%s272 + $0x10c] sm:$0xf]
    %v341 = vld [vmem:[%s272 + $0x110] sm:$0xf]
    %v342 = vld [vmem:[%s272 + $0x114] sm:$0xf]
    %v343 = vld [vmem:[%s272 + $0x118] sm:$0xf]
    %v344 = vld [vmem:[%s272 + $0x11c] sm:$0xf]
    %v345 = vld [vmem:[%s272 + $0x120] sm:$0xf]
    %v346 = vld [vmem:[%s272 + $0x124] sm:$0xf]
    %v347 = vld [vmem:[%s272 + $0x128] sm:$0xf]
    %v348 = vld [vmem:[%s272 + $0x12c] sm:$0xf]
    %v349 = vld [vmem:[%s272 + $0x130] sm:$0xf]
    %v350 = vld [vmem:[%s272 + $0x134] sm:$0xf]
    %v351 = vld [vmem:[%s272 + $0x138] sm:$0xf]
    %v352 = vld [vmem:[%s272 + $0x13c] sm:$0xf]
    %v353 = vld [vmem:[%s272 + $0x140] sm:$0xf]
    %v354 = vld [vmem:[%s272 + $0x144] sm:$0xf]
    %v355 = vld [vmem:[%s272 + $0x148] sm:$0xf]
    %v356 = vld [vmem:[%s272 + $0x14c] sm:$0xf]
    %v357 = vld [vmem:[%s272 + $0x150] sm:$0xf]
    %v358 = vld [vmem:[%s272 + $0x154] sm:$0xf]
    %v359 = vld [vmem:[%s272 + $0x158] sm:$0xf]
    %v360 = vld [vmem:[%s272 + $0x15c] sm:$0xf]
    %v361 = vld [vmem:[%s272 + $0x160] sm:$0xf]
    %v362 = vld [vmem:[%s272 + $0x164] sm:$0xf]
    %v363 = vld [vmem:[%s272 + $0x168] sm:$0xf]
    %v364 = vld [vmem:[%s272 + $0x16c] sm:$0xf]
    %v365 = vld [vmem:[%s272 + $0x170] sm:$0xf]
    %v366 = vld [vmem:[%s272 + $0x174] sm:$0xf]
    %v367 = vld [vmem:[%s272 + $0x178] sm:$0xf]
    %v368 = vld [vmem:[%s272 + $0x17c] sm:$0xf]
    %v369 = vld [vmem:[%s272 + $0x180] sm:$0xf]
    %v370 = vld [vmem:[%s272 + $0x184] sm:$0xf]
    %v371 = vld [vmem:[%s9] sm:$0x1]
    %v372 = vld [vmem:[%s2] ss:$8 sm:$0xf]
    %v373 = vld [vmem:[%s2] ss:$8 sm:$0x70]
    %v374 = vor.u32 %v372, %v373
    %s375 = scalar_lea.vmem %s2, 56
    %v376 = vld [vmem:[%s375] ss:$8 sm:$0xf]
    %v377 = vld [vmem:[%s375] ss:$8 sm:$0x70]
    %v378 = vor.u32 %v376, %v377
    %v381 = vlaneseq
    %v382 = vshrl.u32 %v381, 7
    %v383 = vsub.s32 0, %v382
    %v384 = vrot.slane %v374, %v383
    %v385 = vlaneseq
    %v386 = vshrl.u32 %v385, 7
    %v387 = vsub.s32 1, %v386
    %v388 = vrot.slane %v374, %v387
    %v389 = vlaneseq
    %v390 = vshrl.u32 %v389, 7
    %v391 = vsub.s32 2, %v390
    %v392 = vrot.slane %v374, %v391
    %v393 = vlaneseq
    %v394 = vshrl.u32 %v393, 7
    %v395 = vsub.s32 3, %v394
    %v396 = vrot.slane %v374, %v395
    %v397 = vlaneseq
    %v398 = vshrl.u32 %v397, 7
    %v399 = vsub.s32 4, %v398
    %v400 = vrot.slane %v374, %v399
    %v401 = vlaneseq
    %v402 = vshrl.u32 %v401, 7
    %v403 = vsub.s32 5, %v402
    %v404 = vrot.slane %v374, %v403
    %v405 = vlaneseq
    %v406 = vshrl.u32 %v405, 7
    %v407 = vsub.s32 6, %v406
    %v408 = vrot.slane %v374, %v407
    %v409 = vlaneseq
    %v410 = vshrl.u32 %v409, 7
    %v411 = vsub.s32 0, %v410
    %v412 = vrot.slane %v378, %v411
    %v413 = vlaneseq
    %v414 = vshrl.u32 %v413, 7
    %v415 = vsub.s32 1, %v414
    %v416 = vrot.slane %v378, %v415
    %v417 = vlaneseq
    %v418 = vshrl.u32 %v417, 7
    %v419 = vsub.s32 2, %v418
    %v420 = vrot.slane %v378, %v419
    %v421 = vlaneseq
    %v422 = vshrl.u32 %v421, 7
    %v423 = vsub.s32 3, %v422
    %v424 = vrot.slane %v378, %v423
    %v425 = vlaneseq
    %v426 = vshrl.u32 %v425, 7
    %v427 = vsub.s32 4, %v426
    %v428 = vrot.slane %v378, %v427
    %v429 = vlaneseq
    %v430 = vshrl.u32 %v429, 7
    %v431 = vsub.s32 5, %v430
    %v432 = vrot.slane %v378, %v431
    %v433 = vlaneseq
    %v434 = vshrl.u32 %v433, 7
    %v435 = vsub.s32 6, %v434
    %v436 = vrot.slane %v378, %v435
    %v451 = vpack.c.bf16 %v384, %v384
    %v452 = vpack.c.bf16 %v388, %v388
    %v453 = vpack.c.bf16 %v392, %v392
    %v454 = vpack.c.bf16 %v396, %v396
    %v455 = vpack.c.bf16 %v400, %v400
    %v456 = vpack.c.bf16 %v404, %v404
    %v457 = vpack.c.bf16 %v408, %v408
    %v458 = vpack.c.bf16 %v412, %v412
    %v459 = vpack.c.bf16 %v416, %v416
    %v460 = vpack.c.bf16 %v420, %v420
    %v461 = vpack.c.bf16 %v424, %v424
    %v462 = vpack.c.bf16 %v428, %v428
    %v463 = vpack.c.bf16 %v432, %v432
    %v464 = vpack.c.bf16 %v436, %v436
    %v466 = vlaneseq
    %v467 = vshrl.u32 %v466, 7
    %v468 = vsub.s32 0, %v467
    %v469 = vrot.slane %v371, %v468
    %v485 = vunpack.c.l.b16 %v451
    %v486 = vunpack.c.l.b16 %v452
    %v487 = vunpack.c.l.b16 %v453
    %v488 = vunpack.c.l.b16 %v454
    %v489 = vunpack.c.l.b16 %v455
    %v490 = vunpack.c.l.b16 %v456
    %v491 = vunpack.c.l.b16 %v457
    %v492 = vunpack.c.l.b16 %v458
    %v493 = vunpack.c.l.b16 %v459
    %v494 = vunpack.c.l.b16 %v460
    %v495 = vunpack.c.l.b16 %v461
    %v496 = vunpack.c.l.b16 %v462
    %v497 = vunpack.c.l.b16 %v463
    %v498 = vunpack.c.l.b16 %v464
    %v499 = vrot.slane %v492, 7
    %vm500 = vcmask 1041409
    %v501 = vsel %vm500, %v499, %v485
    %v502 = vrot.slane %v493, 7
    %v503 = vsel %vm500, %v502, %v486
    %v504 = vrot.slane %v494, 7
    %v505 = vsel %vm500, %v504, %v487
    %v506 = vrot.slane %v495, 7
    %v507 = vsel %vm500, %v506, %v488
    %v508 = vrot.slane %v496, 7
    %v509 = vsel %vm500, %v508, %v489
    %v510 = vrot.slane %v497, 7
    %v511 = vsel %vm500, %v510, %v490
    %v512 = vrot.slane %v498, 7
    %v513 = vsel %vm500, %v512, %v491
    %v514 = vpack.c.b16 %v501, %v501
    %v515 = vpack.c.b16 %v503, %v503
    %v516 = vpack.c.b16 %v505, %v505
    %v517 = vpack.c.b16 %v507, %v507
    %v518 = vpack.c.b16 %v509, %v509
    %v519 = vpack.c.b16 %v511, %v511
    %v520 = vpack.c.b16 %v513, %v513
    %v625 = vunpack.c.l.b16 %v174
    %v626 = vunpack.c.l.b16 %v175
    %v627 = vunpack.c.l.b16 %v176
    %v628 = vunpack.c.l.b16 %v177
    %v629 = vunpack.c.l.b16 %v178
    %v630 = vunpack.c.l.b16 %v179
    %v631 = vunpack.c.l.b16 %v180
    %v632 = vunpack.c.l.b16 %v181
    %v633 = vunpack.c.l.b16 %v182
    %v634 = vunpack.c.l.b16 %v183
    %v635 = vunpack.c.l.b16 %v184
    %v636 = vunpack.c.l.b16 %v185
    %v637 = vunpack.c.l.b16 %v186
    %v638 = vunpack.c.l.b16 %v187
    %v639 = vunpack.c.l.b16 %v188
    %v640 = vunpack.c.l.b16 %v189
    %v641 = vunpack.c.l.b16 %v190
    %v642 = vunpack.c.l.b16 %v191
    %v643 = vunpack.c.l.b16 %v192
    %v644 = vunpack.c.l.b16 %v193
    %v645 = vunpack.c.l.b16 %v194
    %v646 = vunpack.c.l.b16 %v195
    %v647 = vunpack.c.l.b16 %v196
    %v648 = vunpack.c.l.b16 %v197
    %v649 = vunpack.c.l.b16 %v198
    %v650 = vunpack.c.l.b16 %v199
    %v651 = vunpack.c.l.b16 %v200
    %v652 = vunpack.c.l.b16 %v201
    %v653 = vunpack.c.l.b16 %v202
    %v654 = vunpack.c.l.b16 %v203
    %v655 = vunpack.c.l.b16 %v204
    %v656 = vunpack.c.l.b16 %v205
    %v657 = vunpack.c.l.b16 %v206
    %v658 = vunpack.c.l.b16 %v207
    %v659 = vunpack.c.l.b16 %v208
    %v660 = vunpack.c.l.b16 %v209
    %v661 = vunpack.c.l.b16 %v210
    %v662 = vunpack.c.l.b16 %v211
    %v663 = vunpack.c.l.b16 %v212
    %v664 = vunpack.c.l.b16 %v213
    %v665 = vunpack.c.l.b16 %v214
    %v666 = vunpack.c.l.b16 %v215
    %v667 = vunpack.c.l.b16 %v216
    %v668 = vunpack.c.l.b16 %v217
    %v669 = vunpack.c.l.b16 %v218
    %v670 = vunpack.c.l.b16 %v219
    %v671 = vunpack.c.l.b16 %v220
    %v672 = vunpack.c.l.b16 %v221
    %v673 = vunpack.c.l.b16 %v222
    %v674 = vunpack.c.l.b16 %v223
    %v675 = vunpack.c.l.b16 %v224
    %v676 = vunpack.c.l.b16 %v225
    %v677 = vunpack.c.l.b16 %v226
    %v678 = vunpack.c.l.b16 %v227
    %v679 = vunpack.c.l.b16 %v228
    %v680 = vunpack.c.l.b16 %v229
    %v681 = vunpack.c.l.b16 %v230
    %v682 = vunpack.c.l.b16 %v231
    %v683 = vunpack.c.l.b16 %v232
    %v684 = vunpack.c.l.b16 %v233
    %v685 = vunpack.c.l.b16 %v234
    %v686 = vunpack.c.l.b16 %v235
    %v687 = vunpack.c.l.b16 %v236
    %v688 = vunpack.c.l.b16 %v237
    %v689 = vunpack.c.l.b16 %v238
    %v690 = vunpack.c.l.b16 %v239
    %v691 = vunpack.c.l.b16 %v240
    %v692 = vunpack.c.l.b16 %v241
    %v693 = vunpack.c.l.b16 %v242
    %v694 = vunpack.c.l.b16 %v243
    %v695 = vunpack.c.l.b16 %v244
    %v696 = vunpack.c.l.b16 %v245
    %v697 = vunpack.c.l.b16 %v246
    %v698 = vunpack.c.l.b16 %v247
    %v699 = vunpack.c.l.b16 %v248
    %v700 = vunpack.c.l.b16 %v249
    %v701 = vunpack.c.l.b16 %v250
    %v702 = vunpack.c.l.b16 %v251
    %v703 = vunpack.c.l.b16 %v252
    %v704 = vunpack.c.l.b16 %v253
    %v705 = vunpack.c.l.b16 %v254
    %v706 = vunpack.c.l.b16 %v255
    %v707 = vunpack.c.l.b16 %v256
    %v708 = vunpack.c.l.b16 %v257
    %v709 = vunpack.c.l.b16 %v258
    %v710 = vunpack.c.l.b16 %v259
    %v711 = vunpack.c.l.b16 %v260
    %v712 = vunpack.c.l.b16 %v261
    %v713 = vunpack.c.l.b16 %v262
    %v714 = vunpack.c.l.b16 %v263
    %v715 = vunpack.c.l.b16 %v264
    %v716 = vunpack.c.l.b16 %v265
    %v717 = vunpack.c.l.b16 %v266
    %v718 = vunpack.c.l.b16 %v267
    %v719 = vunpack.c.l.b16 %v268
    %v720 = vunpack.c.l.b16 %v269
    %v721 = vunpack.c.l.b16 %v270
    %v722 = vunpack.c.l.b16 %v271
    %v723 = vpack.c.b16 %v626, %v625
    %v724 = vpack.c.b16 %v628, %v627
    %v725 = vpack.c.b16 %v630, %v629
    %v726 = vpack.c.b16 %v632, %v631
    %v727 = vpack.c.b16 %v634, %v633
    %v728 = vpack.c.b16 %v636, %v635
    %v729 = vpack.c.b16 %v638, %v637
    %v730 = vpack.c.b16 %v640, %v639
    %v731 = vpack.c.b16 %v642, %v641
    %v732 = vpack.c.b16 %v644, %v643
    %v733 = vpack.c.b16 %v646, %v645
    %v734 = vpack.c.b16 %v648, %v647
    %v735 = vpack.c.b16 %v650, %v649
    %v736 = vpack.c.b16 %v652, %v651
    %v737 = vpack.c.b16 %v654, %v653
    %v738 = vpack.c.b16 %v656, %v655
    %v739 = vpack.c.b16 %v658, %v657
    %v740 = vpack.c.b16 %v660, %v659
    %v741 = vpack.c.b16 %v662, %v661
    %v742 = vpack.c.b16 %v664, %v663
    %v743 = vpack.c.b16 %v666, %v665
    %v744 = vpack.c.b16 %v668, %v667
    %v745 = vpack.c.b16 %v670, %v669
    %v746 = vpack.c.b16 %v672, %v671
    %v747 = vpack.c.b16 %v674, %v673
    %v748 = vpack.c.b16 %v676, %v675
    %v749 = vpack.c.b16 %v678, %v677
    %v750 = vpack.c.b16 %v680, %v679
    %v751 = vpack.c.b16 %v682, %v681
    %v752 = vpack.c.b16 %v684, %v683
    %v753 = vpack.c.b16 %v686, %v685
    %v754 = vpack.c.b16 %v688, %v687
    %v755 = vpack.c.b16 %v690, %v689
    %v756 = vpack.c.b16 %v692, %v691
    %v757 = vpack.c.b16 %v694, %v693
    %v758 = vpack.c.b16 %v696, %v695
    %v759 = vpack.c.b16 %v698, %v697
    %v760 = vpack.c.b16 %v700, %v699
    %v761 = vpack.c.b16 %v702, %v701
    %v762 = vpack.c.b16 %v704, %v703
    %v763 = vpack.c.b16 %v706, %v705
    %v764 = vpack.c.b16 %v708, %v707
    %v765 = vpack.c.b16 %v710, %v709
    %v766 = vpack.c.b16 %v712, %v711
    %v767 = vpack.c.b16 %v714, %v713
    %v768 = vpack.c.b16 %v716, %v715
    %v769 = vpack.c.b16 %v718, %v717
    %v770 = vpack.c.b16 %v720, %v719
    %v771 = vpack.c.b16 %v722, %v721
    %vm821 = vcmask 130048
    %v823 = vsel %vm821, %v520, 0
    %825 = vmatprep.subr.bf16.mxu0 0
    %826 = vmatpush1.bf16.msra.mxu0 %v730
    %827 = vmatprep.subr.bf16.mxu0 0
    %828 = vmatpush1.bf16.msra.mxu0 %v729
    %829 = vmatprep.subr.bf16.mxu0 0
    %830 = vmatpush1.bf16.msra.mxu0 %v728
    %831 = vmatprep.subr.bf16.mxu0 0
    %832 = vmatpush1.bf16.msra.mxu0 %v727
    %833 = vmatprep.subr.bf16.mxu0 0
    %834 = vmatpush1.bf16.msra.mxu0 %v726
    %835 = vmatprep.subr.bf16.mxu0 0
    %836 = vmatpush1.bf16.msra.mxu0 %v725
    %837 = vmatprep.subr.bf16.mxu0 0
    %838 = vmatpush1.bf16.msra.mxu0 %v724
    %839 = vmatprep.subr.bf16.mxu0 0
    %840 = vmatpush1.bf16.msra.mxu0 %v723
    %841 = vmatprep.subr.bf16.mxu0 0
    %842 = vmatpush2.bf16.msra.mxu0 %v738
    %843 = vmatprep.subr.bf16.mxu0 0
    %844 = vmatpush2.bf16.msra.mxu0 %v737
    %845 = vmatprep.subr.bf16.mxu0 0
    %846 = vmatpush2.bf16.msra.mxu0 %v736
    %847 = vmatprep.subr.bf16.mxu0 0
    %848 = vmatpush2.bf16.msra.mxu0 %v735
    %849 = vmatprep.subr.bf16.mxu0 0
    %850 = vmatpush2.bf16.msra.mxu0 %v734
    %851 = vmatprep.subr.bf16.mxu0 0
    %852 = vmatpush2.bf16.msra.mxu0 %v733
    %853 = vmatprep.subr.bf16.mxu0 0
    %854 = vmatpush2.bf16.msra.mxu0 %v732
    %855 = vmatprep.subr.bf16.mxu0 0
    %856 = vmatpush2.bf16.msra.mxu0 %v731
    %857 = vmatprep.mubr.bf16.mxu0 %v515
    %858 = vmatmul.mubr.bf16.gmra.mxu0 %v514
    %v859 = vpop.f32.mrf.mxu0
    %v860 = vadd.f32 %v469, %v859
    %v861 = vpop.f32.mrf.mxu0
    %v862 = vpop.f32.mrf.mxu0
    %v863 = vpop.f32.mrf.mxu0
    %864 = vdwg.mxu0
    %865 = vmatprep.subr.bf16.mxu0 0
    %866 = vmatpush1.bf16.msra.mxu0 %v746
    %867 = vmatprep.subr.bf16.mxu0 0
    %868 = vmatpush1.bf16.msra.mxu0 %v745
    %869 = vmatprep.subr.bf16.mxu0 0
    %870 = vmatpush1.bf16.msra.mxu0 %v744
    %871 = vmatprep.subr.bf16.mxu0 0
    %872 = vmatpush1.bf16.msra.mxu0 %v743
    %873 = vmatprep.subr.bf16.mxu0 0
    %874 = vmatpush1.bf16.msra.mxu0 %v742
    %875 = vmatprep.subr.bf16.mxu0 0
    %876 = vmatpush1.bf16.msra.mxu0 %v741
    %877 = vmatprep.subr.bf16.mxu0 0
    %878 = vmatpush1.bf16.msra.mxu0 %v740
    %879 = vmatprep.subr.bf16.mxu0 0
    %880 = vmatpush1.bf16.msra.mxu0 %v739
    %881 = vmatprep.subr.bf16.mxu0 0
    %882 = vmatpush2.bf16.msra.mxu0 %v754
    %883 = vmatprep.subr.bf16.mxu0 0
    %884 = vmatpush2.bf16.msra.mxu0 %v753
    %885 = vmatprep.subr.bf16.mxu0 0
    %886 = vmatpush2.bf16.msra.mxu0 %v752
    %887 = vmatprep.subr.bf16.mxu0 0
    %888 = vmatpush2.bf16.msra.mxu0 %v751
    %889 = vmatprep.subr.bf16.mxu0 0
    %890 = vmatpush2.bf16.msra.mxu0 %v750
    %891 = vmatprep.subr.bf16.mxu0 0
    %892 = vmatpush2.bf16.msra.mxu0 %v749
    %893 = vmatprep.subr.bf16.mxu0 0
    %894 = vmatpush2.bf16.msra.mxu0 %v748
    %895 = vmatprep.subr.bf16.mxu0 0
    %896 = vmatpush2.bf16.msra.mxu0 %v747
    %897 = vmatprep.mubr.bf16.mxu0 %v517
    %898 = vmatmul.mubr.bf16.gmra.mxu0 %v516
    %v899 = vpop.f32.mrf.mxu0
    %v900 = vadd.f32 %v860, %v899
    %v901 = vpop.f32.mrf.mxu0
    %v902 = vpop.f32.mrf.mxu0
    %v903 = vpop.f32.mrf.mxu0
    %904 = vdwg.mxu0
    %905 = vmatprep.subr.bf16.mxu0 0
    %906 = vmatpush1.bf16.msra.mxu0 %v762
    %907 = vmatprep.subr.bf16.mxu0 0
    %908 = vmatpush1.bf16.msra.mxu0 %v761
    %909 = vmatprep.subr.bf16.mxu0 0
    %910 = vmatpush1.bf16.msra.mxu0 %v760
    %911 = vmatprep.subr.bf16.mxu0 0
    %912 = vmatpush1.bf16.msra.mxu0 %v759
    %913 = vmatprep.subr.bf16.mxu0 0
    %914 = vmatpush1.bf16.msra.mxu0 %v758
    %915 = vmatprep.subr.bf16.mxu0 0
    %916 = vmatpush1.bf16.msra.mxu0 %v757
    %917 = vmatprep.subr.bf16.mxu0 0
    %918 = vmatpush1.bf16.msra.mxu0 %v756
    %919 = vmatprep.subr.bf16.mxu0 0
    %920 = vmatpush1.bf16.msra.mxu0 %v755
    %921 = vmatprep.subr.bf16.mxu0 0
    %922 = vmatpush2.bf16.msra.mxu0 %v770
    %923 = vmatprep.subr.bf16.mxu0 0
    %924 = vmatpush2.bf16.msra.mxu0 %v769
    %925 = vmatprep.subr.bf16.mxu0 0
    %926 = vmatpush2.bf16.msra.mxu0 %v768
    %927 = vmatprep.subr.bf16.mxu0 0
    %928 = vmatpush2.bf16.msra.mxu0 %v767
    %929 = vmatprep.subr.bf16.mxu0 0
    %930 = vmatpush2.bf16.msra.mxu0 %v766
    %931 = vmatprep.subr.bf16.mxu0 0
    %932 = vmatpush2.bf16.msra.mxu0 %v765
    %933 = vmatprep.subr.bf16.mxu0 0
    %934 = vmatpush2.bf16.msra.mxu0 %v764
    %935 = vmatprep.subr.bf16.mxu0 0
    %936 = vmatpush2.bf16.msra.mxu0 %v763
    %937 = vmatprep.mubr.bf16.mxu0 %v519
    %938 = vmatmul.mubr.bf16.gmra.mxu0 %v518
    %v939 = vpop.f32.mrf.mxu0
    %v940 = vadd.f32 %v900, %v939
    %v941 = vpop.f32.mrf.mxu0
    %v942 = vpop.f32.mrf.mxu0
    %v943 = vpop.f32.mrf.mxu0
    %944 = vdwg.mxu0
    %945 = vmatprep.subr.bf16.mxu0 0
    %946 = vmatpush1.bf16.msra.mxu0 0
    %947 = vmatprep.subr.bf16.mxu0 0
    %948 = vmatpush1.bf16.msra.mxu0 0
    %949 = vmatprep.subr.bf16.mxu0 0
    %950 = vmatpush1.bf16.msra.mxu0 0
    %951 = vmatprep.subr.bf16.mxu0 0
    %952 = vmatpush1.bf16.msra.mxu0 0
    %953 = vmatprep.subr.bf16.mxu0 0
    %954 = vmatpush1.bf16.msra.mxu0 0
    %955 = vmatprep.subr.bf16.mxu0 0
    %956 = vmatpush1.bf16.msra.mxu0 0
    %957 = vmatprep.subr.bf16.mxu0 0
    %958 = vmatpush1.bf16.msra.mxu0 0
    %959 = vmatprep.subr.bf16.mxu0 0
    %960 = vmatpush1.bf16.msra.mxu0 %v771
    %961 = vmatprep.subr.bf16.mxu0 0
    %962 = vmatpush2.bf16.msra.mxu0 0
    %963 = vmatprep.subr.bf16.mxu0 0
    %964 = vmatpush2.bf16.msra.mxu0 0
    %965 = vmatprep.subr.bf16.mxu0 0
    %966 = vmatpush2.bf16.msra.mxu0 0
    %967 = vmatprep.subr.bf16.mxu0 0
    %968 = vmatpush2.bf16.msra.mxu0 0
    %969 = vmatprep.subr.bf16.mxu0 0
    %970 = vmatpush2.bf16.msra.mxu0 0
    %971 = vmatprep.subr.bf16.mxu0 0
    %972 = vmatpush2.bf16.msra.mxu0 0
    %973 = vmatprep.subr.bf16.mxu0 0
    %974 = vmatpush2.bf16.msra.mxu0 0
    %975 = vmatprep.subr.bf16.mxu0 0
    %976 = vmatpush2.bf16.msra.mxu0 0
    %977 = vmatprep.mubr.bf16.mxu0 0
    %978 = vmatmul.mubr.bf16.gmra.mxu0 %v823
    %v979 = vpop.f32.mrf.mxu0
    %v980 = vadd.f32 %v940, %v979
    %v981 = vpop.f32.mrf.mxu0
    %v982 = vpop.f32.mrf.mxu0
    %v983 = vpop.f32.mrf.mxu0
    %984 = vdwg.mxu0
    %v985 = vmax.f32 %v980, 0.0
    %v986 = vadd.f32 %v985, 0.0
    %s987 = scalar_lea.vmem %s2, 1
    %v988 = vld [vmem:[%s987] ss:$8 sm:$0xf]
    %v989 = vld [vmem:[%s987] ss:$8 sm:$0x70]
    %v990 = vor.u32 %v988, %v989
    %s991 = scalar_lea.vmem %s2, 57
    %v992 = vld [vmem:[%s991] ss:$8 sm:$0xf]
    %v993 = vld [vmem:[%s991] ss:$8 sm:$0x70]
    %v994 = vor.u32 %v992, %v993
    %v997 = vlaneseq
    %v998 = vshrl.u32 %v997, 7
    %v999 = vsub.s32 0, %v998
    %v1000 = vrot.slane %v990, %v999
    %v1001 = vlaneseq
    %v1002 = vshrl.u32 %v1001, 7
    %v1003 = vsub.s32 1, %v1002
    %v1004 = vrot.slane %v990, %v1003
    %v1005 = vlaneseq
    %v1006 = vshrl.u32 %v1005, 7
    %v1007 = vsub.s32 2, %v1006
    %v1008 = vrot.slane %v990, %v1007
    %v1009 = vlaneseq
    %v1010 = vshrl.u32 %v1009, 7
    %v1011 = vsub.s32 3, %v1010
    %v1012 = vrot.slane %v990, %v1011
    %v1013 = vlaneseq
    %v1014 = vshrl.u32 %v1013, 7
    %v1015 = vsub.s32 4, %v1014
    %v1016 = vrot.slane %v990, %v1015
    %v1017 = vlaneseq
    %v1018 = vshrl.u32 %v1017, 7
    %v1019 = vsub.s32 5, %v1018
    %v1020 = vrot.slane %v990, %v1019
    %v1021 = vlaneseq
    %v1022 = vshrl.u32 %v1021, 7
    %v1023 = vsub.s32 6, %v1022
    %v1024 = vrot.slane %v990, %v1023
    %v1025 = vlaneseq
    %v1026 = vshrl.u32 %v1025, 7
    %v1027 = vsub.s32 0, %v1026
    %v1028 = vrot.slane %v994, %v1027
    %v1029 = vlaneseq
    %v1030 = vshrl.u32 %v1029, 7
    %v1031 = vsub.s32 1, %v1030
    %v1032 = vrot.slane %v994, %v1031
    %v1033 = vlaneseq
    %v1034 = vshrl.u32 %v1033, 7
    %v1035 = vsub.s32 2, %v1034
    %v1036 = vrot.slane %v994, %v1035
    %v1037 = vlaneseq
    %v1038 = vshrl.u32 %v1037, 7
    %v1039 = vsub.s32 3, %v1038
    %v1040 = vrot.slane %v994, %v1039
    %v1041 = vlaneseq
    %v1042 = vshrl.u32 %v1041, 7
    %v1043 = vsub.s32 4, %v1042
    %v1044 = vrot.slane %v994, %v1043
    %v1045 = vlaneseq
    %v1046 = vshrl.u32 %v1045, 7
    %v1047 = vsub.s32 5, %v1046
    %v1048 = vrot.slane %v994, %v1047
    %v1049 = vlaneseq
    %v1050 = vshrl.u32 %v1049, 7
    %v1051 = vsub.s32 6, %v1050
    %v1052 = vrot.slane %v994, %v1051
    %v1067 = vpack.c.bf16 %v1000, %v1000
    %v1068 = vpack.c.bf16 %v1004, %v1004
    %v1069 = vpack.c.bf16 %v1008, %v1008
    %v1070 = vpack.c.bf16 %v1012, %v1012
    %v1071 = vpack.c.bf16 %v1016, %v1016
    %v1072 = vpack.c.bf16 %v1020, %v1020
    %v1073 = vpack.c.bf16 %v1024, %v1024
    %v1074 = vpack.c.bf16 %v1028, %v1028
    %v1075 = vpack.c.bf16 %v1032, %v1032
    %v1076 = vpack.c.bf16 %v1036, %v1036
    %v1077 = vpack.c.bf16 %v1040, %v1040
    %v1078 = vpack.c.bf16 %v1044, %v1044
    %v1079 = vpack.c.bf16 %v1048, %v1048
    %v1080 = vpack.c.bf16 %v1052, %v1052
    %v1095 = vunpack.c.l.b16 %v1067
    %v1096 = vunpack.c.l.b16 %v1068
    %v1097 = vunpack.c.l.b16 %v1069
    %v1098 = vunpack.c.l.b16 %v1070
    %v1099 = vunpack.c.l.b16 %v1071
    %v1100 = vunpack.c.l.b16 %v1072
    %v1101 = vunpack.c.l.b16 %v1073
    %v1102 = vunpack.c.l.b16 %v1074
    %v1103 = vunpack.c.l.b16 %v1075
    %v1104 = vunpack.c.l.b16 %v1076
    %v1105 = vunpack.c.l.b16 %v1077
    %v1106 = vunpack.c.l.b16 %v1078
    %v1107 = vunpack.c.l.b16 %v1079
    %v1108 = vunpack.c.l.b16 %v1080
    %v1109 = vrot.slane %v1102, 7
    %v1110 = vsel %vm500, %v1109, %v1095
    %v1111 = vrot.slane %v1103, 7
    %v1112 = vsel %vm500, %v1111, %v1096
    %v1113 = vrot.slane %v1104, 7
    %v1114 = vsel %vm500, %v1113, %v1097
    %v1115 = vrot.slane %v1105, 7
    %v1116 = vsel %vm500, %v1115, %v1098
    %v1117 = vrot.slane %v1106, 7
    %v1118 = vsel %vm500, %v1117, %v1099
    %v1119 = vrot.slane %v1107, 7
    %v1120 = vsel %vm500, %v1119, %v1100
    %v1121 = vrot.slane %v1108, 7
    %v1122 = vsel %vm500, %v1121, %v1101
    %v1123 = vpack.c.b16 %v1110, %v1110
    %v1124 = vpack.c.b16 %v1112, %v1112
    %v1125 = vpack.c.b16 %v1114, %v1114
    %v1126 = vpack.c.b16 %v1116, %v1116
    %v1127 = vpack.c.b16 %v1118, %v1118
    %v1128 = vpack.c.b16 %v1120, %v1120
    %v1129 = vpack.c.b16 %v1122, %v1122
    %v1137 = vsel %vm821, %v1129, 0
    %1139 = vmatprep.subr.bf16.mxu0 0
    %1140 = vmatpush1.bf16.msra.mxu0 %v730
    %1141 = vmatprep.subr.bf16.mxu0 0
    %1142 = vmatpush1.bf16.msra.mxu0 %v729
    %1143 = vmatprep.subr.bf16.mxu0 0
    %1144 = vmatpush1.bf16.msra.mxu0 %v728
    %1145 = vmatprep.subr.bf16.mxu0 0
    %1146 = vmatpush1.bf16.msra.mxu0 %v727
    %1147 = vmatprep.subr.bf16.mxu0 0
    %1148 = vmatpush1.bf16.msra.mxu0 %v726
    %1149 = vmatprep.subr.bf16.mxu0 0
    %1150 = vmatpush1.bf16.msra.mxu0 %v725
    %1151 = vmatprep.subr.bf16.mxu0 0
    %1152 = vmatpush1.bf16.msra.mxu0 %v724
    %1153 = vmatprep.subr.bf16.mxu0 0
    %1154 = vmatpush1.bf16.msra.mxu0 %v723
    %1155 = vmatprep.subr.bf16.mxu0 0
    %1156 = vmatpush2.bf16.msra.mxu0 %v738
    %1157 = vmatprep.subr.bf16.mxu0 0
    %1158 = vmatpush2.bf16.msra.mxu0 %v737
    %1159 = vmatprep.subr.bf16.mxu0 0
    %1160 = vmatpush2.bf16.msra.mxu0 %v736
    %1161 = vmatprep.subr.bf16.mxu0 0
    %1162 = vmatpush2.bf16.msra.mxu0 %v735
    %1163 = vmatprep.subr.bf16.mxu0 0
    %1164 = vmatpush2.bf16.msra.mxu0 %v734
    %1165 = vmatprep.subr.bf16.mxu0 0
    %1166 = vmatpush2.bf16.msra.mxu0 %v733
    %1167 = vmatprep.subr.bf16.mxu0 0
    %1168 = vmatpush2.bf16.msra.mxu0 %v732
    %1169 = vmatprep.subr.bf16.mxu0 0
    %1170 = vmatpush2.bf16.msra.mxu0 %v731
    %1171 = vmatprep.mubr.bf16.mxu0 %v1124
    %1172 = vmatmul.mubr.bf16.gmra.mxu0 %v1123
    %v1173 = vpop.f32.mrf.mxu0
    %v1174 = vadd.f32 %v469, %v1173
    %v1175 = vpop.f32.mrf.mxu0
    %v1176 = vpop.f32.mrf.mxu0
    %v1177 = vpop.f32.mrf.mxu0
    %1178 = vdwg.mxu0
    %1179 = vmatprep.subr.bf16.mxu0 0
    %1180 = vmatpush1.bf16.msra.mxu0 %v746
    %1181 = vmatprep.subr.bf16.mxu0 0
    %1182 = vmatpush1.bf16.msra.mxu0 %v745
    %1183 = vmatprep.subr.bf16.mxu0 0
    %1184 = vmatpush1.bf16.msra.mxu0 %v744
    %1185 = vmatprep.subr.bf16.mxu0 0
    %1186 = vmatpush1.bf16.msra.mxu0 %v743
    %1187 = vmatprep.subr.bf16.mxu0 0
    %1188 = vmatpush1.bf16.msra.mxu0 %v742
    %1189 = vmatprep.subr.bf16.mxu0 0
    %1190 = vmatpush1.bf16.msra.mxu0 %v741
    %1191 = vmatprep.subr.bf16.mxu0 0
    %1192 = vmatpush1.bf16.msra.mxu0 %v740
    %1193 = vmatprep.subr.bf16.mxu0 0
    %1194 = vmatpush1.bf16.msra.mxu0 %v739
    %1195 = vmatprep.subr.bf16.mxu0 0
    %1196 = vmatpush2.bf16.msra.mxu0 %v754
    %1197 = vmatprep.subr.bf16.mxu0 0
    %1198 = vmatpush2.bf16.msra.mxu0 %v753
    %1199 = vmatprep.subr.bf16.mxu0 0
    %1200 = vmatpush2.bf16.msra.mxu0 %v752
    %1201 = vmatprep.subr.bf16.mxu0 0
    %1202 = vmatpush2.bf16.msra.mxu0 %v751
    %1203 = vmatprep.subr.bf16.mxu0 0
    %1204 = vmatpush2.bf16.msra.mxu0 %v750
    %1205 = vmatprep.subr.bf16.mxu0 0
    %1206 = vmatpush2.bf16.msra.mxu0 %v749
    %1207 = vmatprep.subr.bf16.mxu0 0
    %1208 = vmatpush2.bf16.msra.mxu0 %v748
    %1209 = vmatprep.subr.bf16.mxu0 0
    %1210 = vmatpush2.bf16.msra.mxu0 %v747
    %1211 = vmatprep.mubr.bf16.mxu0 %v1126
    %1212 = vmatmul.mubr.bf16.gmra.mxu0 %v1125
    %v1213 = vpop.f32.mrf.mxu0
    %v1214 = vadd.f32 %v1174, %v1213
    %v1215 = vpop.f32.mrf.mxu0
    %v1216 = vpop.f32.mrf.mxu0
    %v1217 = vpop.f32.mrf.mxu0
    %1218 = vdwg.mxu0
    %1219 = vmatprep.subr.bf16.mxu0 0
    %1220 = vmatpush1.bf16.msra.mxu0 %v762
    %1221 = vmatprep.subr.bf16.mxu0 0
    %1222 = vmatpush1.bf16.msra.mxu0 %v761
    %1223 = vmatprep.subr.bf16.mxu0 0
    %1224 = vmatpush1.bf16.msra.mxu0 %v760
    %1225 = vmatprep.subr.bf16.mxu0 0
    %1226 = vmatpush1.bf16.msra.mxu0 %v759
    %1227 = vmatprep.subr.bf16.mxu0 0
    %1228 = vmatpush1.bf16.msra.mxu0 %v758
    %1229 = vmatprep.subr.bf16.mxu0 0
    %1230 = vmatpush1.bf16.msra.mxu0 %v757
    %1231 = vmatprep.subr.bf16.mxu0 0
    %1232 = vmatpush1.bf16.msra.mxu0 %v756
    %1233 = vmatprep.subr.bf16.mxu0 0
    %1234 = vmatpush1.bf16.msra.mxu0 %v755
    %1235 = vmatprep.subr.bf16.mxu0 0
    %1236 = vmatpush2.bf16.msra.mxu0 %v770
    %1237 = vmatprep.subr.bf16.mxu0 0
    %1238 = vmatpush2.bf16.msra.mxu0 %v769
    %1239 = vmatprep.subr.bf16.mxu0 0
    %1240 = vmatpush2.bf16.msra.mxu0 %v768
    %1241 = vmatprep.subr.bf16.mxu0 0
    %1242 = vmatpush2.bf16.msra.mxu0 %v767
    %1243 = vmatprep.subr.bf16.mxu0 0
    %1244 = vmatpush2.bf16.msra.mxu0 %v766
    %1245 = vmatprep.subr.bf16.mxu0 0
    %1246 = vmatpush2.bf16.msra.mxu0 %v765
    %1247 = vmatprep.subr.bf16.mxu0 0
    %1248 = vmatpush2.bf16.msra.mxu0 %v764
    %1249 = vmatprep.subr.bf16.mxu0 0
    %1250 = vmatpush2.bf16.msra.mxu0 %v763
    %1251 = vmatprep.mubr.bf16.mxu0 %v1128
    %1252 = vmatmul.mubr.bf16.gmra.mxu0 %v1127
    %v1253 = vpop.f32.mrf.mxu0
    %v1254 = vadd.f32 %v1214, %v1253
    %v1255 = vpop.f32.mrf.mxu0
    %v1256 = vpop.f32.mrf.mxu0
    %v1257 = vpop.f32.mrf.mxu0
    %1258 = vdwg.mxu0
    %1259 = vmatprep.subr.bf16.mxu0 0
    %1260 = vmatpush1.bf16.msra.mxu0 0
    %1261 = vmatprep.subr.bf16.mxu0 0
    %1262 = vmatpush1.bf16.msra.mxu0 0
    %1263 = vmatprep.subr.bf16.mxu0 0
    %1264 = vmatpush1.bf16.msra.mxu0 0
    %1265 = vmatprep.subr.bf16.mxu0 0
    %1266 = vmatpush1.bf16.msra.mxu0 0
    %1267 = vmatprep.subr.bf16.mxu0 0
    %1268 = vmatpush1.bf16.msra.mxu0 0
    %1269 = vmatprep.subr.bf16.mxu0 0
    %1270 = vmatpush1.bf16.msra.mxu0 0
    %1271 = vmatprep.subr.bf16.mxu0 0
    %1272 = vmatpush1.bf16.msra.mxu0 0
    %1273 = vmatprep.subr.bf16.mxu0 0
    %1274 = vmatpush1.bf16.msra.mxu0 %v771
    %1275 = vmatprep.subr.bf16.mxu0 0
    %1276 = vmatpush2.bf16.msra.mxu0 0
    %1277 = vmatprep.subr.bf16.mxu0 0
    %1278 = vmatpush2.bf16.msra.mxu0 0
    %1279 = vmatprep.subr.bf16.mxu0 0
    %1280 = vmatpush2.bf16.msra.mxu0 0
    %1281 = vmatprep.subr.bf16.mxu0 0
    %1282 = vmatpush2.bf16.msra.mxu0 0
    %1283 = vmatprep.subr.bf16.mxu0 0
    %1284 = vmatpush2.bf16.msra.mxu0 0
    %1285 = vmatprep.subr.bf16.mxu0 0
    %1286 = vmatpush2.bf16.msra.mxu0 0
    %1287 = vmatprep.subr.bf16.mxu0 0
    %1288 = vmatpush2.bf16.msra.mxu0 0
    %1289 = vmatprep.subr.bf16.mxu0 0
    %1290 = vmatpush2.bf16.msra.mxu0 0
    %1291 = vmatprep.mubr.bf16.mxu0 0
    %1292 = vmatmul.mubr.bf16.gmra.mxu0 %v1137
    %v1293 = vpop.f32.mrf.mxu0
    %v1294 = vadd.f32 %v1254, %v1293
    %v1295 = vpop.f32.mrf.mxu0
    %v1296 = vpop.f32.mrf.mxu0
    %v1297 = vpop.f32.mrf.mxu0
    %1298 = vdwg.mxu0
    %v1299 = vmax.f32 %v1294, 0.0
    %v1300 = vadd.f32 %v986, %v1299
    %s1301 = scalar_lea.vmem %s2, 2
    %v1302 = vld [vmem:[%s1301] ss:$8 sm:$0xf]
    %v1303 = vld [vmem:[%s1301] ss:$8 sm:$0x70]
    %v1304 = vor.u32 %v1302, %v1303
    %s1305 = scalar_lea.vmem %s2, 58
    %v1306 = vld [vmem:[%s1305] ss:$8 sm:$0xf]
    %v1307 = vld [vmem:[%s1305] ss:$8 sm:$0x70]
    %v1308 = vor.u32 %v1306, %v1307
    %v1311 = vlaneseq
    %v1312 = vshrl.u32 %v1311, 7
    %v1313 = vsub.s32 0, %v1312
    %v1314 = vrot.slane %v1304, %v1313
    %v1315 = vlaneseq
    %v1316 = vshrl.u32 %v1315, 7
    %v1317 = vsub.s32 1, %v1316
    %v1318 = vrot.slane %v1304, %v1317
    %v1319 = vlaneseq
    %v1320 = vshrl.u32 %v1319, 7
    %v1321 = vsub.s32 2, %v1320
    %v1322 = vrot.slane %v1304, %v1321
    %v1323 = vlaneseq
    %v1324 = vshrl.u32 %v1323, 7
    %v1325 = vsub.s32 3, %v1324
    %v1326 = vrot.slane %v1304, %v1325
    %v1327 = vlaneseq
    %v1328 = vshrl.u32 %v1327, 7
    %v1329 = vsub.s32 4, %v1328
    %v1330 = vrot.slane %v1304, %v1329
    %v1331 = vlaneseq
    %v1332 = vshrl.u32 %v1331, 7
    %v1333 = vsub.s32 5, %v1332
    %v1334 = vrot.slane %v1304, %v1333
    %v1335 = vlaneseq
    %v1336 = vshrl.u32 %v1335, 7
    %v1337 = vsub.s32 6, %v1336
    %v1338 = vrot.slane %v1304, %v1337
    %v1339 = vlaneseq
    %v1340 = vshrl.u32 %v1339, 7
    %v1341 = vsub.s32 0, %v1340
    %v1342 = vrot.slane %v1308, %v1341
    %v1343 = vlaneseq
    %v1344 = vshrl.u32 %v1343, 7
    %v1345 = vsub.s32 1, %v1344
    %v1346 = vrot.slane %v1308, %v1345
    %v1347 = vlaneseq
    %v1348 = vshrl.u32 %v1347, 7
    %v1349 = vsub.s32 2, %v1348
    %v1350 = vrot.slane %v1308, %v1349
    %v1351 = vlaneseq
    %v1352 = vshrl.u32 %v1351, 7
    %v1353 = vsub.s32 3, %v1352
    %v1354 = vrot.slane %v1308, %v1353
    %v1355 = vlaneseq
    %v1356 = vshrl.u32 %v1355, 7
    %v1357 = vsub.s32 4, %v1356
    %v1358 = vrot.slane %v1308, %v1357
    %v1359 = vlaneseq
    %v1360 = vshrl.u32 %v1359, 7
    %v1361 = vsub.s32 5, %v1360
    %v1362 = vrot.slane %v1308, %v1361
    %v1363 = vlaneseq
    %v1364 = vshrl.u32 %v1363, 7
    %v1365 = vsub.s32 6, %v1364
    %v1366 = vrot.slane %v1308, %v1365
    %v1381 = vpack.c.bf16 %v1314, %v1314
    %v1382 = vpack.c.bf16 %v1318, %v1318
    %v1383 = vpack.c.bf16 %v1322, %v1322
    %v1384 = vpack.c.bf16 %v1326, %v1326
    %v1385 = vpack.c.bf16 %v1330, %v1330
    %v1386 = vpack.c.bf16 %v1334, %v1334
    %v1387 = vpack.c.bf16 %v1338, %v1338
    %v1388 = vpack.c.bf16 %v1342, %v1342
    %v1389 = vpack.c.bf16 %v1346, %v1346
    %v1390 = vpack.c.bf16 %v1350, %v1350
    %v1391 = vpack.c.bf16 %v1354, %v1354
    %v1392 = vpack.c.bf16 %v1358, %v1358
    %v1393 = vpack.c.bf16 %v1362, %v1362
    %v1394 = vpack.c.bf16 %v1366, %v1366
    %v1409 = vunpack.c.l.b16 %v1381
    %v1410 = vunpack.c.l.b16 %v1382
    %v1411 = vunpack.c.l.b16 %v1383
    %v1412 = vunpack.c.l.b16 %v1384
    %v1413 = vunpack.c.l.b16 %v1385
    %v1414 = vunpack.c.l.b16 %v1386
    %v1415 = vunpack.c.l.b16 %v1387
    %v1416 = vunpack.c.l.b16 %v1388
    %v1417 = vunpack.c.l.b16 %v1389
    %v1418 = vunpack.c.l.b16 %v1390
    %v1419 = vunpack.c.l.b16 %v1391
    %v1420 = vunpack.c.l.b16 %v1392
    %v1421 = vunpack.c.l.b16 %v1393
    %v1422 = vunpack.c.l.b16 %v1394
    %v1423 = vrot.slane %v1416, 7
    %v1424 = vsel %vm500, %v1423, %v1409
    %v1425 = vrot.slane %v1417, 7
    %v1426 = vsel %vm500, %v1425, %v1410
    %v1427 = vrot.slane %v1418, 7
    %v1428 = vsel %vm500, %v1427, %v1411
    %v1429 = vrot.slane %v1419, 7
    %v1430 = vsel %vm500, %v1429, %v1412
    %v1431 = vrot.slane %v1420, 7
    %v1432 = vsel %vm500, %v1431, %v1413
    %v1433 = vrot.slane %v1421, 7
    %v1434 = vsel %vm500, %v1433, %v1414
    %v1435 = vrot.slane %v1422, 7
    %v1436 = vsel %vm500, %v1435, %v1415
    %v1437 = vpack.c.b16 %v1424, %v1424
    %v1438 = vpack.c.b16 %v1426, %v1426
    %v1439 = vpack.c.b16 %v1428, %v1428
    %v1440 = vpack.c.b16 %v1430, %v1430
    %v1441 = vpack.c.b16 %v1432, %v1432
    %v1442 = vpack.c.b16 %v1434, %v1434
    %v1443 = vpack.c.b16 %v1436, %v1436
    %v1451 = vsel %vm821, %v1443, 0
    %1453 = vmatprep.subr.bf16.mxu0 0
    %1454 = vmatpush1.bf16.msra.mxu0 %v730
    %1455 = vmatprep.subr.bf16.mxu0 0
    %1456 = vmatpush1.bf16.msra.mxu0 %v729
    %1457 = vmatprep.subr.bf16.mxu0 0
    %1458 = vmatpush1.bf16.msra.mxu0 %v728
    %1459 = vmatprep.subr.bf16.mxu0 0
    %1460 = vmatpush1.bf16.msra.mxu0 %v727
    %1461 = vmatprep.subr.bf16.mxu0 0
    %1462 = vmatpush1.bf16.msra.mxu0 %v726
    %1463 = vmatprep.subr.bf16.mxu0 0
    %1464 = vmatpush1.bf16.msra.mxu0 %v725
    %1465 = vmatprep.subr.bf16.mxu0 0
    %1466 = vmatpush1.bf16.msra.mxu0 %v724
    %1467 = vmatprep.subr.bf16.mxu0 0
    %1468 = vmatpush1.bf16.msra.mxu0 %v723
    %1469 = vmatprep.subr.bf16.mxu0 0
    %1470 = vmatpush2.bf16.msra.mxu0 %v738
    %1471 = vmatprep.subr.bf16.mxu0 0
    %1472 = vmatpush2.bf16.msra.mxu0 %v737
    %1473 = vmatprep.subr.bf16.mxu0 0
    %1474 = vmatpush2.bf16.msra.mxu0 %v736
    %1475 = vmatprep.subr.bf16.mxu0 0
    %1476 = vmatpush2.bf16.msra.mxu0 %v735
    %1477 = vmatprep.subr.bf16.mxu0 0
    %1478 = vmatpush2.bf16.msra.mxu0 %v734
    %1479 = vmatprep.subr.bf16.mxu0 0
    %1480 = vmatpush2.bf16.msra.mxu0 %v733
    %1481 = vmatprep.subr.bf16.mxu0 0
    %1482 = vmatpush2.bf16.msra.mxu0 %v732
    %1483 = vmatprep.subr.bf16.mxu0 0
    %1484 = vmatpush2.bf16.msra.mxu0 %v731
    %1485 = vmatprep.mubr.bf16.mxu0 %v1438
    %1486 = vmatmul.mubr.bf16.gmra.mxu0 %v1437
    %v1487 = vpop.f32.mrf.mxu0
    %v1488 = vadd.f32 %v469, %v1487
    %v1489 = vpop.f32.mrf.mxu0
    %v1490 = vpop.f32.mrf.mxu0
    %v1491 = vpop.f32.mrf.mxu0
    %1492 = vdwg.mxu0
    %1493 = vmatprep.subr.bf16.mxu0 0
    %1494 = vmatpush1.bf16.msra.mxu0 %v746
    %1495 = vmatprep.subr.bf16.mxu0 0
    %1496 = vmatpush1.bf16.msra.mxu0 %v745
    %1497 = vmatprep.subr.bf16.mxu0 0
    %1498 = vmatpush1.bf16.msra.mxu0 %v744
    %1499 = vmatprep.subr.bf16.mxu0 0
    %1500 = vmatpush1.bf16.msra.mxu0 %v743
    %1501 = vmatprep.subr.bf16.mxu0 0
    %1502 = vmatpush1.bf16.msra.mxu0 %v742
    %1503 = vmatprep.subr.bf16.mxu0 0
    %1504 = vmatpush1.bf16.msra.mxu0 %v741
    %1505 = vmatprep.subr.bf16.mxu0 0
    %1506 = vmatpush1.bf16.msra.mxu0 %v740
    %1507 = vmatprep.subr.bf16.mxu0 0
    %1508 = vmatpush1.bf16.msra.mxu0 %v739
    %1509 = vmatprep.subr.bf16.mxu0 0
    %1510 = vmatpush2.bf16.msra.mxu0 %v754
    %1511 = vmatprep.subr.bf16.mxu0 0
    %1512 = vmatpush2.bf16.msra.mxu0 %v753
    %1513 = vmatprep.subr.bf16.mxu0 0
    %1514 = vmatpush2.bf16.msra.mxu0 %v752
    %1515 = vmatprep.subr.bf16.mxu0 0
    %1516 = vmatpush2.bf16.msra.mxu0 %v751
    %1517 = vmatprep.subr.bf16.mxu0 0
    %1518 = vmatpush2.bf16.msra.mxu0 %v750
    %1519 = vmatprep.subr.bf16.mxu0 0
    %1520 = vmatpush2.bf16.msra.mxu0 %v749
    %1521 = vmatprep.subr.bf16.mxu0 0
    %1522 = vmatpush2.bf16.msra.mxu0 %v748
    %1523 = vmatprep.subr.bf16.mxu0 0
    %1524 = vmatpush2.bf16.msra.mxu0 %v747
    %1525 = vmatprep.mubr.bf16.mxu0 %v1440
    %1526 = vmatmul.mubr.bf16.gmra.mxu0 %v1439
    %v1527 = vpop.f32.mrf.mxu0
    %v1528 = vadd.f32 %v1488, %v1527
    %v1529 = vpop.f32.mrf.mxu0
    %v1530 = vpop.f32.mrf.mxu0
    %v1531 = vpop.f32.mrf.mxu0
    %1532 = vdwg.mxu0
    %1533 = vmatprep.subr.bf16.mxu0 0
    %1534 = vmatpush1.bf16.msra.mxu0 %v762
    %1535 = vmatprep.subr.bf16.mxu0 0
    %1536 = vmatpush1.bf16.msra.mxu0 %v761
    %1537 = vmatprep.subr.bf16.mxu0 0
    %1538 = vmatpush1.bf16.msra.mxu0 %v760
    %1539 = vmatprep.subr.bf16.mxu0 0
    %1540 = vmatpush1.bf16.msra.mxu0 %v759
    %1541 = vmatprep.subr.bf16.mxu0 0
    %1542 = vmatpush1.bf16.msra.mxu0 %v758
    %1543 = vmatprep.subr.bf16.mxu0 0
    %1544 = vmatpush1.bf16.msra.mxu0 %v757
    %1545 = vmatprep.subr.bf16.mxu0 0
    %1546 = vmatpush1.bf16.msra.mxu0 %v756
    %1547 = vmatprep.subr.bf16.mxu0 0
    %1548 = vmatpush1.bf16.msra.mxu0 %v755
    %1549 = vmatprep.subr.bf16.mxu0 0
    %1550 = vmatpush2.bf16.msra.mxu0 %v770
    %1551 = vmatprep.subr.bf16.mxu0 0
    %1552 = vmatpush2.bf16.msra.mxu0 %v769
    %1553 = vmatprep.subr.bf16.mxu0 0
    %1554 = vmatpush2.bf16.msra.mxu0 %v768
    %1555 = vmatprep.subr.bf16.mxu0 0
    %1556 = vmatpush2.bf16.msra.mxu0 %v767
    %1557 = vmatprep.subr.bf16.mxu0 0
    %1558 = vmatpush2.bf16.msra.mxu0 %v766
    %1559 = vmatprep.subr.bf16.mxu0 0
    %1560 = vmatpush2.bf16.msra.mxu0 %v765
    %1561 = vmatprep.subr.bf16.mxu0 0
    %1562 = vmatpush2.bf16.msra.mxu0 %v764
    %1563 = vmatprep.subr.bf16.mxu0 0
    %1564 = vmatpush2.bf16.msra.mxu0 %v763
    %1565 = vmatprep.mubr.bf16.mxu0 %v1442
    %1566 = vmatmul.mubr.bf16.gmra.mxu0 %v1441
    %v1567 = vpop.f32.mrf.mxu0
    %v1568 = vadd.f32 %v1528, %v1567
    %v1569 = vpop.f32.mrf.mxu0
    %v1570 = vpop.f32.mrf.mxu0
    %v1571 = vpop.f32.mrf.mxu0
    %1572 = vdwg.mxu0
    %1573 = vmatprep.subr.bf16.mxu0 0
    %1574 = vmatpush1.bf16.msra.mxu0 0
    %1575 = vmatprep.subr.bf16.mxu0 0
    %1576 = vmatpush1.bf16.msra.mxu0 0
    %1577 = vmatprep.subr.bf16.mxu0 0
    %1578 = vmatpush1.bf16.msra.mxu0 0
    %1579 = vmatprep.subr.bf16.mxu0 0
    %1580 = vmatpush1.bf16.msra.mxu0 0
    %1581 = vmatprep.subr.bf16.mxu0 0
    %1582 = vmatpush1.bf16.msra.mxu0 0
    %1583 = vmatprep.subr.bf16.mxu0 0
    %1584 = vmatpush1.bf16.msra.mxu0 0
    %1585 = vmatprep.subr.bf16.mxu0 0
    %1586 = vmatpush1.bf16.msra.mxu0 0
    %1587 = vmatprep.subr.bf16.mxu0 0
    %1588 = vmatpush1.bf16.msra.mxu0 %v771
    %1589 = vmatprep.subr.bf16.mxu0 0
    %1590 = vmatpush2.bf16.msra.mxu0 0
    %1591 = vmatprep.subr.bf16.mxu0 0
    %1592 = vmatpush2.bf16.msra.mxu0 0
    %1593 = vmatprep.subr.bf16.mxu0 0
    %1594 = vmatpush2.bf16.msra.mxu0 0
    %1595 = vmatprep.subr.bf16.mxu0 0
    %1596 = vmatpush2.bf16.msra.mxu0 0
    %1597 = vmatprep.subr.bf16.mxu0 0
    %1598 = vmatpush2.bf16.msra.mxu0 0
    %1599 = vmatprep.subr.bf16.mxu0 0
    %1600 = vmatpush2.bf16.msra.mxu0 0
    %1601 = vmatprep.subr.bf16.mxu0 0
    %1602 = vmatpush2.bf16.msra.mxu0 0
    %1603 = vmatprep.subr.bf16.mxu0 0
    %1604 = vmatpush2.bf16.msra.mxu0 0
    %1605 = vmatprep.mubr.bf16.mxu0 0
    %1606 = vmatmul.mubr.bf16.gmra.mxu0 %v1451
    %v1607 = vpop.f32.mrf.mxu0
    %v1608 = vadd.f32 %v1568, %v1607
    %v1609 = vpop.f32.mrf.mxu0
    %v1610 = vpop.f32.mrf.mxu0
    %v1611 = vpop.f32.mrf.mxu0
    %1612 = vdwg.mxu0
    %v1613 = vmax.f32 %v1608, 0.0
    %v1614 = vadd.f32 %v1300, %v1613
    %s1615 = scalar_lea.vmem %s2, 3
    %v1616 = vld [vmem:[%s1615] ss:$8 sm:$0xf]
    %v1617 = vld [vmem:[%s1615] ss:$8 sm:$0x70]
    %v1618 = vor.u32 %v1616, %v1617
    %s1619 = scalar_lea.vmem %s2, 59
    %v1620 = vld [vmem:[%s1619] ss:$8 sm:$0xf]
    %v1621 = vld [vmem:[%s1619] ss:$8 sm:$0x70]
    %v1622 = vor.u32 %v1620, %v1621
    %v1625 = vlaneseq
    %v1626 = vshrl.u32 %v1625, 7
    %v1627 = vsub.s32 0, %v1626
    %v1628 = vrot.slane %v1618, %v1627
    %v1629 = vlaneseq
    %v1630 = vshrl.u32 %v1629, 7
    %v1631 = vsub.s32 1, %v1630
    %v1632 = vrot.slane %v1618, %v1631
    %v1633 = vlaneseq
    %v1634 = vshrl.u32 %v1633, 7
    %v1635 = vsub.s32 2, %v1634
    %v1636 = vrot.slane %v1618, %v1635
    %v1637 = vlaneseq
    %v1638 = vshrl.u32 %v1637, 7
    %v1639 = vsub.s32 3, %v1638
    %v1640 = vrot.slane %v1618, %v1639
    %v1641 = vlaneseq
    %v1642 = vshrl.u32 %v1641, 7
    %v1643 = vsub.s32 4, %v1642
    %v1644 = vrot.slane %v1618, %v1643
    %v1645 = vlaneseq
    %v1646 = vshrl.u32 %v1645, 7
    %v1647 = vsub.s32 5, %v1646
    %v1648 = vrot.slane %v1618, %v1647
    %v1649 = vlaneseq
    %v1650 = vshrl.u32 %v1649, 7
    %v1651 = vsub.s32 6, %v1650
    %v1652 = vrot.slane %v1618, %v1651
    %v1653 = vlaneseq
    %v1654 = vshrl.u32 %v1653, 7
    %v1655 = vsub.s32 0, %v1654
    %v1656 = vrot.slane %v1622, %v1655
    %v1657 = vlaneseq
    %v1658 = vshrl.u32 %v1657, 7
    %v1659 = vsub.s32 1, %v1658
    %v1660 = vrot.slane %v1622, %v1659
    %v1661 = vlaneseq
    %v1662 = vshrl.u32 %v1661, 7
    %v1663 = vsub.s32 2, %v1662
    %v1664 = vrot.slane %v1622, %v1663
    %v1665 = vlaneseq
    %v1666 = vshrl.u32 %v1665, 7
    %v1667 = vsub.s32 3, %v1666
    %v1668 = vrot.slane %v1622, %v1667
    %v1669 = vlaneseq
    %v1670 = vshrl.u32 %v1669, 7
    %v1671 = vsub.s32 4, %v1670
    %v1672 = vrot.slane %v1622, %v1671
    %v1673 = vlaneseq
    %v1674 = vshrl.u32 %v1673, 7
    %v1675 = vsub.s32 5, %v1674
    %v1676 = vrot.slane %v1622, %v1675
    %v1677 = vlaneseq
    %v1678 = vshrl.u32 %v1677, 7
    %v1679 = vsub.s32 6, %v1678
    %v1680 = vrot.slane %v1622, %v1679
    %v1695 = vpack.c.bf16 %v1628, %v1628
    %v1696 = vpack.c.bf16 %v1632, %v1632
    %v1697 = vpack.c.bf16 %v1636, %v1636
    %v1698 = vpack.c.bf16 %v1640, %v1640
    %v1699 = vpack.c.bf16 %v1644, %v1644
    %v1700 = vpack.c.bf16 %v1648, %v1648
    %v1701 = vpack.c.bf16 %v1652, %v1652
    %v1702 = vpack.c.bf16 %v1656, %v1656
    %v1703 = vpack.c.bf16 %v1660, %v1660
    %v1704 = vpack.c.bf16 %v1664, %v1664
    %v1705 = vpack.c.bf16 %v1668, %v1668
    %v1706 = vpack.c.bf16 %v1672, %v1672
    %v1707 = vpack.c.bf16 %v1676, %v1676
    %v1708 = vpack.c.bf16 %v1680, %v1680
    %v1723 = vunpack.c.l.b16 %v1695
    %v1724 = vunpack.c.l.b16 %v1696
    %v1725 = vunpack.c.l.b16 %v1697
    %v1726 = vunpack.c.l.b16 %v1698
    %v1727 = vunpack.c.l.b16 %v1699
    %v1728 = vunpack.c.l.b16 %v1700
    %v1729 = vunpack.c.l.b16 %v1701
    %v1730 = vunpack.c.l.b16 %v1702
    %v1731 = vunpack.c.l.b16 %v1703
    %v1732 = vunpack.c.l.b16 %v1704
    %v1733 = vunpack.c.l.b16 %v1705
    %v1734 = vunpack.c.l.b16 %v1706
    %v1735 = vunpack.c.l.b16 %v1707
    %v1736 = vunpack.c.l.b16 %v1708
    %v1737 = vrot.slane %v1730, 7
    %v1738 = vsel %vm500, %v1737, %v1723
    %v1739 = vrot.slane %v1731, 7
    %v1740 = vsel %vm500, %v1739, %v1724
    %v1741 = vrot.slane %v1732, 7
    %v1742 = vsel %vm500, %v1741, %v1725
    %v1743 = vrot.slane %v1733, 7
    %v1744 = vsel %vm500, %v1743, %v1726
    %v1745 = vrot.slane %v1734, 7
    %v1746 = vsel %vm500, %v1745, %v1727
    %v1747 = vrot.slane %v1735, 7
    %v1748 = vsel %vm500, %v1747, %v1728
    %v1749 = vrot.slane %v1736, 7
    %v1750 = vsel %vm500, %v1749, %v1729
    %v1751 = vpack.c.b16 %v1738, %v1738
    %v1752 = vpack.c.b16 %v1740, %v1740
    %v1753 = vpack.c.b16 %v1742, %v1742
    %v1754 = vpack.c.b16 %v1744, %v1744
    %v1755 = vpack.c.b16 %v1746, %v1746
    %v1756 = vpack.c.b16 %v1748, %v1748
    %v1757 = vpack.c.b16 %v1750, %v1750
    %v1765 = vsel %vm821, %v1757, 0
    %1767 = vmatprep.subr.bf16.mxu0 0
    %1768 = vmatpush1.bf16.msra.mxu0 %v730
    %1769 = vmatprep.subr.bf16.mxu0 0
    %1770 = vmatpush1.bf16.msra.mxu0 %v729
    %1771 = vmatprep.subr.bf16.mxu0 0
    %1772 = vmatpush1.bf16.msra.mxu0 %v728
    %1773 = vmatprep.subr.bf16.mxu0 0
    %1774 = vmatpush1.bf16.msra.mxu0 %v727
    %1775 = vmatprep.subr.bf16.mxu0 0
    %1776 = vmatpush1.bf16.msra.mxu0 %v726
    %1777 = vmatprep.subr.bf16.mxu0 0
    %1778 = vmatpush1.bf16.msra.mxu0 %v725
    %1779 = vmatprep.subr.bf16.mxu0 0
    %1780 = vmatpush1.bf16.msra.mxu0 %v724
    %1781 = vmatprep.subr.bf16.mxu0 0
    %1782 = vmatpush1.bf16.msra.mxu0 %v723
    %1783 = vmatprep.subr.bf16.mxu0 0
    %1784 = vmatpush2.bf16.msra.mxu0 %v738
    %1785 = vmatprep.subr.bf16.mxu0 0
    %1786 = vmatpush2.bf16.msra.mxu0 %v737
    %1787 = vmatprep.subr.bf16.mxu0 0
    %1788 = vmatpush2.bf16.msra.mxu0 %v736
    %1789 = vmatprep.subr.bf16.mxu0 0
    %1790 = vmatpush2.bf16.msra.mxu0 %v735
    %1791 = vmatprep.subr.bf16.mxu0 0
    %1792 = vmatpush2.bf16.msra.mxu0 %v734
    %1793 = vmatprep.subr.bf16.mxu0 0
    %1794 = vmatpush2.bf16.msra.mxu0 %v733
    %1795 = vmatprep.subr.bf16.mxu0 0
    %1796 = vmatpush2.bf16.msra.mxu0 %v732
    %1797 = vmatprep.subr.bf16.mxu0 0
    %1798 = vmatpush2.bf16.msra.mxu0 %v731
    %1799 = vmatprep.mubr.bf16.mxu0 %v1752
    %1800 = vmatmul.mubr.bf16.gmra.mxu0 %v1751
    %v1801 = vpop.f32.mrf.mxu0
    %v1802 = vadd.f32 %v469, %v1801
    %v1803 = vpop.f32.mrf.mxu0
    %v1804 = vpop.f32.mrf.mxu0
    %v1805 = vpop.f32.mrf.mxu0
    %1806 = vdwg.mxu0
    %1807 = vmatprep.subr.bf16.mxu0 0
    %1808 = vmatpush1.bf16.msra.mxu0 %v746
    %1809 = vmatprep.subr.bf16.mxu0 0
    %1810 = vmatpush1.bf16.msra.mxu0 %v745
    %1811 = vmatprep.subr.bf16.mxu0 0
    %1812 = vmatpush1.bf16.msra.mxu0 %v744
    %1813 = vmatprep.subr.bf16.mxu0 0
    %1814 = vmatpush1.bf16.msra.mxu0 %v743
    %1815 = vmatprep.subr.bf16.mxu0 0
    %1816 = vmatpush1.bf16.msra.mxu0 %v742
    %1817 = vmatprep.subr.bf16.mxu0 0
    %1818 = vmatpush1.bf16.msra.mxu0 %v741
    %1819 = vmatprep.subr.bf16.mxu0 0
    %1820 = vmatpush1.bf16.msra.mxu0 %v740
    %1821 = vmatprep.subr.bf16.mxu0 0
    %1822 = vmatpush1.bf16.msra.mxu0 %v739
    %1823 = vmatprep.subr.bf16.mxu0 0
    %1824 = vmatpush2.bf16.msra.mxu0 %v754
    %1825 = vmatprep.subr.bf16.mxu0 0
    %1826 = vmatpush2.bf16.msra.mxu0 %v753
    %1827 = vmatprep.subr.bf16.mxu0 0
    %1828 = vmatpush2.bf16.msra.mxu0 %v752
    %1829 = vmatprep.subr.bf16.mxu0 0
    %1830 = vmatpush2.bf16.msra.mxu0 %v751
    %1831 = vmatprep.subr.bf16.mxu0 0
    %1832 = vmatpush2.bf16.msra.mxu0 %v750
    %1833 = vmatprep.subr.bf16.mxu0 0
    %1834 = vmatpush2.bf16.msra.mxu0 %v749
    %1835 = vmatprep.subr.bf16.mxu0 0
    %1836 = vmatpush2.bf16.msra.mxu0 %v748
    %1837 = vmatprep.subr.bf16.mxu0 0
    %1838 = vmatpush2.bf16.msra.mxu0 %v747
    %1839 = vmatprep.mubr.bf16.mxu0 %v1754
    %1840 = vmatmul.mubr.bf16.gmra.mxu0 %v1753
    %v1841 = vpop.f32.mrf.mxu0
    %v1842 = vadd.f32 %v1802, %v1841
    %v1843 = vpop.f32.mrf.mxu0
    %v1844 = vpop.f32.mrf.mxu0
    %v1845 = vpop.f32.mrf.mxu0
    %1846 = vdwg.mxu0
    %1847 = vmatprep.subr.bf16.mxu0 0
    %1848 = vmatpush1.bf16.msra.mxu0 %v762
    %1849 = vmatprep.subr.bf16.mxu0 0
    %1850 = vmatpush1.bf16.msra.mxu0 %v761
    %1851 = vmatprep.subr.bf16.mxu0 0
    %1852 = vmatpush1.bf16.msra.mxu0 %v760
    %1853 = vmatprep.subr.bf16.mxu0 0
    %1854 = vmatpush1.bf16.msra.mxu0 %v759
    %1855 = vmatprep.subr.bf16.mxu0 0
    %1856 = vmatpush1.bf16.msra.mxu0 %v758
    %1857 = vmatprep.subr.bf16.mxu0 0
    %1858 = vmatpush1.bf16.msra.mxu0 %v757
    %1859 = vmatprep.subr.bf16.mxu0 0
    %1860 = vmatpush1.bf16.msra.mxu0 %v756
    %1861 = vmatprep.subr.bf16.mxu0 0
    %1862 = vmatpush1.bf16.msra.mxu0 %v755
    %1863 = vmatprep.subr.bf16.mxu0 0
    %1864 = vmatpush2.bf16.msra.mxu0 %v770
    %1865 = vmatprep.subr.bf16.mxu0 0
    %1866 = vmatpush2.bf16.msra.mxu0 %v769
    %1867 = vmatprep.subr.bf16.mxu0 0
    %1868 = vmatpush2.bf16.msra.mxu0 %v768
    %1869 = vmatprep.subr.bf16.mxu0 0
    %1870 = vmatpush2.bf16.msra.mxu0 %v767
    %1871 = vmatprep.subr.bf16.mxu0 0
    %1872 = vmatpush2.bf16.msra.mxu0 %v766
    %1873 = vmatprep.subr.bf16.mxu0 0
    %1874 = vmatpush2.bf16.msra.mxu0 %v765
    %1875 = vmatprep.subr.bf16.mxu0 0
    %1876 = vmatpush2.bf16.msra.mxu0 %v764
    %1877 = vmatprep.subr.bf16.mxu0 0
    %1878 = vmatpush2.bf16.msra.mxu0 %v763
    %1879 = vmatprep.mubr.bf16.mxu0 %v1756
    %1880 = vmatmul.mubr.bf16.gmra.mxu0 %v1755
    %v1881 = vpop.f32.mrf.mxu0
    %v1882 = vadd.f32 %v1842, %v1881
    %v1883 = vpop.f32.mrf.mxu0
    %v1884 = vpop.f32.mrf.mxu0
    %v1885 = vpop.f32.mrf.mxu0
    %1886 = vdwg.mxu0
    %1887 = vmatprep.subr.bf16.mxu0 0
    %1888 = vmatpush1.bf16.msra.mxu0 0
    %1889 = vmatprep.subr.bf16.mxu0 0
    %1890 = vmatpush1.bf16.msra.mxu0 0
    %1891 = vmatprep.subr.bf16.mxu0 0
    %1892 = vmatpush1.bf16.msra.mxu0 0
    %1893 = vmatprep.subr.bf16.mxu0 0
    %1894 = vmatpush1.bf16.msra.mxu0 0
    %1895 = vmatprep.subr.bf16.mxu0 0
    %1896 = vmatpush1.bf16.msra.mxu0 0
    %1897 = vmatprep.subr.bf16.mxu0 0
    %1898 = vmatpush1.bf16.msra.mxu0 0
    %1899 = vmatprep.subr.bf16.mxu0 0
    %1900 = vmatpush1.bf16.msra.mxu0 0
    %1901 = vmatprep.subr.bf16.mxu0 0
    %1902 = vmatpush1.bf16.msra.mxu0 %v771
    %1903 = vmatprep.subr.bf16.mxu0 0
    %1904 = vmatpush2.bf16.msra.mxu0 0
    %1905 = vmatprep.subr.bf16.mxu0 0
    %1906 = vmatpush2.bf16.msra.mxu0 0
    %1907 = vmatprep.subr.bf16.mxu0 0
    %1908 = vmatpush2.bf16.msra.mxu0 0
    %1909 = vmatprep.subr.bf16.mxu0 0
    %1910 = vmatpush2.bf16.msra.mxu0 0
    %1911 = vmatprep.subr.bf16.mxu0 0
    %1912 = vmatpush2.bf16.msra.mxu0 0
    %1913 = vmatprep.subr.bf16.mxu0 0
    %1914 = vmatpush2.bf16.msra.mxu0 0
    %1915 = vmatprep.subr.bf16.mxu0 0
    %1916 = vmatpush2.bf16.msra.mxu0 0
    %1917 = vmatprep.subr.bf16.mxu0 0
    %1918 = vmatpush2.bf16.msra.mxu0 0
    %1919 = vmatprep.mubr.bf16.mxu0 0
    %1920 = vmatmul.mubr.bf16.gmra.mxu0 %v1765
    %v1921 = vpop.f32.mrf.mxu0
    %v1922 = vadd.f32 %v1882, %v1921
    %v1923 = vpop.f32.mrf.mxu0
    %v1924 = vpop.f32.mrf.mxu0
    %v1925 = vpop.f32.mrf.mxu0
    %1926 = vdwg.mxu0
    %v1927 = vmax.f32 %v1922, 0.0
    %v1928 = vadd.f32 %v1614, %v1927
    %s1929 = scalar_lea.vmem %s2, 4
    %v1930 = vld [vmem:[%s1929] ss:$8 sm:$0xf]
    %v1931 = vld [vmem:[%s1929] ss:$8 sm:$0x70]
    %v1932 = vor.u32 %v1930, %v1931
    %s1933 = scalar_lea.vmem %s2, 60
    %v1934 = vld [vmem:[%s1933] ss:$8 sm:$0xf]
    %v1935 = vld [vmem:[%s1933] ss:$8 sm:$0x70]
    %v1936 = vor.u32 %v1934, %v1935
    %v1939 = vlaneseq
    %v1940 = vshrl.u32 %v1939, 7
    %v1941 = vsub.s32 0, %v1940
    %v1942 = vrot.slane %v1932, %v1941
    %v1943 = vlaneseq
    %v1944 = vshrl.u32 %v1943, 7
    %v1945 = vsub.s32 1, %v1944
    %v1946 = vrot.slane %v1932, %v1945
    %v1947 = vlaneseq
    %v1948 = vshrl.u32 %v1947, 7
    %v1949 = vsub.s32 2, %v1948
    %v1950 = vrot.slane %v1932, %v1949
    %v1951 = vlaneseq
    %v1952 = vshrl.u32 %v1951, 7
    %v1953 = vsub.s32 3, %v1952
    %v1954 = vrot.slane %v1932, %v1953
    %v1955 = vlaneseq
    %v1956 = vshrl.u32 %v1955, 7
    %v1957 = vsub.s32 4, %v1956
    %v1958 = vrot.slane %v1932, %v1957
    %v1959 = vlaneseq
    %v1960 = vshrl.u32 %v1959, 7
    %v1961 = vsub.s32 5, %v1960
    %v1962 = vrot.slane %v1932, %v1961
    %v1963 = vlaneseq
    %v1964 = vshrl.u32 %v1963, 7
    %v1965 = vsub.s32 6, %v1964
    %v1966 = vrot.slane %v1932, %v1965
    %v1967 = vlaneseq
    %v1968 = vshrl.u32 %v1967, 7
    %v1969 = vsub.s32 0, %v1968
    %v1970 = vrot.slane %v1936, %v1969
    %v1971 = vlaneseq
    %v1972 = vshrl.u32 %v1971, 7
    %v1973 = vsub.s32 1, %v1972
    %v1974 = vrot.slane %v1936, %v1973
    %v1975 = vlaneseq
    %v1976 = vshrl.u32 %v1975, 7
    %v1977 = vsub.s32 2, %v1976
    %v1978 = vrot.slane %v1936, %v1977
    %v1979 = vlaneseq
    %v1980 = vshrl.u32 %v1979, 7
    %v1981 = vsub.s32 3, %v1980
    %v1982 = vrot.slane %v1936, %v1981
    %v1983 = vlaneseq
    %v1984 = vshrl.u32 %v1983, 7
    %v1985 = vsub.s32 4, %v1984
    %v1986 = vrot.slane %v1936, %v1985
    %v1987 = vlaneseq
    %v1988 = vshrl.u32 %v1987, 7
    %v1989 = vsub.s32 5, %v1988
    %v1990 = vrot.slane %v1936, %v1989
    %v1991 = vlaneseq
    %v1992 = vshrl.u32 %v1991, 7
    %v1993 = vsub.s32 6, %v1992
    %v1994 = vrot.slane %v1936, %v1993
    %v2009 = vpack.c.bf16 %v1942, %v1942
    %v2010 = vpack.c.bf16 %v1946, %v1946
    %v2011 = vpack.c.bf16 %v1950, %v1950
    %v2012 = vpack.c.bf16 %v1954, %v1954
    %v2013 = vpack.c.bf16 %v1958, %v1958
    %v2014 = vpack.c.bf16 %v1962, %v1962
    %v2015 = vpack.c.bf16 %v1966, %v1966
    %v2016 = vpack.c.bf16 %v1970, %v1970
    %v2017 = vpack.c.bf16 %v1974, %v1974
    %v2018 = vpack.c.bf16 %v1978, %v1978
    %v2019 = vpack.c.bf16 %v1982, %v1982
    %v2020 = vpack.c.bf16 %v1986, %v1986
    %v2021 = vpack.c.bf16 %v1990, %v1990
    %v2022 = vpack.c.bf16 %v1994, %v1994
    %v2037 = vunpack.c.l.b16 %v2009
    %v2038 = vunpack.c.l.b16 %v2010
    %v2039 = vunpack.c.l.b16 %v2011
    %v2040 = vunpack.c.l.b16 %v2012
    %v2041 = vunpack.c.l.b16 %v2013
    %v2042 = vunpack.c.l.b16 %v2014
    %v2043 = vunpack.c.l.b16 %v2015
    %v2044 = vunpack.c.l.b16 %v2016
    %v2045 = vunpack.c.l.b16 %v2017
    %v2046 = vunpack.c.l.b16 %v2018
    %v2047 = vunpack.c.l.b16 %v2019
    %v2048 = vunpack.c.l.b16 %v2020
    %v2049 = vunpack.c.l.b16 %v2021
    %v2050 = vunpack.c.l.b16 %v2022
    %v2051 = vrot.slane %v2044, 7
    %v2052 = vsel %vm500, %v2051, %v2037
    %v2053 = vrot.slane %v2045, 7
    %v2054 = vsel %vm500, %v2053, %v2038
    %v2055 = vrot.slane %v2046, 7
    %v2056 = vsel %vm500, %v2055, %v2039
    %v2057 = vrot.slane %v2047, 7
    %v2058 = vsel %vm500, %v2057, %v2040
    %v2059 = vrot.slane %v2048, 7
    %v2060 = vsel %vm500, %v2059, %v2041
    %v2061 = vrot.slane %v2049, 7
    %v2062 = vsel %vm500, %v2061, %v2042
    %v2063 = vrot.slane %v2050, 7
    %v2064 = vsel %vm500, %v2063, %v2043
    %v2065 = vpack.c.b16 %v2052, %v2052
    %v2066 = vpack.c.b16 %v2054, %v2054
    %v2067 = vpack.c.b16 %v2056, %v2056
    %v2068 = vpack.c.b16 %v2058, %v2058
    %v2069 = vpack.c.b16 %v2060, %v2060
    %v2070 = vpack.c.b16 %v2062, %v2062
    %v2071 = vpack.c.b16 %v2064, %v2064
    %v2079 = vsel %vm821, %v2071, 0
    %2081 = vmatprep.subr.bf16.mxu0 0
    %2082 = vmatpush1.bf16.msra.mxu0 %v730
    %2083 = vmatprep.subr.bf16.mxu0 0
    %2084 = vmatpush1.bf16.msra.mxu0 %v729
    %2085 = vmatprep.subr.bf16.mxu0 0
    %2086 = vmatpush1.bf16.msra.mxu0 %v728
    %2087 = vmatprep.subr.bf16.mxu0 0
    %2088 = vmatpush1.bf16.msra.mxu0 %v727
    %2089 = vmatprep.subr.bf16.mxu0 0
    %2090 = vmatpush1.bf16.msra.mxu0 %v726
    %2091 = vmatprep.subr.bf16.mxu0 0
    %2092 = vmatpush1.bf16.msra.mxu0 %v725
    %2093 = vmatprep.subr.bf16.mxu0 0
    %2094 = vmatpush1.bf16.msra.mxu0 %v724
    %2095 = vmatprep.subr.bf16.mxu0 0
    %2096 = vmatpush1.bf16.msra.mxu0 %v723
    %2097 = vmatprep.subr.bf16.mxu0 0
    %2098 = vmatpush2.bf16.msra.mxu0 %v738
    %2099 = vmatprep.subr.bf16.mxu0 0
    %2100 = vmatpush2.bf16.msra.mxu0 %v737
    %2101 = vmatprep.subr.bf16.mxu0 0
    %2102 = vmatpush2.bf16.msra.mxu0 %v736
    %2103 = vmatprep.subr.bf16.mxu0 0
    %2104 = vmatpush2.bf16.msra.mxu0 %v735
    %2105 = vmatprep.subr.bf16.mxu0 0
    %2106 = vmatpush2.bf16.msra.mxu0 %v734
    %2107 = vmatprep.subr.bf16.mxu0 0
    %2108 = vmatpush2.bf16.msra.mxu0 %v733
    %2109 = vmatprep.subr.bf16.mxu0 0
    %2110 = vmatpush2.bf16.msra.mxu0 %v732
    %2111 = vmatprep.subr.bf16.mxu0 0
    %2112 = vmatpush2.bf16.msra.mxu0 %v731
    %2113 = vmatprep.mubr.bf16.mxu0 %v2066
    %2114 = vmatmul.mubr.bf16.gmra.mxu0 %v2065
    %v2115 = vpop.f32.mrf.mxu0
    %v2116 = vadd.f32 %v469, %v2115
    %v2117 = vpop.f32.mrf.mxu0
    %v2118 = vpop.f32.mrf.mxu0
    %v2119 = vpop.f32.mrf.mxu0
    %2120 = vdwg.mxu0
    %2121 = vmatprep.subr.bf16.mxu0 0
    %2122 = vmatpush1.bf16.msra.mxu0 %v746
    %2123 = vmatprep.subr.bf16.mxu0 0
    %2124 = vmatpush1.bf16.msra.mxu0 %v745
    %2125 = vmatprep.subr.bf16.mxu0 0
    %2126 = vmatpush1.bf16.msra.mxu0 %v744
    %2127 = vmatprep.subr.bf16.mxu0 0
    %2128 = vmatpush1.bf16.msra.mxu0 %v743
    %2129 = vmatprep.subr.bf16.mxu0 0
    %2130 = vmatpush1.bf16.msra.mxu0 %v742
    %2131 = vmatprep.subr.bf16.mxu0 0
    %2132 = vmatpush1.bf16.msra.mxu0 %v741
    %2133 = vmatprep.subr.bf16.mxu0 0
    %2134 = vmatpush1.bf16.msra.mxu0 %v740
    %2135 = vmatprep.subr.bf16.mxu0 0
    %2136 = vmatpush1.bf16.msra.mxu0 %v739
    %2137 = vmatprep.subr.bf16.mxu0 0
    %2138 = vmatpush2.bf16.msra.mxu0 %v754
    %2139 = vmatprep.subr.bf16.mxu0 0
    %2140 = vmatpush2.bf16.msra.mxu0 %v753
    %2141 = vmatprep.subr.bf16.mxu0 0
    %2142 = vmatpush2.bf16.msra.mxu0 %v752
    %2143 = vmatprep.subr.bf16.mxu0 0
    %2144 = vmatpush2.bf16.msra.mxu0 %v751
    %2145 = vmatprep.subr.bf16.mxu0 0
    %2146 = vmatpush2.bf16.msra.mxu0 %v750
    %2147 = vmatprep.subr.bf16.mxu0 0
    %2148 = vmatpush2.bf16.msra.mxu0 %v749
    %2149 = vmatprep.subr.bf16.mxu0 0
    %2150 = vmatpush2.bf16.msra.mxu0 %v748
    %2151 = vmatprep.subr.bf16.mxu0 0
    %2152 = vmatpush2.bf16.msra.mxu0 %v747
    %2153 = vmatprep.mubr.bf16.mxu0 %v2068
    %2154 = vmatmul.mubr.bf16.gmra.mxu0 %v2067
    %v2155 = vpop.f32.mrf.mxu0
    %v2156 = vadd.f32 %v2116, %v2155
    %v2157 = vpop.f32.mrf.mxu0
    %v2158 = vpop.f32.mrf.mxu0
    %v2159 = vpop.f32.mrf.mxu0
    %2160 = vdwg.mxu0
    %2161 = vmatprep.subr.bf16.mxu0 0
    %2162 = vmatpush1.bf16.msra.mxu0 %v762
    %2163 = vmatprep.subr.bf16.mxu0 0
    %2164 = vmatpush1.bf16.msra.mxu0 %v761
    %2165 = vmatprep.subr.bf16.mxu0 0
    %2166 = vmatpush1.bf16.msra.mxu0 %v760
    %2167 = vmatprep.subr.bf16.mxu0 0
    %2168 = vmatpush1.bf16.msra.mxu0 %v759
    %2169 = vmatprep.subr.bf16.mxu0 0
    %2170 = vmatpush1.bf16.msra.mxu0 %v758
    %2171 = vmatprep.subr.bf16.mxu0 0
    %2172 = vmatpush1.bf16.msra.mxu0 %v757
    %2173 = vmatprep.subr.bf16.mxu0 0
    %2174 = vmatpush1.bf16.msra.mxu0 %v756
    %2175 = vmatprep.subr.bf16.mxu0 0
    %2176 = vmatpush1.bf16.msra.mxu0 %v755
    %2177 = vmatprep.subr.bf16.mxu0 0
    %2178 = vmatpush2.bf16.msra.mxu0 %v770
    %2179 = vmatprep.subr.bf16.mxu0 0
    %2180 = vmatpush2.bf16.msra.mxu0 %v769
    %2181 = vmatprep.subr.bf16.mxu0 0
    %2182 = vmatpush2.bf16.msra.mxu0 %v768
    %2183 = vmatprep.subr.bf16.mxu0 0
    %2184 = vmatpush2.bf16.msra.mxu0 %v767
    %2185 = vmatprep.subr.bf16.mxu0 0
    %2186 = vmatpush2.bf16.msra.mxu0 %v766
    %2187 = vmatprep.subr.bf16.mxu0 0
    %2188 = vmatpush2.bf16.msra.mxu0 %v765
    %2189 = vmatprep.subr.bf16.mxu0 0
    %2190 = vmatpush2.bf16.msra.mxu0 %v764
    %2191 = vmatprep.subr.bf16.mxu0 0
    %2192 = vmatpush2.bf16.msra.mxu0 %v763
    %2193 = vmatprep.mubr.bf16.mxu0 %v2070
    %2194 = vmatmul.mubr.bf16.gmra.mxu0 %v2069
    %v2195 = vpop.f32.mrf.mxu0
    %v2196 = vadd.f32 %v2156, %v2195
    %v2197 = vpop.f32.mrf.mxu0
    %v2198 = vpop.f32.mrf.mxu0
    %v2199 = vpop.f32.mrf.mxu0
    %2200 = vdwg.mxu0
    %2201 = vmatprep.subr.bf16.mxu0 0
    %2202 = vmatpush1.bf16.msra.mxu0 0
    %2203 = vmatprep.subr.bf16.mxu0 0
    %2204 = vmatpush1.bf16.msra.mxu0 0
    %2205 = vmatprep.subr.bf16.mxu0 0
    %2206 = vmatpush1.bf16.msra.mxu0 0
    %2207 = vmatprep.subr.bf16.mxu0 0
    %2208 = vmatpush1.bf16.msra.mxu0 0
    %2209 = vmatprep.subr.bf16.mxu0 0
    %2210 = vmatpush1.bf16.msra.mxu0 0
    %2211 = vmatprep.subr.bf16.mxu0 0
    %2212 = vmatpush1.bf16.msra.mxu0 0
    %2213 = vmatprep.subr.bf16.mxu0 0
    %2214 = vmatpush1.bf16.msra.mxu0 0
    %2215 = vmatprep.subr.bf16.mxu0 0
    %2216 = vmatpush1.bf16.msra.mxu0 %v771
    %2217 = vmatprep.subr.bf16.mxu0 0
    %2218 = vmatpush2.bf16.msra.mxu0 0
    %2219 = vmatprep.subr.bf16.mxu0 0
    %2220 = vmatpush2.bf16.msra.mxu0 0
    %2221 = vmatprep.subr.bf16.mxu0 0
    %2222 = vmatpush2.bf16.msra.mxu0 0
    %2223 = vmatprep.subr.bf16.mxu0 0
    %2224 = vmatpush2.bf16.msra.mxu0 0
    %2225 = vmatprep.subr.bf16.mxu0 0
    %2226 = vmatpush2.bf16.msra.mxu0 0
    %2227 = vmatprep.subr.bf16.mxu0 0
    %2228 = vmatpush2.bf16.msra.mxu0 0
    %2229 = vmatprep.subr.bf16.mxu0 0
    %2230 = vmatpush2.bf16.msra.mxu0 0
    %2231 = vmatprep.subr.bf16.mxu0 0
    %2232 = vmatpush2.bf16.msra.mxu0 0
    %2233 = vmatprep.mubr.bf16.mxu0 0
    %2234 = vmatmul.mubr.bf16.gmra.mxu0 %v2079
    %v2235 = vpop.f32.mrf.mxu0
    %v2236 = vadd.f32 %v2196, %v2235
    %v2237 = vpop.f32.mrf.mxu0
    %v2238 = vpop.f32.mrf.mxu0
    %v2239 = vpop.f32.mrf.mxu0
    %2240 = vdwg.mxu0
    %v2241 = vmax.f32 %v2236, 0.0
    %v2242 = vadd.f32 %v1928, %v2241
    %s2243 = scalar_lea.vmem %s2, 5
    %v2244 = vld [vmem:[%s2243] ss:$8 sm:$0xf]
    %v2245 = vld [vmem:[%s2243] ss:$8 sm:$0x70]
    %v2246 = vor.u32 %v2244, %v2245
    %s2247 = scalar_lea.vmem %s2, 61
    %v2248 = vld [vmem:[%s2247] ss:$8 sm:$0xf]
    %v2249 = vld [vmem:[%s2247] ss:$8 sm:$0x70]
    %v2250 = vor.u32 %v2248, %v2249
    %v2253 = vlaneseq
    %v2254 = vshrl.u32 %v2253, 7
    %v2255 = vsub.s32 0, %v2254
    %v2256 = vrot.slane %v2246, %v2255
    %v2257 = vlaneseq
    %v2258 = vshrl.u32 %v2257, 7
    %v2259 = vsub.s32 1, %v2258
    %v2260 = vrot.slane %v2246, %v2259
    %v2261 = vlaneseq
    %v2262 = vshrl.u32 %v2261, 7
    %v2263 = vsub.s32 2, %v2262
    %v2264 = vrot.slane %v2246, %v2263
    %v2265 = vlaneseq
    %v2266 = vshrl.u32 %v2265, 7
    %v2267 = vsub.s32 3, %v2266
    %v2268 = vrot.slane %v2246, %v2267
    %v2269 = vlaneseq
    %v2270 = vshrl.u32 %v2269, 7
    %v2271 = vsub.s32 4, %v2270
    %v2272 = vrot.slane %v2246, %v2271
    %v2273 = vlaneseq
    %v2274 = vshrl.u32 %v2273, 7
    %v2275 = vsub.s32 5, %v2274
    %v2276 = vrot.slane %v2246, %v2275
    %v2277 = vlaneseq
    %v2278 = vshrl.u32 %v2277, 7
    %v2279 = vsub.s32 6, %v2278
    %v2280 = vrot.slane %v2246, %v2279
    %v2281 = vlaneseq
    %v2282 = vshrl.u32 %v2281, 7
    %v2283 = vsub.s32 0, %v2282
    %v2284 = vrot.slane %v2250, %v2283
    %v2285 = vlaneseq
    %v2286 = vshrl.u32 %v2285, 7
    %v2287 = vsub.s32 1, %v2286
    %v2288 = vrot.slane %v2250, %v2287
    %v2289 = vlaneseq
    %v2290 = vshrl.u32 %v2289, 7
    %v2291 = vsub.s32 2, %v2290
    %v2292 = vrot.slane %v2250, %v2291
    %v2293 = vlaneseq
    %v2294 = vshrl.u32 %v2293, 7
    %v2295 = vsub.s32 3, %v2294
    %v2296 = vrot.slane %v2250, %v2295
    %v2297 = vlaneseq
    %v2298 = vshrl.u32 %v2297, 7
    %v2299 = vsub.s32 4, %v2298
    %v2300 = vrot.slane %v2250, %v2299
    %v2301 = vlaneseq
    %v2302 = vshrl.u32 %v2301, 7
    %v2303 = vsub.s32 5, %v2302
    %v2304 = vrot.slane %v2250, %v2303
    %v2305 = vlaneseq
    %v2306 = vshrl.u32 %v2305, 7
    %v2307 = vsub.s32 6, %v2306
    %v2308 = vrot.slane %v2250, %v2307
    %v2323 = vpack.c.bf16 %v2256, %v2256
    %v2324 = vpack.c.bf16 %v2260, %v2260
    %v2325 = vpack.c.bf16 %v2264, %v2264
    %v2326 = vpack.c.bf16 %v2268, %v2268
    %v2327 = vpack.c.bf16 %v2272, %v2272
    %v2328 = vpack.c.bf16 %v2276, %v2276
    %v2329 = vpack.c.bf16 %v2280, %v2280
    %v2330 = vpack.c.bf16 %v2284, %v2284
    %v2331 = vpack.c.bf16 %v2288, %v2288
    %v2332 = vpack.c.bf16 %v2292, %v2292
    %v2333 = vpack.c.bf16 %v2296, %v2296
    %v2334 = vpack.c.bf16 %v2300, %v2300
    %v2335 = vpack.c.bf16 %v2304, %v2304
    %v2336 = vpack.c.bf16 %v2308, %v2308
    %v2351 = vunpack.c.l.b16 %v2323
    %v2352 = vunpack.c.l.b16 %v2324
    %v2353 = vunpack.c.l.b16 %v2325
    %v2354 = vunpack.c.l.b16 %v2326
    %v2355 = vunpack.c.l.b16 %v2327
    %v2356 = vunpack.c.l.b16 %v2328
    %v2357 = vunpack.c.l.b16 %v2329
    %v2358 = vunpack.c.l.b16 %v2330
    %v2359 = vunpack.c.l.b16 %v2331
    %v2360 = vunpack.c.l.b16 %v2332
    %v2361 = vunpack.c.l.b16 %v2333
    %v2362 = vunpack.c.l.b16 %v2334
    %v2363 = vunpack.c.l.b16 %v2335
    %v2364 = vunpack.c.l.b16 %v2336
    %v2365 = vrot.slane %v2358, 7
    %v2366 = vsel %vm500, %v2365, %v2351
    %v2367 = vrot.slane %v2359, 7
    %v2368 = vsel %vm500, %v2367, %v2352
    %v2369 = vrot.slane %v2360, 7
    %v2370 = vsel %vm500, %v2369, %v2353
    %v2371 = vrot.slane %v2361, 7
    %v2372 = vsel %vm500, %v2371, %v2354
    %v2373 = vrot.slane %v2362, 7
    %v2374 = vsel %vm500, %v2373, %v2355
    %v2375 = vrot.slane %v2363, 7
    %v2376 = vsel %vm500, %v2375, %v2356
    %v2377 = vrot.slane %v2364, 7
    %v2378 = vsel %vm500, %v2377, %v2357
    %v2379 = vpack.c.b16 %v2366, %v2366
    %v2380 = vpack.c.b16 %v2368, %v2368
    %v2381 = vpack.c.b16 %v2370, %v2370
    %v2382 = vpack.c.b16 %v2372, %v2372
    %v2383 = vpack.c.b16 %v2374, %v2374
    %v2384 = vpack.c.b16 %v2376, %v2376
    %v2385 = vpack.c.b16 %v2378, %v2378
    %v2393 = vsel %vm821, %v2385, 0
    %2395 = vmatprep.subr.bf16.mxu0 0
    %2396 = vmatpush1.bf16.msra.mxu0 %v730
    %2397 = vmatprep.subr.bf16.mxu0 0
    %2398 = vmatpush1.bf16.msra.mxu0 %v729
    %2399 = vmatprep.subr.bf16.mxu0 0
    %2400 = vmatpush1.bf16.msra.mxu0 %v728
    %2401 = vmatprep.subr.bf16.mxu0 0
    %2402 = vmatpush1.bf16.msra.mxu0 %v727
    %2403 = vmatprep.subr.bf16.mxu0 0
    %2404 = vmatpush1.bf16.msra.mxu0 %v726
    %2405 = vmatprep.subr.bf16.mxu0 0
    %2406 = vmatpush1.bf16.msra.mxu0 %v725
    %2407 = vmatprep.subr.bf16.mxu0 0
    %2408 = vmatpush1.bf16.msra.mxu0 %v724
    %2409 = vmatprep.subr.bf16.mxu0 0
    %2410 = vmatpush1.bf16.msra.mxu0 %v723
    %2411 = vmatprep.subr.bf16.mxu0 0
    %2412 = vmatpush2.bf16.msra.mxu0 %v738
    %2413 = vmatprep.subr.bf16.mxu0 0
    %2414 = vmatpush2.bf16.msra.mxu0 %v737
    %2415 = vmatprep.subr.bf16.mxu0 0
    %2416 = vmatpush2.bf16.msra.mxu0 %v736
    %2417 = vmatprep.subr.bf16.mxu0 0
    %2418 = vmatpush2.bf16.msra.mxu0 %v735
    %2419 = vmatprep.subr.bf16.mxu0 0
    %2420 = vmatpush2.bf16.msra.mxu0 %v734
    %2421 = vmatprep.subr.bf16.mxu0 0
    %2422 = vmatpush2.bf16.msra.mxu0 %v733
    %2423 = vmatprep.subr.bf16.mxu0 0
    %2424 = vmatpush2.bf16.msra.mxu0 %v732
    %2425 = vmatprep.subr.bf16.mxu0 0
    %2426 = vmatpush2.bf16.msra.mxu0 %v731
    %2427 = vmatprep.mubr.bf16.mxu0 %v2380
    %2428 = vmatmul.mubr.bf16.gmra.mxu0 %v2379
    %v2429 = vpop.f32.mrf.mxu0
    %v2430 = vadd.f32 %v469, %v2429
    %v2431 = vpop.f32.mrf.mxu0
    %v2432 = vpop.f32.mrf.mxu0
    %v2433 = vpop.f32.mrf.mxu0
    %2434 = vdwg.mxu0
    %2435 = vmatprep.subr.bf16.mxu0 0
    %2436 = vmatpush1.bf16.msra.mxu0 %v746
    %2437 = vmatprep.subr.bf16.mxu0 0
    %2438 = vmatpush1.bf16.msra.mxu0 %v745
    %2439 = vmatprep.subr.bf16.mxu0 0
    %2440 = vmatpush1.bf16.msra.mxu0 %v744
    %2441 = vmatprep.subr.bf16.mxu0 0
    %2442 = vmatpush1.bf16.msra.mxu0 %v743
    %2443 = vmatprep.subr.bf16.mxu0 0
    %2444 = vmatpush1.bf16.msra.mxu0 %v742
    %2445 = vmatprep.subr.bf16.mxu0 0
    %2446 = vmatpush1.bf16.msra.mxu0 %v741
    %2447 = vmatprep.subr.bf16.mxu0 0
    %2448 = vmatpush1.bf16.msra.mxu0 %v740
    %2449 = vmatprep.subr.bf16.mxu0 0
    %2450 = vmatpush1.bf16.msra.mxu0 %v739
    %2451 = vmatprep.subr.bf16.mxu0 0
    %2452 = vmatpush2.bf16.msra.mxu0 %v754
    %2453 = vmatprep.subr.bf16.mxu0 0
    %2454 = vmatpush2.bf16.msra.mxu0 %v753
    %2455 = vmatprep.subr.bf16.mxu0 0
    %2456 = vmatpush2.bf16.msra.mxu0 %v752
    %2457 = vmatprep.subr.bf16.mxu0 0
    %2458 = vmatpush2.bf16.msra.mxu0 %v751
    %2459 = vmatprep.subr.bf16.mxu0 0
    %2460 = vmatpush2.bf16.msra.mxu0 %v750
    %2461 = vmatprep.subr.bf16.mxu0 0
    %2462 = vmatpush2.bf16.msra.mxu0 %v749
    %2463 = vmatprep.subr.bf16.mxu0 0
    %2464 = vmatpush2.bf16.msra.mxu0 %v748
    %2465 = vmatprep.subr.bf16.mxu0 0
    %2466 = vmatpush2.bf16.msra.mxu0 %v747
    %2467 = vmatprep.mubr.bf16.mxu0 %v2382
    %2468 = vmatmul.mubr.bf16.gmra.mxu0 %v2381
    %v2469 = vpop.f32.mrf.mxu0
    %v2470 = vadd.f32 %v2430, %v2469
    %v2471 = vpop.f32.mrf.mxu0
    %v2472 = vpop.f32.mrf.mxu0
    %v2473 = vpop.f32.mrf.mxu0
    %2474 = vdwg.mxu0
    %2475 = vmatprep.subr.bf16.mxu0 0
    %2476 = vmatpush1.bf16.msra.mxu0 %v762
    %2477 = vmatprep.subr.bf16.mxu0 0
    %2478 = vmatpush1.bf16.msra.mxu0 %v761
    %2479 = vmatprep.subr.bf16.mxu0 0
    %2480 = vmatpush1.bf16.msra.mxu0 %v760
    %2481 = vmatprep.subr.bf16.mxu0 0
    %2482 = vmatpush1.bf16.msra.mxu0 %v759
    %2483 = vmatprep.subr.bf16.mxu0 0
    %2484 = vmatpush1.bf16.msra.mxu0 %v758
    %2485 = vmatprep.subr.bf16.mxu0 0
    %2486 = vmatpush1.bf16.msra.mxu0 %v757
    %2487 = vmatprep.subr.bf16.mxu0 0
    %2488 = vmatpush1.bf16.msra.mxu0 %v756
    %2489 = vmatprep.subr.bf16.mxu0 0
    %2490 = vmatpush1.bf16.msra.mxu0 %v755
    %2491 = vmatprep.subr.bf16.mxu0 0
    %2492 = vmatpush2.bf16.msra.mxu0 %v770
    %2493 = vmatprep.subr.bf16.mxu0 0
    %2494 = vmatpush2.bf16.msra.mxu0 %v769
    %2495 = vmatprep.subr.bf16.mxu0 0
    %2496 = vmatpush2.bf16.msra.mxu0 %v768
    %2497 = vmatprep.subr.bf16.mxu0 0
    %2498 = vmatpush2.bf16.msra.mxu0 %v767
    %2499 = vmatprep.subr.bf16.mxu0 0
    %2500 = vmatpush2.bf16.msra.mxu0 %v766
    %2501 = vmatprep.subr.bf16.mxu0 0
    %2502 = vmatpush2.bf16.msra.mxu0 %v765
    %2503 = vmatprep.subr.bf16.mxu0 0
    %2504 = vmatpush2.bf16.msra.mxu0 %v764
    %2505 = vmatprep.subr.bf16.mxu0 0
    %2506 = vmatpush2.bf16.msra.mxu0 %v763
    %2507 = vmatprep.mubr.bf16.mxu0 %v2384
    %2508 = vmatmul.mubr.bf16.gmra.mxu0 %v2383
    %v2509 = vpop.f32.mrf.mxu0
    %v2510 = vadd.f32 %v2470, %v2509
    %v2511 = vpop.f32.mrf.mxu0
    %v2512 = vpop.f32.mrf.mxu0
    %v2513 = vpop.f32.mrf.mxu0
    %2514 = vdwg.mxu0
    %2515 = vmatprep.subr.bf16.mxu0 0
    %2516 = vmatpush1.bf16.msra.mxu0 0
    %2517 = vmatprep.subr.bf16.mxu0 0
    %2518 = vmatpush1.bf16.msra.mxu0 0
    %2519 = vmatprep.subr.bf16.mxu0 0
    %2520 = vmatpush1.bf16.msra.mxu0 0
    %2521 = vmatprep.subr.bf16.mxu0 0
    %2522 = vmatpush1.bf16.msra.mxu0 0
    %2523 = vmatprep.subr.bf16.mxu0 0
    %2524 = vmatpush1.bf16.msra.mxu0 0
    %2525 = vmatprep.subr.bf16.mxu0 0
    %2526 = vmatpush1.bf16.msra.mxu0 0
    %2527 = vmatprep.subr.bf16.mxu0 0
    %2528 = vmatpush1.bf16.msra.mxu0 0
    %2529 = vmatprep.subr.bf16.mxu0 0
    %2530 = vmatpush1.bf16.msra.mxu0 %v771
    %2531 = vmatprep.subr.bf16.mxu0 0
    %2532 = vmatpush2.bf16.msra.mxu0 0
    %2533 = vmatprep.subr.bf16.mxu0 0
    %2534 = vmatpush2.bf16.msra.mxu0 0
    %2535 = vmatprep.subr.bf16.mxu0 0
    %2536 = vmatpush2.bf16.msra.mxu0 0
    %2537 = vmatprep.subr.bf16.mxu0 0
    %2538 = vmatpush2.bf16.msra.mxu0 0
    %2539 = vmatprep.subr.bf16.mxu0 0
    %2540 = vmatpush2.bf16.msra.mxu0 0
    %2541 = vmatprep.subr.bf16.mxu0 0
    %2542 = vmatpush2.bf16.msra.mxu0 0
    %2543 = vmatprep.subr.bf16.mxu0 0
    %2544 = vmatpush2.bf16.msra.mxu0 0
    %2545 = vmatprep.subr.bf16.mxu0 0
    %2546 = vmatpush2.bf16.msra.mxu0 0
    %2547 = vmatprep.mubr.bf16.mxu0 0
    %2548 = vmatmul.mubr.bf16.gmra.mxu0 %v2393
    %v2549 = vpop.f32.mrf.mxu0
    %v2550 = vadd.f32 %v2510, %v2549
    %v2551 = vpop.f32.mrf.mxu0
    %v2552 = vpop.f32.mrf.mxu0
    %v2553 = vpop.f32.mrf.mxu0
    %2554 = vdwg.mxu0
    %v2555 = vmax.f32 %v2550, 0.0
    %v2556 = vadd.f32 %v2242, %v2555
    %s2557 = scalar_lea.vmem %s2, 6
    %v2558 = vld [vmem:[%s2557] ss:$8 sm:$0xf]
    %v2559 = vld [vmem:[%s2557] ss:$8 sm:$0x70]
    %v2560 = vor.u32 %v2558, %v2559
    %s2561 = scalar_lea.vmem %s2, 62
    %v2562 = vld [vmem:[%s2561] ss:$8 sm:$0xf]
    %v2563 = vld [vmem:[%s2561] ss:$8 sm:$0x70]
    %v2564 = vor.u32 %v2562, %v2563
    %v2567 = vlaneseq
    %v2568 = vshrl.u32 %v2567, 7
    %v2569 = vsub.s32 0, %v2568
    %v2570 = vrot.slane %v2560, %v2569
    %v2571 = vlaneseq
    %v2572 = vshrl.u32 %v2571, 7
    %v2573 = vsub.s32 1, %v2572
    %v2574 = vrot.slane %v2560, %v2573
    %v2575 = vlaneseq
    %v2576 = vshrl.u32 %v2575, 7
    %v2577 = vsub.s32 2, %v2576
    %v2578 = vrot.slane %v2560, %v2577
    %v2579 = vlaneseq
    %v2580 = vshrl.u32 %v2579, 7
    %v2581 = vsub.s32 3, %v2580
    %v2582 = vrot.slane %v2560, %v2581
    %v2583 = vlaneseq
    %v2584 = vshrl.u32 %v2583, 7
    %v2585 = vsub.s32 4, %v2584
    %v2586 = vrot.slane %v2560, %v2585
    %v2587 = vlaneseq
    %v2588 = vshrl.u32 %v2587, 7
    %v2589 = vsub.s32 5, %v2588
    %v2590 = vrot.slane %v2560, %v2589
    %v2591 = vlaneseq
    %v2592 = vshrl.u32 %v2591, 7
    %v2593 = vsub.s32 6, %v2592
    %v2594 = vrot.slane %v2560, %v2593
    %v2595 = vlaneseq
    %v2596 = vshrl.u32 %v2595, 7
    %v2597 = vsub.s32 0, %v2596
    %v2598 = vrot.slane %v2564, %v2597
    %v2599 = vlaneseq
    %v2600 = vshrl.u32 %v2599, 7
    %v2601 = vsub.s32 1, %v2600
    %v2602 = vrot.slane %v2564, %v2601
    %v2603 = vlaneseq
    %v2604 = vshrl.u32 %v2603, 7
    %v2605 = vsub.s32 2, %v2604
    %v2606 = vrot.slane %v2564, %v2605
    %v2607 = vlaneseq
    %v2608 = vshrl.u32 %v2607, 7
    %v2609 = vsub.s32 3, %v2608
    %v2610 = vrot.slane %v2564, %v2609
    %v2611 = vlaneseq
    %v2612 = vshrl.u32 %v2611, 7
    %v2613 = vsub.s32 4, %v2612
    %v2614 = vrot.slane %v2564, %v2613
    %v2615 = vlaneseq
    %v2616 = vshrl.u32 %v2615, 7
    %v2617 = vsub.s32 5, %v2616
    %v2618 = vrot.slane %v2564, %v2617
    %v2619 = vlaneseq
    %v2620 = vshrl.u32 %v2619, 7
    %v2621 = vsub.s32 6, %v2620
    %v2622 = vrot.slane %v2564, %v2621
    %v2637 = vpack.c.bf16 %v2570, %v2570
    %v2638 = vpack.c.bf16 %v2574, %v2574
    %v2639 = vpack.c.bf16 %v2578, %v2578
    %v2640 = vpack.c.bf16 %v2582, %v2582
    %v2641 = vpack.c.bf16 %v2586, %v2586
    %v2642 = vpack.c.bf16 %v2590, %v2590
    %v2643 = vpack.c.bf16 %v2594, %v2594
    %v2644 = vpack.c.bf16 %v2598, %v2598
    %v2645 = vpack.c.bf16 %v2602, %v2602
    %v2646 = vpack.c.bf16 %v2606, %v2606
    %v2647 = vpack.c.bf16 %v2610, %v2610
    %v2648 = vpack.c.bf16 %v2614, %v2614
    %v2649 = vpack.c.bf16 %v2618, %v2618
    %v2650 = vpack.c.bf16 %v2622, %v2622
    %v2665 = vunpack.c.l.b16 %v2637
    %v2666 = vunpack.c.l.b16 %v2638
    %v2667 = vunpack.c.l.b16 %v2639
    %v2668 = vunpack.c.l.b16 %v2640
    %v2669 = vunpack.c.l.b16 %v2641
    %v2670 = vunpack.c.l.b16 %v2642
    %v2671 = vunpack.c.l.b16 %v2643
    %v2672 = vunpack.c.l.b16 %v2644
    %v2673 = vunpack.c.l.b16 %v2645
    %v2674 = vunpack.c.l.b16 %v2646
    %v2675 = vunpack.c.l.b16 %v2647
    %v2676 = vunpack.c.l.b16 %v2648
    %v2677 = vunpack.c.l.b16 %v2649
    %v2678 = vunpack.c.l.b16 %v2650
    %v2679 = vrot.slane %v2672, 7
    %v2680 = vsel %vm500, %v2679, %v2665
    %v2681 = vrot.slane %v2673, 7
    %v2682 = vsel %vm500, %v2681, %v2666
    %v2683 = vrot.slane %v2674, 7
    %v2684 = vsel %vm500, %v2683, %v2667
    %v2685 = vrot.slane %v2675, 7
    %v2686 = vsel %vm500, %v2685, %v2668
    %v2687 = vrot.slane %v2676, 7
    %v2688 = vsel %vm500, %v2687, %v2669
    %v2689 = vrot.slane %v2677, 7
    %v2690 = vsel %vm500, %v2689, %v2670
    %v2691 = vrot.slane %v2678, 7
    %v2692 = vsel %vm500, %v2691, %v2671
    %v2693 = vpack.c.b16 %v2680, %v2680
    %v2694 = vpack.c.b16 %v2682, %v2682
    %v2695 = vpack.c.b16 %v2684, %v2684
    %v2696 = vpack.c.b16 %v2686, %v2686
    %v2697 = vpack.c.b16 %v2688, %v2688
    %v2698 = vpack.c.b16 %v2690, %v2690
    %v2699 = vpack.c.b16 %v2692, %v2692
    %v2707 = vsel %vm821, %v2699, 0
    %2709 = vmatprep.subr.bf16.mxu0 0
    %2710 = vmatpush1.bf16.msra.mxu0 %v730
    %2711 = vmatprep.subr.bf16.mxu0 0
    %2712 = vmatpush1.bf16.msra.mxu0 %v729
    %2713 = vmatprep.subr.bf16.mxu0 0
    %2714 = vmatpush1.bf16.msra.mxu0 %v728
    %2715 = vmatprep.subr.bf16.mxu0 0
    %2716 = vmatpush1.bf16.msra.mxu0 %v727
    %2717 = vmatprep.subr.bf16.mxu0 0
    %2718 = vmatpush1.bf16.msra.mxu0 %v726
    %2719 = vmatprep.subr.bf16.mxu0 0
    %2720 = vmatpush1.bf16.msra.mxu0 %v725
    %2721 = vmatprep.subr.bf16.mxu0 0
    %2722 = vmatpush1.bf16.msra.mxu0 %v724
    %2723 = vmatprep.subr.bf16.mxu0 0
    %2724 = vmatpush1.bf16.msra.mxu0 %v723
    %2725 = vmatprep.subr.bf16.mxu0 0
    %2726 = vmatpush2.bf16.msra.mxu0 %v738
    %2727 = vmatprep.subr.bf16.mxu0 0
    %2728 = vmatpush2.bf16.msra.mxu0 %v737
    %2729 = vmatprep.subr.bf16.mxu0 0
    %2730 = vmatpush2.bf16.msra.mxu0 %v736
    %2731 = vmatprep.subr.bf16.mxu0 0
    %2732 = vmatpush2.bf16.msra.mxu0 %v735
    %2733 = vmatprep.subr.bf16.mxu0 0
    %2734 = vmatpush2.bf16.msra.mxu0 %v734
    %2735 = vmatprep.subr.bf16.mxu0 0
    %2736 = vmatpush2.bf16.msra.mxu0 %v733
    %2737 = vmatprep.subr.bf16.mxu0 0
    %2738 = vmatpush2.bf16.msra.mxu0 %v732
    %2739 = vmatprep.subr.bf16.mxu0 0
    %2740 = vmatpush2.bf16.msra.mxu0 %v731
    %2741 = vmatprep.mubr.bf16.mxu0 %v2694
    %2742 = vmatmul.mubr.bf16.gmra.mxu0 %v2693
    %v2743 = vpop.f32.mrf.mxu0
    %v2744 = vadd.f32 %v469, %v2743
    %v2745 = vpop.f32.mrf.mxu0
    %v2746 = vpop.f32.mrf.mxu0
    %v2747 = vpop.f32.mrf.mxu0
    %2748 = vdwg.mxu0
    %2749 = vmatprep.subr.bf16.mxu0 0
    %2750 = vmatpush1.bf16.msra.mxu0 %v746
    %2751 = vmatprep.subr.bf16.mxu0 0
    %2752 = vmatpush1.bf16.msra.mxu0 %v745
    %2753 = vmatprep.subr.bf16.mxu0 0
    %2754 = vmatpush1.bf16.msra.mxu0 %v744
    %2755 = vmatprep.subr.bf16.mxu0 0
    %2756 = vmatpush1.bf16.msra.mxu0 %v743
    %2757 = vmatprep.subr.bf16.mxu0 0
    %2758 = vmatpush1.bf16.msra.mxu0 %v742
    %2759 = vmatprep.subr.bf16.mxu0 0
    %2760 = vmatpush1.bf16.msra.mxu0 %v741
    %2761 = vmatprep.subr.bf16.mxu0 0
    %2762 = vmatpush1.bf16.msra.mxu0 %v740
    %2763 = vmatprep.subr.bf16.mxu0 0
    %2764 = vmatpush1.bf16.msra.mxu0 %v739
    %2765 = vmatprep.subr.bf16.mxu0 0
    %2766 = vmatpush2.bf16.msra.mxu0 %v754
    %2767 = vmatprep.subr.bf16.mxu0 0
    %2768 = vmatpush2.bf16.msra.mxu0 %v753
    %2769 = vmatprep.subr.bf16.mxu0 0
    %2770 = vmatpush2.bf16.msra.mxu0 %v752
    %2771 = vmatprep.subr.bf16.mxu0 0
    %2772 = vmatpush2.bf16.msra.mxu0 %v751
    %2773 = vmatprep.subr.bf16.mxu0 0
    %2774 = vmatpush2.bf16.msra.mxu0 %v750
    %2775 = vmatprep.subr.bf16.mxu0 0
    %2776 = vmatpush2.bf16.msra.mxu0 %v749
    %2777 = vmatprep.subr.bf16.mxu0 0
    %2778 = vmatpush2.bf16.msra.mxu0 %v748
    %2779 = vmatprep.subr.bf16.mxu0 0
    %2780 = vmatpush2.bf16.msra.mxu0 %v747
    %2781 = vmatprep.mubr.bf16.mxu0 %v2696
    %2782 = vmatmul.mubr.bf16.gmra.mxu0 %v2695
    %v2783 = vpop.f32.mrf.mxu0
    %v2784 = vadd.f32 %v2744, %v2783
    %v2785 = vpop.f32.mrf.mxu0
    %v2786 = vpop.f32.mrf.mxu0
    %v2787 = vpop.f32.mrf.mxu0
    %2788 = vdwg.mxu0
    %2789 = vmatprep.subr.bf16.mxu0 0
    %2790 = vmatpush1.bf16.msra.mxu0 %v762
    %2791 = vmatprep.subr.bf16.mxu0 0
    %2792 = vmatpush1.bf16.msra.mxu0 %v761
    %2793 = vmatprep.subr.bf16.mxu0 0
    %2794 = vmatpush1.bf16.msra.mxu0 %v760
    %2795 = vmatprep.subr.bf16.mxu0 0
    %2796 = vmatpush1.bf16.msra.mxu0 %v759
    %2797 = vmatprep.subr.bf16.mxu0 0
    %2798 = vmatpush1.bf16.msra.mxu0 %v758
    %2799 = vmatprep.subr.bf16.mxu0 0
    %2800 = vmatpush1.bf16.msra.mxu0 %v757
    %2801 = vmatprep.subr.bf16.mxu0 0
    %2802 = vmatpush1.bf16.msra.mxu0 %v756
    %2803 = vmatprep.subr.bf16.mxu0 0
    %2804 = vmatpush1.bf16.msra.mxu0 %v755
    %2805 = vmatprep.subr.bf16.mxu0 0
    %2806 = vmatpush2.bf16.msra.mxu0 %v770
    %2807 = vmatprep.subr.bf16.mxu0 0
    %2808 = vmatpush2.bf16.msra.mxu0 %v769
    %2809 = vmatprep.subr.bf16.mxu0 0
    %2810 = vmatpush2.bf16.msra.mxu0 %v768
    %2811 = vmatprep.subr.bf16.mxu0 0
    %2812 = vmatpush2.bf16.msra.mxu0 %v767
    %2813 = vmatprep.subr.bf16.mxu0 0
    %2814 = vmatpush2.bf16.msra.mxu0 %v766
    %2815 = vmatprep.subr.bf16.mxu0 0
    %2816 = vmatpush2.bf16.msra.mxu0 %v765
    %2817 = vmatprep.subr.bf16.mxu0 0
    %2818 = vmatpush2.bf16.msra.mxu0 %v764
    %2819 = vmatprep.subr.bf16.mxu0 0
    %2820 = vmatpush2.bf16.msra.mxu0 %v763
    %2821 = vmatprep.mubr.bf16.mxu0 %v2698
    %2822 = vmatmul.mubr.bf16.gmra.mxu0 %v2697
    %v2823 = vpop.f32.mrf.mxu0
    %v2824 = vadd.f32 %v2784, %v2823
    %v2825 = vpop.f32.mrf.mxu0
    %v2826 = vpop.f32.mrf.mxu0
    %v2827 = vpop.f32.mrf.mxu0
    %2828 = vdwg.mxu0
    %2829 = vmatprep.subr.bf16.mxu0 0
    %2830 = vmatpush1.bf16.msra.mxu0 0
    %2831 = vmatprep.subr.bf16.mxu0 0
    %2832 = vmatpush1.bf16.msra.mxu0 0
    %2833 = vmatprep.subr.bf16.mxu0 0
    %2834 = vmatpush1.bf16.msra.mxu0 0
    %2835 = vmatprep.subr.bf16.mxu0 0
    %2836 = vmatpush1.bf16.msra.mxu0 0
    %2837 = vmatprep.subr.bf16.mxu0 0
    %2838 = vmatpush1.bf16.msra.mxu0 0
    %2839 = vmatprep.subr.bf16.mxu0 0
    %2840 = vmatpush1.bf16.msra.mxu0 0
    %2841 = vmatprep.subr.bf16.mxu0 0
    %2842 = vmatpush1.bf16.msra.mxu0 0
    %2843 = vmatprep.subr.bf16.mxu0 0
    %2844 = vmatpush1.bf16.msra.mxu0 %v771
    %2845 = vmatprep.subr.bf16.mxu0 0
    %2846 = vmatpush2.bf16.msra.mxu0 0
    %2847 = vmatprep.subr.bf16.mxu0 0
    %2848 = vmatpush2.bf16.msra.mxu0 0
    %2849 = vmatprep.subr.bf16.mxu0 0
    %2850 = vmatpush2.bf16.msra.mxu0 0
    %2851 = vmatprep.subr.bf16.mxu0 0
    %2852 = vmatpush2.bf16.msra.mxu0 0
    %2853 = vmatprep.subr.bf16.mxu0 0
    %2854 = vmatpush2.bf16.msra.mxu0 0
    %2855 = vmatprep.subr.bf16.mxu0 0
    %2856 = vmatpush2.bf16.msra.mxu0 0
    %2857 = vmatprep.subr.bf16.mxu0 0
    %2858 = vmatpush2.bf16.msra.mxu0 0
    %2859 = vmatprep.subr.bf16.mxu0 0
    %2860 = vmatpush2.bf16.msra.mxu0 0
    %2861 = vmatprep.mubr.bf16.mxu0 0
    %2862 = vmatmul.mubr.bf16.gmra.mxu0 %v2707
    %v2863 = vpop.f32.mrf.mxu0
    %v2864 = vadd.f32 %v2824, %v2863
    %v2865 = vpop.f32.mrf.mxu0
    %v2866 = vpop.f32.mrf.mxu0
    %v2867 = vpop.f32.mrf.mxu0
    %2868 = vdwg.mxu0
    %v2869 = vmax.f32 %v2864, 0.0
    %v2870 = vadd.f32 %v2556, %v2869
    %s2871 = scalar_lea.vmem %s2, 7
    %v2872 = vld [vmem:[%s2871] ss:$8 sm:$0xf]
    %v2873 = vld [vmem:[%s2871] ss:$8 sm:$0x70]
    %v2874 = vor.u32 %v2872, %v2873
    %s2875 = scalar_lea.vmem %s2, 63
    %v2876 = vld [vmem:[%s2875] ss:$8 sm:$0xf]
    %v2877 = vld [vmem:[%s2875] ss:$8 sm:$0x70]
    %v2878 = vor.u32 %v2876, %v2877
    %v2881 = vlaneseq
    %v2882 = vshrl.u32 %v2881, 7
    %v2883 = vsub.s32 0, %v2882
    %v2884 = vrot.slane %v2874, %v2883
    %v2885 = vlaneseq
    %v2886 = vshrl.u32 %v2885, 7
    %v2887 = vsub.s32 1, %v2886
    %v2888 = vrot.slane %v2874, %v2887
    %v2889 = vlaneseq
    %v2890 = vshrl.u32 %v2889, 7
    %v2891 = vsub.s32 2, %v2890
    %v2892 = vrot.slane %v2874, %v2891
    %v2893 = vlaneseq
    %v2894 = vshrl.u32 %v2893, 7
    %v2895 = vsub.s32 3, %v2894
    %v2896 = vrot.slane %v2874, %v2895
    %v2897 = vlaneseq
    %v2898 = vshrl.u32 %v2897, 7
    %v2899 = vsub.s32 4, %v2898
    %v2900 = vrot.slane %v2874, %v2899
    %v2901 = vlaneseq
    %v2902 = vshrl.u32 %v2901, 7
    %v2903 = vsub.s32 5, %v2902
    %v2904 = vrot.slane %v2874, %v2903
    %v2905 = vlaneseq
    %v2906 = vshrl.u32 %v2905, 7
    %v2907 = vsub.s32 6, %v2906
    %v2908 = vrot.slane %v2874, %v2907
    %v2909 = vlaneseq
    %v2910 = vshrl.u32 %v2909, 7
    %v2911 = vsub.s32 0, %v2910
    %v2912 = vrot.slane %v2878, %v2911
    %v2913 = vlaneseq
    %v2914 = vshrl.u32 %v2913, 7
    %v2915 = vsub.s32 1, %v2914
    %v2916 = vrot.slane %v2878, %v2915
    %v2917 = vlaneseq
    %v2918 = vshrl.u32 %v2917, 7
    %v2919 = vsub.s32 2, %v2918
    %v2920 = vrot.slane %v2878, %v2919
    %v2921 = vlaneseq
    %v2922 = vshrl.u32 %v2921, 7
    %v2923 = vsub.s32 3, %v2922
    %v2924 = vrot.slane %v2878, %v2923
    %v2925 = vlaneseq
    %v2926 = vshrl.u32 %v2925, 7
    %v2927 = vsub.s32 4, %v2926
    %v2928 = vrot.slane %v2878, %v2927
    %v2929 = vlaneseq
    %v2930 = vshrl.u32 %v2929, 7
    %v2931 = vsub.s32 5, %v2930
    %v2932 = vrot.slane %v2878, %v2931
    %v2933 = vlaneseq
    %v2934 = vshrl.u32 %v2933, 7
    %v2935 = vsub.s32 6, %v2934
    %v2936 = vrot.slane %v2878, %v2935
    %v2951 = vpack.c.bf16 %v2884, %v2884
    %v2952 = vpack.c.bf16 %v2888, %v2888
    %v2953 = vpack.c.bf16 %v2892, %v2892
    %v2954 = vpack.c.bf16 %v2896, %v2896
    %v2955 = vpack.c.bf16 %v2900, %v2900
    %v2956 = vpack.c.bf16 %v2904, %v2904
    %v2957 = vpack.c.bf16 %v2908, %v2908
    %v2958 = vpack.c.bf16 %v2912, %v2912
    %v2959 = vpack.c.bf16 %v2916, %v2916
    %v2960 = vpack.c.bf16 %v2920, %v2920
    %v2961 = vpack.c.bf16 %v2924, %v2924
    %v2962 = vpack.c.bf16 %v2928, %v2928
    %v2963 = vpack.c.bf16 %v2932, %v2932
    %v2964 = vpack.c.bf16 %v2936, %v2936
    %v2979 = vunpack.c.l.b16 %v2951
    %v2980 = vunpack.c.l.b16 %v2952
    %v2981 = vunpack.c.l.b16 %v2953
    %v2982 = vunpack.c.l.b16 %v2954
    %v2983 = vunpack.c.l.b16 %v2955
    %v2984 = vunpack.c.l.b16 %v2956
    %v2985 = vunpack.c.l.b16 %v2957
    %v2986 = vunpack.c.l.b16 %v2958
    %v2987 = vunpack.c.l.b16 %v2959
    %v2988 = vunpack.c.l.b16 %v2960
    %v2989 = vunpack.c.l.b16 %v2961
    %v2990 = vunpack.c.l.b16 %v2962
    %v2991 = vunpack.c.l.b16 %v2963
    %v2992 = vunpack.c.l.b16 %v2964
    %v2993 = vrot.slane %v2986, 7
    %v2994 = vsel %vm500, %v2993, %v2979
    %v2995 = vrot.slane %v2987, 7
    %v2996 = vsel %vm500, %v2995, %v2980
    %v2997 = vrot.slane %v2988, 7
    %v2998 = vsel %vm500, %v2997, %v2981
    %v2999 = vrot.slane %v2989, 7
    %v3000 = vsel %vm500, %v2999, %v2982
    %v3001 = vrot.slane %v2990, 7
    %v3002 = vsel %vm500, %v3001, %v2983
    %v3003 = vrot.slane %v2991, 7
    %v3004 = vsel %vm500, %v3003, %v2984
    %v3005 = vrot.slane %v2992, 7
    %v3006 = vsel %vm500, %v3005, %v2985
    %v3007 = vpack.c.b16 %v2994, %v2994
    %v3008 = vpack.c.b16 %v2996, %v2996
    %v3009 = vpack.c.b16 %v2998, %v2998
    %v3010 = vpack.c.b16 %v3000, %v3000
    %v3011 = vpack.c.b16 %v3002, %v3002
    %v3012 = vpack.c.b16 %v3004, %v3004
    %v3013 = vpack.c.b16 %v3006, %v3006
    %v3021 = vsel %vm821, %v3013, 0
    %3023 = vmatprep.subr.bf16.mxu0 0
    %3024 = vmatpush1.bf16.msra.mxu0 %v730
    %3025 = vmatprep.subr.bf16.mxu0 0
    %3026 = vmatpush1.bf16.msra.mxu0 %v729
    %3027 = vmatprep.subr.bf16.mxu0 0
    %3028 = vmatpush1.bf16.msra.mxu0 %v728
    %3029 = vmatprep.subr.bf16.mxu0 0
    %3030 = vmatpush1.bf16.msra.mxu0 %v727
    %3031 = vmatprep.subr.bf16.mxu0 0
    %3032 = vmatpush1.bf16.msra.mxu0 %v726
    %3033 = vmatprep.subr.bf16.mxu0 0
    %3034 = vmatpush1.bf16.msra.mxu0 %v725
    %3035 = vmatprep.subr.bf16.mxu0 0
    %3036 = vmatpush1.bf16.msra.mxu0 %v724
    %3037 = vmatprep.subr.bf16.mxu0 0
    %3038 = vmatpush1.bf16.msra.mxu0 %v723
    %3039 = vmatprep.subr.bf16.mxu0 0
    %3040 = vmatpush2.bf16.msra.mxu0 %v738
    %3041 = vmatprep.subr.bf16.mxu0 0
    %3042 = vmatpush2.bf16.msra.mxu0 %v737
    %3043 = vmatprep.subr.bf16.mxu0 0
    %3044 = vmatpush2.bf16.msra.mxu0 %v736
    %3045 = vmatprep.subr.bf16.mxu0 0
    %3046 = vmatpush2.bf16.msra.mxu0 %v735
    %3047 = vmatprep.subr.bf16.mxu0 0
    %3048 = vmatpush2.bf16.msra.mxu0 %v734
    %3049 = vmatprep.subr.bf16.mxu0 0
    %3050 = vmatpush2.bf16.msra.mxu0 %v733
    %3051 = vmatprep.subr.bf16.mxu0 0
    %3052 = vmatpush2.bf16.msra.mxu0 %v732
    %3053 = vmatprep.subr.bf16.mxu0 0
    %3054 = vmatpush2.bf16.msra.mxu0 %v731
    %3055 = vmatprep.mubr.bf16.mxu0 %v3008
    %3056 = vmatmul.mubr.bf16.gmra.mxu0 %v3007
    %v3057 = vpop.f32.mrf.mxu0
    %v3058 = vadd.f32 %v469, %v3057
    %v3059 = vpop.f32.mrf.mxu0
    %v3060 = vpop.f32.mrf.mxu0
    %v3061 = vpop.f32.mrf.mxu0
    %3062 = vdwg.mxu0
    %3063 = vmatprep.subr.bf16.mxu0 0
    %3064 = vmatpush1.bf16.msra.mxu0 %v746
    %3065 = vmatprep.subr.bf16.mxu0 0
    %3066 = vmatpush1.bf16.msra.mxu0 %v745
    %3067 = vmatprep.subr.bf16.mxu0 0
    %3068 = vmatpush1.bf16.msra.mxu0 %v744
    %3069 = vmatprep.subr.bf16.mxu0 0
    %3070 = vmatpush1.bf16.msra.mxu0 %v743
    %3071 = vmatprep.subr.bf16.mxu0 0
    %3072 = vmatpush1.bf16.msra.mxu0 %v742
    %3073 = vmatprep.subr.bf16.mxu0 0
    %3074 = vmatpush1.bf16.msra.mxu0 %v741
    %3075 = vmatprep.subr.bf16.mxu0 0
    %3076 = vmatpush1.bf16.msra.mxu0 %v740
    %3077 = vmatprep.subr.bf16.mxu0 0
    %3078 = vmatpush1.bf16.msra.mxu0 %v739
    %3079 = vmatprep.subr.bf16.mxu0 0
    %3080 = vmatpush2.bf16.msra.mxu0 %v754
    %3081 = vmatprep.subr.bf16.mxu0 0
    %3082 = vmatpush2.bf16.msra.mxu0 %v753
    %3083 = vmatprep.subr.bf16.mxu0 0
    %3084 = vmatpush2.bf16.msra.mxu0 %v752
    %3085 = vmatprep.subr.bf16.mxu0 0
    %3086 = vmatpush2.bf16.msra.mxu0 %v751
    %3087 = vmatprep.subr.bf16.mxu0 0
    %3088 = vmatpush2.bf16.msra.mxu0 %v750
    %3089 = vmatprep.subr.bf16.mxu0 0
    %3090 = vmatpush2.bf16.msra.mxu0 %v749
    %3091 = vmatprep.subr.bf16.mxu0 0
    %3092 = vmatpush2.bf16.msra.mxu0 %v748
    %3093 = vmatprep.subr.bf16.mxu0 0
    %3094 = vmatpush2.bf16.msra.mxu0 %v747
    %3095 = vmatprep.mubr.bf16.mxu0 %v3010
    %3096 = vmatmul.mubr.bf16.gmra.mxu0 %v3009
    %v3097 = vpop.f32.mrf.mxu0
    %v3098 = vadd.f32 %v3058, %v3097
    %v3099 = vpop.f32.mrf.mxu0
    %v3100 = vpop.f32.mrf.mxu0
    %v3101 = vpop.f32.mrf.mxu0
    %3102 = vdwg.mxu0
    %3103 = vmatprep.subr.bf16.mxu0 0
    %3104 = vmatpush1.bf16.msra.mxu0 %v762
    %3105 = vmatprep.subr.bf16.mxu0 0
    %3106 = vmatpush1.bf16.msra.mxu0 %v761
    %3107 = vmatprep.subr.bf16.mxu0 0
    %3108 = vmatpush1.bf16.msra.mxu0 %v760
    %3109 = vmatprep.subr.bf16.mxu0 0
    %3110 = vmatpush1.bf16.msra.mxu0 %v759
    %3111 = vmatprep.subr.bf16.mxu0 0
    %3112 = vmatpush1.bf16.msra.mxu0 %v758
    %3113 = vmatprep.subr.bf16.mxu0 0
    %3114 = vmatpush1.bf16.msra.mxu0 %v757
    %3115 = vmatprep.subr.bf16.mxu0 0
    %3116 = vmatpush1.bf16.msra.mxu0 %v756
    %3117 = vmatprep.subr.bf16.mxu0 0
    %3118 = vmatpush1.bf16.msra.mxu0 %v755
    %3119 = vmatprep.subr.bf16.mxu0 0
    %3120 = vmatpush2.bf16.msra.mxu0 %v770
    %3121 = vmatprep.subr.bf16.mxu0 0
    %3122 = vmatpush2.bf16.msra.mxu0 %v769
    %3123 = vmatprep.subr.bf16.mxu0 0
    %3124 = vmatpush2.bf16.msra.mxu0 %v768
    %3125 = vmatprep.subr.bf16.mxu0 0
    %3126 = vmatpush2.bf16.msra.mxu0 %v767
    %3127 = vmatprep.subr.bf16.mxu0 0
    %3128 = vmatpush2.bf16.msra.mxu0 %v766
    %3129 = vmatprep.subr.bf16.mxu0 0
    %3130 = vmatpush2.bf16.msra.mxu0 %v765
    %3131 = vmatprep.subr.bf16.mxu0 0
    %3132 = vmatpush2.bf16.msra.mxu0 %v764
    %3133 = vmatprep.subr.bf16.mxu0 0
    %3134 = vmatpush2.bf16.msra.mxu0 %v763
    %3135 = vmatprep.mubr.bf16.mxu0 %v3012
    %3136 = vmatmul.mubr.bf16.gmra.mxu0 %v3011
    %v3137 = vpop.f32.mrf.mxu0
    %v3138 = vadd.f32 %v3098, %v3137
    %v3139 = vpop.f32.mrf.mxu0
    %v3140 = vpop.f32.mrf.mxu0
    %v3141 = vpop.f32.mrf.mxu0
    %3142 = vdwg.mxu0
    %3143 = vmatprep.subr.bf16.mxu0 0
    %3144 = vmatpush1.bf16.msra.mxu0 0
    %3145 = vmatprep.subr.bf16.mxu0 0
    %3146 = vmatpush1.bf16.msra.mxu0 0
    %3147 = vmatprep.subr.bf16.mxu0 0
    %3148 = vmatpush1.bf16.msra.mxu0 0
    %3149 = vmatprep.subr.bf16.mxu0 0
    %3150 = vmatpush1.bf16.msra.mxu0 0
    %3151 = vmatprep.subr.bf16.mxu0 0
    %3152 = vmatpush1.bf16.msra.mxu0 0
    %3153 = vmatprep.subr.bf16.mxu0 0
    %3154 = vmatpush1.bf16.msra.mxu0 0
    %3155 = vmatprep.subr.bf16.mxu0 0
    %3156 = vmatpush1.bf16.msra.mxu0 0
    %3157 = vmatprep.subr.bf16.mxu0 0
    %3158 = vmatpush1.bf16.msra.mxu0 %v771
    %3159 = vmatprep.subr.bf16.mxu0 0
    %3160 = vmatpush2.bf16.msra.mxu0 0
    %3161 = vmatprep.subr.bf16.mxu0 0
    %3162 = vmatpush2.bf16.msra.mxu0 0
    %3163 = vmatprep.subr.bf16.mxu0 0
    %3164 = vmatpush2.bf16.msra.mxu0 0
    %3165 = vmatprep.subr.bf16.mxu0 0
    %3166 = vmatpush2.bf16.msra.mxu0 0
    %3167 = vmatprep.subr.bf16.mxu0 0
    %3168 = vmatpush2.bf16.msra.mxu0 0
    %3169 = vmatprep.subr.bf16.mxu0 0
    %3170 = vmatpush2.bf16.msra.mxu0 0
    %3171 = vmatprep.subr.bf16.mxu0 0
    %3172 = vmatpush2.bf16.msra.mxu0 0
    %3173 = vmatprep.subr.bf16.mxu0 0
    %3174 = vmatpush2.bf16.msra.mxu0 0
    %3175 = vmatprep.mubr.bf16.mxu0 0
    %3176 = vmatmul.mubr.bf16.gmra.mxu0 %v3021
    %v3177 = vpop.f32.mrf.mxu0
    %v3178 = vadd.f32 %v3138, %v3177
    %v3179 = vpop.f32.mrf.mxu0
    %v3180 = vpop.f32.mrf.mxu0
    %v3181 = vpop.f32.mrf.mxu0
    %3182 = vdwg.mxu0
    %v3183 = vmax.f32 %v3178, 0.0
    %v3184 = vadd.f32 %v2870, %v3183
    %v3185 = vmul.f32 %v3184, 0.125
    %v3186 = vpack.c.bf16 %v3185, %v3185
    %v3187 = vld [vmem:[%s5] sm:$0xf]
    %v3188 = vld [vmem:[%s5 + $0x4] sm:$0xf]
    %v3189 = vld [vmem:[%s5 + $0x8] sm:$0xf]
    %v3190 = vld [vmem:[%s5 + $0xc] sm:$0xf]
    %v3191 = vld [vmem:[%s10] sm:$0x1]
    %v3193 = vlaneseq
    %v3194 = vshrl.u32 %v3193, 7
    %v3195 = vsub.s32 0, %v3194
    %v3196 = vrot.slane %v3191, %v3195
    %v3202 = vunpack.c.l.b16 %v3187
    %v3203 = vunpack.c.l.b16 %v3188
    %v3204 = vunpack.c.l.b16 %v3189
    %v3205 = vunpack.c.l.b16 %v3190
    %v3206 = vpack.c.b16 %v3203, %v3202
    %v3207 = vpack.c.b16 %v3205, %v3204
    %vm3210 = vcmask 261120
    %v3212 = vsel %vm3210, %v3186, 0
    %3214 = vmatprep.subr.bf16.mxu0 0
    %3215 = vmatpush1.bf16.msra.mxu0 0
    %3216 = vmatprep.subr.bf16.mxu0 0
    %3217 = vmatpush1.bf16.msra.mxu0 0
    %3218 = vmatprep.subr.bf16.mxu0 0
    %3219 = vmatpush1.bf16.msra.mxu0 0
    %3220 = vmatprep.subr.bf16.mxu0 0
    %3221 = vmatpush1.bf16.msra.mxu0 0
    %3222 = vmatprep.subr.bf16.mxu0 0
    %3223 = vmatpush1.bf16.msra.mxu0 0
    %3224 = vmatprep.subr.bf16.mxu0 0
    %3225 = vmatpush1.bf16.msra.mxu0 0
    %3226 = vmatprep.subr.bf16.mxu0 0
    %3227 = vmatpush1.bf16.msra.mxu0 %v3207
    %3228 = vmatprep.subr.bf16.mxu0 0
    %3229 = vmatpush1.bf16.msra.mxu0 %v3206
    %3230 = vmatprep.subr.bf16.mxu0 0
    %3231 = vmatpush2.bf16.msra.mxu0 0
    %3232 = vmatprep.subr.bf16.mxu0 0
    %3233 = vmatpush2.bf16.msra.mxu0 0
    %3234 = vmatprep.subr.bf16.mxu0 0
    %3235 = vmatpush2.bf16.msra.mxu0 0
    %3236 = vmatprep.subr.bf16.mxu0 0
    %3237 = vmatpush2.bf16.msra.mxu0 0
    %3238 = vmatprep.subr.bf16.mxu0 0
    %3239 = vmatpush2.bf16.msra.mxu0 0
    %3240 = vmatprep.subr.bf16.mxu0 0
    %3241 = vmatpush2.bf16.msra.mxu0 0
    %3242 = vmatprep.subr.bf16.mxu0 0
    %3243 = vmatpush2.bf16.msra.mxu0 0
    %3244 = vmatprep.subr.bf16.mxu0 0
    %3245 = vmatpush2.bf16.msra.mxu0 0
    %3246 = vmatprep.mubr.bf16.mxu0 0
    %3247 = vmatmul.mubr.bf16.gmra.mxu0 %v3212
    %v3248 = vpop.f32.mrf.mxu0
    %v3249 = vadd.f32 %v3196, %v3248
    %v3250 = vpop.f32.mrf.mxu0
    %v3251 = vpop.f32.mrf.mxu0
    %v3252 = vpop.f32.mrf.mxu0
    %3253 = vdwg.mxu0
    %v3254 = vld [vmem:[%s1] sm:$0xff]
    %v3255 = vld [vmem:[%s1 + $0x8] sm:$0x3f]
    %v3258 = vcombine.high %v3254, %v3254
    %v3260 = vunpack.c.l.s4 1983009808
    %v3261 = vunpack.c.0.s8 %v3260
    %v3262 = vlaneseq
    %v3263 = vshrl.u32 %v3262, 7
    %v3264 = vsub.s32 %v3261, %v3263
    %v3265 = vrot.slane %v3254, %v3264
    %v3267 = vunpack.c.l.s4 1983009808
    %v3268 = vunpack.c.0.s8 %v3267
    %v3269 = vlaneseq
    %v3270 = vshrl.u32 %v3269, 7
    %v3271 = vsub.s32 %v3268, %v3270
    %v3272 = vrot.slane %v3258, %v3271
    %v3273 = vcombine.high %v3265, %v3265
    %v3274 = vcombine.high %v3272, %v3272
    %v3275 = vcombine.high %v3255, %v3255
    %v3277 = vunpack.c.l.s4 1983009808
    %v3278 = vunpack.c.0.s8 %v3277
    %v3279 = vlaneseq
    %v3280 = vshrl.u32 %v3279, 7
    %v3281 = vsub.s32 %v3278, %v3280
    %v3282 = vrot.slane %v3255, %v3281
    %v3284 = vunpack.c.l.s4 1983009808
    %v3285 = vunpack.c.0.s8 %v3284
    %v3286 = vlaneseq
    %v3287 = vshrl.u32 %v3286, 7
    %v3288 = vsub.s32 %v3285, %v3287
    %v3289 = vrot.slane %v3275, %v3288
    %v3290 = vcombine.high %v3282, %v3282
    %v3298 = vpack.c.bf16 %v3265, %v3265
    %v3299 = vpack.c.bf16 %v3273, %v3273
    %v3300 = vpack.c.bf16 %v3272, %v3272
    %v3301 = vpack.c.bf16 %v3274, %v3274
    %v3302 = vpack.c.bf16 %v3282, %v3282
    %v3303 = vpack.c.bf16 %v3290, %v3290
    %v3304 = vpack.c.bf16 %v3289, %v3289
    %v3305 = vpack.c.bf16 %v3249, %v3249
    %v3306 = vld [vmem:[%s6] sm:$0xf]
    %v3307 = vld [vmem:[%s6 + $0x4] sm:$0xf]
    %v3308 = vld [vmem:[%s6 + $0x8] sm:$0xf]
    %v3309 = vld [vmem:[%s6 + $0xc] sm:$0xf]
    %v3314 = vunpack.c.l.b16 %v3306
    %v3315 = vunpack.c.l.b16 %v3307
    %v3316 = vunpack.c.l.b16 %v3308
    %v3317 = vunpack.c.l.b16 %v3309
    %v3318 = vpack.c.b16 %v3315, %v3314
    %v3319 = vpack.c.b16 %v3317, %v3316
    %v3323 = vsel %vm3210, %v3305, 0
    %3325 = vmatprep.subr.bf16.mxu0 0
    %3326 = vmatpush1.bf16.msra.mxu0 0
    %3327 = vmatprep.subr.bf16.mxu0 0
    %3328 = vmatpush1.bf16.msra.mxu0 0
    %3329 = vmatprep.subr.bf16.mxu0 0
    %3330 = vmatpush1.bf16.msra.mxu0 0
    %3331 = vmatprep.subr.bf16.mxu0 0
    %3332 = vmatpush1.bf16.msra.mxu0 0
    %3333 = vmatprep.subr.bf16.mxu0 0
    %3334 = vmatpush1.bf16.msra.mxu0 0
    %3335 = vmatprep.subr.bf16.mxu0 0
    %3336 = vmatpush1.bf16.msra.mxu0 0
    %3337 = vmatprep.subr.bf16.mxu0 0
    %3338 = vmatpush1.bf16.msra.mxu0 %v3319
    %3339 = vmatprep.subr.bf16.mxu0 0
    %3340 = vmatpush1.bf16.msra.mxu0 %v3318
    %3341 = vmatprep.subr.bf16.mxu0 0
    %3342 = vmatpush2.bf16.msra.mxu0 0
    %3343 = vmatprep.subr.bf16.mxu0 0
    %3344 = vmatpush2.bf16.msra.mxu0 0
    %3345 = vmatprep.subr.bf16.mxu0 0
    %3346 = vmatpush2.bf16.msra.mxu0 0
    %3347 = vmatprep.subr.bf16.mxu0 0
    %3348 = vmatpush2.bf16.msra.mxu0 0
    %3349 = vmatprep.subr.bf16.mxu0 0
    %3350 = vmatpush2.bf16.msra.mxu0 0
    %3351 = vmatprep.subr.bf16.mxu0 0
    %3352 = vmatpush2.bf16.msra.mxu0 0
    %3353 = vmatprep.subr.bf16.mxu0 0
    %3354 = vmatpush2.bf16.msra.mxu0 0
    %3355 = vmatprep.subr.bf16.mxu0 0
    %3356 = vmatpush2.bf16.msra.mxu0 0
    %3357 = vmatprep.mubr.bf16.mxu0 0
    %3358 = vmatmul.mubr.bf16.gmra.mxu0 %v3323
    %v3359 = vpop.f32.mrf.mxu0
    %v3360 = vadd.f32 0.0, %v3359
    %v3361 = vpop.f32.mrf.mxu0
    %v3362 = vpop.f32.mrf.mxu0
    %v3363 = vpop.f32.mrf.mxu0
    %3364 = vdwg.mxu0
    %v3463 = vunpack.c.l.b16 %v273
    %v3464 = vunpack.c.l.b16 %v274
    %v3465 = vunpack.c.l.b16 %v275
    %v3466 = vunpack.c.l.b16 %v276
    %v3467 = vunpack.c.l.b16 %v277
    %v3468 = vunpack.c.l.b16 %v278
    %v3469 = vunpack.c.l.b16 %v279
    %v3470 = vunpack.c.l.b16 %v280
    %v3471 = vunpack.c.l.b16 %v281
    %v3472 = vunpack.c.l.b16 %v282
    %v3473 = vunpack.c.l.b16 %v283
    %v3474 = vunpack.c.l.b16 %v284
    %v3475 = vunpack.c.l.b16 %v285
    %v3476 = vunpack.c.l.b16 %v286
    %v3477 = vunpack.c.l.b16 %v287
    %v3478 = vunpack.c.l.b16 %v288
    %v3479 = vunpack.c.l.b16 %v289
    %v3480 = vunpack.c.l.b16 %v290
    %v3481 = vunpack.c.l.b16 %v291
    %v3482 = vunpack.c.l.b16 %v292
    %v3483 = vunpack.c.l.b16 %v293
    %v3484 = vunpack.c.l.b16 %v294
    %v3485 = vunpack.c.l.b16 %v295
    %v3486 = vunpack.c.l.b16 %v296
    %v3487 = vunpack.c.l.b16 %v297
    %v3488 = vunpack.c.l.b16 %v298
    %v3489 = vunpack.c.l.b16 %v299
    %v3490 = vunpack.c.l.b16 %v300
    %v3491 = vunpack.c.l.b16 %v301
    %v3492 = vunpack.c.l.b16 %v302
    %v3493 = vunpack.c.l.b16 %v303
    %v3494 = vunpack.c.l.b16 %v304
    %v3495 = vunpack.c.l.b16 %v305
    %v3496 = vunpack.c.l.b16 %v306
    %v3497 = vunpack.c.l.b16 %v307
    %v3498 = vunpack.c.l.b16 %v308
    %v3499 = vunpack.c.l.b16 %v309
    %v3500 = vunpack.c.l.b16 %v310
    %v3501 = vunpack.c.l.b16 %v311
    %v3502 = vunpack.c.l.b16 %v312
    %v3503 = vunpack.c.l.b16 %v313
    %v3504 = vunpack.c.l.b16 %v314
    %v3505 = vunpack.c.l.b16 %v315
    %v3506 = vunpack.c.l.b16 %v316
    %v3507 = vunpack.c.l.b16 %v317
    %v3508 = vunpack.c.l.b16 %v318
    %v3509 = vunpack.c.l.b16 %v319
    %v3510 = vunpack.c.l.b16 %v320
    %v3511 = vunpack.c.l.b16 %v321
    %v3512 = vunpack.c.l.b16 %v322
    %v3513 = vunpack.c.l.b16 %v323
    %v3514 = vunpack.c.l.b16 %v324
    %v3515 = vunpack.c.l.b16 %v325
    %v3516 = vunpack.c.l.b16 %v326
    %v3517 = vunpack.c.l.b16 %v327
    %v3518 = vunpack.c.l.b16 %v328
    %v3519 = vunpack.c.l.b16 %v329
    %v3520 = vunpack.c.l.b16 %v330
    %v3521 = vunpack.c.l.b16 %v331
    %v3522 = vunpack.c.l.b16 %v332
    %v3523 = vunpack.c.l.b16 %v333
    %v3524 = vunpack.c.l.b16 %v334
    %v3525 = vunpack.c.l.b16 %v335
    %v3526 = vunpack.c.l.b16 %v336
    %v3527 = vunpack.c.l.b16 %v337
    %v3528 = vunpack.c.l.b16 %v338
    %v3529 = vunpack.c.l.b16 %v339
    %v3530 = vunpack.c.l.b16 %v340
    %v3531 = vunpack.c.l.b16 %v341
    %v3532 = vunpack.c.l.b16 %v342
    %v3533 = vunpack.c.l.b16 %v343
    %v3534 = vunpack.c.l.b16 %v344
    %v3535 = vunpack.c.l.b16 %v345
    %v3536 = vunpack.c.l.b16 %v346
    %v3537 = vunpack.c.l.b16 %v347
    %v3538 = vunpack.c.l.b16 %v348
    %v3539 = vunpack.c.l.b16 %v349
    %v3540 = vunpack.c.l.b16 %v350
    %v3541 = vunpack.c.l.b16 %v351
    %v3542 = vunpack.c.l.b16 %v352
    %v3543 = vunpack.c.l.b16 %v353
    %v3544 = vunpack.c.l.b16 %v354
    %v3545 = vunpack.c.l.b16 %v355
    %v3546 = vunpack.c.l.b16 %v356
    %v3547 = vunpack.c.l.b16 %v357
    %v3548 = vunpack.c.l.b16 %v358
    %v3549 = vunpack.c.l.b16 %v359
    %v3550 = vunpack.c.l.b16 %v360
    %v3551 = vunpack.c.l.b16 %v361
    %v3552 = vunpack.c.l.b16 %v362
    %v3553 = vunpack.c.l.b16 %v363
    %v3554 = vunpack.c.l.b16 %v364
    %v3555 = vunpack.c.l.b16 %v365
    %v3556 = vunpack.c.l.b16 %v366
    %v3557 = vunpack.c.l.b16 %v367
    %v3558 = vunpack.c.l.b16 %v368
    %v3559 = vunpack.c.l.b16 %v369
    %v3560 = vunpack.c.l.b16 %v370
    %v3561 = vpack.c.b16 %v3464, %v3463
    %v3562 = vpack.c.b16 %v3466, %v3465
    %v3563 = vpack.c.b16 %v3468, %v3467
    %v3564 = vpack.c.b16 %v3470, %v3469
    %v3565 = vpack.c.b16 %v3472, %v3471
    %v3566 = vpack.c.b16 %v3474, %v3473
    %v3567 = vpack.c.b16 %v3476, %v3475
    %v3568 = vpack.c.b16 %v3478, %v3477
    %v3569 = vpack.c.b16 %v3480, %v3479
    %v3570 = vpack.c.b16 %v3482, %v3481
    %v3571 = vpack.c.b16 %v3484, %v3483
    %v3572 = vpack.c.b16 %v3486, %v3485
    %v3573 = vpack.c.b16 %v3488, %v3487
    %v3574 = vpack.c.b16 %v3490, %v3489
    %v3575 = vpack.c.b16 %v3492, %v3491
    %v3576 = vpack.c.b16 %v3494, %v3493
    %v3577 = vpack.c.b16 %v3496, %v3495
    %v3578 = vpack.c.b16 %v3498, %v3497
    %v3579 = vpack.c.b16 %v3500, %v3499
    %v3580 = vpack.c.b16 %v3502, %v3501
    %v3581 = vpack.c.b16 %v3504, %v3503
    %v3582 = vpack.c.b16 %v3506, %v3505
    %v3583 = vpack.c.b16 %v3508, %v3507
    %v3584 = vpack.c.b16 %v3510, %v3509
    %v3585 = vpack.c.b16 %v3512, %v3511
    %v3586 = vpack.c.b16 %v3514, %v3513
    %v3587 = vpack.c.b16 %v3516, %v3515
    %v3588 = vpack.c.b16 %v3518, %v3517
    %v3589 = vpack.c.b16 %v3520, %v3519
    %v3590 = vpack.c.b16 %v3522, %v3521
    %v3591 = vpack.c.b16 %v3524, %v3523
    %v3592 = vpack.c.b16 %v3526, %v3525
    %v3593 = vpack.c.b16 %v3528, %v3527
    %v3594 = vpack.c.b16 %v3530, %v3529
    %v3595 = vpack.c.b16 %v3532, %v3531
    %v3596 = vpack.c.b16 %v3534, %v3533
    %v3597 = vpack.c.b16 %v3536, %v3535
    %v3598 = vpack.c.b16 %v3538, %v3537
    %v3599 = vpack.c.b16 %v3540, %v3539
    %v3600 = vpack.c.b16 %v3542, %v3541
    %v3601 = vpack.c.b16 %v3544, %v3543
    %v3602 = vpack.c.b16 %v3546, %v3545
    %v3603 = vpack.c.b16 %v3548, %v3547
    %v3604 = vpack.c.b16 %v3550, %v3549
    %v3605 = vpack.c.b16 %v3552, %v3551
    %v3606 = vpack.c.b16 %v3554, %v3553
    %v3607 = vpack.c.b16 %v3556, %v3555
    %v3608 = vpack.c.b16 %v3558, %v3557
    %v3609 = vpack.c.b16 %v3560, %v3559
    %v3660 = vsel %vm821, %v3304, 0
    %3662 = vmatprep.subr.bf16.mxu0 0
    %3663 = vmatpush1.bf16.msra.mxu0 %v3568
    %3664 = vmatprep.subr.bf16.mxu0 0
    %3665 = vmatpush1.bf16.msra.mxu0 %v3567
    %3666 = vmatprep.subr.bf16.mxu0 0
    %3667 = vmatpush1.bf16.msra.mxu0 %v3566
    %3668 = vmatprep.subr.bf16.mxu0 0
    %3669 = vmatpush1.bf16.msra.mxu0 %v3565
    %3670 = vmatprep.subr.bf16.mxu0 0
    %3671 = vmatpush1.bf16.msra.mxu0 %v3564
    %3672 = vmatprep.subr.bf16.mxu0 0
    %3673 = vmatpush1.bf16.msra.mxu0 %v3563
    %3674 = vmatprep.subr.bf16.mxu0 0
    %3675 = vmatpush1.bf16.msra.mxu0 %v3562
    %3676 = vmatprep.subr.bf16.mxu0 0
    %3677 = vmatpush1.bf16.msra.mxu0 %v3561
    %3678 = vmatprep.subr.bf16.mxu0 0
    %3679 = vmatpush2.bf16.msra.mxu0 %v3576
    %3680 = vmatprep.subr.bf16.mxu0 0
    %3681 = vmatpush2.bf16.msra.mxu0 %v3575
    %3682 = vmatprep.subr.bf16.mxu0 0
    %3683 = vmatpush2.bf16.msra.mxu0 %v3574
    %3684 = vmatprep.subr.bf16.mxu0 0
    %3685 = vmatpush2.bf16.msra.mxu0 %v3573
    %3686 = vmatprep.subr.bf16.mxu0 0
    %3687 = vmatpush2.bf16.msra.mxu0 %v3572
    %3688 = vmatprep.subr.bf16.mxu0 0
    %3689 = vmatpush2.bf16.msra.mxu0 %v3571
    %3690 = vmatprep.subr.bf16.mxu0 0
    %3691 = vmatpush2.bf16.msra.mxu0 %v3570
    %3692 = vmatprep.subr.bf16.mxu0 0
    %3693 = vmatpush2.bf16.msra.mxu0 %v3569
    %3694 = vmatprep.mubr.bf16.mxu0 %v3299
    %3695 = vmatmul.mubr.bf16.gmra.mxu0 %v3298
    %v3696 = vpop.f32.mrf.mxu0
    %v3697 = vadd.f32 %v3360, %v3696
    %v3698 = vpop.f32.mrf.mxu0
    %v3699 = vpop.f32.mrf.mxu0
    %v3700 = vpop.f32.mrf.mxu0
    %3701 = vdwg.mxu0
    %3702 = vmatprep.subr.bf16.mxu0 0
    %3703 = vmatpush1.bf16.msra.mxu0 %v3584
    %3704 = vmatprep.subr.bf16.mxu0 0
    %3705 = vmatpush1.bf16.msra.mxu0 %v3583
    %3706 = vmatprep.subr.bf16.mxu0 0
    %3707 = vmatpush1.bf16.msra.mxu0 %v3582
    %3708 = vmatprep.subr.bf16.mxu0 0
    %3709 = vmatpush1.bf16.msra.mxu0 %v3581
    %3710 = vmatprep.subr.bf16.mxu0 0
    %3711 = vmatpush1.bf16.msra.mxu0 %v3580
    %3712 = vmatprep.subr.bf16.mxu0 0
    %3713 = vmatpush1.bf16.msra.mxu0 %v3579
    %3714 = vmatprep.subr.bf16.mxu0 0
    %3715 = vmatpush1.bf16.msra.mxu0 %v3578
    %3716 = vmatprep.subr.bf16.mxu0 0
    %3717 = vmatpush1.bf16.msra.mxu0 %v3577
    %3718 = vmatprep.subr.bf16.mxu0 0
    %3719 = vmatpush2.bf16.msra.mxu0 %v3592
    %3720 = vmatprep.subr.bf16.mxu0 0
    %3721 = vmatpush2.bf16.msra.mxu0 %v3591
    %3722 = vmatprep.subr.bf16.mxu0 0
    %3723 = vmatpush2.bf16.msra.mxu0 %v3590
    %3724 = vmatprep.subr.bf16.mxu0 0
    %3725 = vmatpush2.bf16.msra.mxu0 %v3589
    %3726 = vmatprep.subr.bf16.mxu0 0
    %3727 = vmatpush2.bf16.msra.mxu0 %v3588
    %3728 = vmatprep.subr.bf16.mxu0 0
    %3729 = vmatpush2.bf16.msra.mxu0 %v3587
    %3730 = vmatprep.subr.bf16.mxu0 0
    %3731 = vmatpush2.bf16.msra.mxu0 %v3586
    %3732 = vmatprep.subr.bf16.mxu0 0
    %3733 = vmatpush2.bf16.msra.mxu0 %v3585
    %3734 = vmatprep.mubr.bf16.mxu0 %v3301
    %3735 = vmatmul.mubr.bf16.gmra.mxu0 %v3300
    %v3736 = vpop.f32.mrf.mxu0
    %v3737 = vadd.f32 %v3697, %v3736
    %v3738 = vpop.f32.mrf.mxu0
    %v3739 = vpop.f32.mrf.mxu0
    %v3740 = vpop.f32.mrf.mxu0
    %3741 = vdwg.mxu0
    %3742 = vmatprep.subr.bf16.mxu0 0
    %3743 = vmatpush1.bf16.msra.mxu0 %v3600
    %3744 = vmatprep.subr.bf16.mxu0 0
    %3745 = vmatpush1.bf16.msra.mxu0 %v3599
    %3746 = vmatprep.subr.bf16.mxu0 0
    %3747 = vmatpush1.bf16.msra.mxu0 %v3598
    %3748 = vmatprep.subr.bf16.mxu0 0
    %3749 = vmatpush1.bf16.msra.mxu0 %v3597
    %3750 = vmatprep.subr.bf16.mxu0 0
    %3751 = vmatpush1.bf16.msra.mxu0 %v3596
    %3752 = vmatprep.subr.bf16.mxu0 0
    %3753 = vmatpush1.bf16.msra.mxu0 %v3595
    %3754 = vmatprep.subr.bf16.mxu0 0
    %3755 = vmatpush1.bf16.msra.mxu0 %v3594
    %3756 = vmatprep.subr.bf16.mxu0 0
    %3757 = vmatpush1.bf16.msra.mxu0 %v3593
    %3758 = vmatprep.subr.bf16.mxu0 0
    %3759 = vmatpush2.bf16.msra.mxu0 %v3608
    %3760 = vmatprep.subr.bf16.mxu0 0
    %3761 = vmatpush2.bf16.msra.mxu0 %v3607
    %3762 = vmatprep.subr.bf16.mxu0 0
    %3763 = vmatpush2.bf16.msra.mxu0 %v3606
    %3764 = vmatprep.subr.bf16.mxu0 0
    %3765 = vmatpush2.bf16.msra.mxu0 %v3605
    %3766 = vmatprep.subr.bf16.mxu0 0
    %3767 = vmatpush2.bf16.msra.mxu0 %v3604
    %3768 = vmatprep.subr.bf16.mxu0 0
    %3769 = vmatpush2.bf16.msra.mxu0 %v3603
    %3770 = vmatprep.subr.bf16.mxu0 0
    %3771 = vmatpush2.bf16.msra.mxu0 %v3602
    %3772 = vmatprep.subr.bf16.mxu0 0
    %3773 = vmatpush2.bf16.msra.mxu0 %v3601
    %3774 = vmatprep.mubr.bf16.mxu0 %v3303
    %3775 = vmatmul.mubr.bf16.gmra.mxu0 %v3302
    %v3776 = vpop.f32.mrf.mxu0
    %v3777 = vadd.f32 %v3737, %v3776
    %v3778 = vpop.f32.mrf.mxu0
    %v3779 = vpop.f32.mrf.mxu0
    %v3780 = vpop.f32.mrf.mxu0
    %3781 = vdwg.mxu0
    %3782 = vmatprep.subr.bf16.mxu0 0
    %3783 = vmatpush1.bf16.msra.mxu0 0
    %3784 = vmatprep.subr.bf16.mxu0 0
    %3785 = vmatpush1.bf16.msra.mxu0 0
    %3786 = vmatprep.subr.bf16.mxu0 0
    %3787 = vmatpush1.bf16.msra.mxu0 0
    %3788 = vmatprep.subr.bf16.mxu0 0
    %3789 = vmatpush1.bf16.msra.mxu0 0
    %3790 = vmatprep.subr.bf16.mxu0 0
    %3791 = vmatpush1.bf16.msra.mxu0 0
    %3792 = vmatprep.subr.bf16.mxu0 0
    %3793 = vmatpush1.bf16.msra.mxu0 0
    %3794 = vmatprep.subr.bf16.mxu0 0
    %3795 = vmatpush1.bf16.msra.mxu0 0
    %3796 = vmatprep.subr.bf16.mxu0 0
    %3797 = vmatpush1.bf16.msra.mxu0 %v3609
    %3798 = vmatprep.subr.bf16.mxu0 0
    %3799 = vmatpush2.bf16.msra.mxu0 0
    %3800 = vmatprep.subr.bf16.mxu0 0
    %3801 = vmatpush2.bf16.msra.mxu0 0
    %3802 = vmatprep.subr.bf16.mxu0 0
    %3803 = vmatpush2.bf16.msra.mxu0 0
    %3804 = vmatprep.subr.bf16.mxu0 0
    %3805 = vmatpush2.bf16.msra.mxu0 0
    %3806 = vmatprep.subr.bf16.mxu0 0
    %3807 = vmatpush2.bf16.msra.mxu0 0
    %3808 = vmatprep.subr.bf16.mxu0 0
    %3809 = vmatpush2.bf16.msra.mxu0 0
    %3810 = vmatprep.subr.bf16.mxu0 0
    %3811 = vmatpush2.bf16.msra.mxu0 0
    %3812 = vmatprep.subr.bf16.mxu0 0
    %3813 = vmatpush2.bf16.msra.mxu0 0
    %3814 = vmatprep.mubr.bf16.mxu0 0
    %3815 = vmatmul.mubr.bf16.gmra.mxu0 %v3660
    %v3816 = vpop.f32.mrf.mxu0
    %v3817 = vadd.f32 %v3777, %v3816
    %v3818 = vpop.f32.mrf.mxu0
    %v3819 = vpop.f32.mrf.mxu0
    %v3820 = vpop.f32.mrf.mxu0
    %3821 = vdwg.mxu0
    %v3822 = vld [vmem:[%s11] sm:$0x1]
    %v3824 = vlaneseq
    %v3825 = vshrl.u32 %v3824, 7
    %v3826 = vsub.s32 0, %v3825
    %v3827 = vrot.slane %v3822, %v3826
    %v3829 = vadd.f32 %v3817, %v3827
    %v3830 = vmax.f32 %v3829, 0.0
    %v3831 = vpack.c.bf16 %v3830, %v3830
    %v3832 = vld [vmem:[%s7] sm:$0xf]
    %v3833 = vld [vmem:[%s7 + $0x4] sm:$0xf]
    %v3834 = vld [vmem:[%s7 + $0x8] sm:$0xf]
    %v3835 = vld [vmem:[%s7 + $0xc] sm:$0xf]
    %v3836 = vld [vmem:[%s12] sm:$0x1]
    %v3838 = vlaneseq
    %v3839 = vshrl.u32 %v3838, 7
    %v3840 = vsub.s32 0, %v3839
    %v3841 = vrot.slane %v3836, %v3840
    %v3847 = vunpack.c.l.b16 %v3832
    %v3848 = vunpack.c.l.b16 %v3833
    %v3849 = vunpack.c.l.b16 %v3834
    %v3850 = vunpack.c.l.b16 %v3835
    %v3851 = vpack.c.b16 %v3848, %v3847
    %v3852 = vpack.c.b16 %v3850, %v3849
    %v3856 = vsel %vm3210, %v3831, 0
    %3858 = vmatprep.subr.bf16.mxu0 0
    %3859 = vmatpush1.bf16.msra.mxu0 0
    %3860 = vmatprep.subr.bf16.mxu0 0
    %3861 = vmatpush1.bf16.msra.mxu0 0
    %3862 = vmatprep.subr.bf16.mxu0 0
    %3863 = vmatpush1.bf16.msra.mxu0 0
    %3864 = vmatprep.subr.bf16.mxu0 0
    %3865 = vmatpush1.bf16.msra.mxu0 0
    %3866 = vmatprep.subr.bf16.mxu0 0
    %3867 = vmatpush1.bf16.msra.mxu0 0
    %3868 = vmatprep.subr.bf16.mxu0 0
    %3869 = vmatpush1.bf16.msra.mxu0 0
    %3870 = vmatprep.subr.bf16.mxu0 0
    %3871 = vmatpush1.bf16.msra.mxu0 %v3852
    %3872 = vmatprep.subr.bf16.mxu0 0
    %3873 = vmatpush1.bf16.msra.mxu0 %v3851
    %3874 = vmatprep.subr.bf16.mxu0 0
    %3875 = vmatpush2.bf16.msra.mxu0 0
    %3876 = vmatprep.subr.bf16.mxu0 0
    %3877 = vmatpush2.bf16.msra.mxu0 0
    %3878 = vmatprep.subr.bf16.mxu0 0
    %3879 = vmatpush2.bf16.msra.mxu0 0
    %3880 = vmatprep.subr.bf16.mxu0 0
    %3881 = vmatpush2.bf16.msra.mxu0 0
    %3882 = vmatprep.subr.bf16.mxu0 0
    %3883 = vmatpush2.bf16.msra.mxu0 0
    %3884 = vmatprep.subr.bf16.mxu0 0
    %3885 = vmatpush2.bf16.msra.mxu0 0
    %3886 = vmatprep.subr.bf16.mxu0 0
    %3887 = vmatpush2.bf16.msra.mxu0 0
    %3888 = vmatprep.subr.bf16.mxu0 0
    %3889 = vmatpush2.bf16.msra.mxu0 0
    %3890 = vmatprep.mubr.bf16.mxu0 0
    %3891 = vmatmul.mubr.bf16.gmra.mxu0 %v3856
    %v3892 = vpop.f32.mrf.mxu0
    %v3893 = vadd.f32 %v3841, %v3892
    %v3894 = vpop.f32.mrf.mxu0
    %v3895 = vpop.f32.mrf.mxu0
    %v3896 = vpop.f32.mrf.mxu0
    %3897 = vdwg.mxu0
    %v3898 = vmax.f32 %v3893, 0.0
    %v3899 = vpack.c.bf16 %v3898, %v3898
    %v3900 = vld [vmem:[%s8] sm:$0xf]
    %v3901 = vld [vmem:[%s8 + $0x4] sm:$0xf]
    %v3902 = vld [vmem:[%s8 + $0x8] sm:$0xf]
    %v3903 = vld [vmem:[%s8 + $0xc] sm:$0xf]
    %v3904 = vld [vmem:[%s13] sm:$0x1]
    %v3906 = vlaneseq
    %v3907 = vshrl.u32 %v3906, 7
    %v3908 = vsub.s32 0, %v3907
    %v3909 = vrot.slane %v3904, %v3908
    %v3915 = vunpack.c.l.b16 %v3900
    %v3916 = vunpack.c.l.b16 %v3901
    %v3917 = vunpack.c.l.b16 %v3902
    %v3918 = vunpack.c.l.b16 %v3903
    %v3919 = vpack.c.b16 %v3916, %v3915
    %v3920 = vpack.c.b16 %v3918, %v3917
    %v3924 = vsel %vm3210, %v3899, 0
    %3926 = vmatprep.subr.bf16.mxu0 0
    %3927 = vmatpush1.bf16.msra.mxu0 0
    %3928 = vmatprep.subr.bf16.mxu0 0
    %3929 = vmatpush1.bf16.msra.mxu0 0
    %3930 = vmatprep.subr.bf16.mxu0 0
    %3931 = vmatpush1.bf16.msra.mxu0 0
    %3932 = vmatprep.subr.bf16.mxu0 0
    %3933 = vmatpush1.bf16.msra.mxu0 0
    %3934 = vmatprep.subr.bf16.mxu0 0
    %3935 = vmatpush1.bf16.msra.mxu0 0
    %3936 = vmatprep.subr.bf16.mxu0 0
    %3937 = vmatpush1.bf16.msra.mxu0 0
    %3938 = vmatprep.subr.bf16.mxu0 0
    %3939 = vmatpush1.bf16.msra.mxu0 %v3920
    %3940 = vmatprep.subr.bf16.mxu0 0
    %3941 = vmatpush1.bf16.msra.mxu0 %v3919
    %3942 = vmatprep.subr.bf16.mxu0 0
    %3943 = vmatpush2.bf16.msra.mxu0 0
    %3944 = vmatprep.subr.bf16.mxu0 0
    %3945 = vmatpush2.bf16.msra.mxu0 0
    %3946 = vmatprep.subr.bf16.mxu0 0
    %3947 = vmatpush2.bf16.msra.mxu0 0
    %3948 = vmatprep.subr.bf16.mxu0 0
    %3949 = vmatpush2.bf16.msra.mxu0 0
    %3950 = vmatprep.subr.bf16.mxu0 0
    %3951 = vmatpush2.bf16.msra.mxu0 0
    %3952 = vmatprep.subr.bf16.mxu0 0
    %3953 = vmatpush2.bf16.msra.mxu0 0
    %3954 = vmatprep.subr.bf16.mxu0 0
    %3955 = vmatpush2.bf16.msra.mxu0 0
    %3956 = vmatprep.subr.bf16.mxu0 0
    %3957 = vmatpush2.bf16.msra.mxu0 0
    %3958 = vmatprep.mubr.bf16.mxu0 0
    %3959 = vmatmul.mubr.bf16.gmra.mxu0 %v3924
    %v3960 = vpop.f32.mrf.mxu0
    %v3961 = vadd.f32 %v3909, %v3960
    %v3962 = vpop.f32.mrf.mxu0
    %v3963 = vpop.f32.mrf.mxu0
    %v3964 = vpop.f32.mrf.mxu0
    %3965 = vdwg.mxu0
    %v3966 = vld [vmem:[%s3] sm:$0x3]
    %v3967 = vmul.f32 %v3961, 0.5
    %v3968 = vmul.f32 %v3967, 1.442695
    %v3969 = vpow.pop %v3968
    %3971 = vrot.lane.b32.xlu0 %v3969, 120
    %v3972 = vpop.permute.xlu0 %3971
    %v3974 = vmul.f32 %v3966, %v3972
    %v3975 = vadd.f32 %v3974, %v3961
    %v3976 = vpack.c.bf16 %v3975, %v3975
    %v3977 = vld [vmem:[%s141] sm:$0xf]
    %v3978 = vld [vmem:[%s160] sm:$0x1]
    %v3980 = vlaneseq
    %v3981 = vshrl.u32 %v3980, 7
    %v3982 = vsub.s32 0, %v3981
    %v3983 = vrot.slane %v3978, %v3982
    %vm3985 = vcmask 64512
    %v3987 = vsel %vm3985, %v3976, 0
    %vm3989 = vcmask 1043456
    %v3991 = vsel %vm3989, %v3977, 0
    %3993 = vmatprep.subr.bf16.mxu0 0
    %3994 = vmatpush1.bf16.msra.mxu0 0
    %3995 = vmatprep.subr.bf16.mxu0 0
    %3996 = vmatpush1.bf16.msra.mxu0 0
    %3997 = vmatprep.subr.bf16.mxu0 0
    %3998 = vmatpush1.bf16.msra.mxu0 0
    %3999 = vmatprep.subr.bf16.mxu0 0
    %4000 = vmatpush1.bf16.msra.mxu0 0
    %4001 = vmatprep.subr.bf16.mxu0 0
    %4002 = vmatpush1.bf16.msra.mxu0 0
    %4003 = vmatprep.subr.bf16.mxu0 0
    %4004 = vmatpush1.bf16.msra.mxu0 0
    %4005 = vmatprep.subr.bf16.mxu0 0
    %4006 = vmatpush1.bf16.msra.mxu0 0
    %4007 = vmatprep.subr.bf16.mxu0 0
    %4008 = vmatpush1.bf16.msra.mxu0 %v3991
    %4009 = vmatprep.subr.bf16.mxu0 0
    %4010 = vmatpush2.bf16.msra.mxu0 0
    %4011 = vmatprep.subr.bf16.mxu0 0
    %4012 = vmatpush2.bf16.msra.mxu0 0
    %4013 = vmatprep.subr.bf16.mxu0 0
    %4014 = vmatpush2.bf16.msra.mxu0 0
    %4015 = vmatprep.subr.bf16.mxu0 0
    %4016 = vmatpush2.bf16.msra.mxu0 0
    %4017 = vmatprep.subr.bf16.mxu0 0
    %4018 = vmatpush2.bf16.msra.mxu0 0
    %4019 = vmatprep.subr.bf16.mxu0 0
    %4020 = vmatpush2.bf16.msra.mxu0 0
    %4021 = vmatprep.subr.bf16.mxu0 0
    %4022 = vmatpush2.bf16.msra.mxu0 0
    %4023 = vmatprep.subr.bf16.mxu0 0
    %4024 = vmatpush2.bf16.msra.mxu0 0
    %4025 = vmatprep.mubr.bf16.mxu0 0
    %4026 = vmatmul.mubr.bf16.gmra.mxu0 %v3987
    %v4027 = vpop.f32.mrf.mxu0
    %v4028 = vadd.f32 %v3983, %v4027
    %v4029 = vpop.f32.mrf.mxu0
    %v4030 = vpop.f32.mrf.mxu0
    %v4031 = vpop.f32.mrf.mxu0
    %4032 = vdwg.mxu0
    %v4033 = vmax.f32 %v4028, 0.0
    %v4034 = vpack.c.bf16 %v4033, %v4033
    %v4035 = vld [vmem:[%s148] sm:$0xf]
    %v4036 = vld [vmem:[%s148 + $0x4] sm:$0xf]
    %v4037 = vld [vmem:[%s148 + $0x8] sm:$0xf]
    %v4038 = vld [vmem:[%s148 + $0xc] sm:$0xf]
    %v4039 = vld [vmem:[%s165] sm:$0x1]
    %v4041 = vlaneseq
    %v4042 = vshrl.u32 %v4041, 7
    %v4043 = vsub.s32 0, %v4042
    %v4044 = vrot.slane %v4039, %v4043
    %v4050 = vunpack.c.l.b16 %v4035
    %v4051 = vunpack.c.l.b16 %v4036
    %v4052 = vunpack.c.l.b16 %v4037
    %v4053 = vunpack.c.l.b16 %v4038
    %v4054 = vpack.c.b16 %v4051, %v4050
    %v4055 = vpack.c.b16 %v4053, %v4052
    %v4059 = vsel %vm3210, %v4034, 0
    %4061 = vmatprep.subr.bf16.mxu0 0
    %4062 = vmatpush1.bf16.msra.mxu0 0
    %4063 = vmatprep.subr.bf16.mxu0 0
    %4064 = vmatpush1.bf16.msra.mxu0 0
    %4065 = vmatprep.subr.bf16.mxu0 0
    %4066 = vmatpush1.bf16.msra.mxu0 0
    %4067 = vmatprep.subr.bf16.mxu0 0
    %4068 = vmatpush1.bf16.msra.mxu0 0
    %4069 = vmatprep.subr.bf16.mxu0 0
    %4070 = vmatpush1.bf16.msra.mxu0 0
    %4071 = vmatprep.subr.bf16.mxu0 0
    %4072 = vmatpush1.bf16.msra.mxu0 0
    %4073 = vmatprep.subr.bf16.mxu0 0
    %4074 = vmatpush1.bf16.msra.mxu0 %v4055
    %4075 = vmatprep.subr.bf16.mxu0 0
    %4076 = vmatpush1.bf16.msra.mxu0 %v4054
    %4077 = vmatprep.subr.bf16.mxu0 0
    %4078 = vmatpush2.bf16.msra.mxu0 0
    %4079 = vmatprep.subr.bf16.mxu0 0
    %4080 = vmatpush2.bf16.msra.mxu0 0
    %4081 = vmatprep.subr.bf16.mxu0 0
    %4082 = vmatpush2.bf16.msra.mxu0 0
    %4083 = vmatprep.subr.bf16.mxu0 0
    %4084 = vmatpush2.bf16.msra.mxu0 0
    %4085 = vmatprep.subr.bf16.mxu0 0
    %4086 = vmatpush2.bf16.msra.mxu0 0
    %4087 = vmatprep.subr.bf16.mxu0 0
    %4088 = vmatpush2.bf16.msra.mxu0 0
    %4089 = vmatprep.subr.bf16.mxu0 0
    %4090 = vmatpush2.bf16.msra.mxu0 0
    %4091 = vmatprep.subr.bf16.mxu0 0
    %4092 = vmatpush2.bf16.msra.mxu0 0
    %4093 = vmatprep.mubr.bf16.mxu0 0
    %4094 = vmatmul.mubr.bf16.gmra.mxu0 %v4059
    %v4095 = vpop.f32.mrf.mxu0
    %v4096 = vadd.f32 %v4044, %v4095
    %v4097 = vpop.f32.mrf.mxu0
    %v4098 = vpop.f32.mrf.mxu0
    %v4099 = vpop.f32.mrf.mxu0
    %4100 = vdwg.mxu0
    %v4101 = vmax.f32 %v4096, 0.0
    %v4102 = vpack.c.bf16 %v4101, %v4101
    %v4103 = vld [vmem:[%s155] sm:$0xff]
    %v4104 = vld [vmem:[%s155 + $0x8] sm:$0xff]
    %v4105 = vld [vmem:[%s155 + $0x10] sm:$0xff]
    %v4106 = vld [vmem:[%s155 + $0x18] sm:$0xf]
    %v4107 = vld [vmem:[%s155 + $0x1c] sm:$0xff]
    %v4108 = vld [vmem:[%s155 + $0x24] sm:$0xff]
    %v4109 = vld [vmem:[%s155 + $0x2c] sm:$0xff]
    %v4110 = vld [vmem:[%s155 + $0x34] sm:$0xf]
    %v4111 = vld [vmem:[%s155 + $0x38] sm:$0xff]
    %v4112 = vld [vmem:[%s155 + $0x40] sm:$0xff]
    %v4113 = vld [vmem:[%s155 + $0x48] sm:$0xff]
    %v4114 = vld [vmem:[%s155 + $0x50] sm:$0xf]
    %v4115 = vld [vmem:[%s155 + $0x54] sm:$0xff]
    %v4116 = vld [vmem:[%s155 + $0x5c] sm:$0xff]
    %v4117 = vld [vmem:[%s155 + $0x64] sm:$0xff]
    %v4118 = vld [vmem:[%s155 + $0x6c] sm:$0xf]
    %v4119 = vld [vmem:[%s171] sm:$0x7f]
    %v4121 = vlaneseq
    %v4122 = vshrl.u32 %v4121, 7
    %v4123 = vsub.s32 0, %v4122
    %v4124 = vrot.slane %v4119, %v4123
    %v4125 = vlaneseq
    %v4126 = vshrl.u32 %v4125, 7
    %v4127 = vsub.s32 1, %v4126
    %v4128 = vrot.slane %v4119, %v4127
    %v4129 = vlaneseq
    %v4130 = vshrl.u32 %v4129, 7
    %v4131 = vsub.s32 2, %v4130
    %v4132 = vrot.slane %v4119, %v4131
    %v4133 = vlaneseq
    %v4134 = vshrl.u32 %v4133, 7
    %v4135 = vsub.s32 3, %v4134
    %v4136 = vrot.slane %v4119, %v4135
    %v4137 = vlaneseq
    %v4138 = vshrl.u32 %v4137, 7
    %v4139 = vsub.s32 4, %v4138
    %v4140 = vrot.slane %v4119, %v4139
    %v4141 = vlaneseq
    %v4142 = vshrl.u32 %v4141, 7
    %v4143 = vsub.s32 5, %v4142
    %v4144 = vrot.slane %v4119, %v4143
    %v4145 = vlaneseq
    %v4146 = vshrl.u32 %v4145, 7
    %v4147 = vsub.s32 6, %v4146
    %v4148 = vrot.slane %v4119, %v4147
    %v4172 = vunpack.c.l.b16 %v4103
    %v4173 = vunpack.c.h.b16 %v4103
    %v4174 = vunpack.c.l.b16 %v4104
    %v4175 = vunpack.c.h.b16 %v4104
    %v4176 = vunpack.c.l.b16 %v4105
    %v4177 = vunpack.c.h.b16 %v4105
    %v4178 = vunpack.c.l.b16 %v4106
    %v4179 = vunpack.c.l.b16 %v4107
    %v4180 = vunpack.c.h.b16 %v4107
    %v4181 = vunpack.c.l.b16 %v4108
    %v4182 = vunpack.c.h.b16 %v4108
    %v4183 = vunpack.c.l.b16 %v4109
    %v4184 = vunpack.c.h.b16 %v4109
    %v4185 = vunpack.c.l.b16 %v4110
    %v4186 = vunpack.c.l.b16 %v4111
    %v4187 = vunpack.c.h.b16 %v4111
    %v4188 = vunpack.c.l.b16 %v4112
    %v4189 = vunpack.c.h.b16 %v4112
    %v4190 = vunpack.c.l.b16 %v4113
    %v4191 = vunpack.c.h.b16 %v4113
    %v4192 = vunpack.c.l.b16 %v4114
    %v4193 = vunpack.c.l.b16 %v4115
    %v4194 = vunpack.c.h.b16 %v4115
    %v4195 = vunpack.c.l.b16 %v4116
    %v4196 = vunpack.c.h.b16 %v4116
    %v4197 = vunpack.c.l.b16 %v4117
    %v4198 = vunpack.c.h.b16 %v4117
    %v4199 = vunpack.c.l.b16 %v4118
    %v4200 = vpack.c.b16 %v4179, %v4172
    %v4201 = vpack.c.b16 %v4180, %v4173
    %v4202 = vpack.c.b16 %v4181, %v4174
    %v4203 = vpack.c.b16 %v4182, %v4175
    %v4204 = vpack.c.b16 %v4183, %v4176
    %v4205 = vpack.c.b16 %v4184, %v4177
    %v4206 = vpack.c.b16 %v4185, %v4178
    %v4207 = vpack.c.b16 %v4193, %v4186
    %v4208 = vpack.c.b16 %v4194, %v4187
    %v4209 = vpack.c.b16 %v4195, %v4188
    %v4210 = vpack.c.b16 %v4196, %v4189
    %v4211 = vpack.c.b16 %v4197, %v4190
    %v4212 = vpack.c.b16 %v4198, %v4191
    %v4213 = vpack.c.b16 %v4199, %v4192
    %v4229 = vsel %vm3210, %v4102, 0
    %4231 = vmatprep.subr.bf16.mxu0 0
    %4232 = vmatpush1.bf16.msra.mxu0 0
    %4233 = vmatprep.subr.bf16.mxu0 0
    %4234 = vmatpush1.bf16.msra.mxu0 0
    %4235 = vmatprep.subr.bf16.mxu0 0
    %4236 = vmatpush1.bf16.msra.mxu0 0
    %4237 = vmatprep.subr.bf16.mxu0 0
    %4238 = vmatpush1.bf16.msra.mxu0 0
    %4239 = vmatprep.subr.bf16.mxu0 0
    %4240 = vmatpush1.bf16.msra.mxu0 0
    %4241 = vmatprep.subr.bf16.mxu0 0
    %4242 = vmatpush1.bf16.msra.mxu0 0
    %4243 = vmatprep.subr.bf16.mxu0 %v4208
    %4244 = vmatpush1.bf16.msra.mxu0 %v4207
    %4245 = vmatprep.subr.bf16.mxu0 %v4201
    %4246 = vmatpush1.bf16.msra.mxu0 %v4200
    %4247 = vmatprep.subr.bf16.mxu0 0
    %4248 = vmatpush2.bf16.msra.mxu0 0
    %4249 = vmatprep.subr.bf16.mxu0 0
    %4250 = vmatpush2.bf16.msra.mxu0 0
    %4251 = vmatprep.subr.bf16.mxu0 0
    %4252 = vmatpush2.bf16.msra.mxu0 0
    %4253 = vmatprep.subr.bf16.mxu0 0
    %4254 = vmatpush2.bf16.msra.mxu0 0
    %4255 = vmatprep.subr.bf16.mxu0 0
    %4256 = vmatpush2.bf16.msra.mxu0 0
    %4257 = vmatprep.subr.bf16.mxu0 0
    %4258 = vmatpush2.bf16.msra.mxu0 0
    %4259 = vmatprep.subr.bf16.mxu0 0
    %4260 = vmatpush2.bf16.msra.mxu0 0
    %4261 = vmatprep.subr.bf16.mxu0 0
    %4262 = vmatpush2.bf16.msra.mxu0 0
    %4263 = vmatprep.mubr.bf16.mxu0 0
    %4264 = vmatmul.mubr.bf16.gmra.mxu0 %v4229
    %v4265 = vpop.f32.mrf.mxu0
    %v4266 = vadd.f32 %v4124, %v4265
    %v4267 = vpop.f32.mrf.mxu0
    %v4268 = vadd.f32 %v4128, %v4267
    %v4269 = vpop.f32.mrf.mxu0
    %v4270 = vpop.f32.mrf.mxu0
    %4271 = vdwg.mxu0
    %4272 = vmatprep.subr.bf16.mxu0 0
    %4273 = vmatpush1.bf16.msra.mxu0 0
    %4274 = vmatprep.subr.bf16.mxu0 0
    %4275 = vmatpush1.bf16.msra.mxu0 0
    %4276 = vmatprep.subr.bf16.mxu0 0
    %4277 = vmatpush1.bf16.msra.mxu0 0
    %4278 = vmatprep.subr.bf16.mxu0 0
    %4279 = vmatpush1.bf16.msra.mxu0 0
    %4280 = vmatprep.subr.bf16.mxu0 0
    %4281 = vmatpush1.bf16.msra.mxu0 0
    %4282 = vmatprep.subr.bf16.mxu0 0
    %4283 = vmatpush1.bf16.msra.mxu0 0
    %4284 = vmatprep.subr.bf16.mxu0 %v4210
    %4285 = vmatpush1.bf16.msra.mxu0 %v4209
    %4286 = vmatprep.subr.bf16.mxu0 %v4203
    %4287 = vmatpush1.bf16.msra.mxu0 %v4202
    %4288 = vmatprep.subr.bf16.mxu0 0
    %4289 = vmatpush2.bf16.msra.mxu0 0
    %4290 = vmatprep.subr.bf16.mxu0 0
    %4291 = vmatpush2.bf16.msra.mxu0 0
    %4292 = vmatprep.subr.bf16.mxu0 0
    %4293 = vmatpush2.bf16.msra.mxu0 0
    %4294 = vmatprep.subr.bf16.mxu0 0
    %4295 = vmatpush2.bf16.msra.mxu0 0
    %4296 = vmatprep.subr.bf16.mxu0 0
    %4297 = vmatpush2.bf16.msra.mxu0 0
    %4298 = vmatprep.subr.bf16.mxu0 0
    %4299 = vmatpush2.bf16.msra.mxu0 0
    %4300 = vmatprep.subr.bf16.mxu0 0
    %4301 = vmatpush2.bf16.msra.mxu0 0
    %4302 = vmatprep.subr.bf16.mxu0 0
    %4303 = vmatpush2.bf16.msra.mxu0 0
    %4304 = vmatprep.mubr.bf16.mxu0 0
    %4305 = vmatmul.mubr.bf16.gmra.mxu0 %v4229
    %v4306 = vpop.f32.mrf.mxu0
    %v4307 = vadd.f32 %v4132, %v4306
    %v4308 = vpop.f32.mrf.mxu0
    %v4309 = vadd.f32 %v4136, %v4308
    %v4310 = vpop.f32.mrf.mxu0
    %v4311 = vpop.f32.mrf.mxu0
    %4312 = vdwg.mxu0
    %4313 = vmatprep.subr.bf16.mxu0 0
    %4314 = vmatpush1.bf16.msra.mxu0 0
    %4315 = vmatprep.subr.bf16.mxu0 0
    %4316 = vmatpush1.bf16.msra.mxu0 0
    %4317 = vmatprep.subr.bf16.mxu0 0
    %4318 = vmatpush1.bf16.msra.mxu0 0
    %4319 = vmatprep.subr.bf16.mxu0 0
    %4320 = vmatpush1.bf16.msra.mxu0 0
    %4321 = vmatprep.subr.bf16.mxu0 0
    %4322 = vmatpush1.bf16.msra.mxu0 0
    %4323 = vmatprep.subr.bf16.mxu0 0
    %4324 = vmatpush1.bf16.msra.mxu0 0
    %4325 = vmatprep.subr.bf16.mxu0 %v4212
    %4326 = vmatpush1.bf16.msra.mxu0 %v4211
    %4327 = vmatprep.subr.bf16.mxu0 %v4205
    %4328 = vmatpush1.bf16.msra.mxu0 %v4204
    %4329 = vmatprep.subr.bf16.mxu0 0
    %4330 = vmatpush2.bf16.msra.mxu0 0
    %4331 = vmatprep.subr.bf16.mxu0 0
    %4332 = vmatpush2.bf16.msra.mxu0 0
    %4333 = vmatprep.subr.bf16.mxu0 0
    %4334 = vmatpush2.bf16.msra.mxu0 0
    %4335 = vmatprep.subr.bf16.mxu0 0
    %4336 = vmatpush2.bf16.msra.mxu0 0
    %4337 = vmatprep.subr.bf16.mxu0 0
    %4338 = vmatpush2.bf16.msra.mxu0 0
    %4339 = vmatprep.subr.bf16.mxu0 0
    %4340 = vmatpush2.bf16.msra.mxu0 0
    %4341 = vmatprep.subr.bf16.mxu0 0
    %4342 = vmatpush2.bf16.msra.mxu0 0
    %4343 = vmatprep.subr.bf16.mxu0 0
    %4344 = vmatpush2.bf16.msra.mxu0 0
    %4345 = vmatprep.mubr.bf16.mxu0 0
    %4346 = vmatmul.mubr.bf16.gmra.mxu0 %v4229
    %v4347 = vpop.f32.mrf.mxu0
    %v4348 = vadd.f32 %v4140, %v4347
    %v4349 = vpop.f32.mrf.mxu0
    %v4350 = vadd.f32 %v4144, %v4349
    %v4351 = vpop.f32.mrf.mxu0
    %v4352 = vpop.f32.mrf.mxu0
    %4353 = vdwg.mxu0
    %4354 = vmatprep.subr.bf16.mxu0 0
    %4355 = vmatpush1.bf16.msra.mxu0 0
    %4356 = vmatprep.subr.bf16.mxu0 0
    %4357 = vmatpush1.bf16.msra.mxu0 0
    %4358 = vmatprep.subr.bf16.mxu0 0
    %4359 = vmatpush1.bf16.msra.mxu0 0
    %4360 = vmatprep.subr.bf16.mxu0 0
    %4361 = vmatpush1.bf16.msra.mxu0 0
    %4362 = vmatprep.subr.bf16.mxu0 0
    %4363 = vmatpush1.bf16.msra.mxu0 0
    %4364 = vmatprep.subr.bf16.mxu0 0
    %4365 = vmatpush1.bf16.msra.mxu0 0
    %4366 = vmatprep.subr.bf16.mxu0 0
    %4367 = vmatpush1.bf16.msra.mxu0 %v4213
    %4368 = vmatprep.subr.bf16.mxu0 0
    %4369 = vmatpush1.bf16.msra.mxu0 %v4206
    %4370 = vmatprep.subr.bf16.mxu0 0
    %4371 = vmatpush2.bf16.msra.mxu0 0
    %4372 = vmatprep.subr.bf16.mxu0 0
    %4373 = vmatpush2.bf16.msra.mxu0 0
    %4374 = vmatprep.subr.bf16.mxu0 0
    %4375 = vmatpush2.bf16.msra.mxu0 0
    %4376 = vmatprep.subr.bf16.mxu0 0
    %4377 = vmatpush2.bf16.msra.mxu0 0
    %4378 = vmatprep.subr.bf16.mxu0 0
    %4379 = vmatpush2.bf16.msra.mxu0 0
    %4380 = vmatprep.subr.bf16.mxu0 0
    %4381 = vmatpush2.bf16.msra.mxu0 0
    %4382 = vmatprep.subr.bf16.mxu0 0
    %4383 = vmatpush2.bf16.msra.mxu0 0
    %4384 = vmatprep.subr.bf16.mxu0 0
    %4385 = vmatpush2.bf16.msra.mxu0 0
    %4386 = vmatprep.mubr.bf16.mxu0 0
    %4387 = vmatmul.mubr.bf16.gmra.mxu0 %v4229
    %v4388 = vpop.f32.mrf.mxu0
    %v4389 = vadd.f32 %v4148, %v4388
    %v4390 = vpop.f32.mrf.mxu0
    %v4391 = vpop.f32.mrf.mxu0
    %v4392 = vpop.f32.mrf.mxu0
    %4393 = vdwg.mxu0
    %v4394 = vmul.f32 %v4266, 0.5
    %v4395 = vmul.f32 %v4268, 0.5
    %v4396 = vmul.f32 %v4307, 0.5
    %v4397 = vmul.f32 %v4309, 0.5
    %v4398 = vmul.f32 %v4348, 0.5
    %v4399 = vmul.f32 %v4350, 0.5
    %v4400 = vmul.f32 %v4389, 0.5
    %v4401 = vtanh.pop %v4394
    %v4402 = vtanh.pop %v4395
    %v4403 = vtanh.pop %v4396
    %v4404 = vtanh.pop %v4397
    %v4405 = vtanh.pop %v4398
    %v4406 = vtanh.pop %v4399
    %v4407 = vtanh.pop %v4400
    %v4408 = vmul.f32 %v4401, 0.5
    %v4409 = vmul.f32 %v4402, 0.5
    %v4410 = vmul.f32 %v4403, 0.5
    %v4411 = vmul.f32 %v4404, 0.5
    %v4412 = vmul.f32 %v4405, 0.5
    %v4413 = vmul.f32 %v4406, 0.5
    %v4414 = vmul.f32 %v4407, 0.5
    %v4415 = vadd.f32 %v4408, 0.5
    %v4416 = vadd.f32 %v4409, 0.5
    %v4417 = vadd.f32 %v4410, 0.5
    %v4418 = vadd.f32 %v4411, 0.5
    %v4419 = vadd.f32 %v4412, 0.5
    %v4420 = vadd.f32 %v4413, 0.5
    %v4421 = vadd.f32 %v4414, 0.5
    %v4429 = vcombine.low %v4415, %v4416
    %v4430 = vcombine.low %v4417, %v4418
    %v4432 = vunpack.c.l.s4 1983009808
    %v4433 = vunpack.c.0.s8 %v4432
    %v4434 = vlaneseq
    %v4435 = vshrl.u32 %v4434, 7
    %v4436 = vsub.s32 %v4433, %v4435
    %v4437 = vrot.slane %v4429, %v4436
    %v4439 = vunpack.c.l.s4 1983009808
    %v4440 = vunpack.c.0.s8 %v4439
    %v4441 = vlaneseq
    %v4442 = vshrl.u32 %v4441, 7
    %v4443 = vsub.s32 %v4440, %v4442
    %v4444 = vrot.slane %v4430, %v4443
    %v4445 = vcombine.low %v4437, %v4444
    %v4446 = vcombine.low %v4419, %v4420
    %v4448 = vunpack.c.l.s4 1983009808
    %v4449 = vunpack.c.0.s8 %v4448
    %v4450 = vlaneseq
    %v4451 = vshrl.u32 %v4450, 7
    %v4452 = vsub.s32 %v4449, %v4451
    %v4453 = vrot.slane %v4446, %v4452
    %v4455 = vunpack.c.l.s4 1983009808
    %v4456 = vunpack.c.0.s8 %v4455
    %v4457 = vlaneseq
    %v4458 = vshrl.u32 %v4457, 7
    %v4459 = vsub.s32 %v4456, %v4458
    %v4460 = vrot.slane %v4421, %v4459
    %v4461 = vcombine.low %v4453, %v4460
    %4464 = vst [vmem:[#allocation4] sm:$0xff] %v4445
    %vm4465 = vcmask 1041408
    %vm4466 = vcmask 1043458
    %vm4467 = vmor %vm4466, %vm4465
    %vm4468 = vcmask 128004
    %vm4469 = vmor %vm4468, %vm4467
    %4470 = vst.msk [vmem:[#allocation4 + $0x8] sm:$0x3f] %vm4469, %v4461
    %vm4471 = vcmask 58368
    %4472 = vst.msk [vmem:[#allocation6] sm:$0x3] %vm4471, %v3975
    %4473 = vst.msk [vmem:[#allocation8] sm:$0x3] %vm4471, %v3961
    %4475 = vrot.lane.b32.xlu0 %v3961, 120
    %v4476 = vpop.permute.xlu0 %4475
    %4478 = vst.msk [vmem:[#allocation9] sm:$0x3] %vm4471, %v4476
    // Predicated region
    $region78: #{meta_vae_forward.1} parent=1 // pred_check
      _
    $region79: #{meta_vae_forward.1} parent=1 // pred_check_branch
      %4480 = sbr.rel (0) target = $region81
    $region80: #{meta_vae_forward.1} parent=1 // pred_region
      %s4482 = ssub.s32 224, 224
      %4483 = vsyncadd [#allocation5], %s4482
      %s4485 = sshll.u32 [#allocation4], 4
      %s4486 = int_to_ptr.vmem [resolvable:$true] %s4485
      %4488 = dma.vmem_to_hbm [thread:$0]  %s4486, 224, %s20, [#allocation5]
    $region81: #{meta_vae_forward.1} parent=1 // pred_fallthru
      _
    // Predicated region
    $region82: #{meta_vae_forward.1} parent=1 // pred_check
      _
    $region83: #{meta_vae_forward.1} parent=1 // pred_check_branch
      %4490 = sbr.rel (0) target = $region85
    $region84: #{meta_vae_forward.1} parent=1 // pred_region
      %s4492 = ssub.s32 32, 32
      %4493 = vsyncadd [#allocation7], %s4492
      %s4495 = sshll.u32 [#allocation6], 4
      %s4496 = int_to_ptr.vmem [resolvable:$true] %s4495
      %4498 = dma.vmem_to_hbm [thread:$0]  %s4496, 32, %s21, [#allocation7]
    $region85: #{meta_vae_forward.1} parent=1 // pred_fallthru
      _
    // Predicated region
    $region86: #{meta_vae_forward.1} parent=1 // pred_check
      _
    $region87: #{meta_vae_forward.1} parent=1 // pred_check_branch
      %4500 = sbr.rel (0) target = $region89
    $region88: #{meta_vae_forward.1} parent=1 // pred_region
      %s4502 = ssub.s32 32, 32
      %4503 = vsyncadd [#allocation7], %s4502
      %s4505 = sshll.u32 [#allocation8], 4
      %s4506 = int_to_ptr.vmem [resolvable:$true] %s4505
      %4508 = dma.vmem_to_hbm [thread:$0]  %s4506, 32, %s22, [#allocation7]
    $region89: #{meta_vae_forward.1} parent=1 // pred_fallthru
      _
    // Predicated region
    $region90: #{meta_vae_forward.1} parent=1 // pred_check
      _
    $region91: #{meta_vae_forward.1} parent=1 // pred_check_branch
      %4510 = sbr.rel (0) target = $region93
    $region92: #{meta_vae_forward.1} parent=1 // pred_region
      %s4512 = ssub.s32 32, 32
      %4513 = vsyncadd [#allocation10], %s4512
      %s4515 = sshll.u32 [#allocation9], 4
      %s4516 = int_to_ptr.vmem [resolvable:$true] %s4515
      %4518 = dma.vmem_to_hbm [thread:$0]  %s4516, 32, %s23, [#allocation10]
    $region93: #{meta_vae_forward.1} parent=1 // pred_fallthru
      _
    // Predicated region
    $region94: #{meta_vae_forward.1} parent=1 // pred_check
      _
    $region95: #{meta_vae_forward.1} parent=1 // pred_check_branch
      %4520 = sbr.rel (0) target = $region97
    $region96: #{meta_vae_forward.1} parent=1 // pred_region
      %4521 = dma.done [#allocation5], 224
    $region97: #{meta_vae_forward.1} parent=1 // pred_fallthru
      _
    // Predicated region
    $region98: #{meta_vae_forward.1} parent=1 // pred_check
      _
    $region99: #{meta_vae_forward.1} parent=1 // pred_check_branch
      %4523 = sbr.rel (0) target = $region101
    $region100: #{meta_vae_forward.1} parent=1 // pred_region
      %4524 = dma.done [#allocation7], 32
    $region101: #{meta_vae_forward.1} parent=1 // pred_fallthru
      _
    // Predicated region
    $region102: #{meta_vae_forward.1} parent=1 // pred_check
      _
    $region103: #{meta_vae_forward.1} parent=1 // pred_check_branch
      %4526 = sbr.rel (0) target = $region105
    $region104: #{meta_vae_forward.1} parent=1 // pred_region
      %4527 = dma.done [#allocation7], 32
    $region105: #{meta_vae_forward.1} parent=1 // pred_fallthru
      _
    // Predicated region
    $region106: #{meta_vae_forward.1} parent=1 // pred_check
      _
    $region107: #{meta_vae_forward.1} parent=1 // pred_check_branch
      %4529 = sbr.rel (0) target = $region109
    $region108: #{meta_vae_forward.1} parent=1 // pred_region
      %4530 = dma.done [#allocation10], 32
    $region109: #{meta_vae_forward.1} parent=1 // pred_fallthru
      _
    %4531 = vsyncpa [#allocation5], 1
    %4532 = vsyncpa [#allocation7], 1
    %4533 = vsyncpa [#allocation10], 1

</llo_original>
